<compile_context>
chip_gen: v6e
topology: v6e:2x2x1
jax: 0.10.0
libtpu: 0.0.40
codegen_flags: <defaults>
</compile_context>

<pallas_src>
import functools

import jax
import jax.numpy as jnp
from jax.experimental import pallas as pl
from jax.experimental.pallas import tpu as pltpu

EPS = 1e-5


def _inception_conv_bn_relu_kernel(x_ref, w_ref, b_ref, o_ref, *, H, W):
    """All three conv branches + folded BN + ReLU + channel concat, one image.

    x_ref: (1, H+6, W+6, Cin)   zero-padded NHWC input (pad = 3)
    w_ref: (KMAX, KMAX*Cin, Cout) combined folded weights, feature = (kw, cin)
    b_ref: (1, Cout)            combined folded bias
    o_ref: (1, H, W, Cout)      output (branches concatenated along channels)
    """
    Cin = x_ref.shape[-1]
    Cout = o_ref.shape[-1]
    KMAX = w_ref.shape[0]

    acc = jnp.zeros((H * W, Cout), jnp.float32)
    for kh in range(KMAX):
        # Hoist the per-row slab once and reuse it for all kw taps.
        row = x_ref[0, kh:kh + H, :, :]                         # (H, W+6, Cin)
        taps = [row[:, kw:kw + W, :] for kw in range(KMAX)]     # KMAX x (H,W,Cin)
        patch = jnp.concatenate(taps, axis=-1)                  # (H, W, KMAX*Cin)
        patch = patch.reshape(H * W, KMAX * Cin)                # K = KMAX*Cin = 21
        acc = acc + jnp.dot(patch, w_ref[kh],
                            preferred_element_type=jnp.float32)

    out = jnp.maximum(acc + b_ref[0], 0.0)                      # bias + ReLU
    o_ref[...] = out.reshape(1, H, W, Cout)


def mul_forward(img_nchw, w_comb, bias):
    """Forward pass of `mul`.  img_nchw: (N, 3, H, W) -> (N, 64, H, W)."""
    N, Cin, H, W = img_nchw.shape
    KMAX = w_comb.shape[0]
    Cout = w_comb.shape[-1]
    R = (KMAX - 1) // 2                                         # = 3

    x = jnp.transpose(img_nchw, (0, 2, 3, 1))                   # NCHW -> NHWC
    xp = jnp.pad(x, ((0, 0), (R, R), (R, R), (0, 0)))           # single tiny pad
    Hp, Wp = H + 2 * R, W + 2 * R

    kernel = functools.partial(_inception_conv_bn_relu_kernel, H=H, W=W)

    out_nhwc = pl.pallas_call(
        kernel,
        out_shape=jax.ShapeDtypeStruct((N, H, W, Cout), jnp.float32),
        grid=(N,),
        in_specs=[
            pl.BlockSpec((1, Hp, Wp, Cin), lambda n: (n, 0, 0, 0)),
            pl.BlockSpec((KMAX, KMAX * Cin, Cout), lambda n: (0, 0, 0)),
            pl.BlockSpec((1, Cout), lambda n: (0, 0)),
        ],
        out_specs=pl.BlockSpec((1, H, W, Cout), lambda n: (n, 0, 0, 0)),
        compiler_params=pltpu.CompilerParams(
            dimension_semantics=("parallel",)),
    )(xp, w_comb, bias)

    return jnp.transpose(out_nhwc, (0, 3, 1, 2))                # NHWC -> NCHW


def init_params(key):
    """Deterministic params mirroring the module: 3 (conv, BN) branches."""
    specs = [(3, 24), (5, 20), (7, 20)]                         # (kernel, cout)
    cin = 3
    branches = []
    for k, cout in specs:
        key, kw_, kb_, kg_, kbe_, km_ = jax.random.split(key, 6)
        bound = (1.0 / (cin * k * k)) ** 0.5
        w = jax.random.uniform(kw_, (k, k, cin, cout), jnp.float32, -bound, bound)
        b = jax.random.uniform(kb_, (cout,), jnp.float32, -bound, bound)
        gamma = 1.0 + 0.1 * jax.random.normal(kg_, (cout,), jnp.float32)
        beta = 0.1 * jax.random.normal(kbe_, (cout,), jnp.float32)
        mean = 0.1 * jax.random.normal(km_, (cout,), jnp.float32)
        var = jnp.ones((cout,), jnp.float32)
        branches.append((k, w, b, gamma, beta, mean, var))
    return branches


def fold_params(branches):
    """Embed the 3 branches into one (KMAX, KMAX*Cin, Cout_total) weight + bias.

    BN (eval mode) is folded: w' = w * gamma/sqrt(var+eps),
    bias' = beta + (conv_bias - mean) * gamma/sqrt(var+eps).
    The branch channel ranges [0:24], [24:44], [44:64] realize the concat.
    """
    kmax = max(k for (k, *_rest) in branches)
    cin = branches[0][1].shape[2]
    cout_total = sum(w.shape[-1] for (_, w, *_r) in branches)

    w_all = jnp.zeros((kmax, kmax, cin, cout_total), jnp.float32)
    b_all = jnp.zeros((cout_total,), jnp.float32)
    off = 0
    for (k, w, b, gamma, beta, mean, var) in branches:
        cout = w.shape[-1]
        scale = gamma / jnp.sqrt(var + EPS)
        pad = (kmax - k) // 2
        w_all = w_all.at[pad:pad + k, pad:pad + k, :, off:off + cout].set(w * scale)
        b_all = b_all.at[off:off + cout].set(beta + (b - mean) * scale)
        off += cout
    return w_all.reshape(kmax, kmax * cin, cout_total), b_all.reshape(1, cout_total)


def reference_forward(img_nchw, branches):
    """Pure-JAX (XLA) reference of the PyTorch module in eval mode."""
    outs = []
    for (k, w, b, gamma, beta, mean, var) in branches:
        y = jax.lax.conv_general_dilated(
            img_nchw, w, window_strides=(1, 1), padding="SAME",
            dimension_numbers=("NCHW", "HWIO", "NCHW"))
        y = y + b[None, :, None, None]
        scale = gamma / jnp.sqrt(var + EPS)
        y = (y - mean[None, :, None, None]) * scale[None, :, None, None] \
            + beta[None, :, None, None]
        outs.append(jnp.maximum(y, 0.0))
    return jnp.concatenate(outs, axis=1)


if __name__ == "__main__":
    key = jax.random.PRNGKey(0)
    k_param, k_in = jax.random.split(key)

    branches = init_params(k_param)
    w_comb, bias = fold_params(branches)

    # Input: batch=2, channels=3 (required by the convs), spatial=16x16.
    img = jax.random.normal(k_in, (2, 3, 16, 16), jnp.float32)

    fwd = jax.jit(mul_forward)
    out = fwd(img, w_comb, bias)
    out = jax.block_until_ready(out)

    assert out.shape == (2, 64, 16, 16), out.shape
    assert out.dtype == jnp.float32

    # Numerical check against a pure-JAX reference of the same (eval-mode) math.
    ref = jax.block_until_ready(reference_forward(img, branches))
    max_err = float(jnp.max(jnp.abs(out - ref)))
    assert max_err < 2e-3, f"max abs error {max_err}"

    print("KERNEL_OK")
</pallas_src>

<mosaic_0001>
module attributes {stable_mosaic.version = 11 : i64} {
  func.func @_inception_conv_bn_relu_kernel(%arg0: i32, %arg1: memref<1x22x22x3xf32, #tpu.memory_space<vmem>>, %arg2: memref<7x21x64xf32, #tpu.memory_space<vmem>>, %arg3: memref<1x64xf32, #tpu.memory_space<vmem>>, %arg4: memref<1x16x16x64xf32, #tpu.memory_space<vmem>>) attributes {dimension_semantics = [#tpu.dimension_semantics<parallel>], iteration_bounds = array<i64: 2>, scalar_prefetch = 0 : i64, scratch_operands = 0 : i64, tpu.core_type = #tpu.core_type<tc>, window_params = [{transform_indices = @transform_0, window_bounds = array<i64: 1, 22, 22, 3>}, {pipeline_mode = #tpu.pipeline_mode<synchronous>, transform_indices = @transform_1, window_bounds = array<i64: 7, 21, 64>}, {pipeline_mode = #tpu.pipeline_mode<synchronous>, transform_indices = @transform_2, window_bounds = array<i64: 1, 64>}, {transform_indices = @transform_3, window_bounds = array<i64: 1, 16, 16, 64>}]} {
    %cst = arith.constant 0.000000e+00 : f32
    %0 = vector.broadcast %cst : f32 to vector<256x64xf32>
    %c0 = arith.constant 0 : index
    %c0_0 = arith.constant 0 : index
    %c0_1 = arith.constant 0 : index
    %c0_2 = arith.constant 0 : index
    %1 = vector.load %arg1[%c0, %c0_0, %c0_1, %c0_2] : memref<1x22x22x3xf32, #tpu.memory_space<vmem>>, vector<1x16x22x3xf32>
    %2 = vector.shape_cast %1 : vector<1x16x22x3xf32> to vector<16x22x3xf32>
    %3 = vector.extract_strided_slice %2 {offsets = [0, 0, 0], sizes = [16, 16, 3], strides = [1, 1, 1]} : vector<16x22x3xf32> to vector<16x16x3xf32>
    %4 = vector.extract_strided_slice %2 {offsets = [0, 1, 0], sizes = [16, 16, 3], strides = [1, 1, 1]} : vector<16x22x3xf32> to vector<16x16x3xf32>
    %5 = vector.extract_strided_slice %2 {offsets = [0, 2, 0], sizes = [16, 16, 3], strides = [1, 1, 1]} : vector<16x22x3xf32> to vector<16x16x3xf32>
    %6 = vector.extract_strided_slice %2 {offsets = [0, 3, 0], sizes = [16, 16, 3], strides = [1, 1, 1]} : vector<16x22x3xf32> to vector<16x16x3xf32>
    %7 = vector.extract_strided_slice %2 {offsets = [0, 4, 0], sizes = [16, 16, 3], strides = [1, 1, 1]} : vector<16x22x3xf32> to vector<16x16x3xf32>
    %8 = vector.extract_strided_slice %2 {offsets = [0, 5, 0], sizes = [16, 16, 3], strides = [1, 1, 1]} : vector<16x22x3xf32> to vector<16x16x3xf32>
    %9 = vector.extract_strided_slice %2 {offsets = [0, 6, 0], sizes = [16, 16, 3], strides = [1, 1, 1]} : vector<16x22x3xf32> to vector<16x16x3xf32>
    %10 = tpu.concatenate %3, %4, %5, %6, %7, %8, %9 in 2 : vector<16x16x3xf32>, vector<16x16x3xf32>, vector<16x16x3xf32>, vector<16x16x3xf32>, vector<16x16x3xf32>, vector<16x16x3xf32>, vector<16x16x3xf32> -> vector<16x16x21xf32>
    %11 = vector.shape_cast %10 : vector<16x16x21xf32> to vector<256x21xf32>
    %c0_3 = arith.constant 0 : index
    %c0_4 = arith.constant 0 : index
    %c0_5 = arith.constant 0 : index
    %12 = vector.load %arg2[%c0_3, %c0_4, %c0_5] : memref<7x21x64xf32, #tpu.memory_space<vmem>>, vector<1x21x64xf32>
    %13 = vector.shape_cast %12 : vector<1x21x64xf32> to vector<21x64xf32>
    %cst_6 = arith.constant dense<0.000000e+00> : vector<256x64xf32>
    %14 = tpu.matmul %11, %13, %cst_6 {dimension_numbers = #tpu.dot_dimension_numbers<[1], [0], [0], [1], [0, 0, 1, 1], [], []>} : vector<256x21xf32>, vector<21x64xf32>, vector<256x64xf32> -> vector<256x64xf32>
    %15 = arith.addf %0, %14 : vector<256x64xf32>
    %c0_7 = arith.constant 0 : index
    %c1 = arith.constant 1 : index
    %c0_8 = arith.constant 0 : index
    %c0_9 = arith.constant 0 : index
    %16 = vector.load %arg1[%c0_7, %c1, %c0_8, %c0_9] : memref<1x22x22x3xf32, #tpu.memory_space<vmem>>, vector<1x16x22x3xf32>
    %17 = vector.shape_cast %16 : vector<1x16x22x3xf32> to vector<16x22x3xf32>
    %18 = vector.extract_strided_slice %17 {offsets = [0, 0, 0], sizes = [16, 16, 3], strides = [1, 1, 1]} : vector<16x22x3xf32> to vector<16x16x3xf32>
    %19 = vector.extract_strided_slice %17 {offsets = [0, 1, 0], sizes = [16, 16, 3], strides = [1, 1, 1]} : vector<16x22x3xf32> to vector<16x16x3xf32>
    %20 = vector.extract_strided_slice %17 {offsets = [0, 2, 0], sizes = [16, 16, 3], strides = [1, 1, 1]} : vector<16x22x3xf32> to vector<16x16x3xf32>
    %21 = vector.extract_strided_slice %17 {offsets = [0, 3, 0], sizes = [16, 16, 3], strides = [1, 1, 1]} : vector<16x22x3xf32> to vector<16x16x3xf32>
    %22 = vector.extract_strided_slice %17 {offsets = [0, 4, 0], sizes = [16, 16, 3], strides = [1, 1, 1]} : vector<16x22x3xf32> to vector<16x16x3xf32>
    %23 = vector.extract_strided_slice %17 {offsets = [0, 5, 0], sizes = [16, 16, 3], strides = [1, 1, 1]} : vector<16x22x3xf32> to vector<16x16x3xf32>
    %24 = vector.extract_strided_slice %17 {offsets = [0, 6, 0], sizes = [16, 16, 3], strides = [1, 1, 1]} : vector<16x22x3xf32> to vector<16x16x3xf32>
    %25 = tpu.concatenate %18, %19, %20, %21, %22, %23, %24 in 2 : vector<16x16x3xf32>, vector<16x16x3xf32>, vector<16x16x3xf32>, vector<16x16x3xf32>, vector<16x16x3xf32>, vector<16x16x3xf32>, vector<16x16x3xf32> -> vector<16x16x21xf32>
    %26 = vector.shape_cast %25 : vector<16x16x21xf32> to vector<256x21xf32>
    %c1_10 = arith.constant 1 : index
    %c0_11 = arith.constant 0 : index
    %c0_12 = arith.constant 0 : index
    %27 = vector.load %arg2[%c1_10, %c0_11, %c0_12] : memref<7x21x64xf32, #tpu.memory_space<vmem>>, vector<1x21x64xf32>
    %28 = vector.shape_cast %27 : vector<1x21x64xf32> to vector<21x64xf32>
    %cst_13 = arith.constant dense<0.000000e+00> : vector<256x64xf32>
    %29 = tpu.matmul %26, %28, %cst_13 {dimension_numbers = #tpu.dot_dimension_numbers<[1], [0], [0], [1], [0, 0, 1, 1], [], []>} : vector<256x21xf32>, vector<21x64xf32>, vector<256x64xf32> -> vector<256x64xf32>
    %30 = arith.addf %15, %29 : vector<256x64xf32>
    %c0_14 = arith.constant 0 : index
    %c2 = arith.constant 2 : index
    %c0_15 = arith.constant 0 : index
    %c0_16 = arith.constant 0 : index
    %31 = vector.load %arg1[%c0_14, %c2, %c0_15, %c0_16] : memref<1x22x22x3xf32, #tpu.memory_space<vmem>>, vector<1x16x22x3xf32>
    %32 = vector.shape_cast %31 : vector<1x16x22x3xf32> to vector<16x22x3xf32>
    %33 = vector.extract_strided_slice %32 {offsets = [0, 0, 0], sizes = [16, 16, 3], strides = [1, 1, 1]} : vector<16x22x3xf32> to vector<16x16x3xf32>
    %34 = vector.extract_strided_slice %32 {offsets = [0, 1, 0], sizes = [16, 16, 3], strides = [1, 1, 1]} : vector<16x22x3xf32> to vector<16x16x3xf32>
    %35 = vector.extract_strided_slice %32 {offsets = [0, 2, 0], sizes = [16, 16, 3], strides = [1, 1, 1]} : vector<16x22x3xf32> to vector<16x16x3xf32>
    %36 = vector.extract_strided_slice %32 {offsets = [0, 3, 0], sizes = [16, 16, 3], strides = [1, 1, 1]} : vector<16x22x3xf32> to vector<16x16x3xf32>
    %37 = vector.extract_strided_slice %32 {offsets = [0, 4, 0], sizes = [16, 16, 3], strides = [1, 1, 1]} : vector<16x22x3xf32> to vector<16x16x3xf32>
    %38 = vector.extract_strided_slice %32 {offsets = [0, 5, 0], sizes = [16, 16, 3], strides = [1, 1, 1]} : vector<16x22x3xf32> to vector<16x16x3xf32>
    %39 = vector.extract_strided_slice %32 {offsets = [0, 6, 0], sizes = [16, 16, 3], strides = [1, 1, 1]} : vector<16x22x3xf32> to vector<16x16x3xf32>
    %40 = tpu.concatenate %33, %34, %35, %36, %37, %38, %39 in 2 : vector<16x16x3xf32>, vector<16x16x3xf32>, vector<16x16x3xf32>, vector<16x16x3xf32>, vector<16x16x3xf32>, vector<16x16x3xf32>, vector<16x16x3xf32> -> vector<16x16x21xf32>
    %41 = vector.shape_cast %40 : vector<16x16x21xf32> to vector<256x21xf32>
    %c2_17 = arith.constant 2 : index
    %c0_18 = arith.constant 0 : index
    %c0_19 = arith.constant 0 : index
    %42 = vector.load %arg2[%c2_17, %c0_18, %c0_19] : memref<7x21x64xf32, #tpu.memory_space<vmem>>, vector<1x21x64xf32>
    %43 = vector.shape_cast %42 : vector<1x21x64xf32> to vector<21x64xf32>
    %cst_20 = arith.constant dense<0.000000e+00> : vector<256x64xf32>
    %44 = tpu.matmul %41, %43, %cst_20 {dimension_numbers = #tpu.dot_dimension_numbers<[1], [0], [0], [1], [0, 0, 1, 1], [], []>} : vector<256x21xf32>, vector<21x64xf32>, vector<256x64xf32> -> vector<256x64xf32>
    %45 = arith.addf %30, %44 : vector<256x64xf32>
    %c0_21 = arith.constant 0 : index
    %c3 = arith.constant 3 : index
    %c0_22 = arith.constant 0 : index
    %c0_23 = arith.constant 0 : index
    %46 = vector.load %arg1[%c0_21, %c3, %c0_22, %c0_23] : memref<1x22x22x3xf32, #tpu.memory_space<vmem>>, vector<1x16x22x3xf32>
    %47 = vector.shape_cast %46 : vector<1x16x22x3xf32> to vector<16x22x3xf32>
    %48 = vector.extract_strided_slice %47 {offsets = [0, 0, 0], sizes = [16, 16, 3], strides = [1, 1, 1]} : vector<16x22x3xf32> to vector<16x16x3xf32>
    %49 = vector.extract_strided_slice %47 {offsets = [0, 1, 0], sizes = [16, 16, 3], strides = [1, 1, 1]} : vector<16x22x3xf32> to vector<16x16x3xf32>
    %50 = vector.extract_strided_slice %47 {offsets = [0, 2, 0], sizes = [16, 16, 3], strides = [1, 1, 1]} : vector<16x22x3xf32> to vector<16x16x3xf32>
    %51 = vector.extract_strided_slice %47 {offsets = [0, 3, 0], sizes = [16, 16, 3], strides = [1, 1, 1]} : vector<16x22x3xf32> to vector<16x16x3xf32>
    %52 = vector.extract_strided_slice %47 {offsets = [0, 4, 0], sizes = [16, 16, 3], strides = [1, 1, 1]} : vector<16x22x3xf32> to vector<16x16x3xf32>
    %53 = vector.extract_strided_slice %47 {offsets = [0, 5, 0], sizes = [16, 16, 3], strides = [1, 1, 1]} : vector<16x22x3xf32> to vector<16x16x3xf32>
    %54 = vector.extract_strided_slice %47 {offsets = [0, 6, 0], sizes = [16, 16, 3], strides = [1, 1, 1]} : vector<16x22x3xf32> to vector<16x16x3xf32>
    %55 = tpu.concatenate %48, %49, %50, %51, %52, %53, %54 in 2 : vector<16x16x3xf32>, vector<16x16x3xf32>, vector<16x16x3xf32>, vector<16x16x3xf32>, vector<16x16x3xf32>, vector<16x16x3xf32>, vector<16x16x3xf32> -> vector<16x16x21xf32>
    %56 = vector.shape_cast %55 : vector<16x16x21xf32> to vector<256x21xf32>
    %c3_24 = arith.constant 3 : index
    %c0_25 = arith.constant 0 : index
    %c0_26 = arith.constant 0 : index
    %57 = vector.load %arg2[%c3_24, %c0_25, %c0_26] : memref<7x21x64xf32, #tpu.memory_space<vmem>>, vector<1x21x64xf32>
    %58 = vector.shape_cast %57 : vector<1x21x64xf32> to vector<21x64xf32>
    %cst_27 = arith.constant dense<0.000000e+00> : vector<256x64xf32>
    %59 = tpu.matmul %56, %58, %cst_27 {dimension_numbers = #tpu.dot_dimension_numbers<[1], [0], [0], [1], [0, 0, 1, 1], [], []>} : vector<256x21xf32>, vector<21x64xf32>, vector<256x64xf32> -> vector<256x64xf32>
    %60 = arith.addf %45, %59 : vector<256x64xf32>
    %c0_28 = arith.constant 0 : index
    %c4 = arith.constant 4 : index
    %c0_29 = arith.constant 0 : index
    %c0_30 = arith.constant 0 : index
    %61 = vector.load %arg1[%c0_28, %c4, %c0_29, %c0_30] : memref<1x22x22x3xf32, #tpu.memory_space<vmem>>, vector<1x16x22x3xf32>
    %62 = vector.shape_cast %61 : vector<1x16x22x3xf32> to vector<16x22x3xf32>
    %63 = vector.extract_strided_slice %62 {offsets = [0, 0, 0], sizes = [16, 16, 3], strides = [1, 1, 1]} : vector<16x22x3xf32> to vector<16x16x3xf32>
    %64 = vector.extract_strided_slice %62 {offsets = [0, 1, 0], sizes = [16, 16, 3], strides = [1, 1, 1]} : vector<16x22x3xf32> to vector<16x16x3xf32>
    %65 = vector.extract_strided_slice %62 {offsets = [0, 2, 0], sizes = [16, 16, 3], strides = [1, 1, 1]} : vector<16x22x3xf32> to vector<16x16x3xf32>
    %66 = vector.extract_strided_slice %62 {offsets = [0, 3, 0], sizes = [16, 16, 3], strides = [1, 1, 1]} : vector<16x22x3xf32> to vector<16x16x3xf32>
    %67 = vector.extract_strided_slice %62 {offsets = [0, 4, 0], sizes = [16, 16, 3], strides = [1, 1, 1]} : vector<16x22x3xf32> to vector<16x16x3xf32>
    %68 = vector.extract_strided_slice %62 {offsets = [0, 5, 0], sizes = [16, 16, 3], strides = [1, 1, 1]} : vector<16x22x3xf32> to vector<16x16x3xf32>
    %69 = vector.extract_strided_slice %62 {offsets = [0, 6, 0], sizes = [16, 16, 3], strides = [1, 1, 1]} : vector<16x22x3xf32> to vector<16x16x3xf32>
    %70 = tpu.concatenate %63, %64, %65, %66, %67, %68, %69 in 2 : vector<16x16x3xf32>, vector<16x16x3xf32>, vector<16x16x3xf32>, vector<16x16x3xf32>, vector<16x16x3xf32>, vector<16x16x3xf32>, vector<16x16x3xf32> -> vector<16x16x21xf32>
    %71 = vector.shape_cast %70 : vector<16x16x21xf32> to vector<256x21xf32>
    %c4_31 = arith.constant 4 : index
    %c0_32 = arith.constant 0 : index
    %c0_33 = arith.constant 0 : index
    %72 = vector.load %arg2[%c4_31, %c0_32, %c0_33] : memref<7x21x64xf32, #tpu.memory_space<vmem>>, vector<1x21x64xf32>
    %73 = vector.shape_cast %72 : vector<1x21x64xf32> to vector<21x64xf32>
    %cst_34 = arith.constant dense<0.000000e+00> : vector<256x64xf32>
    %74 = tpu.matmul %71, %73, %cst_34 {dimension_numbers = #tpu.dot_dimension_numbers<[1], [0], [0], [1], [0, 0, 1, 1], [], []>} : vector<256x21xf32>, vector<21x64xf32>, vector<256x64xf32> -> vector<256x64xf32>
    %75 = arith.addf %60, %74 : vector<256x64xf32>
    %c0_35 = arith.constant 0 : index
    %c5 = arith.constant 5 : index
    %c0_36 = arith.constant 0 : index
    %c0_37 = arith.constant 0 : index
    %76 = vector.load %arg1[%c0_35, %c5, %c0_36, %c0_37] : memref<1x22x22x3xf32, #tpu.memory_space<vmem>>, vector<1x16x22x3xf32>
    %77 = vector.shape_cast %76 : vector<1x16x22x3xf32> to vector<16x22x3xf32>
    %78 = vector.extract_strided_slice %77 {offsets = [0, 0, 0], sizes = [16, 16, 3], strides = [1, 1, 1]} : vector<16x22x3xf32> to vector<16x16x3xf32>
    %79 = vector.extract_strided_slice %77 {offsets = [0, 1, 0], sizes = [16, 16, 3], strides = [1, 1, 1]} : vector<16x22x3xf32> to vector<16x16x3xf32>
    %80 = vector.extract_strided_slice %77 {offsets = [0, 2, 0], sizes = [16, 16, 3], strides = [1, 1, 1]} : vector<16x22x3xf32> to vector<16x16x3xf32>
    %81 = vector.extract_strided_slice %77 {offsets = [0, 3, 0], sizes = [16, 16, 3], strides = [1, 1, 1]} : vector<16x22x3xf32> to vector<16x16x3xf32>
    %82 = vector.extract_strided_slice %77 {offsets = [0, 4, 0], sizes = [16, 16, 3], strides = [1, 1, 1]} : vector<16x22x3xf32> to vector<16x16x3xf32>
    %83 = vector.extract_strided_slice %77 {offsets = [0, 5, 0], sizes = [16, 16, 3], strides = [1, 1, 1]} : vector<16x22x3xf32> to vector<16x16x3xf32>
    %84 = vector.extract_strided_slice %77 {offsets = [0, 6, 0], sizes = [16, 16, 3], strides = [1, 1, 1]} : vector<16x22x3xf32> to vector<16x16x3xf32>
    %85 = tpu.concatenate %78, %79, %80, %81, %82, %83, %84 in 2 : vector<16x16x3xf32>, vector<16x16x3xf32>, vector<16x16x3xf32>, vector<16x16x3xf32>, vector<16x16x3xf32>, vector<16x16x3xf32>, vector<16x16x3xf32> -> vector<16x16x21xf32>
    %86 = vector.shape_cast %85 : vector<16x16x21xf32> to vector<256x21xf32>
    %c5_38 = arith.constant 5 : index
    %c0_39 = arith.constant 0 : index
    %c0_40 = arith.constant 0 : index
    %87 = vector.load %arg2[%c5_38, %c0_39, %c0_40] : memref<7x21x64xf32, #tpu.memory_space<vmem>>, vector<1x21x64xf32>
    %88 = vector.shape_cast %87 : vector<1x21x64xf32> to vector<21x64xf32>
    %cst_41 = arith.constant dense<0.000000e+00> : vector<256x64xf32>
    %89 = tpu.matmul %86, %88, %cst_41 {dimension_numbers = #tpu.dot_dimension_numbers<[1], [0], [0], [1], [0, 0, 1, 1], [], []>} : vector<256x21xf32>, vector<21x64xf32>, vector<256x64xf32> -> vector<256x64xf32>
    %90 = arith.addf %75, %89 : vector<256x64xf32>
    %c0_42 = arith.constant 0 : index
    %c6 = arith.constant 6 : index
    %c0_43 = arith.constant 0 : index
    %c0_44 = arith.constant 0 : index
    %91 = vector.load %arg1[%c0_42, %c6, %c0_43, %c0_44] : memref<1x22x22x3xf32, #tpu.memory_space<vmem>>, vector<1x16x22x3xf32>
    %92 = vector.shape_cast %91 : vector<1x16x22x3xf32> to vector<16x22x3xf32>
    %93 = vector.extract_strided_slice %92 {offsets = [0, 0, 0], sizes = [16, 16, 3], strides = [1, 1, 1]} : vector<16x22x3xf32> to vector<16x16x3xf32>
    %94 = vector.extract_strided_slice %92 {offsets = [0, 1, 0], sizes = [16, 16, 3], strides = [1, 1, 1]} : vector<16x22x3xf32> to vector<16x16x3xf32>
    %95 = vector.extract_strided_slice %92 {offsets = [0, 2, 0], sizes = [16, 16, 3], strides = [1, 1, 1]} : vector<16x22x3xf32> to vector<16x16x3xf32>
    %96 = vector.extract_strided_slice %92 {offsets = [0, 3, 0], sizes = [16, 16, 3], strides = [1, 1, 1]} : vector<16x22x3xf32> to vector<16x16x3xf32>
    %97 = vector.extract_strided_slice %92 {offsets = [0, 4, 0], sizes = [16, 16, 3], strides = [1, 1, 1]} : vector<16x22x3xf32> to vector<16x16x3xf32>
    %98 = vector.extract_strided_slice %92 {offsets = [0, 5, 0], sizes = [16, 16, 3], strides = [1, 1, 1]} : vector<16x22x3xf32> to vector<16x16x3xf32>
    %99 = vector.extract_strided_slice %92 {offsets = [0, 6, 0], sizes = [16, 16, 3], strides = [1, 1, 1]} : vector<16x22x3xf32> to vector<16x16x3xf32>
    %100 = tpu.concatenate %93, %94, %95, %96, %97, %98, %99 in 2 : vector<16x16x3xf32>, vector<16x16x3xf32>, vector<16x16x3xf32>, vector<16x16x3xf32>, vector<16x16x3xf32>, vector<16x16x3xf32>, vector<16x16x3xf32> -> vector<16x16x21xf32>
    %101 = vector.shape_cast %100 : vector<16x16x21xf32> to vector<256x21xf32>
    %c6_45 = arith.constant 6 : index
    %c0_46 = arith.constant 0 : index
    %c0_47 = arith.constant 0 : index
    %102 = vector.load %arg2[%c6_45, %c0_46, %c0_47] : memref<7x21x64xf32, #tpu.memory_space<vmem>>, vector<1x21x64xf32>
    %103 = vector.shape_cast %102 : vector<1x21x64xf32> to vector<21x64xf32>
    %cst_48 = arith.constant dense<0.000000e+00> : vector<256x64xf32>
    %104 = tpu.matmul %101, %103, %cst_48 {dimension_numbers = #tpu.dot_dimension_numbers<[1], [0], [0], [1], [0, 0, 1, 1], [], []>} : vector<256x21xf32>, vector<21x64xf32>, vector<256x64xf32> -> vector<256x64xf32>
    %105 = arith.addf %90, %104 : vector<256x64xf32>
    %c0_49 = arith.constant 0 : index
    %c0_50 = arith.constant 0 : index
    %106 = vector.load %arg3[%c0_49, %c0_50] : memref<1x64xf32, #tpu.memory_space<vmem>>, vector<1x64xf32>
    %107 = vector.shape_cast %106 : vector<1x64xf32> to vector<64xf32>
    %108 = vector.shape_cast %107 : vector<64xf32> to vector<1x64xf32>
    %109 = vector.broadcast %108 : vector<1x64xf32> to vector<256x64xf32>
    %110 = arith.addf %105, %109 : vector<256x64xf32>
    %cst_51 = arith.constant 0.000000e+00 : f32
    %111 = vector.broadcast %cst_51 : f32 to vector<256x64xf32>
    %112 = arith.maximumf %110, %111 : vector<256x64xf32>
    %113 = vector.shape_cast %112 : vector<256x64xf32> to vector<1x16x16x64xf32>
    %c0_52 = arith.constant 0 : index
    %c0_53 = arith.constant 0 : index
    %c0_54 = arith.constant 0 : index
    %c0_55 = arith.constant 0 : index
    %114 = vector.load %arg4[%c0_52, %c0_53, %c0_54, %c0_55] : memref<1x16x16x64xf32, #tpu.memory_space<vmem>>, vector<1x16x16x64xf32>
    tpu.vector_store %arg4[%c0_52, %c0_53, %c0_54, %c0_55], %113 {strides = array<i32>} : memref<1x16x16x64xf32, #tpu.memory_space<vmem>>, vector<1x16x16x64xf32>,
    return
  }
  func.func @transform_0(%arg0: i32) -> (i32, i32, i32, i32) {
    %c0_i32 = arith.constant 0 : i32
    %c0_i32_0 = arith.constant 0 : i32
    %c0_i32_1 = arith.constant 0 : i32
    %c0_i32_2 = arith.constant 0 : i32
    return %arg0, %c0_i32, %c0_i32_0, %c0_i32_1 : i32, i32, i32, i32
  }
  func.func @transform_1(%arg0: i32) -> (i32, i32, i32) {
    %c0_i32 = arith.constant 0 : i32
    %c0_i32_0 = arith.constant 0 : i32
    %c0_i32_1 = arith.constant 0 : i32
    %c0_i32_2 = arith.constant 0 : i32
    return %c0_i32, %c0_i32_0, %c0_i32_1 : i32, i32, i32
  }
  func.func @transform_2(%arg0: i32) -> (i32, i32) {
    %c0_i32 = arith.constant 0 : i32
    %c0_i32_0 = arith.constant 0 : i32
    %c0_i32_1 = arith.constant 0 : i32
    return %c0_i32, %c0_i32_0 : i32, i32
  }
  func.func @transform_3(%arg0: i32) -> (i32, i32, i32, i32) {
    %c0_i32 = arith.constant 0 : i32
    %c0_i32_0 = arith.constant 0 : i32
    %c0_i32_1 = arith.constant 0 : i32
    %c0_i32_2 = arith.constant 0 : i32
    return %arg0, %c0_i32, %c0_i32_0, %c0_i32_1 : i32, i32, i32, i32
  }
}

</mosaic_0001>

<llo_original>
// kernel: mul_forward.1
$region0: #{mul_forward.1}
  #allocation0 [shape = 'u32[]', space=smem, size = 0x4, offset = 0x4, fixed_abs, tag = 'smem constant byte address 0x4 - core index']
  #allocation1 [shape = 'u32[144,128]{1,0:T(1,128)}', space=vmem, size = 0x12000, scoped, tag = 'internal scratch']
  %s0 = inlined_call_operand.vmem [shape: f32[2,22,22,3], index: 0, kind: input, shape index: {}]
  %s1 = inlined_call_operand.vmem [shape: f32[7,21,64], index: 1, kind: input, shape index: {}]
  %s2 = inlined_call_operand.vmem [shape: f32[1,64], index: 2, kind: input, shape index: {}]
  %s3 = inlined_call_operand.hbm [shape: f32[2,16,16,64], index: 3, kind: output, shape index: {}]
  %s4 = sld [smem:[#allocation0]]
  $region45: #{mul_forward.1} parent=0
    _
  %s6 = ssub.s32 1, %s4
  %s7 = scalar_select 0, %s6, %s4
  $region1: #{mul_forward.1} parent=0
    #allocation2 [shape = 'u8[262144]{0}', space=vmem, size = 0x40000, scoped, tag = 'output window, operand 0']
    #allocation3 [shape = 's32[2]{0}', space=sflag, size = 0x8, scoped, tag = 'scoped memory for mul_forward.1']
    %8 = vsyncpa [#allocation3], 0
    %s9 = scalar_lea.sflag [#allocation3], 1
    %10 = vsyncpa %s9, 0
    loop: start=0, step=1, limit=4
    $region2: #{mul_forward.1} parent=1 // loop_pre_header
      _
    $region3: #{mul_forward.1} parent=1 // loop_header
      %s12 = sphi 0, %s16
      %p13 = scmp.ge.s32.totalorder %s12, 4
      %s22 = sphi 0, %s24
      %s25 = sphi 0, %s22
      %s26 = sphi 0, %s25
      %s42 = sphi 0, %s26
      %s46 = sphi 0, %s46
      %s48 = sphi 0, %s46
      %s49 = sphi 0, %s48
      %s63 = sphi 0, %s49
      %s67 = sphi 0, %s67
      %s69 = sphi 0, %s67
      %s70 = sphi 0, %s69
      %s84 = sphi 0, %s70
      %s90 = sphi 0, %s92
      %s93 = sphi 0, %s90
      %s94 = sphi 0, %s93
      %s110 = sphi 0, %s94
    $region4: #{mul_forward.1} parent=1 // loop_header_branch
      %15 = sbr.rel (%p13) target = $region8
    $region5: #{mul_forward.1} parent=1 // loop_body
      %s17 = ssub.s32 %s12, 1
      %s18 = ssub.s32 %s12, 2
      %s19 = sadd.s32 %s12, 1
      %s20 = ssub.s32 %s12, %s19
      %p21 = scmp.eq.s32.totalorder %s20, 0
      %s23 = sadd.s32 %s22, 1
      %s24 = scalar_select %p21, %s22, %s23
      %p27 = pneg %p21
      %p28 = scmp.eq.s32.totalorder %s12, 1
      %p29 = por %p27, %p28
      %p30 = scmp.ne.s32.totalorder %s22, %s25
      %p31 = scmp.eq.s32.totalorder %s12, 0
      %p32 = por %p30, %p31
      %p33 = scmp.ne.s32.totalorder %s22, %s25
      %p34 = scmp.eq.s32.totalorder %s17, 1
      %p35 = por %p33, %p34
      %p36 = scmp.ne.s32.totalorder %s25, %s26
      %p37 = scmp.eq.s32.totalorder %s17, 0
      %p38 = por %p36, %p37
      %p39 = scmp.ne.s32.totalorder %s25, %s26
      %p40 = scmp.eq.s32.totalorder %s18, 1
      %p41 = por %p39, %p40
      %p43 = scmp.ne.s32.totalorder %s26, %s42
      %p44 = scmp.eq.s32.totalorder %s18, 0
      %p45 = por %p43, %p44
      %s47 = sadd.s32 %s46, 1
      %p50 = scmp.eq.s32.totalorder %s12, 1
      %p51 = scmp.ne.s32.totalorder %s46, %s48
      %p52 = scmp.eq.s32.totalorder %s12, 0
      %p53 = por %p51, %p52
      %p54 = scmp.ne.s32.totalorder %s46, %s48
      %p55 = scmp.eq.s32.totalorder %s17, 1
      %p56 = por %p54, %p55
      %p57 = scmp.ne.s32.totalorder %s48, %s49
      %p58 = scmp.eq.s32.totalorder %s17, 0
      %p59 = por %p57, %p58
      %p60 = scmp.ne.s32.totalorder %s48, %s49
      %p61 = scmp.eq.s32.totalorder %s18, 1
      %p62 = por %p60, %p61
      %p64 = scmp.ne.s32.totalorder %s49, %s63
      %p65 = scmp.eq.s32.totalorder %s18, 0
      %p66 = por %p64, %p65
      %s68 = sadd.s32 %s67, 1
      %p71 = scmp.eq.s32.totalorder %s12, 1
      %p72 = scmp.ne.s32.totalorder %s67, %s69
      %p73 = scmp.eq.s32.totalorder %s12, 0
      %p74 = por %p72, %p73
      %p75 = scmp.ne.s32.totalorder %s67, %s69
      %p76 = scmp.eq.s32.totalorder %s17, 1
      %p77 = por %p75, %p76
      %p78 = scmp.ne.s32.totalorder %s69, %s70
      %p79 = scmp.eq.s32.totalorder %s17, 0
      %p80 = por %p78, %p79
      %p81 = scmp.ne.s32.totalorder %s69, %s70
      %p82 = scmp.eq.s32.totalorder %s18, 1
      %p83 = por %p81, %p82
      %p85 = scmp.ne.s32.totalorder %s70, %s84
      %p86 = scmp.eq.s32.totalorder %s18, 0
      %p87 = por %p85, %p86
      %s88 = ssub.s32 %s12, %s19
      %p89 = scmp.eq.s32.totalorder %s88, 0
      %s91 = sadd.s32 %s90, 1
      %s92 = scalar_select %p89, %s90, %s91
      %p95 = pneg %p89
      %p96 = scmp.eq.s32.totalorder %s12, 1
      %p97 = por %p95, %p96
      %p98 = scmp.ne.s32.totalorder %s90, %s93
      %p99 = scmp.eq.s32.totalorder %s12, 0
      %p100 = por %p98, %p99
      %p101 = scmp.ne.s32.totalorder %s90, %s93
      %p102 = scmp.eq.s32.totalorder %s17, 1
      %p103 = por %p101, %p102
      %p104 = scmp.ne.s32.totalorder %s93, %s94
      %p105 = scmp.eq.s32.totalorder %s17, 0
      %p106 = por %p104, %p105
      %p107 = scmp.ne.s32.totalorder %s93, %s94
      %p108 = scmp.eq.s32.totalorder %s18, 1
      %p109 = por %p107, %p108
      %p111 = scmp.ne.s32.totalorder %s94, %s110
      %p112 = scmp.eq.s32.totalorder %s18, 0
      %p113 = por %p111, %p112
      %p114 = scmp.le.s32.totalorder 1, %s12
      %p115 = scmp.lt.s32.totalorder %s12, 3
      %p116 = pnand %p114, %p115
      %p117 = pneg %p116
      // Predicated region
      $region9: #{mul_forward.1} parent=5 // pred_check
        _
      $region10: #{mul_forward.1} parent=5 // pred_check_branch
        %119 = sbr.rel (%p116) target = $region12
      $region11: #{mul_forward.1} parent=5 // pred_region
        %s120 = ssub.s32 %s12, 1
        // Predicated region
        $region13: #{mul_forward.1} parent=11 // pred_check
          %p121 = pneg %p59
        $region14: #{mul_forward.1} parent=11 // pred_check_branch
          %123 = sbr.rel (%p121) target = $region16
        $region15: #{mul_forward.1} parent=11 // pred_region
          _
        $region16: #{mul_forward.1} parent=11 // pred_fallthru
          _
        // Predicated region
        $region17: #{mul_forward.1} parent=11 // pred_check
          %p124 = pneg %p80
        $region18: #{mul_forward.1} parent=11 // pred_check_branch
          %126 = sbr.rel (%p124) target = $region20
        $region19: #{mul_forward.1} parent=11 // pred_region
          _
        $region20: #{mul_forward.1} parent=11 // pred_fallthru
          _
      $region12: #{mul_forward.1} parent=5 // pred_fallthru
        _
      %p127 = scmp.lt.s32.totalorder %s12, 2
      // Predicated region
      $region21: #{mul_forward.1} parent=5 // pred_check
        %p128 = pneg %p127
      $region22: #{mul_forward.1} parent=5 // pred_check_branch
        %130 = sbr.rel (%p128) target = $region24
      $region23: #{mul_forward.1} parent=5 // pred_region
        // Predicated region
        $region25: #{mul_forward.1} parent=23 // pred_check
          %p131 = pneg %p32
        $region26: #{mul_forward.1} parent=23 // pred_check_branch
          %133 = sbr.rel (%p131) target = $region28
        $region27: #{mul_forward.1} parent=23 // pred_region
          %p134 = scmp.lt.s32.totalorder %s12, 1
          %s135 = scalar_select %p134, %s12, 1
          %s136 = smul.addr %s135, 66
          %s137 = smul.addr %s136, 8
          %s138 = scalar_lea.vmem %s0, %s137
        $region28: #{mul_forward.1} parent=23 // pred_fallthru
          _
      $region24: #{mul_forward.1} parent=5 // pred_fallthru
        _
      %p139 = scmp.le.s32.totalorder 1, %s12
      %p140 = scmp.lt.s32.totalorder %s12, 3
      %p141 = pnand %p139, %p140
      %p142 = pneg %p141
      // Predicated region
      $region29: #{mul_forward.1} parent=5 // pred_check
        _
      $region30: #{mul_forward.1} parent=5 // pred_check_branch
        %144 = sbr.rel (%p141) target = $region32
      $region31: #{mul_forward.1} parent=5 // pred_region
        %s145 = ssub.s32 %s12, 1
        %p146 = scmp.lt.s32.totalorder %s17, 1
        %s147 = scalar_select %p146, %s17, 1
        %s148 = smul.addr %s147, 66
        %s149 = smul.addr %s148, 8
        %s150 = scalar_lea.vmem %s0, %s149
        %p151 = pneg %p38
        %p152 = pneg %p35
        %p153 = pneg %p59
        %p154 = pneg %p56
        %p155 = pneg %p80
        %p156 = pneg %p77
        %p157 = pneg %p106
        %p158 = pneg %p103
        %s159 = sand.u32 %s93, 1
        %s160 = scalar_lea.sflag [#allocation3], %s159
        %s161 = sand.u32 %s93, 1
        %s162 = smul.addr %s161, 256
        %s163 = scalar_lea.vmem [#allocation2], %s162
        %p164 = scmp.lt.s32.totalorder %s17, 1
        %s165 = scalar_select %p164, %s17, 1
        %s166 = smul.addr %s165, 66
        %s167 = smul.addr %s166, 8
        %s168 = scalar_lea.vmem %s0, %s167
        %v169 = vld [vmem:[%s168] sm:$0xff]
        %v170 = vld [vmem:[%s168 + $0x8] sm:$0xff]
        %v171 = vld [vmem:[%s168 + $0x10] sm:$0x3f]
        %v172 = vld [vmem:[%s168 + $0x18] sm:$0xff]
        %v173 = vld [vmem:[%s168 + $0x20] sm:$0xff]
        %v174 = vld [vmem:[%s168 + $0x28] sm:$0x3f]
        %v175 = vld [vmem:[%s168 + $0x30] sm:$0xff]
        %v176 = vld [vmem:[%s168 + $0x38] sm:$0xff]
        %v177 = vld [vmem:[%s168 + $0x40] sm:$0x3f]
        %v178 = vld [vmem:[%s168 + $0x48] sm:$0xff]
        %v179 = vld [vmem:[%s168 + $0x50] sm:$0xff]
        %v180 = vld [vmem:[%s168 + $0x58] sm:$0x3f]
        %v181 = vld [vmem:[%s168 + $0x60] sm:$0xff]
        %v182 = vld [vmem:[%s168 + $0x68] sm:$0xff]
        %v183 = vld [vmem:[%s168 + $0x70] sm:$0x3f]
        %v184 = vld [vmem:[%s168 + $0x78] sm:$0xff]
        %v185 = vld [vmem:[%s168 + $0x80] sm:$0xff]
        %v186 = vld [vmem:[%s168 + $0x88] sm:$0x3f]
        %v187 = vld [vmem:[%s168 + $0x90] sm:$0xff]
        %v188 = vld [vmem:[%s168 + $0x98] sm:$0xff]
        %v189 = vld [vmem:[%s168 + $0xa0] sm:$0x3f]
        %v190 = vld [vmem:[%s168 + $0xa8] sm:$0xff]
        %v191 = vld [vmem:[%s168 + $0xb0] sm:$0xff]
        %v192 = vld [vmem:[%s168 + $0xb8] sm:$0x3f]
        %v193 = vld [vmem:[%s168 + $0xc0] sm:$0xff]
        %v194 = vld [vmem:[%s168 + $0xc8] sm:$0xff]
        %v195 = vld [vmem:[%s168 + $0xd0] sm:$0x3f]
        %v196 = vld [vmem:[%s168 + $0xd8] sm:$0xff]
        %v197 = vld [vmem:[%s168 + $0xe0] sm:$0xff]
        %v198 = vld [vmem:[%s168 + $0xe8] sm:$0x3f]
        %v199 = vld [vmem:[%s168 + $0xf0] sm:$0xff]
        %v200 = vld [vmem:[%s168 + $0xf8] sm:$0xff]
        %v201 = vld [vmem:[%s168 + $0x100] sm:$0x3f]
        %v202 = vld [vmem:[%s168 + $0x108] sm:$0xff]
        %v203 = vld [vmem:[%s168 + $0x110] sm:$0xff]
        %v204 = vld [vmem:[%s168 + $0x118] sm:$0x3f]
        %v205 = vld [vmem:[%s168 + $0x120] sm:$0xff]
        %v206 = vld [vmem:[%s168 + $0x128] sm:$0xff]
        %v207 = vld [vmem:[%s168 + $0x130] sm:$0x3f]
        %v208 = vld [vmem:[%s168 + $0x138] sm:$0xff]
        %v209 = vld [vmem:[%s168 + $0x140] sm:$0xff]
        %v210 = vld [vmem:[%s168 + $0x148] sm:$0x3f]
        %v211 = vld [vmem:[%s168 + $0x150] sm:$0xff]
        %v212 = vld [vmem:[%s168 + $0x158] sm:$0xff]
        %v213 = vld [vmem:[%s168 + $0x160] sm:$0x3f]
        %v214 = vld [vmem:[%s168 + $0x168] sm:$0xff]
        %v215 = vld [vmem:[%s168 + $0x170] sm:$0xff]
        %v216 = vld [vmem:[%s168 + $0x178] sm:$0x3f]
        %vm265 = vcmask 1046528
        %v266 = vrot.slane %v169, 1
        %v267 = vrot.slane %v170, 1
        %v268 = vsel %vm265, %v266, %v267
        %v269 = vrot.slane %v171, 1
        %v270 = vsel %vm265, %v267, %v269
        %v271 = vrot.slane %v172, 1
        %v272 = vrot.slane %v173, 1
        %v273 = vsel %vm265, %v271, %v272
        %v274 = vrot.slane %v174, 1
        %v275 = vsel %vm265, %v272, %v274
        %v276 = vrot.slane %v175, 1
        %v277 = vrot.slane %v176, 1
        %v278 = vsel %vm265, %v276, %v277
        %v279 = vrot.slane %v177, 1
        %v280 = vsel %vm265, %v277, %v279
        %v281 = vrot.slane %v178, 1
        %v282 = vrot.slane %v179, 1
        %v283 = vsel %vm265, %v281, %v282
        %v284 = vrot.slane %v180, 1
        %v285 = vsel %vm265, %v282, %v284
        %v286 = vrot.slane %v181, 1
        %v287 = vrot.slane %v182, 1
        %v288 = vsel %vm265, %v286, %v287
        %v289 = vrot.slane %v183, 1
        %v290 = vsel %vm265, %v287, %v289
        %v291 = vrot.slane %v184, 1
        %v292 = vrot.slane %v185, 1
        %v293 = vsel %vm265, %v291, %v292
        %v294 = vrot.slane %v186, 1
        %v295 = vsel %vm265, %v292, %v294
        %v296 = vrot.slane %v187, 1
        %v297 = vrot.slane %v188, 1
        %v298 = vsel %vm265, %v296, %v297
        %v299 = vrot.slane %v189, 1
        %v300 = vsel %vm265, %v297, %v299
        %v301 = vrot.slane %v190, 1
        %v302 = vrot.slane %v191, 1
        %v303 = vsel %vm265, %v301, %v302
        %v304 = vrot.slane %v192, 1
        %v305 = vsel %vm265, %v302, %v304
        %v306 = vrot.slane %v193, 1
        %v307 = vrot.slane %v194, 1
        %v308 = vsel %vm265, %v306, %v307
        %v309 = vrot.slane %v195, 1
        %v310 = vsel %vm265, %v307, %v309
        %v311 = vrot.slane %v196, 1
        %v312 = vrot.slane %v197, 1
        %v313 = vsel %vm265, %v311, %v312
        %v314 = vrot.slane %v198, 1
        %v315 = vsel %vm265, %v312, %v314
        %v316 = vrot.slane %v199, 1
        %v317 = vrot.slane %v200, 1
        %v318 = vsel %vm265, %v316, %v317
        %v319 = vrot.slane %v201, 1
        %v320 = vsel %vm265, %v317, %v319
        %v321 = vrot.slane %v202, 1
        %v322 = vrot.slane %v203, 1
        %v323 = vsel %vm265, %v321, %v322
        %v324 = vrot.slane %v204, 1
        %v325 = vsel %vm265, %v322, %v324
        %v326 = vrot.slane %v205, 1
        %v327 = vrot.slane %v206, 1
        %v328 = vsel %vm265, %v326, %v327
        %v329 = vrot.slane %v207, 1
        %v330 = vsel %vm265, %v327, %v329
        %v331 = vrot.slane %v208, 1
        %v332 = vrot.slane %v209, 1
        %v333 = vsel %vm265, %v331, %v332
        %v334 = vrot.slane %v210, 1
        %v335 = vsel %vm265, %v332, %v334
        %v336 = vrot.slane %v211, 1
        %v337 = vrot.slane %v212, 1
        %v338 = vsel %vm265, %v336, %v337
        %v339 = vrot.slane %v213, 1
        %v340 = vsel %vm265, %v337, %v339
        %v341 = vrot.slane %v214, 1
        %v342 = vrot.slane %v215, 1
        %v343 = vsel %vm265, %v341, %v342
        %v344 = vrot.slane %v216, 1
        %v345 = vsel %vm265, %v342, %v344
        %346 = vrot.lane.b32.xlu0 %v268, 3
        %v347 = vpop.permute.xlu0 %346
        %348 = vrot.lane.b32.xlu0 %v270, 3
        %v349 = vpop.permute.xlu0 %348
        %350 = vrot.lane.b32.xlu0 %v273, 3
        %v351 = vpop.permute.xlu0 %350
        %352 = vrot.lane.b32.xlu0 %v275, 3
        %v353 = vpop.permute.xlu0 %352
        %354 = vrot.lane.b32.xlu0 %v278, 3
        %v355 = vpop.permute.xlu0 %354
        %356 = vrot.lane.b32.xlu0 %v280, 3
        %v357 = vpop.permute.xlu0 %356
        %358 = vrot.lane.b32.xlu0 %v283, 3
        %v359 = vpop.permute.xlu0 %358
        %360 = vrot.lane.b32.xlu0 %v285, 3
        %v361 = vpop.permute.xlu0 %360
        %362 = vrot.lane.b32.xlu0 %v288, 3
        %v363 = vpop.permute.xlu0 %362
        %364 = vrot.lane.b32.xlu0 %v290, 3
        %v365 = vpop.permute.xlu0 %364
        %366 = vrot.lane.b32.xlu0 %v293, 3
        %v367 = vpop.permute.xlu0 %366
        %368 = vrot.lane.b32.xlu0 %v295, 3
        %v369 = vpop.permute.xlu0 %368
        %370 = vrot.lane.b32.xlu0 %v298, 3
        %v371 = vpop.permute.xlu0 %370
        %372 = vrot.lane.b32.xlu0 %v300, 3
        %v373 = vpop.permute.xlu0 %372
        %374 = vrot.lane.b32.xlu0 %v303, 3
        %v375 = vpop.permute.xlu0 %374
        %376 = vrot.lane.b32.xlu0 %v305, 3
        %v377 = vpop.permute.xlu0 %376
        %378 = vrot.lane.b32.xlu0 %v308, 3
        %v379 = vpop.permute.xlu0 %378
        %380 = vrot.lane.b32.xlu0 %v310, 3
        %v381 = vpop.permute.xlu0 %380
        %382 = vrot.lane.b32.xlu0 %v313, 3
        %v383 = vpop.permute.xlu0 %382
        %384 = vrot.lane.b32.xlu0 %v315, 3
        %v385 = vpop.permute.xlu0 %384
        %386 = vrot.lane.b32.xlu0 %v318, 3
        %v387 = vpop.permute.xlu0 %386
        %388 = vrot.lane.b32.xlu0 %v320, 3
        %v389 = vpop.permute.xlu0 %388
        %390 = vrot.lane.b32.xlu0 %v323, 3
        %v391 = vpop.permute.xlu0 %390
        %392 = vrot.lane.b32.xlu0 %v325, 3
        %v393 = vpop.permute.xlu0 %392
        %394 = vrot.lane.b32.xlu0 %v328, 3
        %v395 = vpop.permute.xlu0 %394
        %396 = vrot.lane.b32.xlu0 %v330, 3
        %v397 = vpop.permute.xlu0 %396
        %398 = vrot.lane.b32.xlu0 %v333, 3
        %v399 = vpop.permute.xlu0 %398
        %400 = vrot.lane.b32.xlu0 %v335, 3
        %v401 = vpop.permute.xlu0 %400
        %402 = vrot.lane.b32.xlu0 %v338, 3
        %v403 = vpop.permute.xlu0 %402
        %404 = vrot.lane.b32.xlu0 %v340, 3
        %v405 = vpop.permute.xlu0 %404
        %406 = vrot.lane.b32.xlu0 %v343, 3
        %v407 = vpop.permute.xlu0 %406
        %408 = vrot.lane.b32.xlu0 %v345, 3
        %v409 = vpop.permute.xlu0 %408
        %vm442 = vcmask 1045504
        %v443 = vrot.slane %v169, 2
        %v444 = vrot.slane %v170, 2
        %v445 = vsel %vm442, %v443, %v444
        %v446 = vrot.slane %v171, 2
        %v447 = vsel %vm442, %v444, %v446
        %v448 = vrot.slane %v172, 2
        %v449 = vrot.slane %v173, 2
        %v450 = vsel %vm442, %v448, %v449
        %v451 = vrot.slane %v174, 2
        %v452 = vsel %vm442, %v449, %v451
        %v453 = vrot.slane %v175, 2
        %v454 = vrot.slane %v176, 2
        %v455 = vsel %vm442, %v453, %v454
        %v456 = vrot.slane %v177, 2
        %v457 = vsel %vm442, %v454, %v456
        %v458 = vrot.slane %v178, 2
        %v459 = vrot.slane %v179, 2
        %v460 = vsel %vm442, %v458, %v459
        %v461 = vrot.slane %v180, 2
        %v462 = vsel %vm442, %v459, %v461
        %v463 = vrot.slane %v181, 2
        %v464 = vrot.slane %v182, 2
        %v465 = vsel %vm442, %v463, %v464
        %v466 = vrot.slane %v183, 2
        %v467 = vsel %vm442, %v464, %v466
        %v468 = vrot.slane %v184, 2
        %v469 = vrot.slane %v185, 2
        %v470 = vsel %vm442, %v468, %v469
        %v471 = vrot.slane %v186, 2
        %v472 = vsel %vm442, %v469, %v471
        %v473 = vrot.slane %v187, 2
        %v474 = vrot.slane %v188, 2
        %v475 = vsel %vm442, %v473, %v474
        %v476 = vrot.slane %v189, 2
        %v477 = vsel %vm442, %v474, %v476
        %v478 = vrot.slane %v190, 2
        %v479 = vrot.slane %v191, 2
        %v480 = vsel %vm442, %v478, %v479
        %v481 = vrot.slane %v192, 2
        %v482 = vsel %vm442, %v479, %v481
        %v483 = vrot.slane %v193, 2
        %v484 = vrot.slane %v194, 2
        %v485 = vsel %vm442, %v483, %v484
        %v486 = vrot.slane %v195, 2
        %v487 = vsel %vm442, %v484, %v486
        %v488 = vrot.slane %v196, 2
        %v489 = vrot.slane %v197, 2
        %v490 = vsel %vm442, %v488, %v489
        %v491 = vrot.slane %v198, 2
        %v492 = vsel %vm442, %v489, %v491
        %v493 = vrot.slane %v199, 2
        %v494 = vrot.slane %v200, 2
        %v495 = vsel %vm442, %v493, %v494
        %v496 = vrot.slane %v201, 2
        %v497 = vsel %vm442, %v494, %v496
        %v498 = vrot.slane %v202, 2
        %v499 = vrot.slane %v203, 2
        %v500 = vsel %vm442, %v498, %v499
        %v501 = vrot.slane %v204, 2
        %v502 = vsel %vm442, %v499, %v501
        %v503 = vrot.slane %v205, 2
        %v504 = vrot.slane %v206, 2
        %v505 = vsel %vm442, %v503, %v504
        %v506 = vrot.slane %v207, 2
        %v507 = vsel %vm442, %v504, %v506
        %v508 = vrot.slane %v208, 2
        %v509 = vrot.slane %v209, 2
        %v510 = vsel %vm442, %v508, %v509
        %v511 = vrot.slane %v210, 2
        %v512 = vsel %vm442, %v509, %v511
        %v513 = vrot.slane %v211, 2
        %v514 = vrot.slane %v212, 2
        %v515 = vsel %vm442, %v513, %v514
        %v516 = vrot.slane %v213, 2
        %v517 = vsel %vm442, %v514, %v516
        %v518 = vrot.slane %v214, 2
        %v519 = vrot.slane %v215, 2
        %v520 = vsel %vm442, %v518, %v519
        %v521 = vrot.slane %v216, 2
        %v522 = vsel %vm442, %v519, %v521
        %523 = vrot.lane.b32.xlu0 %v445, 6
        %v524 = vpop.permute.xlu0 %523
        %525 = vrot.lane.b32.xlu0 %v447, 6
        %v526 = vpop.permute.xlu0 %525
        %527 = vrot.lane.b32.xlu0 %v450, 6
        %v528 = vpop.permute.xlu0 %527
        %529 = vrot.lane.b32.xlu0 %v452, 6
        %v530 = vpop.permute.xlu0 %529
        %531 = vrot.lane.b32.xlu0 %v455, 6
        %v532 = vpop.permute.xlu0 %531
        %533 = vrot.lane.b32.xlu0 %v457, 6
        %v534 = vpop.permute.xlu0 %533
        %535 = vrot.lane.b32.xlu0 %v460, 6
        %v536 = vpop.permute.xlu0 %535
        %537 = vrot.lane.b32.xlu0 %v462, 6
        %v538 = vpop.permute.xlu0 %537
        %539 = vrot.lane.b32.xlu0 %v465, 6
        %v540 = vpop.permute.xlu0 %539
        %541 = vrot.lane.b32.xlu0 %v467, 6
        %v542 = vpop.permute.xlu0 %541
        %543 = vrot.lane.b32.xlu0 %v470, 6
        %v544 = vpop.permute.xlu0 %543
        %545 = vrot.lane.b32.xlu0 %v472, 6
        %v546 = vpop.permute.xlu0 %545
        %547 = vrot.lane.b32.xlu0 %v475, 6
        %v548 = vpop.permute.xlu0 %547
        %549 = vrot.lane.b32.xlu0 %v477, 6
        %v550 = vpop.permute.xlu0 %549
        %551 = vrot.lane.b32.xlu0 %v480, 6
        %v552 = vpop.permute.xlu0 %551
        %553 = vrot.lane.b32.xlu0 %v482, 6
        %v554 = vpop.permute.xlu0 %553
        %555 = vrot.lane.b32.xlu0 %v485, 6
        %v556 = vpop.permute.xlu0 %555
        %557 = vrot.lane.b32.xlu0 %v487, 6
        %v558 = vpop.permute.xlu0 %557
        %559 = vrot.lane.b32.xlu0 %v490, 6
        %v560 = vpop.permute.xlu0 %559
        %561 = vrot.lane.b32.xlu0 %v492, 6
        %v562 = vpop.permute.xlu0 %561
        %563 = vrot.lane.b32.xlu0 %v495, 6
        %v564 = vpop.permute.xlu0 %563
        %565 = vrot.lane.b32.xlu0 %v497, 6
        %v566 = vpop.permute.xlu0 %565
        %567 = vrot.lane.b32.xlu0 %v500, 6
        %v568 = vpop.permute.xlu0 %567
        %569 = vrot.lane.b32.xlu0 %v502, 6
        %v570 = vpop.permute.xlu0 %569
        %571 = vrot.lane.b32.xlu0 %v505, 6
        %v572 = vpop.permute.xlu0 %571
        %573 = vrot.lane.b32.xlu0 %v507, 6
        %v574 = vpop.permute.xlu0 %573
        %575 = vrot.lane.b32.xlu0 %v510, 6
        %v576 = vpop.permute.xlu0 %575
        %577 = vrot.lane.b32.xlu0 %v512, 6
        %v578 = vpop.permute.xlu0 %577
        %579 = vrot.lane.b32.xlu0 %v515, 6
        %v580 = vpop.permute.xlu0 %579
        %581 = vrot.lane.b32.xlu0 %v517, 6
        %v582 = vpop.permute.xlu0 %581
        %583 = vrot.lane.b32.xlu0 %v520, 6
        %v584 = vpop.permute.xlu0 %583
        %585 = vrot.lane.b32.xlu0 %v522, 6
        %v586 = vpop.permute.xlu0 %585
        %vm619 = vcmask 1044480
        %v620 = vrot.slane %v169, 3
        %v621 = vrot.slane %v170, 3
        %v622 = vsel %vm619, %v620, %v621
        %v623 = vrot.slane %v171, 3
        %v624 = vsel %vm619, %v621, %v623
        %v625 = vrot.slane %v172, 3
        %v626 = vrot.slane %v173, 3
        %v627 = vsel %vm619, %v625, %v626
        %v628 = vrot.slane %v174, 3
        %v629 = vsel %vm619, %v626, %v628
        %v630 = vrot.slane %v175, 3
        %v631 = vrot.slane %v176, 3
        %v632 = vsel %vm619, %v630, %v631
        %v633 = vrot.slane %v177, 3
        %v634 = vsel %vm619, %v631, %v633
        %v635 = vrot.slane %v178, 3
        %v636 = vrot.slane %v179, 3
        %v637 = vsel %vm619, %v635, %v636
        %v638 = vrot.slane %v180, 3
        %v639 = vsel %vm619, %v636, %v638
        %v640 = vrot.slane %v181, 3
        %v641 = vrot.slane %v182, 3
        %v642 = vsel %vm619, %v640, %v641
        %v643 = vrot.slane %v183, 3
        %v644 = vsel %vm619, %v641, %v643
        %v645 = vrot.slane %v184, 3
        %v646 = vrot.slane %v185, 3
        %v647 = vsel %vm619, %v645, %v646
        %v648 = vrot.slane %v186, 3
        %v649 = vsel %vm619, %v646, %v648
        %v650 = vrot.slane %v187, 3
        %v651 = vrot.slane %v188, 3
        %v652 = vsel %vm619, %v650, %v651
        %v653 = vrot.slane %v189, 3
        %v654 = vsel %vm619, %v651, %v653
        %v655 = vrot.slane %v190, 3
        %v656 = vrot.slane %v191, 3
        %v657 = vsel %vm619, %v655, %v656
        %v658 = vrot.slane %v192, 3
        %v659 = vsel %vm619, %v656, %v658
        %v660 = vrot.slane %v193, 3
        %v661 = vrot.slane %v194, 3
        %v662 = vsel %vm619, %v660, %v661
        %v663 = vrot.slane %v195, 3
        %v664 = vsel %vm619, %v661, %v663
        %v665 = vrot.slane %v196, 3
        %v666 = vrot.slane %v197, 3
        %v667 = vsel %vm619, %v665, %v666
        %v668 = vrot.slane %v198, 3
        %v669 = vsel %vm619, %v666, %v668
        %v670 = vrot.slane %v199, 3
        %v671 = vrot.slane %v200, 3
        %v672 = vsel %vm619, %v670, %v671
        %v673 = vrot.slane %v201, 3
        %v674 = vsel %vm619, %v671, %v673
        %v675 = vrot.slane %v202, 3
        %v676 = vrot.slane %v203, 3
        %v677 = vsel %vm619, %v675, %v676
        %v678 = vrot.slane %v204, 3
        %v679 = vsel %vm619, %v676, %v678
        %v680 = vrot.slane %v205, 3
        %v681 = vrot.slane %v206, 3
        %v682 = vsel %vm619, %v680, %v681
        %v683 = vrot.slane %v207, 3
        %v684 = vsel %vm619, %v681, %v683
        %v685 = vrot.slane %v208, 3
        %v686 = vrot.slane %v209, 3
        %v687 = vsel %vm619, %v685, %v686
        %v688 = vrot.slane %v210, 3
        %v689 = vsel %vm619, %v686, %v688
        %v690 = vrot.slane %v211, 3
        %v691 = vrot.slane %v212, 3
        %v692 = vsel %vm619, %v690, %v691
        %v693 = vrot.slane %v213, 3
        %v694 = vsel %vm619, %v691, %v693
        %v695 = vrot.slane %v214, 3
        %v696 = vrot.slane %v215, 3
        %v697 = vsel %vm619, %v695, %v696
        %v698 = vrot.slane %v216, 3
        %v699 = vsel %vm619, %v696, %v698
        %700 = vrot.lane.b32.xlu0 %v622, 9
        %v701 = vpop.permute.xlu0 %700
        %702 = vrot.lane.b32.xlu0 %v624, 9
        %v703 = vpop.permute.xlu0 %702
        %704 = vrot.lane.b32.xlu0 %v627, 9
        %v705 = vpop.permute.xlu0 %704
        %706 = vrot.lane.b32.xlu0 %v629, 9
        %v707 = vpop.permute.xlu0 %706
        %708 = vrot.lane.b32.xlu0 %v632, 9
        %v709 = vpop.permute.xlu0 %708
        %710 = vrot.lane.b32.xlu0 %v634, 9
        %v711 = vpop.permute.xlu0 %710
        %712 = vrot.lane.b32.xlu0 %v637, 9
        %v713 = vpop.permute.xlu0 %712
        %714 = vrot.lane.b32.xlu0 %v639, 9
        %v715 = vpop.permute.xlu0 %714
        %716 = vrot.lane.b32.xlu0 %v642, 9
        %v717 = vpop.permute.xlu0 %716
        %718 = vrot.lane.b32.xlu0 %v644, 9
        %v719 = vpop.permute.xlu0 %718
        %720 = vrot.lane.b32.xlu0 %v647, 9
        %v721 = vpop.permute.xlu0 %720
        %722 = vrot.lane.b32.xlu0 %v649, 9
        %v723 = vpop.permute.xlu0 %722
        %724 = vrot.lane.b32.xlu0 %v652, 9
        %v725 = vpop.permute.xlu0 %724
        %726 = vrot.lane.b32.xlu0 %v654, 9
        %v727 = vpop.permute.xlu0 %726
        %728 = vrot.lane.b32.xlu0 %v657, 9
        %v729 = vpop.permute.xlu0 %728
        %730 = vrot.lane.b32.xlu0 %v659, 9
        %v731 = vpop.permute.xlu0 %730
        %732 = vrot.lane.b32.xlu0 %v662, 9
        %v733 = vpop.permute.xlu0 %732
        %734 = vrot.lane.b32.xlu0 %v664, 9
        %v735 = vpop.permute.xlu0 %734
        %736 = vrot.lane.b32.xlu0 %v667, 9
        %v737 = vpop.permute.xlu0 %736
        %738 = vrot.lane.b32.xlu0 %v669, 9
        %v739 = vpop.permute.xlu0 %738
        %740 = vrot.lane.b32.xlu0 %v672, 9
        %v741 = vpop.permute.xlu0 %740
        %742 = vrot.lane.b32.xlu0 %v674, 9
        %v743 = vpop.permute.xlu0 %742
        %744 = vrot.lane.b32.xlu0 %v677, 9
        %v745 = vpop.permute.xlu0 %744
        %746 = vrot.lane.b32.xlu0 %v679, 9
        %v747 = vpop.permute.xlu0 %746
        %748 = vrot.lane.b32.xlu0 %v682, 9
        %v749 = vpop.permute.xlu0 %748
        %750 = vrot.lane.b32.xlu0 %v684, 9
        %v751 = vpop.permute.xlu0 %750
        %752 = vrot.lane.b32.xlu0 %v687, 9
        %v753 = vpop.permute.xlu0 %752
        %754 = vrot.lane.b32.xlu0 %v689, 9
        %v755 = vpop.permute.xlu0 %754
        %756 = vrot.lane.b32.xlu0 %v692, 9
        %v757 = vpop.permute.xlu0 %756
        %758 = vrot.lane.b32.xlu0 %v694, 9
        %v759 = vpop.permute.xlu0 %758
        %760 = vrot.lane.b32.xlu0 %v697, 9
        %v761 = vpop.permute.xlu0 %760
        %762 = vrot.lane.b32.xlu0 %v699, 9
        %v763 = vpop.permute.xlu0 %762
        %vm796 = vcmask 1043456
        %v797 = vrot.slane %v169, 4
        %v798 = vrot.slane %v170, 4
        %v799 = vsel %vm796, %v797, %v798
        %v800 = vrot.slane %v171, 4
        %v801 = vsel %vm796, %v798, %v800
        %v802 = vrot.slane %v172, 4
        %v803 = vrot.slane %v173, 4
        %v804 = vsel %vm796, %v802, %v803
        %v805 = vrot.slane %v174, 4
        %v806 = vsel %vm796, %v803, %v805
        %v807 = vrot.slane %v175, 4
        %v808 = vrot.slane %v176, 4
        %v809 = vsel %vm796, %v807, %v808
        %v810 = vrot.slane %v177, 4
        %v811 = vsel %vm796, %v808, %v810
        %v812 = vrot.slane %v178, 4
        %v813 = vrot.slane %v179, 4
        %v814 = vsel %vm796, %v812, %v813
        %v815 = vrot.slane %v180, 4
        %v816 = vsel %vm796, %v813, %v815
        %v817 = vrot.slane %v181, 4
        %v818 = vrot.slane %v182, 4
        %v819 = vsel %vm796, %v817, %v818
        %v820 = vrot.slane %v183, 4
        %v821 = vsel %vm796, %v818, %v820
        %v822 = vrot.slane %v184, 4
        %v823 = vrot.slane %v185, 4
        %v824 = vsel %vm796, %v822, %v823
        %v825 = vrot.slane %v186, 4
        %v826 = vsel %vm796, %v823, %v825
        %v827 = vrot.slane %v187, 4
        %v828 = vrot.slane %v188, 4
        %v829 = vsel %vm796, %v827, %v828
        %v830 = vrot.slane %v189, 4
        %v831 = vsel %vm796, %v828, %v830
        %v832 = vrot.slane %v190, 4
        %v833 = vrot.slane %v191, 4
        %v834 = vsel %vm796, %v832, %v833
        %v835 = vrot.slane %v192, 4
        %v836 = vsel %vm796, %v833, %v835
        %v837 = vrot.slane %v193, 4
        %v838 = vrot.slane %v194, 4
        %v839 = vsel %vm796, %v837, %v838
        %v840 = vrot.slane %v195, 4
        %v841 = vsel %vm796, %v838, %v840
        %v842 = vrot.slane %v196, 4
        %v843 = vrot.slane %v197, 4
        %v844 = vsel %vm796, %v842, %v843
        %v845 = vrot.slane %v198, 4
        %v846 = vsel %vm796, %v843, %v845
        %v847 = vrot.slane %v199, 4
        %v848 = vrot.slane %v200, 4
        %v849 = vsel %vm796, %v847, %v848
        %v850 = vrot.slane %v201, 4
        %v851 = vsel %vm796, %v848, %v850
        %v852 = vrot.slane %v202, 4
        %v853 = vrot.slane %v203, 4
        %v854 = vsel %vm796, %v852, %v853
        %v855 = vrot.slane %v204, 4
        %v856 = vsel %vm796, %v853, %v855
        %v857 = vrot.slane %v205, 4
        %v858 = vrot.slane %v206, 4
        %v859 = vsel %vm796, %v857, %v858
        %v860 = vrot.slane %v207, 4
        %v861 = vsel %vm796, %v858, %v860
        %v862 = vrot.slane %v208, 4
        %v863 = vrot.slane %v209, 4
        %v864 = vsel %vm796, %v862, %v863
        %v865 = vrot.slane %v210, 4
        %v866 = vsel %vm796, %v863, %v865
        %v867 = vrot.slane %v211, 4
        %v868 = vrot.slane %v212, 4
        %v869 = vsel %vm796, %v867, %v868
        %v870 = vrot.slane %v213, 4
        %v871 = vsel %vm796, %v868, %v870
        %v872 = vrot.slane %v214, 4
        %v873 = vrot.slane %v215, 4
        %v874 = vsel %vm796, %v872, %v873
        %v875 = vrot.slane %v216, 4
        %v876 = vsel %vm796, %v873, %v875
        %877 = vrot.lane.b32.xlu0 %v799, 12
        %v878 = vpop.permute.xlu0 %877
        %879 = vrot.lane.b32.xlu0 %v801, 12
        %v880 = vpop.permute.xlu0 %879
        %881 = vrot.lane.b32.xlu0 %v804, 12
        %v882 = vpop.permute.xlu0 %881
        %883 = vrot.lane.b32.xlu0 %v806, 12
        %v884 = vpop.permute.xlu0 %883
        %885 = vrot.lane.b32.xlu0 %v809, 12
        %v886 = vpop.permute.xlu0 %885
        %887 = vrot.lane.b32.xlu0 %v811, 12
        %v888 = vpop.permute.xlu0 %887
        %889 = vrot.lane.b32.xlu0 %v814, 12
        %v890 = vpop.permute.xlu0 %889
        %891 = vrot.lane.b32.xlu0 %v816, 12
        %v892 = vpop.permute.xlu0 %891
        %893 = vrot.lane.b32.xlu0 %v819, 12
        %v894 = vpop.permute.xlu0 %893
        %895 = vrot.lane.b32.xlu0 %v821, 12
        %v896 = vpop.permute.xlu0 %895
        %897 = vrot.lane.b32.xlu0 %v824, 12
        %v898 = vpop.permute.xlu0 %897
        %899 = vrot.lane.b32.xlu0 %v826, 12
        %v900 = vpop.permute.xlu0 %899
        %901 = vrot.lane.b32.xlu0 %v829, 12
        %v902 = vpop.permute.xlu0 %901
        %903 = vrot.lane.b32.xlu0 %v831, 12
        %v904 = vpop.permute.xlu0 %903
        %905 = vrot.lane.b32.xlu0 %v834, 12
        %v906 = vpop.permute.xlu0 %905
        %907 = vrot.lane.b32.xlu0 %v836, 12
        %v908 = vpop.permute.xlu0 %907
        %909 = vrot.lane.b32.xlu0 %v839, 12
        %v910 = vpop.permute.xlu0 %909
        %911 = vrot.lane.b32.xlu0 %v841, 12
        %v912 = vpop.permute.xlu0 %911
        %913 = vrot.lane.b32.xlu0 %v844, 12
        %v914 = vpop.permute.xlu0 %913
        %915 = vrot.lane.b32.xlu0 %v846, 12
        %v916 = vpop.permute.xlu0 %915
        %917 = vrot.lane.b32.xlu0 %v849, 12
        %v918 = vpop.permute.xlu0 %917
        %919 = vrot.lane.b32.xlu0 %v851, 12
        %v920 = vpop.permute.xlu0 %919
        %921 = vrot.lane.b32.xlu0 %v854, 12
        %v922 = vpop.permute.xlu0 %921
        %923 = vrot.lane.b32.xlu0 %v856, 12
        %v924 = vpop.permute.xlu0 %923
        %925 = vrot.lane.b32.xlu0 %v859, 12
        %v926 = vpop.permute.xlu0 %925
        %927 = vrot.lane.b32.xlu0 %v861, 12
        %v928 = vpop.permute.xlu0 %927
        %929 = vrot.lane.b32.xlu0 %v864, 12
        %v930 = vpop.permute.xlu0 %929
        %931 = vrot.lane.b32.xlu0 %v866, 12
        %v932 = vpop.permute.xlu0 %931
        %933 = vrot.lane.b32.xlu0 %v869, 12
        %v934 = vpop.permute.xlu0 %933
        %935 = vrot.lane.b32.xlu0 %v871, 12
        %v936 = vpop.permute.xlu0 %935
        %937 = vrot.lane.b32.xlu0 %v874, 12
        %v938 = vpop.permute.xlu0 %937
        %939 = vrot.lane.b32.xlu0 %v876, 12
        %v940 = vpop.permute.xlu0 %939
        %vm973 = vcmask 1042432
        %v974 = vrot.slane %v169, 5
        %v975 = vrot.slane %v170, 5
        %v976 = vsel %vm973, %v974, %v975
        %v977 = vrot.slane %v171, 5
        %v978 = vsel %vm973, %v975, %v977
        %v979 = vrot.slane %v172, 5
        %v980 = vrot.slane %v173, 5
        %v981 = vsel %vm973, %v979, %v980
        %v982 = vrot.slane %v174, 5
        %v983 = vsel %vm973, %v980, %v982
        %v984 = vrot.slane %v175, 5
        %v985 = vrot.slane %v176, 5
        %v986 = vsel %vm973, %v984, %v985
        %v987 = vrot.slane %v177, 5
        %v988 = vsel %vm973, %v985, %v987
        %v989 = vrot.slane %v178, 5
        %v990 = vrot.slane %v179, 5
        %v991 = vsel %vm973, %v989, %v990
        %v992 = vrot.slane %v180, 5
        %v993 = vsel %vm973, %v990, %v992
        %v994 = vrot.slane %v181, 5
        %v995 = vrot.slane %v182, 5
        %v996 = vsel %vm973, %v994, %v995
        %v997 = vrot.slane %v183, 5
        %v998 = vsel %vm973, %v995, %v997
        %v999 = vrot.slane %v184, 5
        %v1000 = vrot.slane %v185, 5
        %v1001 = vsel %vm973, %v999, %v1000
        %v1002 = vrot.slane %v186, 5
        %v1003 = vsel %vm973, %v1000, %v1002
        %v1004 = vrot.slane %v187, 5
        %v1005 = vrot.slane %v188, 5
        %v1006 = vsel %vm973, %v1004, %v1005
        %v1007 = vrot.slane %v189, 5
        %v1008 = vsel %vm973, %v1005, %v1007
        %v1009 = vrot.slane %v190, 5
        %v1010 = vrot.slane %v191, 5
        %v1011 = vsel %vm973, %v1009, %v1010
        %v1012 = vrot.slane %v192, 5
        %v1013 = vsel %vm973, %v1010, %v1012
        %v1014 = vrot.slane %v193, 5
        %v1015 = vrot.slane %v194, 5
        %v1016 = vsel %vm973, %v1014, %v1015
        %v1017 = vrot.slane %v195, 5
        %v1018 = vsel %vm973, %v1015, %v1017
        %v1019 = vrot.slane %v196, 5
        %v1020 = vrot.slane %v197, 5
        %v1021 = vsel %vm973, %v1019, %v1020
        %v1022 = vrot.slane %v198, 5
        %v1023 = vsel %vm973, %v1020, %v1022
        %v1024 = vrot.slane %v199, 5
        %v1025 = vrot.slane %v200, 5
        %v1026 = vsel %vm973, %v1024, %v1025
        %v1027 = vrot.slane %v201, 5
        %v1028 = vsel %vm973, %v1025, %v1027
        %v1029 = vrot.slane %v202, 5
        %v1030 = vrot.slane %v203, 5
        %v1031 = vsel %vm973, %v1029, %v1030
        %v1032 = vrot.slane %v204, 5
        %v1033 = vsel %vm973, %v1030, %v1032
        %v1034 = vrot.slane %v205, 5
        %v1035 = vrot.slane %v206, 5
        %v1036 = vsel %vm973, %v1034, %v1035
        %v1037 = vrot.slane %v207, 5
        %v1038 = vsel %vm973, %v1035, %v1037
        %v1039 = vrot.slane %v208, 5
        %v1040 = vrot.slane %v209, 5
        %v1041 = vsel %vm973, %v1039, %v1040
        %v1042 = vrot.slane %v210, 5
        %v1043 = vsel %vm973, %v1040, %v1042
        %v1044 = vrot.slane %v211, 5
        %v1045 = vrot.slane %v212, 5
        %v1046 = vsel %vm973, %v1044, %v1045
        %v1047 = vrot.slane %v213, 5
        %v1048 = vsel %vm973, %v1045, %v1047
        %v1049 = vrot.slane %v214, 5
        %v1050 = vrot.slane %v215, 5
        %v1051 = vsel %vm973, %v1049, %v1050
        %v1052 = vrot.slane %v216, 5
        %v1053 = vsel %vm973, %v1050, %v1052
        %1054 = vrot.lane.b32.xlu0 %v976, 15
        %v1055 = vpop.permute.xlu0 %1054
        %1056 = vrot.lane.b32.xlu0 %v978, 15
        %v1057 = vpop.permute.xlu0 %1056
        %1058 = vrot.lane.b32.xlu0 %v981, 15
        %v1059 = vpop.permute.xlu0 %1058
        %1060 = vrot.lane.b32.xlu0 %v983, 15
        %v1061 = vpop.permute.xlu0 %1060
        %1062 = vrot.lane.b32.xlu0 %v986, 15
        %v1063 = vpop.permute.xlu0 %1062
        %1064 = vrot.lane.b32.xlu0 %v988, 15
        %v1065 = vpop.permute.xlu0 %1064
        %1066 = vrot.lane.b32.xlu0 %v991, 15
        %v1067 = vpop.permute.xlu0 %1066
        %1068 = vrot.lane.b32.xlu0 %v993, 15
        %v1069 = vpop.permute.xlu0 %1068
        %1070 = vrot.lane.b32.xlu0 %v996, 15
        %v1071 = vpop.permute.xlu0 %1070
        %1072 = vrot.lane.b32.xlu0 %v998, 15
        %v1073 = vpop.permute.xlu0 %1072
        %1074 = vrot.lane.b32.xlu0 %v1001, 15
        %v1075 = vpop.permute.xlu0 %1074
        %1076 = vrot.lane.b32.xlu0 %v1003, 15
        %v1077 = vpop.permute.xlu0 %1076
        %1078 = vrot.lane.b32.xlu0 %v1006, 15
        %v1079 = vpop.permute.xlu0 %1078
        %1080 = vrot.lane.b32.xlu0 %v1008, 15
        %v1081 = vpop.permute.xlu0 %1080
        %1082 = vrot.lane.b32.xlu0 %v1011, 15
        %v1083 = vpop.permute.xlu0 %1082
        %1084 = vrot.lane.b32.xlu0 %v1013, 15
        %v1085 = vpop.permute.xlu0 %1084
        %1086 = vrot.lane.b32.xlu0 %v1016, 15
        %v1087 = vpop.permute.xlu0 %1086
        %1088 = vrot.lane.b32.xlu0 %v1018, 15
        %v1089 = vpop.permute.xlu0 %1088
        %1090 = vrot.lane.b32.xlu0 %v1021, 15
        %v1091 = vpop.permute.xlu0 %1090
        %1092 = vrot.lane.b32.xlu0 %v1023, 15
        %v1093 = vpop.permute.xlu0 %1092
        %1094 = vrot.lane.b32.xlu0 %v1026, 15
        %v1095 = vpop.permute.xlu0 %1094
        %1096 = vrot.lane.b32.xlu0 %v1028, 15
        %v1097 = vpop.permute.xlu0 %1096
        %1098 = vrot.lane.b32.xlu0 %v1031, 15
        %v1099 = vpop.permute.xlu0 %1098
        %1100 = vrot.lane.b32.xlu0 %v1033, 15
        %v1101 = vpop.permute.xlu0 %1100
        %1102 = vrot.lane.b32.xlu0 %v1036, 15
        %v1103 = vpop.permute.xlu0 %1102
        %1104 = vrot.lane.b32.xlu0 %v1038, 15
        %v1105 = vpop.permute.xlu0 %1104
        %1106 = vrot.lane.b32.xlu0 %v1041, 15
        %v1107 = vpop.permute.xlu0 %1106
        %1108 = vrot.lane.b32.xlu0 %v1043, 15
        %v1109 = vpop.permute.xlu0 %1108
        %1110 = vrot.lane.b32.xlu0 %v1046, 15
        %v1111 = vpop.permute.xlu0 %1110
        %1112 = vrot.lane.b32.xlu0 %v1048, 15
        %v1113 = vpop.permute.xlu0 %1112
        %1114 = vrot.lane.b32.xlu0 %v1051, 15
        %v1115 = vpop.permute.xlu0 %1114
        %1116 = vrot.lane.b32.xlu0 %v1053, 15
        %v1117 = vpop.permute.xlu0 %1116
        %vm1150 = vcmask 1041408
        %v1151 = vrot.slane %v169, 6
        %v1152 = vrot.slane %v170, 6
        %v1153 = vsel %vm1150, %v1151, %v1152
        %v1154 = vrot.slane %v171, 6
        %v1155 = vsel %vm1150, %v1152, %v1154
        %v1156 = vrot.slane %v172, 6
        %v1157 = vrot.slane %v173, 6
        %v1158 = vsel %vm1150, %v1156, %v1157
        %v1159 = vrot.slane %v174, 6
        %v1160 = vsel %vm1150, %v1157, %v1159
        %v1161 = vrot.slane %v175, 6
        %v1162 = vrot.slane %v176, 6
        %v1163 = vsel %vm1150, %v1161, %v1162
        %v1164 = vrot.slane %v177, 6
        %v1165 = vsel %vm1150, %v1162, %v1164
        %v1166 = vrot.slane %v178, 6
        %v1167 = vrot.slane %v179, 6
        %v1168 = vsel %vm1150, %v1166, %v1167
        %v1169 = vrot.slane %v180, 6
        %v1170 = vsel %vm1150, %v1167, %v1169
        %v1171 = vrot.slane %v181, 6
        %v1172 = vrot.slane %v182, 6
        %v1173 = vsel %vm1150, %v1171, %v1172
        %v1174 = vrot.slane %v183, 6
        %v1175 = vsel %vm1150, %v1172, %v1174
        %v1176 = vrot.slane %v184, 6
        %v1177 = vrot.slane %v185, 6
        %v1178 = vsel %vm1150, %v1176, %v1177
        %v1179 = vrot.slane %v186, 6
        %v1180 = vsel %vm1150, %v1177, %v1179
        %v1181 = vrot.slane %v187, 6
        %v1182 = vrot.slane %v188, 6
        %v1183 = vsel %vm1150, %v1181, %v1182
        %v1184 = vrot.slane %v189, 6
        %v1185 = vsel %vm1150, %v1182, %v1184
        %v1186 = vrot.slane %v190, 6
        %v1187 = vrot.slane %v191, 6
        %v1188 = vsel %vm1150, %v1186, %v1187
        %v1189 = vrot.slane %v192, 6
        %v1190 = vsel %vm1150, %v1187, %v1189
        %v1191 = vrot.slane %v193, 6
        %v1192 = vrot.slane %v194, 6
        %v1193 = vsel %vm1150, %v1191, %v1192
        %v1194 = vrot.slane %v195, 6
        %v1195 = vsel %vm1150, %v1192, %v1194
        %v1196 = vrot.slane %v196, 6
        %v1197 = vrot.slane %v197, 6
        %v1198 = vsel %vm1150, %v1196, %v1197
        %v1199 = vrot.slane %v198, 6
        %v1200 = vsel %vm1150, %v1197, %v1199
        %v1201 = vrot.slane %v199, 6
        %v1202 = vrot.slane %v200, 6
        %v1203 = vsel %vm1150, %v1201, %v1202
        %v1204 = vrot.slane %v201, 6
        %v1205 = vsel %vm1150, %v1202, %v1204
        %v1206 = vrot.slane %v202, 6
        %v1207 = vrot.slane %v203, 6
        %v1208 = vsel %vm1150, %v1206, %v1207
        %v1209 = vrot.slane %v204, 6
        %v1210 = vsel %vm1150, %v1207, %v1209
        %v1211 = vrot.slane %v205, 6
        %v1212 = vrot.slane %v206, 6
        %v1213 = vsel %vm1150, %v1211, %v1212
        %v1214 = vrot.slane %v207, 6
        %v1215 = vsel %vm1150, %v1212, %v1214
        %v1216 = vrot.slane %v208, 6
        %v1217 = vrot.slane %v209, 6
        %v1218 = vsel %vm1150, %v1216, %v1217
        %v1219 = vrot.slane %v210, 6
        %v1220 = vsel %vm1150, %v1217, %v1219
        %v1221 = vrot.slane %v211, 6
        %v1222 = vrot.slane %v212, 6
        %v1223 = vsel %vm1150, %v1221, %v1222
        %v1224 = vrot.slane %v213, 6
        %v1225 = vsel %vm1150, %v1222, %v1224
        %v1226 = vrot.slane %v214, 6
        %v1227 = vrot.slane %v215, 6
        %v1228 = vsel %vm1150, %v1226, %v1227
        %v1229 = vrot.slane %v216, 6
        %v1230 = vsel %vm1150, %v1227, %v1229
        %1231 = vrot.lane.b32.xlu0 %v1153, 18
        %v1232 = vpop.permute.xlu0 %1231
        %1233 = vrot.lane.b32.xlu0 %v1155, 18
        %v1234 = vpop.permute.xlu0 %1233
        %1235 = vrot.lane.b32.xlu0 %v1158, 18
        %v1236 = vpop.permute.xlu0 %1235
        %1237 = vrot.lane.b32.xlu0 %v1160, 18
        %v1238 = vpop.permute.xlu0 %1237
        %1239 = vrot.lane.b32.xlu0 %v1163, 18
        %v1240 = vpop.permute.xlu0 %1239
        %1241 = vrot.lane.b32.xlu0 %v1165, 18
        %v1242 = vpop.permute.xlu0 %1241
        %1243 = vrot.lane.b32.xlu0 %v1168, 18
        %v1244 = vpop.permute.xlu0 %1243
        %1245 = vrot.lane.b32.xlu0 %v1170, 18
        %v1246 = vpop.permute.xlu0 %1245
        %1247 = vrot.lane.b32.xlu0 %v1173, 18
        %v1248 = vpop.permute.xlu0 %1247
        %1249 = vrot.lane.b32.xlu0 %v1175, 18
        %v1250 = vpop.permute.xlu0 %1249
        %1251 = vrot.lane.b32.xlu0 %v1178, 18
        %v1252 = vpop.permute.xlu0 %1251
        %1253 = vrot.lane.b32.xlu0 %v1180, 18
        %v1254 = vpop.permute.xlu0 %1253
        %1255 = vrot.lane.b32.xlu0 %v1183, 18
        %v1256 = vpop.permute.xlu0 %1255
        %1257 = vrot.lane.b32.xlu0 %v1185, 18
        %v1258 = vpop.permute.xlu0 %1257
        %1259 = vrot.lane.b32.xlu0 %v1188, 18
        %v1260 = vpop.permute.xlu0 %1259
        %1261 = vrot.lane.b32.xlu0 %v1190, 18
        %v1262 = vpop.permute.xlu0 %1261
        %1263 = vrot.lane.b32.xlu0 %v1193, 18
        %v1264 = vpop.permute.xlu0 %1263
        %1265 = vrot.lane.b32.xlu0 %v1195, 18
        %v1266 = vpop.permute.xlu0 %1265
        %1267 = vrot.lane.b32.xlu0 %v1198, 18
        %v1268 = vpop.permute.xlu0 %1267
        %1269 = vrot.lane.b32.xlu0 %v1200, 18
        %v1270 = vpop.permute.xlu0 %1269
        %1271 = vrot.lane.b32.xlu0 %v1203, 18
        %v1272 = vpop.permute.xlu0 %1271
        %1273 = vrot.lane.b32.xlu0 %v1205, 18
        %v1274 = vpop.permute.xlu0 %1273
        %1275 = vrot.lane.b32.xlu0 %v1208, 18
        %v1276 = vpop.permute.xlu0 %1275
        %1277 = vrot.lane.b32.xlu0 %v1210, 18
        %v1278 = vpop.permute.xlu0 %1277
        %1279 = vrot.lane.b32.xlu0 %v1213, 18
        %v1280 = vpop.permute.xlu0 %1279
        %1281 = vrot.lane.b32.xlu0 %v1215, 18
        %v1282 = vpop.permute.xlu0 %1281
        %1283 = vrot.lane.b32.xlu0 %v1218, 18
        %v1284 = vpop.permute.xlu0 %1283
        %1285 = vrot.lane.b32.xlu0 %v1220, 18
        %v1286 = vpop.permute.xlu0 %1285
        %1287 = vrot.lane.b32.xlu0 %v1223, 18
        %v1288 = vpop.permute.xlu0 %1287
        %1289 = vrot.lane.b32.xlu0 %v1225, 18
        %v1290 = vpop.permute.xlu0 %1289
        %1291 = vrot.lane.b32.xlu0 %v1228, 18
        %v1292 = vpop.permute.xlu0 %1291
        %1293 = vrot.lane.b32.xlu0 %v1230, 18
        %v1294 = vpop.permute.xlu0 %1293
        %vm1327 = vcmask 23552
        %v1328 = vsel %vm1327, %v169, %v347
        %v1329 = vsel %vm1327, %v170, %v349
        %v1330 = vsel %vm1327, %v172, %v351
        %v1331 = vsel %vm1327, %v173, %v353
        %v1332 = vsel %vm1327, %v175, %v355
        %v1333 = vsel %vm1327, %v176, %v357
        %v1334 = vsel %vm1327, %v178, %v359
        %v1335 = vsel %vm1327, %v179, %v361
        %v1336 = vsel %vm1327, %v181, %v363
        %v1337 = vsel %vm1327, %v182, %v365
        %v1338 = vsel %vm1327, %v184, %v367
        %v1339 = vsel %vm1327, %v185, %v369
        %v1340 = vsel %vm1327, %v187, %v371
        %v1341 = vsel %vm1327, %v188, %v373
        %v1342 = vsel %vm1327, %v190, %v375
        %v1343 = vsel %vm1327, %v191, %v377
        %v1344 = vsel %vm1327, %v193, %v379
        %v1345 = vsel %vm1327, %v194, %v381
        %v1346 = vsel %vm1327, %v196, %v383
        %v1347 = vsel %vm1327, %v197, %v385
        %v1348 = vsel %vm1327, %v199, %v387
        %v1349 = vsel %vm1327, %v200, %v389
        %v1350 = vsel %vm1327, %v202, %v391
        %v1351 = vsel %vm1327, %v203, %v393
        %v1352 = vsel %vm1327, %v205, %v395
        %v1353 = vsel %vm1327, %v206, %v397
        %v1354 = vsel %vm1327, %v208, %v399
        %v1355 = vsel %vm1327, %v209, %v401
        %v1356 = vsel %vm1327, %v211, %v403
        %v1357 = vsel %vm1327, %v212, %v405
        %v1358 = vsel %vm1327, %v214, %v407
        %v1359 = vsel %vm1327, %v215, %v409
        %vm1360 = vcmask 48128
        %v1361 = vsel %vm1360, %v1328, %v524
        %v1362 = vsel %vm1360, %v1329, %v526
        %v1363 = vsel %vm1360, %v1330, %v528
        %v1364 = vsel %vm1360, %v1331, %v530
        %v1365 = vsel %vm1360, %v1332, %v532
        %v1366 = vsel %vm1360, %v1333, %v534
        %v1367 = vsel %vm1360, %v1334, %v536
        %v1368 = vsel %vm1360, %v1335, %v538
        %v1369 = vsel %vm1360, %v1336, %v540
        %v1370 = vsel %vm1360, %v1337, %v542
        %v1371 = vsel %vm1360, %v1338, %v544
        %v1372 = vsel %vm1360, %v1339, %v546
        %v1373 = vsel %vm1360, %v1340, %v548
        %v1374 = vsel %vm1360, %v1341, %v550
        %v1375 = vsel %vm1360, %v1342, %v552
        %v1376 = vsel %vm1360, %v1343, %v554
        %v1377 = vsel %vm1360, %v1344, %v556
        %v1378 = vsel %vm1360, %v1345, %v558
        %v1379 = vsel %vm1360, %v1346, %v560
        %v1380 = vsel %vm1360, %v1347, %v562
        %v1381 = vsel %vm1360, %v1348, %v564
        %v1382 = vsel %vm1360, %v1349, %v566
        %v1383 = vsel %vm1360, %v1350, %v568
        %v1384 = vsel %vm1360, %v1351, %v570
        %v1385 = vsel %vm1360, %v1352, %v572
        %v1386 = vsel %vm1360, %v1353, %v574
        %v1387 = vsel %vm1360, %v1354, %v576
        %v1388 = vsel %vm1360, %v1355, %v578
        %v1389 = vsel %vm1360, %v1356, %v580
        %v1390 = vsel %vm1360, %v1357, %v582
        %v1391 = vsel %vm1360, %v1358, %v584
        %v1392 = vsel %vm1360, %v1359, %v586
        %vm1393 = vcmask 72704
        %v1394 = vsel %vm1393, %v1361, %v701
        %v1395 = vsel %vm1393, %v1362, %v703
        %v1396 = vsel %vm1393, %v1363, %v705
        %v1397 = vsel %vm1393, %v1364, %v707
        %v1398 = vsel %vm1393, %v1365, %v709
        %v1399 = vsel %vm1393, %v1366, %v711
        %v1400 = vsel %vm1393, %v1367, %v713
        %v1401 = vsel %vm1393, %v1368, %v715
        %v1402 = vsel %vm1393, %v1369, %v717
        %v1403 = vsel %vm1393, %v1370, %v719
        %v1404 = vsel %vm1393, %v1371, %v721
        %v1405 = vsel %vm1393, %v1372, %v723
        %v1406 = vsel %vm1393, %v1373, %v725
        %v1407 = vsel %vm1393, %v1374, %v727
        %v1408 = vsel %vm1393, %v1375, %v729
        %v1409 = vsel %vm1393, %v1376, %v731
        %v1410 = vsel %vm1393, %v1377, %v733
        %v1411 = vsel %vm1393, %v1378, %v735
        %v1412 = vsel %vm1393, %v1379, %v737
        %v1413 = vsel %vm1393, %v1380, %v739
        %v1414 = vsel %vm1393, %v1381, %v741
        %v1415 = vsel %vm1393, %v1382, %v743
        %v1416 = vsel %vm1393, %v1383, %v745
        %v1417 = vsel %vm1393, %v1384, %v747
        %v1418 = vsel %vm1393, %v1385, %v749
        %v1419 = vsel %vm1393, %v1386, %v751
        %v1420 = vsel %vm1393, %v1387, %v753
        %v1421 = vsel %vm1393, %v1388, %v755
        %v1422 = vsel %vm1393, %v1389, %v757
        %v1423 = vsel %vm1393, %v1390, %v759
        %v1424 = vsel %vm1393, %v1391, %v761
        %v1425 = vsel %vm1393, %v1392, %v763
        %vm1426 = vcmask 97280
        %v1427 = vsel %vm1426, %v1394, %v878
        %v1428 = vsel %vm1426, %v1395, %v880
        %v1429 = vsel %vm1426, %v1396, %v882
        %v1430 = vsel %vm1426, %v1397, %v884
        %v1431 = vsel %vm1426, %v1398, %v886
        %v1432 = vsel %vm1426, %v1399, %v888
        %v1433 = vsel %vm1426, %v1400, %v890
        %v1434 = vsel %vm1426, %v1401, %v892
        %v1435 = vsel %vm1426, %v1402, %v894
        %v1436 = vsel %vm1426, %v1403, %v896
        %v1437 = vsel %vm1426, %v1404, %v898
        %v1438 = vsel %vm1426, %v1405, %v900
        %v1439 = vsel %vm1426, %v1406, %v902
        %v1440 = vsel %vm1426, %v1407, %v904
        %v1441 = vsel %vm1426, %v1408, %v906
        %v1442 = vsel %vm1426, %v1409, %v908
        %v1443 = vsel %vm1426, %v1410, %v910
        %v1444 = vsel %vm1426, %v1411, %v912
        %v1445 = vsel %vm1426, %v1412, %v914
        %v1446 = vsel %vm1426, %v1413, %v916
        %v1447 = vsel %vm1426, %v1414, %v918
        %v1448 = vsel %vm1426, %v1415, %v920
        %v1449 = vsel %vm1426, %v1416, %v922
        %v1450 = vsel %vm1426, %v1417, %v924
        %v1451 = vsel %vm1426, %v1418, %v926
        %v1452 = vsel %vm1426, %v1419, %v928
        %v1453 = vsel %vm1426, %v1420, %v930
        %v1454 = vsel %vm1426, %v1421, %v932
        %v1455 = vsel %vm1426, %v1422, %v934
        %v1456 = vsel %vm1426, %v1423, %v936
        %v1457 = vsel %vm1426, %v1424, %v938
        %v1458 = vsel %vm1426, %v1425, %v940
        %vm1459 = vcmask 121856
        %v1460 = vsel %vm1459, %v1427, %v1055
        %v1461 = vsel %vm1459, %v1428, %v1057
        %v1462 = vsel %vm1459, %v1429, %v1059
        %v1463 = vsel %vm1459, %v1430, %v1061
        %v1464 = vsel %vm1459, %v1431, %v1063
        %v1465 = vsel %vm1459, %v1432, %v1065
        %v1466 = vsel %vm1459, %v1433, %v1067
        %v1467 = vsel %vm1459, %v1434, %v1069
        %v1468 = vsel %vm1459, %v1435, %v1071
        %v1469 = vsel %vm1459, %v1436, %v1073
        %v1470 = vsel %vm1459, %v1437, %v1075
        %v1471 = vsel %vm1459, %v1438, %v1077
        %v1472 = vsel %vm1459, %v1439, %v1079
        %v1473 = vsel %vm1459, %v1440, %v1081
        %v1474 = vsel %vm1459, %v1441, %v1083
        %v1475 = vsel %vm1459, %v1442, %v1085
        %v1476 = vsel %vm1459, %v1443, %v1087
        %v1477 = vsel %vm1459, %v1444, %v1089
        %v1478 = vsel %vm1459, %v1445, %v1091
        %v1479 = vsel %vm1459, %v1446, %v1093
        %v1480 = vsel %vm1459, %v1447, %v1095
        %v1481 = vsel %vm1459, %v1448, %v1097
        %v1482 = vsel %vm1459, %v1449, %v1099
        %v1483 = vsel %vm1459, %v1450, %v1101
        %v1484 = vsel %vm1459, %v1451, %v1103
        %v1485 = vsel %vm1459, %v1452, %v1105
        %v1486 = vsel %vm1459, %v1453, %v1107
        %v1487 = vsel %vm1459, %v1454, %v1109
        %v1488 = vsel %vm1459, %v1455, %v1111
        %v1489 = vsel %vm1459, %v1456, %v1113
        %v1490 = vsel %vm1459, %v1457, %v1115
        %v1491 = vsel %vm1459, %v1458, %v1117
        %vm1492 = vcmask 146432
        %v1493 = vsel %vm1492, %v1460, %v1232
        %v1494 = vsel %vm1492, %v1461, %v1234
        %v1495 = vsel %vm1492, %v1462, %v1236
        %v1496 = vsel %vm1492, %v1463, %v1238
        %v1497 = vsel %vm1492, %v1464, %v1240
        %v1498 = vsel %vm1492, %v1465, %v1242
        %v1499 = vsel %vm1492, %v1466, %v1244
        %v1500 = vsel %vm1492, %v1467, %v1246
        %v1501 = vsel %vm1492, %v1468, %v1248
        %v1502 = vsel %vm1492, %v1469, %v1250
        %v1503 = vsel %vm1492, %v1470, %v1252
        %v1504 = vsel %vm1492, %v1471, %v1254
        %v1505 = vsel %vm1492, %v1472, %v1256
        %v1506 = vsel %vm1492, %v1473, %v1258
        %v1507 = vsel %vm1492, %v1474, %v1260
        %v1508 = vsel %vm1492, %v1475, %v1262
        %v1509 = vsel %vm1492, %v1476, %v1264
        %v1510 = vsel %vm1492, %v1477, %v1266
        %v1511 = vsel %vm1492, %v1478, %v1268
        %v1512 = vsel %vm1492, %v1479, %v1270
        %v1513 = vsel %vm1492, %v1480, %v1272
        %v1514 = vsel %vm1492, %v1481, %v1274
        %v1515 = vsel %vm1492, %v1482, %v1276
        %v1516 = vsel %vm1492, %v1483, %v1278
        %v1517 = vsel %vm1492, %v1484, %v1280
        %v1518 = vsel %vm1492, %v1485, %v1282
        %v1519 = vsel %vm1492, %v1486, %v1284
        %v1520 = vsel %vm1492, %v1487, %v1286
        %v1521 = vsel %vm1492, %v1488, %v1288
        %v1522 = vsel %vm1492, %v1489, %v1290
        %v1523 = vsel %vm1492, %v1490, %v1292
        %v1524 = vsel %vm1492, %v1491, %v1294
        %v1525 = vld [vmem:[%s1] sm:$0xff]
        %v1526 = vld [vmem:[%s1 + $0x8] sm:$0xff]
        %v1527 = vld [vmem:[%s1 + $0x10] sm:$0x1f]
        %s1528 = scalar_lea.vmem %s168, 24
        %v1529 = vld [vmem:[%s1528] sm:$0xff]
        %v1530 = vld [vmem:[%s1528 + $0x8] sm:$0xff]
        %v1531 = vld [vmem:[%s1528 + $0x10] sm:$0x3f]
        %v1532 = vld [vmem:[%s1528 + $0x18] sm:$0xff]
        %v1533 = vld [vmem:[%s1528 + $0x20] sm:$0xff]
        %v1534 = vld [vmem:[%s1528 + $0x28] sm:$0x3f]
        %v1535 = vld [vmem:[%s1528 + $0x30] sm:$0xff]
        %v1536 = vld [vmem:[%s1528 + $0x38] sm:$0xff]
        %v1537 = vld [vmem:[%s1528 + $0x40] sm:$0x3f]
        %v1538 = vld [vmem:[%s1528 + $0x48] sm:$0xff]
        %v1539 = vld [vmem:[%s1528 + $0x50] sm:$0xff]
        %v1540 = vld [vmem:[%s1528 + $0x58] sm:$0x3f]
        %v1541 = vld [vmem:[%s1528 + $0x60] sm:$0xff]
        %v1542 = vld [vmem:[%s1528 + $0x68] sm:$0xff]
        %v1543 = vld [vmem:[%s1528 + $0x70] sm:$0x3f]
        %v1544 = vld [vmem:[%s1528 + $0x78] sm:$0xff]
        %v1545 = vld [vmem:[%s1528 + $0x80] sm:$0xff]
        %v1546 = vld [vmem:[%s1528 + $0x88] sm:$0x3f]
        %v1547 = vld [vmem:[%s1528 + $0x90] sm:$0xff]
        %v1548 = vld [vmem:[%s1528 + $0x98] sm:$0xff]
        %v1549 = vld [vmem:[%s1528 + $0xa0] sm:$0x3f]
        %v1550 = vld [vmem:[%s1528 + $0xa8] sm:$0xff]
        %v1551 = vld [vmem:[%s1528 + $0xb0] sm:$0xff]
        %v1552 = vld [vmem:[%s1528 + $0xb8] sm:$0x3f]
        %v1553 = vld [vmem:[%s1528 + $0xc0] sm:$0xff]
        %v1554 = vld [vmem:[%s1528 + $0xc8] sm:$0xff]
        %v1555 = vld [vmem:[%s1528 + $0xd0] sm:$0x3f]
        %v1556 = vld [vmem:[%s1528 + $0xd8] sm:$0xff]
        %v1557 = vld [vmem:[%s1528 + $0xe0] sm:$0xff]
        %v1558 = vld [vmem:[%s1528 + $0xe8] sm:$0x3f]
        %v1559 = vld [vmem:[%s1528 + $0xf0] sm:$0xff]
        %v1560 = vld [vmem:[%s1528 + $0xf8] sm:$0xff]
        %v1561 = vld [vmem:[%s1528 + $0x100] sm:$0x3f]
        %v1562 = vld [vmem:[%s1528 + $0x108] sm:$0xff]
        %v1563 = vld [vmem:[%s1528 + $0x110] sm:$0xff]
        %v1564 = vld [vmem:[%s1528 + $0x118] sm:$0x3f]
        %v1565 = vld [vmem:[%s1528 + $0x120] sm:$0xff]
        %v1566 = vld [vmem:[%s1528 + $0x128] sm:$0xff]
        %v1567 = vld [vmem:[%s1528 + $0x130] sm:$0x3f]
        %v1568 = vld [vmem:[%s1528 + $0x138] sm:$0xff]
        %v1569 = vld [vmem:[%s1528 + $0x140] sm:$0xff]
        %v1570 = vld [vmem:[%s1528 + $0x148] sm:$0x3f]
        %v1571 = vld [vmem:[%s1528 + $0x150] sm:$0xff]
        %v1572 = vld [vmem:[%s1528 + $0x158] sm:$0xff]
        %v1573 = vld [vmem:[%s1528 + $0x160] sm:$0x3f]
        %v1574 = vld [vmem:[%s1528 + $0x168] sm:$0xff]
        %v1575 = vld [vmem:[%s1528 + $0x170] sm:$0xff]
        %v1576 = vld [vmem:[%s1528 + $0x178] sm:$0x3f]
        %v1625 = vrot.slane %v1529, 1
        %v1626 = vrot.slane %v1530, 1
        %v1627 = vsel %vm265, %v1625, %v1626
        %v1628 = vrot.slane %v1531, 1
        %v1629 = vsel %vm265, %v1626, %v1628
        %v1630 = vrot.slane %v1532, 1
        %v1631 = vrot.slane %v1533, 1
        %v1632 = vsel %vm265, %v1630, %v1631
        %v1633 = vrot.slane %v1534, 1
        %v1634 = vsel %vm265, %v1631, %v1633
        %v1635 = vrot.slane %v1535, 1
        %v1636 = vrot.slane %v1536, 1
        %v1637 = vsel %vm265, %v1635, %v1636
        %v1638 = vrot.slane %v1537, 1
        %v1639 = vsel %vm265, %v1636, %v1638
        %v1640 = vrot.slane %v1538, 1
        %v1641 = vrot.slane %v1539, 1
        %v1642 = vsel %vm265, %v1640, %v1641
        %v1643 = vrot.slane %v1540, 1
        %v1644 = vsel %vm265, %v1641, %v1643
        %v1645 = vrot.slane %v1541, 1
        %v1646 = vrot.slane %v1542, 1
        %v1647 = vsel %vm265, %v1645, %v1646
        %v1648 = vrot.slane %v1543, 1
        %v1649 = vsel %vm265, %v1646, %v1648
        %v1650 = vrot.slane %v1544, 1
        %v1651 = vrot.slane %v1545, 1
        %v1652 = vsel %vm265, %v1650, %v1651
        %v1653 = vrot.slane %v1546, 1
        %v1654 = vsel %vm265, %v1651, %v1653
        %v1655 = vrot.slane %v1547, 1
        %v1656 = vrot.slane %v1548, 1
        %v1657 = vsel %vm265, %v1655, %v1656
        %v1658 = vrot.slane %v1549, 1
        %v1659 = vsel %vm265, %v1656, %v1658
        %v1660 = vrot.slane %v1550, 1
        %v1661 = vrot.slane %v1551, 1
        %v1662 = vsel %vm265, %v1660, %v1661
        %v1663 = vrot.slane %v1552, 1
        %v1664 = vsel %vm265, %v1661, %v1663
        %v1665 = vrot.slane %v1553, 1
        %v1666 = vrot.slane %v1554, 1
        %v1667 = vsel %vm265, %v1665, %v1666
        %v1668 = vrot.slane %v1555, 1
        %v1669 = vsel %vm265, %v1666, %v1668
        %v1670 = vrot.slane %v1556, 1
        %v1671 = vrot.slane %v1557, 1
        %v1672 = vsel %vm265, %v1670, %v1671
        %v1673 = vrot.slane %v1558, 1
        %v1674 = vsel %vm265, %v1671, %v1673
        %v1675 = vrot.slane %v1559, 1
        %v1676 = vrot.slane %v1560, 1
        %v1677 = vsel %vm265, %v1675, %v1676
        %v1678 = vrot.slane %v1561, 1
        %v1679 = vsel %vm265, %v1676, %v1678
        %v1680 = vrot.slane %v1562, 1
        %v1681 = vrot.slane %v1563, 1
        %v1682 = vsel %vm265, %v1680, %v1681
        %v1683 = vrot.slane %v1564, 1
        %v1684 = vsel %vm265, %v1681, %v1683
        %v1685 = vrot.slane %v1565, 1
        %v1686 = vrot.slane %v1566, 1
        %v1687 = vsel %vm265, %v1685, %v1686
        %v1688 = vrot.slane %v1567, 1
        %v1689 = vsel %vm265, %v1686, %v1688
        %v1690 = vrot.slane %v1568, 1
        %v1691 = vrot.slane %v1569, 1
        %v1692 = vsel %vm265, %v1690, %v1691
        %v1693 = vrot.slane %v1570, 1
        %v1694 = vsel %vm265, %v1691, %v1693
        %v1695 = vrot.slane %v1571, 1
        %v1696 = vrot.slane %v1572, 1
        %v1697 = vsel %vm265, %v1695, %v1696
        %v1698 = vrot.slane %v1573, 1
        %v1699 = vsel %vm265, %v1696, %v1698
        %v1700 = vrot.slane %v1574, 1
        %v1701 = vrot.slane %v1575, 1
        %v1702 = vsel %vm265, %v1700, %v1701
        %v1703 = vrot.slane %v1576, 1
        %v1704 = vsel %vm265, %v1701, %v1703
        %1705 = vrot.lane.b32.xlu0 %v1627, 3
        %v1706 = vpop.permute.xlu0 %1705
        %1707 = vrot.lane.b32.xlu0 %v1629, 3
        %v1708 = vpop.permute.xlu0 %1707
        %1709 = vrot.lane.b32.xlu0 %v1632, 3
        %v1710 = vpop.permute.xlu0 %1709
        %1711 = vrot.lane.b32.xlu0 %v1634, 3
        %v1712 = vpop.permute.xlu0 %1711
        %1713 = vrot.lane.b32.xlu0 %v1637, 3
        %v1714 = vpop.permute.xlu0 %1713
        %1715 = vrot.lane.b32.xlu0 %v1639, 3
        %v1716 = vpop.permute.xlu0 %1715
        %1717 = vrot.lane.b32.xlu0 %v1642, 3
        %v1718 = vpop.permute.xlu0 %1717
        %1719 = vrot.lane.b32.xlu0 %v1644, 3
        %v1720 = vpop.permute.xlu0 %1719
        %1721 = vrot.lane.b32.xlu0 %v1647, 3
        %v1722 = vpop.permute.xlu0 %1721
        %1723 = vrot.lane.b32.xlu0 %v1649, 3
        %v1724 = vpop.permute.xlu0 %1723
        %1725 = vrot.lane.b32.xlu0 %v1652, 3
        %v1726 = vpop.permute.xlu0 %1725
        %1727 = vrot.lane.b32.xlu0 %v1654, 3
        %v1728 = vpop.permute.xlu0 %1727
        %1729 = vrot.lane.b32.xlu0 %v1657, 3
        %v1730 = vpop.permute.xlu0 %1729
        %1731 = vrot.lane.b32.xlu0 %v1659, 3
        %v1732 = vpop.permute.xlu0 %1731
        %1733 = vrot.lane.b32.xlu0 %v1662, 3
        %v1734 = vpop.permute.xlu0 %1733
        %1735 = vrot.lane.b32.xlu0 %v1664, 3
        %v1736 = vpop.permute.xlu0 %1735
        %1737 = vrot.lane.b32.xlu0 %v1667, 3
        %v1738 = vpop.permute.xlu0 %1737
        %1739 = vrot.lane.b32.xlu0 %v1669, 3
        %v1740 = vpop.permute.xlu0 %1739
        %1741 = vrot.lane.b32.xlu0 %v1672, 3
        %v1742 = vpop.permute.xlu0 %1741
        %1743 = vrot.lane.b32.xlu0 %v1674, 3
        %v1744 = vpop.permute.xlu0 %1743
        %1745 = vrot.lane.b32.xlu0 %v1677, 3
        %v1746 = vpop.permute.xlu0 %1745
        %1747 = vrot.lane.b32.xlu0 %v1679, 3
        %v1748 = vpop.permute.xlu0 %1747
        %1749 = vrot.lane.b32.xlu0 %v1682, 3
        %v1750 = vpop.permute.xlu0 %1749
        %1751 = vrot.lane.b32.xlu0 %v1684, 3
        %v1752 = vpop.permute.xlu0 %1751
        %1753 = vrot.lane.b32.xlu0 %v1687, 3
        %v1754 = vpop.permute.xlu0 %1753
        %1755 = vrot.lane.b32.xlu0 %v1689, 3
        %v1756 = vpop.permute.xlu0 %1755
        %1757 = vrot.lane.b32.xlu0 %v1692, 3
        %v1758 = vpop.permute.xlu0 %1757
        %1759 = vrot.lane.b32.xlu0 %v1694, 3
        %v1760 = vpop.permute.xlu0 %1759
        %1761 = vrot.lane.b32.xlu0 %v1697, 3
        %v1762 = vpop.permute.xlu0 %1761
        %1763 = vrot.lane.b32.xlu0 %v1699, 3
        %v1764 = vpop.permute.xlu0 %1763
        %1765 = vrot.lane.b32.xlu0 %v1702, 3
        %v1766 = vpop.permute.xlu0 %1765
        %1767 = vrot.lane.b32.xlu0 %v1704, 3
        %v1768 = vpop.permute.xlu0 %1767
        %v1801 = vrot.slane %v1529, 2
        %v1802 = vrot.slane %v1530, 2
        %v1803 = vsel %vm442, %v1801, %v1802
        %v1804 = vrot.slane %v1531, 2
        %v1805 = vsel %vm442, %v1802, %v1804
        %v1806 = vrot.slane %v1532, 2
        %v1807 = vrot.slane %v1533, 2
        %v1808 = vsel %vm442, %v1806, %v1807
        %v1809 = vrot.slane %v1534, 2
        %v1810 = vsel %vm442, %v1807, %v1809
        %v1811 = vrot.slane %v1535, 2
        %v1812 = vrot.slane %v1536, 2
        %v1813 = vsel %vm442, %v1811, %v1812
        %v1814 = vrot.slane %v1537, 2
        %v1815 = vsel %vm442, %v1812, %v1814
        %v1816 = vrot.slane %v1538, 2
        %v1817 = vrot.slane %v1539, 2
        %v1818 = vsel %vm442, %v1816, %v1817
        %v1819 = vrot.slane %v1540, 2
        %v1820 = vsel %vm442, %v1817, %v1819
        %v1821 = vrot.slane %v1541, 2
        %v1822 = vrot.slane %v1542, 2
        %v1823 = vsel %vm442, %v1821, %v1822
        %v1824 = vrot.slane %v1543, 2
        %v1825 = vsel %vm442, %v1822, %v1824
        %v1826 = vrot.slane %v1544, 2
        %v1827 = vrot.slane %v1545, 2
        %v1828 = vsel %vm442, %v1826, %v1827
        %v1829 = vrot.slane %v1546, 2
        %v1830 = vsel %vm442, %v1827, %v1829
        %v1831 = vrot.slane %v1547, 2
        %v1832 = vrot.slane %v1548, 2
        %v1833 = vsel %vm442, %v1831, %v1832
        %v1834 = vrot.slane %v1549, 2
        %v1835 = vsel %vm442, %v1832, %v1834
        %v1836 = vrot.slane %v1550, 2
        %v1837 = vrot.slane %v1551, 2
        %v1838 = vsel %vm442, %v1836, %v1837
        %v1839 = vrot.slane %v1552, 2
        %v1840 = vsel %vm442, %v1837, %v1839
        %v1841 = vrot.slane %v1553, 2
        %v1842 = vrot.slane %v1554, 2
        %v1843 = vsel %vm442, %v1841, %v1842
        %v1844 = vrot.slane %v1555, 2
        %v1845 = vsel %vm442, %v1842, %v1844
        %v1846 = vrot.slane %v1556, 2
        %v1847 = vrot.slane %v1557, 2
        %v1848 = vsel %vm442, %v1846, %v1847
        %v1849 = vrot.slane %v1558, 2
        %v1850 = vsel %vm442, %v1847, %v1849
        %v1851 = vrot.slane %v1559, 2
        %v1852 = vrot.slane %v1560, 2
        %v1853 = vsel %vm442, %v1851, %v1852
        %v1854 = vrot.slane %v1561, 2
        %v1855 = vsel %vm442, %v1852, %v1854
        %v1856 = vrot.slane %v1562, 2
        %v1857 = vrot.slane %v1563, 2
        %v1858 = vsel %vm442, %v1856, %v1857
        %v1859 = vrot.slane %v1564, 2
        %v1860 = vsel %vm442, %v1857, %v1859
        %v1861 = vrot.slane %v1565, 2
        %v1862 = vrot.slane %v1566, 2
        %v1863 = vsel %vm442, %v1861, %v1862
        %v1864 = vrot.slane %v1567, 2
        %v1865 = vsel %vm442, %v1862, %v1864
        %v1866 = vrot.slane %v1568, 2
        %v1867 = vrot.slane %v1569, 2
        %v1868 = vsel %vm442, %v1866, %v1867
        %v1869 = vrot.slane %v1570, 2
        %v1870 = vsel %vm442, %v1867, %v1869
        %v1871 = vrot.slane %v1571, 2
        %v1872 = vrot.slane %v1572, 2
        %v1873 = vsel %vm442, %v1871, %v1872
        %v1874 = vrot.slane %v1573, 2
        %v1875 = vsel %vm442, %v1872, %v1874
        %v1876 = vrot.slane %v1574, 2
        %v1877 = vrot.slane %v1575, 2
        %v1878 = vsel %vm442, %v1876, %v1877
        %v1879 = vrot.slane %v1576, 2
        %v1880 = vsel %vm442, %v1877, %v1879
        %1881 = vrot.lane.b32.xlu0 %v1803, 6
        %v1882 = vpop.permute.xlu0 %1881
        %1883 = vrot.lane.b32.xlu0 %v1805, 6
        %v1884 = vpop.permute.xlu0 %1883
        %1885 = vrot.lane.b32.xlu0 %v1808, 6
        %v1886 = vpop.permute.xlu0 %1885
        %1887 = vrot.lane.b32.xlu0 %v1810, 6
        %v1888 = vpop.permute.xlu0 %1887
        %1889 = vrot.lane.b32.xlu0 %v1813, 6
        %v1890 = vpop.permute.xlu0 %1889
        %1891 = vrot.lane.b32.xlu0 %v1815, 6
        %v1892 = vpop.permute.xlu0 %1891
        %1893 = vrot.lane.b32.xlu0 %v1818, 6
        %v1894 = vpop.permute.xlu0 %1893
        %1895 = vrot.lane.b32.xlu0 %v1820, 6
        %v1896 = vpop.permute.xlu0 %1895
        %1897 = vrot.lane.b32.xlu0 %v1823, 6
        %v1898 = vpop.permute.xlu0 %1897
        %1899 = vrot.lane.b32.xlu0 %v1825, 6
        %v1900 = vpop.permute.xlu0 %1899
        %1901 = vrot.lane.b32.xlu0 %v1828, 6
        %v1902 = vpop.permute.xlu0 %1901
        %1903 = vrot.lane.b32.xlu0 %v1830, 6
        %v1904 = vpop.permute.xlu0 %1903
        %1905 = vrot.lane.b32.xlu0 %v1833, 6
        %v1906 = vpop.permute.xlu0 %1905
        %1907 = vrot.lane.b32.xlu0 %v1835, 6
        %v1908 = vpop.permute.xlu0 %1907
        %1909 = vrot.lane.b32.xlu0 %v1838, 6
        %v1910 = vpop.permute.xlu0 %1909
        %1911 = vrot.lane.b32.xlu0 %v1840, 6
        %v1912 = vpop.permute.xlu0 %1911
        %1913 = vrot.lane.b32.xlu0 %v1843, 6
        %v1914 = vpop.permute.xlu0 %1913
        %1915 = vrot.lane.b32.xlu0 %v1845, 6
        %v1916 = vpop.permute.xlu0 %1915
        %1917 = vrot.lane.b32.xlu0 %v1848, 6
        %v1918 = vpop.permute.xlu0 %1917
        %1919 = vrot.lane.b32.xlu0 %v1850, 6
        %v1920 = vpop.permute.xlu0 %1919
        %1921 = vrot.lane.b32.xlu0 %v1853, 6
        %v1922 = vpop.permute.xlu0 %1921
        %1923 = vrot.lane.b32.xlu0 %v1855, 6
        %v1924 = vpop.permute.xlu0 %1923
        %1925 = vrot.lane.b32.xlu0 %v1858, 6
        %v1926 = vpop.permute.xlu0 %1925
        %1927 = vrot.lane.b32.xlu0 %v1860, 6
        %v1928 = vpop.permute.xlu0 %1927
        %1929 = vrot.lane.b32.xlu0 %v1863, 6
        %v1930 = vpop.permute.xlu0 %1929
        %1931 = vrot.lane.b32.xlu0 %v1865, 6
        %v1932 = vpop.permute.xlu0 %1931
        %1933 = vrot.lane.b32.xlu0 %v1868, 6
        %v1934 = vpop.permute.xlu0 %1933
        %1935 = vrot.lane.b32.xlu0 %v1870, 6
        %v1936 = vpop.permute.xlu0 %1935
        %1937 = vrot.lane.b32.xlu0 %v1873, 6
        %v1938 = vpop.permute.xlu0 %1937
        %1939 = vrot.lane.b32.xlu0 %v1875, 6
        %v1940 = vpop.permute.xlu0 %1939
        %1941 = vrot.lane.b32.xlu0 %v1878, 6
        %v1942 = vpop.permute.xlu0 %1941
        %1943 = vrot.lane.b32.xlu0 %v1880, 6
        %v1944 = vpop.permute.xlu0 %1943
        %v1977 = vrot.slane %v1529, 3
        %v1978 = vrot.slane %v1530, 3
        %v1979 = vsel %vm619, %v1977, %v1978
        %v1980 = vrot.slane %v1531, 3
        %v1981 = vsel %vm619, %v1978, %v1980
        %v1982 = vrot.slane %v1532, 3
        %v1983 = vrot.slane %v1533, 3
        %v1984 = vsel %vm619, %v1982, %v1983
        %v1985 = vrot.slane %v1534, 3
        %v1986 = vsel %vm619, %v1983, %v1985
        %v1987 = vrot.slane %v1535, 3
        %v1988 = vrot.slane %v1536, 3
        %v1989 = vsel %vm619, %v1987, %v1988
        %v1990 = vrot.slane %v1537, 3
        %v1991 = vsel %vm619, %v1988, %v1990
        %v1992 = vrot.slane %v1538, 3
        %v1993 = vrot.slane %v1539, 3
        %v1994 = vsel %vm619, %v1992, %v1993
        %v1995 = vrot.slane %v1540, 3
        %v1996 = vsel %vm619, %v1993, %v1995
        %v1997 = vrot.slane %v1541, 3
        %v1998 = vrot.slane %v1542, 3
        %v1999 = vsel %vm619, %v1997, %v1998
        %v2000 = vrot.slane %v1543, 3
        %v2001 = vsel %vm619, %v1998, %v2000
        %v2002 = vrot.slane %v1544, 3
        %v2003 = vrot.slane %v1545, 3
        %v2004 = vsel %vm619, %v2002, %v2003
        %v2005 = vrot.slane %v1546, 3
        %v2006 = vsel %vm619, %v2003, %v2005
        %v2007 = vrot.slane %v1547, 3
        %v2008 = vrot.slane %v1548, 3
        %v2009 = vsel %vm619, %v2007, %v2008
        %v2010 = vrot.slane %v1549, 3
        %v2011 = vsel %vm619, %v2008, %v2010
        %v2012 = vrot.slane %v1550, 3
        %v2013 = vrot.slane %v1551, 3
        %v2014 = vsel %vm619, %v2012, %v2013
        %v2015 = vrot.slane %v1552, 3
        %v2016 = vsel %vm619, %v2013, %v2015
        %v2017 = vrot.slane %v1553, 3
        %v2018 = vrot.slane %v1554, 3
        %v2019 = vsel %vm619, %v2017, %v2018
        %v2020 = vrot.slane %v1555, 3
        %v2021 = vsel %vm619, %v2018, %v2020
        %v2022 = vrot.slane %v1556, 3
        %v2023 = vrot.slane %v1557, 3
        %v2024 = vsel %vm619, %v2022, %v2023
        %v2025 = vrot.slane %v1558, 3
        %v2026 = vsel %vm619, %v2023, %v2025
        %v2027 = vrot.slane %v1559, 3
        %v2028 = vrot.slane %v1560, 3
        %v2029 = vsel %vm619, %v2027, %v2028
        %v2030 = vrot.slane %v1561, 3
        %v2031 = vsel %vm619, %v2028, %v2030
        %v2032 = vrot.slane %v1562, 3
        %v2033 = vrot.slane %v1563, 3
        %v2034 = vsel %vm619, %v2032, %v2033
        %v2035 = vrot.slane %v1564, 3
        %v2036 = vsel %vm619, %v2033, %v2035
        %v2037 = vrot.slane %v1565, 3
        %v2038 = vrot.slane %v1566, 3
        %v2039 = vsel %vm619, %v2037, %v2038
        %v2040 = vrot.slane %v1567, 3
        %v2041 = vsel %vm619, %v2038, %v2040
        %v2042 = vrot.slane %v1568, 3
        %v2043 = vrot.slane %v1569, 3
        %v2044 = vsel %vm619, %v2042, %v2043
        %v2045 = vrot.slane %v1570, 3
        %v2046 = vsel %vm619, %v2043, %v2045
        %v2047 = vrot.slane %v1571, 3
        %v2048 = vrot.slane %v1572, 3
        %v2049 = vsel %vm619, %v2047, %v2048
        %v2050 = vrot.slane %v1573, 3
        %v2051 = vsel %vm619, %v2048, %v2050
        %v2052 = vrot.slane %v1574, 3
        %v2053 = vrot.slane %v1575, 3
        %v2054 = vsel %vm619, %v2052, %v2053
        %v2055 = vrot.slane %v1576, 3
        %v2056 = vsel %vm619, %v2053, %v2055
        %2057 = vrot.lane.b32.xlu0 %v1979, 9
        %v2058 = vpop.permute.xlu0 %2057
        %2059 = vrot.lane.b32.xlu0 %v1981, 9
        %v2060 = vpop.permute.xlu0 %2059
        %2061 = vrot.lane.b32.xlu0 %v1984, 9
        %v2062 = vpop.permute.xlu0 %2061
        %2063 = vrot.lane.b32.xlu0 %v1986, 9
        %v2064 = vpop.permute.xlu0 %2063
        %2065 = vrot.lane.b32.xlu0 %v1989, 9
        %v2066 = vpop.permute.xlu0 %2065
        %2067 = vrot.lane.b32.xlu0 %v1991, 9
        %v2068 = vpop.permute.xlu0 %2067
        %2069 = vrot.lane.b32.xlu0 %v1994, 9
        %v2070 = vpop.permute.xlu0 %2069
        %2071 = vrot.lane.b32.xlu0 %v1996, 9
        %v2072 = vpop.permute.xlu0 %2071
        %2073 = vrot.lane.b32.xlu0 %v1999, 9
        %v2074 = vpop.permute.xlu0 %2073
        %2075 = vrot.lane.b32.xlu0 %v2001, 9
        %v2076 = vpop.permute.xlu0 %2075
        %2077 = vrot.lane.b32.xlu0 %v2004, 9
        %v2078 = vpop.permute.xlu0 %2077
        %2079 = vrot.lane.b32.xlu0 %v2006, 9
        %v2080 = vpop.permute.xlu0 %2079
        %2081 = vrot.lane.b32.xlu0 %v2009, 9
        %v2082 = vpop.permute.xlu0 %2081
        %2083 = vrot.lane.b32.xlu0 %v2011, 9
        %v2084 = vpop.permute.xlu0 %2083
        %2085 = vrot.lane.b32.xlu0 %v2014, 9
        %v2086 = vpop.permute.xlu0 %2085
        %2087 = vrot.lane.b32.xlu0 %v2016, 9
        %v2088 = vpop.permute.xlu0 %2087
        %2089 = vrot.lane.b32.xlu0 %v2019, 9
        %v2090 = vpop.permute.xlu0 %2089
        %2091 = vrot.lane.b32.xlu0 %v2021, 9
        %v2092 = vpop.permute.xlu0 %2091
        %2093 = vrot.lane.b32.xlu0 %v2024, 9
        %v2094 = vpop.permute.xlu0 %2093
        %2095 = vrot.lane.b32.xlu0 %v2026, 9
        %v2096 = vpop.permute.xlu0 %2095
        %2097 = vrot.lane.b32.xlu0 %v2029, 9
        %v2098 = vpop.permute.xlu0 %2097
        %2099 = vrot.lane.b32.xlu0 %v2031, 9
        %v2100 = vpop.permute.xlu0 %2099
        %2101 = vrot.lane.b32.xlu0 %v2034, 9
        %v2102 = vpop.permute.xlu0 %2101
        %2103 = vrot.lane.b32.xlu0 %v2036, 9
        %v2104 = vpop.permute.xlu0 %2103
        %2105 = vrot.lane.b32.xlu0 %v2039, 9
        %v2106 = vpop.permute.xlu0 %2105
        %2107 = vrot.lane.b32.xlu0 %v2041, 9
        %v2108 = vpop.permute.xlu0 %2107
        %2109 = vrot.lane.b32.xlu0 %v2044, 9
        %v2110 = vpop.permute.xlu0 %2109
        %2111 = vrot.lane.b32.xlu0 %v2046, 9
        %v2112 = vpop.permute.xlu0 %2111
        %2113 = vrot.lane.b32.xlu0 %v2049, 9
        %v2114 = vpop.permute.xlu0 %2113
        %2115 = vrot.lane.b32.xlu0 %v2051, 9
        %v2116 = vpop.permute.xlu0 %2115
        %2117 = vrot.lane.b32.xlu0 %v2054, 9
        %v2118 = vpop.permute.xlu0 %2117
        %2119 = vrot.lane.b32.xlu0 %v2056, 9
        %v2120 = vpop.permute.xlu0 %2119
        %v2153 = vrot.slane %v1529, 4
        %v2154 = vrot.slane %v1530, 4
        %v2155 = vsel %vm796, %v2153, %v2154
        %v2156 = vrot.slane %v1531, 4
        %v2157 = vsel %vm796, %v2154, %v2156
        %v2158 = vrot.slane %v1532, 4
        %v2159 = vrot.slane %v1533, 4
        %v2160 = vsel %vm796, %v2158, %v2159
        %v2161 = vrot.slane %v1534, 4
        %v2162 = vsel %vm796, %v2159, %v2161
        %v2163 = vrot.slane %v1535, 4
        %v2164 = vrot.slane %v1536, 4
        %v2165 = vsel %vm796, %v2163, %v2164
        %v2166 = vrot.slane %v1537, 4
        %v2167 = vsel %vm796, %v2164, %v2166
        %v2168 = vrot.slane %v1538, 4
        %v2169 = vrot.slane %v1539, 4
        %v2170 = vsel %vm796, %v2168, %v2169
        %v2171 = vrot.slane %v1540, 4
        %v2172 = vsel %vm796, %v2169, %v2171
        %v2173 = vrot.slane %v1541, 4
        %v2174 = vrot.slane %v1542, 4
        %v2175 = vsel %vm796, %v2173, %v2174
        %v2176 = vrot.slane %v1543, 4
        %v2177 = vsel %vm796, %v2174, %v2176
        %v2178 = vrot.slane %v1544, 4
        %v2179 = vrot.slane %v1545, 4
        %v2180 = vsel %vm796, %v2178, %v2179
        %v2181 = vrot.slane %v1546, 4
        %v2182 = vsel %vm796, %v2179, %v2181
        %v2183 = vrot.slane %v1547, 4
        %v2184 = vrot.slane %v1548, 4
        %v2185 = vsel %vm796, %v2183, %v2184
        %v2186 = vrot.slane %v1549, 4
        %v2187 = vsel %vm796, %v2184, %v2186
        %v2188 = vrot.slane %v1550, 4
        %v2189 = vrot.slane %v1551, 4
        %v2190 = vsel %vm796, %v2188, %v2189
        %v2191 = vrot.slane %v1552, 4
        %v2192 = vsel %vm796, %v2189, %v2191
        %v2193 = vrot.slane %v1553, 4
        %v2194 = vrot.slane %v1554, 4
        %v2195 = vsel %vm796, %v2193, %v2194
        %v2196 = vrot.slane %v1555, 4
        %v2197 = vsel %vm796, %v2194, %v2196
        %v2198 = vrot.slane %v1556, 4
        %v2199 = vrot.slane %v1557, 4
        %v2200 = vsel %vm796, %v2198, %v2199
        %v2201 = vrot.slane %v1558, 4
        %v2202 = vsel %vm796, %v2199, %v2201
        %v2203 = vrot.slane %v1559, 4
        %v2204 = vrot.slane %v1560, 4
        %v2205 = vsel %vm796, %v2203, %v2204
        %v2206 = vrot.slane %v1561, 4
        %v2207 = vsel %vm796, %v2204, %v2206
        %v2208 = vrot.slane %v1562, 4
        %v2209 = vrot.slane %v1563, 4
        %v2210 = vsel %vm796, %v2208, %v2209
        %v2211 = vrot.slane %v1564, 4
        %v2212 = vsel %vm796, %v2209, %v2211
        %v2213 = vrot.slane %v1565, 4
        %v2214 = vrot.slane %v1566, 4
        %v2215 = vsel %vm796, %v2213, %v2214
        %v2216 = vrot.slane %v1567, 4
        %v2217 = vsel %vm796, %v2214, %v2216
        %v2218 = vrot.slane %v1568, 4
        %v2219 = vrot.slane %v1569, 4
        %v2220 = vsel %vm796, %v2218, %v2219
        %v2221 = vrot.slane %v1570, 4
        %v2222 = vsel %vm796, %v2219, %v2221
        %v2223 = vrot.slane %v1571, 4
        %v2224 = vrot.slane %v1572, 4
        %v2225 = vsel %vm796, %v2223, %v2224
        %v2226 = vrot.slane %v1573, 4
        %v2227 = vsel %vm796, %v2224, %v2226
        %v2228 = vrot.slane %v1574, 4
        %v2229 = vrot.slane %v1575, 4
        %v2230 = vsel %vm796, %v2228, %v2229
        %v2231 = vrot.slane %v1576, 4
        %v2232 = vsel %vm796, %v2229, %v2231
        %2233 = vrot.lane.b32.xlu0 %v2155, 12
        %v2234 = vpop.permute.xlu0 %2233
        %2235 = vrot.lane.b32.xlu0 %v2157, 12
        %v2236 = vpop.permute.xlu0 %2235
        %2237 = vrot.lane.b32.xlu0 %v2160, 12
        %v2238 = vpop.permute.xlu0 %2237
        %2239 = vrot.lane.b32.xlu0 %v2162, 12
        %v2240 = vpop.permute.xlu0 %2239
        %2241 = vrot.lane.b32.xlu0 %v2165, 12
        %v2242 = vpop.permute.xlu0 %2241
        %2243 = vrot.lane.b32.xlu0 %v2167, 12
        %v2244 = vpop.permute.xlu0 %2243
        %2245 = vrot.lane.b32.xlu0 %v2170, 12
        %v2246 = vpop.permute.xlu0 %2245
        %2247 = vrot.lane.b32.xlu0 %v2172, 12
        %v2248 = vpop.permute.xlu0 %2247
        %2249 = vrot.lane.b32.xlu0 %v2175, 12
        %v2250 = vpop.permute.xlu0 %2249
        %2251 = vrot.lane.b32.xlu0 %v2177, 12
        %v2252 = vpop.permute.xlu0 %2251
        %2253 = vrot.lane.b32.xlu0 %v2180, 12
        %v2254 = vpop.permute.xlu0 %2253
        %2255 = vrot.lane.b32.xlu0 %v2182, 12
        %v2256 = vpop.permute.xlu0 %2255
        %2257 = vrot.lane.b32.xlu0 %v2185, 12
        %v2258 = vpop.permute.xlu0 %2257
        %2259 = vrot.lane.b32.xlu0 %v2187, 12
        %v2260 = vpop.permute.xlu0 %2259
        %2261 = vrot.lane.b32.xlu0 %v2190, 12
        %v2262 = vpop.permute.xlu0 %2261
        %2263 = vrot.lane.b32.xlu0 %v2192, 12
        %v2264 = vpop.permute.xlu0 %2263
        %2265 = vrot.lane.b32.xlu0 %v2195, 12
        %v2266 = vpop.permute.xlu0 %2265
        %2267 = vrot.lane.b32.xlu0 %v2197, 12
        %v2268 = vpop.permute.xlu0 %2267
        %2269 = vrot.lane.b32.xlu0 %v2200, 12
        %v2270 = vpop.permute.xlu0 %2269
        %2271 = vrot.lane.b32.xlu0 %v2202, 12
        %v2272 = vpop.permute.xlu0 %2271
        %2273 = vrot.lane.b32.xlu0 %v2205, 12
        %v2274 = vpop.permute.xlu0 %2273
        %2275 = vrot.lane.b32.xlu0 %v2207, 12
        %v2276 = vpop.permute.xlu0 %2275
        %2277 = vrot.lane.b32.xlu0 %v2210, 12
        %v2278 = vpop.permute.xlu0 %2277
        %2279 = vrot.lane.b32.xlu0 %v2212, 12
        %v2280 = vpop.permute.xlu0 %2279
        %2281 = vrot.lane.b32.xlu0 %v2215, 12
        %v2282 = vpop.permute.xlu0 %2281
        %2283 = vrot.lane.b32.xlu0 %v2217, 12
        %v2284 = vpop.permute.xlu0 %2283
        %2285 = vrot.lane.b32.xlu0 %v2220, 12
        %v2286 = vpop.permute.xlu0 %2285
        %2287 = vrot.lane.b32.xlu0 %v2222, 12
        %v2288 = vpop.permute.xlu0 %2287
        %2289 = vrot.lane.b32.xlu0 %v2225, 12
        %v2290 = vpop.permute.xlu0 %2289
        %2291 = vrot.lane.b32.xlu0 %v2227, 12
        %v2292 = vpop.permute.xlu0 %2291
        %2293 = vrot.lane.b32.xlu0 %v2230, 12
        %v2294 = vpop.permute.xlu0 %2293
        %2295 = vrot.lane.b32.xlu0 %v2232, 12
        %v2296 = vpop.permute.xlu0 %2295
        %v2329 = vrot.slane %v1529, 5
        %v2330 = vrot.slane %v1530, 5
        %v2331 = vsel %vm973, %v2329, %v2330
        %v2332 = vrot.slane %v1531, 5
        %v2333 = vsel %vm973, %v2330, %v2332
        %v2334 = vrot.slane %v1532, 5
        %v2335 = vrot.slane %v1533, 5
        %v2336 = vsel %vm973, %v2334, %v2335
        %v2337 = vrot.slane %v1534, 5
        %v2338 = vsel %vm973, %v2335, %v2337
        %v2339 = vrot.slane %v1535, 5
        %v2340 = vrot.slane %v1536, 5
        %v2341 = vsel %vm973, %v2339, %v2340
        %v2342 = vrot.slane %v1537, 5
        %v2343 = vsel %vm973, %v2340, %v2342
        %v2344 = vrot.slane %v1538, 5
        %v2345 = vrot.slane %v1539, 5
        %v2346 = vsel %vm973, %v2344, %v2345
        %v2347 = vrot.slane %v1540, 5
        %v2348 = vsel %vm973, %v2345, %v2347
        %v2349 = vrot.slane %v1541, 5
        %v2350 = vrot.slane %v1542, 5
        %v2351 = vsel %vm973, %v2349, %v2350
        %v2352 = vrot.slane %v1543, 5
        %v2353 = vsel %vm973, %v2350, %v2352
        %v2354 = vrot.slane %v1544, 5
        %v2355 = vrot.slane %v1545, 5
        %v2356 = vsel %vm973, %v2354, %v2355
        %v2357 = vrot.slane %v1546, 5
        %v2358 = vsel %vm973, %v2355, %v2357
        %v2359 = vrot.slane %v1547, 5
        %v2360 = vrot.slane %v1548, 5
        %v2361 = vsel %vm973, %v2359, %v2360
        %v2362 = vrot.slane %v1549, 5
        %v2363 = vsel %vm973, %v2360, %v2362
        %v2364 = vrot.slane %v1550, 5
        %v2365 = vrot.slane %v1551, 5
        %v2366 = vsel %vm973, %v2364, %v2365
        %v2367 = vrot.slane %v1552, 5
        %v2368 = vsel %vm973, %v2365, %v2367
        %v2369 = vrot.slane %v1553, 5
        %v2370 = vrot.slane %v1554, 5
        %v2371 = vsel %vm973, %v2369, %v2370
        %v2372 = vrot.slane %v1555, 5
        %v2373 = vsel %vm973, %v2370, %v2372
        %v2374 = vrot.slane %v1556, 5
        %v2375 = vrot.slane %v1557, 5
        %v2376 = vsel %vm973, %v2374, %v2375
        %v2377 = vrot.slane %v1558, 5
        %v2378 = vsel %vm973, %v2375, %v2377
        %v2379 = vrot.slane %v1559, 5
        %v2380 = vrot.slane %v1560, 5
        %v2381 = vsel %vm973, %v2379, %v2380
        %v2382 = vrot.slane %v1561, 5
        %v2383 = vsel %vm973, %v2380, %v2382
        %v2384 = vrot.slane %v1562, 5
        %v2385 = vrot.slane %v1563, 5
        %v2386 = vsel %vm973, %v2384, %v2385
        %v2387 = vrot.slane %v1564, 5
        %v2388 = vsel %vm973, %v2385, %v2387
        %v2389 = vrot.slane %v1565, 5
        %v2390 = vrot.slane %v1566, 5
        %v2391 = vsel %vm973, %v2389, %v2390
        %v2392 = vrot.slane %v1567, 5
        %v2393 = vsel %vm973, %v2390, %v2392
        %v2394 = vrot.slane %v1568, 5
        %v2395 = vrot.slane %v1569, 5
        %v2396 = vsel %vm973, %v2394, %v2395
        %v2397 = vrot.slane %v1570, 5
        %v2398 = vsel %vm973, %v2395, %v2397
        %v2399 = vrot.slane %v1571, 5
        %v2400 = vrot.slane %v1572, 5
        %v2401 = vsel %vm973, %v2399, %v2400
        %v2402 = vrot.slane %v1573, 5
        %v2403 = vsel %vm973, %v2400, %v2402
        %v2404 = vrot.slane %v1574, 5
        %v2405 = vrot.slane %v1575, 5
        %v2406 = vsel %vm973, %v2404, %v2405
        %v2407 = vrot.slane %v1576, 5
        %v2408 = vsel %vm973, %v2405, %v2407
        %2409 = vrot.lane.b32.xlu0 %v2331, 15
        %v2410 = vpop.permute.xlu0 %2409
        %2411 = vrot.lane.b32.xlu0 %v2333, 15
        %v2412 = vpop.permute.xlu0 %2411
        %2413 = vrot.lane.b32.xlu0 %v2336, 15
        %v2414 = vpop.permute.xlu0 %2413
        %2415 = vrot.lane.b32.xlu0 %v2338, 15
        %v2416 = vpop.permute.xlu0 %2415
        %2417 = vrot.lane.b32.xlu0 %v2341, 15
        %v2418 = vpop.permute.xlu0 %2417
        %2419 = vrot.lane.b32.xlu0 %v2343, 15
        %v2420 = vpop.permute.xlu0 %2419
        %2421 = vrot.lane.b32.xlu0 %v2346, 15
        %v2422 = vpop.permute.xlu0 %2421
        %2423 = vrot.lane.b32.xlu0 %v2348, 15
        %v2424 = vpop.permute.xlu0 %2423
        %2425 = vrot.lane.b32.xlu0 %v2351, 15
        %v2426 = vpop.permute.xlu0 %2425
        %2427 = vrot.lane.b32.xlu0 %v2353, 15
        %v2428 = vpop.permute.xlu0 %2427
        %2429 = vrot.lane.b32.xlu0 %v2356, 15
        %v2430 = vpop.permute.xlu0 %2429
        %2431 = vrot.lane.b32.xlu0 %v2358, 15
        %v2432 = vpop.permute.xlu0 %2431
        %2433 = vrot.lane.b32.xlu0 %v2361, 15
        %v2434 = vpop.permute.xlu0 %2433
        %2435 = vrot.lane.b32.xlu0 %v2363, 15
        %v2436 = vpop.permute.xlu0 %2435
        %2437 = vrot.lane.b32.xlu0 %v2366, 15
        %v2438 = vpop.permute.xlu0 %2437
        %2439 = vrot.lane.b32.xlu0 %v2368, 15
        %v2440 = vpop.permute.xlu0 %2439
        %2441 = vrot.lane.b32.xlu0 %v2371, 15
        %v2442 = vpop.permute.xlu0 %2441
        %2443 = vrot.lane.b32.xlu0 %v2373, 15
        %v2444 = vpop.permute.xlu0 %2443
        %2445 = vrot.lane.b32.xlu0 %v2376, 15
        %v2446 = vpop.permute.xlu0 %2445
        %2447 = vrot.lane.b32.xlu0 %v2378, 15
        %v2448 = vpop.permute.xlu0 %2447
        %2449 = vrot.lane.b32.xlu0 %v2381, 15
        %v2450 = vpop.permute.xlu0 %2449
        %2451 = vrot.lane.b32.xlu0 %v2383, 15
        %v2452 = vpop.permute.xlu0 %2451
        %2453 = vrot.lane.b32.xlu0 %v2386, 15
        %v2454 = vpop.permute.xlu0 %2453
        %2455 = vrot.lane.b32.xlu0 %v2388, 15
        %v2456 = vpop.permute.xlu0 %2455
        %2457 = vrot.lane.b32.xlu0 %v2391, 15
        %v2458 = vpop.permute.xlu0 %2457
        %2459 = vrot.lane.b32.xlu0 %v2393, 15
        %v2460 = vpop.permute.xlu0 %2459
        %2461 = vrot.lane.b32.xlu0 %v2396, 15
        %v2462 = vpop.permute.xlu0 %2461
        %2463 = vrot.lane.b32.xlu0 %v2398, 15
        %v2464 = vpop.permute.xlu0 %2463
        %2465 = vrot.lane.b32.xlu0 %v2401, 15
        %v2466 = vpop.permute.xlu0 %2465
        %2467 = vrot.lane.b32.xlu0 %v2403, 15
        %v2468 = vpop.permute.xlu0 %2467
        %2469 = vrot.lane.b32.xlu0 %v2406, 15
        %v2470 = vpop.permute.xlu0 %2469
        %2471 = vrot.lane.b32.xlu0 %v2408, 15
        %v2472 = vpop.permute.xlu0 %2471
        %v2505 = vrot.slane %v1529, 6
        %v2506 = vrot.slane %v1530, 6
        %v2507 = vsel %vm1150, %v2505, %v2506
        %v2508 = vrot.slane %v1531, 6
        %v2509 = vsel %vm1150, %v2506, %v2508
        %v2510 = vrot.slane %v1532, 6
        %v2511 = vrot.slane %v1533, 6
        %v2512 = vsel %vm1150, %v2510, %v2511
        %v2513 = vrot.slane %v1534, 6
        %v2514 = vsel %vm1150, %v2511, %v2513
        %v2515 = vrot.slane %v1535, 6
        %v2516 = vrot.slane %v1536, 6
        %v2517 = vsel %vm1150, %v2515, %v2516
        %v2518 = vrot.slane %v1537, 6
        %v2519 = vsel %vm1150, %v2516, %v2518
        %v2520 = vrot.slane %v1538, 6
        %v2521 = vrot.slane %v1539, 6
        %v2522 = vsel %vm1150, %v2520, %v2521
        %v2523 = vrot.slane %v1540, 6
        %v2524 = vsel %vm1150, %v2521, %v2523
        %v2525 = vrot.slane %v1541, 6
        %v2526 = vrot.slane %v1542, 6
        %v2527 = vsel %vm1150, %v2525, %v2526
        %v2528 = vrot.slane %v1543, 6
        %v2529 = vsel %vm1150, %v2526, %v2528
        %v2530 = vrot.slane %v1544, 6
        %v2531 = vrot.slane %v1545, 6
        %v2532 = vsel %vm1150, %v2530, %v2531
        %v2533 = vrot.slane %v1546, 6
        %v2534 = vsel %vm1150, %v2531, %v2533
        %v2535 = vrot.slane %v1547, 6
        %v2536 = vrot.slane %v1548, 6
        %v2537 = vsel %vm1150, %v2535, %v2536
        %v2538 = vrot.slane %v1549, 6
        %v2539 = vsel %vm1150, %v2536, %v2538
        %v2540 = vrot.slane %v1550, 6
        %v2541 = vrot.slane %v1551, 6
        %v2542 = vsel %vm1150, %v2540, %v2541
        %v2543 = vrot.slane %v1552, 6
        %v2544 = vsel %vm1150, %v2541, %v2543
        %v2545 = vrot.slane %v1553, 6
        %v2546 = vrot.slane %v1554, 6
        %v2547 = vsel %vm1150, %v2545, %v2546
        %v2548 = vrot.slane %v1555, 6
        %v2549 = vsel %vm1150, %v2546, %v2548
        %v2550 = vrot.slane %v1556, 6
        %v2551 = vrot.slane %v1557, 6
        %v2552 = vsel %vm1150, %v2550, %v2551
        %v2553 = vrot.slane %v1558, 6
        %v2554 = vsel %vm1150, %v2551, %v2553
        %v2555 = vrot.slane %v1559, 6
        %v2556 = vrot.slane %v1560, 6
        %v2557 = vsel %vm1150, %v2555, %v2556
        %v2558 = vrot.slane %v1561, 6
        %v2559 = vsel %vm1150, %v2556, %v2558
        %v2560 = vrot.slane %v1562, 6
        %v2561 = vrot.slane %v1563, 6
        %v2562 = vsel %vm1150, %v2560, %v2561
        %v2563 = vrot.slane %v1564, 6
        %v2564 = vsel %vm1150, %v2561, %v2563
        %v2565 = vrot.slane %v1565, 6
        %v2566 = vrot.slane %v1566, 6
        %v2567 = vsel %vm1150, %v2565, %v2566
        %v2568 = vrot.slane %v1567, 6
        %v2569 = vsel %vm1150, %v2566, %v2568
        %v2570 = vrot.slane %v1568, 6
        %v2571 = vrot.slane %v1569, 6
        %v2572 = vsel %vm1150, %v2570, %v2571
        %v2573 = vrot.slane %v1570, 6
        %v2574 = vsel %vm1150, %v2571, %v2573
        %v2575 = vrot.slane %v1571, 6
        %v2576 = vrot.slane %v1572, 6
        %v2577 = vsel %vm1150, %v2575, %v2576
        %v2578 = vrot.slane %v1573, 6
        %v2579 = vsel %vm1150, %v2576, %v2578
        %v2580 = vrot.slane %v1574, 6
        %v2581 = vrot.slane %v1575, 6
        %v2582 = vsel %vm1150, %v2580, %v2581
        %v2583 = vrot.slane %v1576, 6
        %v2584 = vsel %vm1150, %v2581, %v2583
        %2585 = vrot.lane.b32.xlu0 %v2507, 18
        %v2586 = vpop.permute.xlu0 %2585
        %2587 = vrot.lane.b32.xlu0 %v2509, 18
        %v2588 = vpop.permute.xlu0 %2587
        %2589 = vrot.lane.b32.xlu0 %v2512, 18
        %v2590 = vpop.permute.xlu0 %2589
        %2591 = vrot.lane.b32.xlu0 %v2514, 18
        %v2592 = vpop.permute.xlu0 %2591
        %2593 = vrot.lane.b32.xlu0 %v2517, 18
        %v2594 = vpop.permute.xlu0 %2593
        %2595 = vrot.lane.b32.xlu0 %v2519, 18
        %v2596 = vpop.permute.xlu0 %2595
        %2597 = vrot.lane.b32.xlu0 %v2522, 18
        %v2598 = vpop.permute.xlu0 %2597
        %2599 = vrot.lane.b32.xlu0 %v2524, 18
        %v2600 = vpop.permute.xlu0 %2599
        %2601 = vrot.lane.b32.xlu0 %v2527, 18
        %v2602 = vpop.permute.xlu0 %2601
        %2603 = vrot.lane.b32.xlu0 %v2529, 18
        %v2604 = vpop.permute.xlu0 %2603
        %2605 = vrot.lane.b32.xlu0 %v2532, 18
        %v2606 = vpop.permute.xlu0 %2605
        %2607 = vrot.lane.b32.xlu0 %v2534, 18
        %v2608 = vpop.permute.xlu0 %2607
        %2609 = vrot.lane.b32.xlu0 %v2537, 18
        %v2610 = vpop.permute.xlu0 %2609
        %2611 = vrot.lane.b32.xlu0 %v2539, 18
        %v2612 = vpop.permute.xlu0 %2611
        %2613 = vrot.lane.b32.xlu0 %v2542, 18
        %v2614 = vpop.permute.xlu0 %2613
        %2615 = vrot.lane.b32.xlu0 %v2544, 18
        %v2616 = vpop.permute.xlu0 %2615
        %2617 = vrot.lane.b32.xlu0 %v2547, 18
        %v2618 = vpop.permute.xlu0 %2617
        %2619 = vrot.lane.b32.xlu0 %v2549, 18
        %v2620 = vpop.permute.xlu0 %2619
        %2621 = vrot.lane.b32.xlu0 %v2552, 18
        %v2622 = vpop.permute.xlu0 %2621
        %2623 = vrot.lane.b32.xlu0 %v2554, 18
        %v2624 = vpop.permute.xlu0 %2623
        %2625 = vrot.lane.b32.xlu0 %v2557, 18
        %v2626 = vpop.permute.xlu0 %2625
        %2627 = vrot.lane.b32.xlu0 %v2559, 18
        %v2628 = vpop.permute.xlu0 %2627
        %2629 = vrot.lane.b32.xlu0 %v2562, 18
        %v2630 = vpop.permute.xlu0 %2629
        %2631 = vrot.lane.b32.xlu0 %v2564, 18
        %v2632 = vpop.permute.xlu0 %2631
        %2633 = vrot.lane.b32.xlu0 %v2567, 18
        %v2634 = vpop.permute.xlu0 %2633
        %2635 = vrot.lane.b32.xlu0 %v2569, 18
        %v2636 = vpop.permute.xlu0 %2635
        %2637 = vrot.lane.b32.xlu0 %v2572, 18
        %v2638 = vpop.permute.xlu0 %2637
        %2639 = vrot.lane.b32.xlu0 %v2574, 18
        %v2640 = vpop.permute.xlu0 %2639
        %2641 = vrot.lane.b32.xlu0 %v2577, 18
        %v2642 = vpop.permute.xlu0 %2641
        %2643 = vrot.lane.b32.xlu0 %v2579, 18
        %v2644 = vpop.permute.xlu0 %2643
        %2645 = vrot.lane.b32.xlu0 %v2582, 18
        %v2646 = vpop.permute.xlu0 %2645
        %2647 = vrot.lane.b32.xlu0 %v2584, 18
        %v2648 = vpop.permute.xlu0 %2647
        %v2681 = vsel %vm1327, %v1529, %v1706
        %v2682 = vsel %vm1327, %v1530, %v1708
        %v2683 = vsel %vm1327, %v1532, %v1710
        %v2684 = vsel %vm1327, %v1533, %v1712
        %v2685 = vsel %vm1327, %v1535, %v1714
        %v2686 = vsel %vm1327, %v1536, %v1716
        %v2687 = vsel %vm1327, %v1538, %v1718
        %v2688 = vsel %vm1327, %v1539, %v1720
        %v2689 = vsel %vm1327, %v1541, %v1722
        %v2690 = vsel %vm1327, %v1542, %v1724
        %v2691 = vsel %vm1327, %v1544, %v1726
        %v2692 = vsel %vm1327, %v1545, %v1728
        %v2693 = vsel %vm1327, %v1547, %v1730
        %v2694 = vsel %vm1327, %v1548, %v1732
        %v2695 = vsel %vm1327, %v1550, %v1734
        %v2696 = vsel %vm1327, %v1551, %v1736
        %v2697 = vsel %vm1327, %v1553, %v1738
        %v2698 = vsel %vm1327, %v1554, %v1740
        %v2699 = vsel %vm1327, %v1556, %v1742
        %v2700 = vsel %vm1327, %v1557, %v1744
        %v2701 = vsel %vm1327, %v1559, %v1746
        %v2702 = vsel %vm1327, %v1560, %v1748
        %v2703 = vsel %vm1327, %v1562, %v1750
        %v2704 = vsel %vm1327, %v1563, %v1752
        %v2705 = vsel %vm1327, %v1565, %v1754
        %v2706 = vsel %vm1327, %v1566, %v1756
        %v2707 = vsel %vm1327, %v1568, %v1758
        %v2708 = vsel %vm1327, %v1569, %v1760
        %v2709 = vsel %vm1327, %v1571, %v1762
        %v2710 = vsel %vm1327, %v1572, %v1764
        %v2711 = vsel %vm1327, %v1574, %v1766
        %v2712 = vsel %vm1327, %v1575, %v1768
        %v2713 = vsel %vm1360, %v2681, %v1882
        %v2714 = vsel %vm1360, %v2682, %v1884
        %v2715 = vsel %vm1360, %v2683, %v1886
        %v2716 = vsel %vm1360, %v2684, %v1888
        %v2717 = vsel %vm1360, %v2685, %v1890
        %v2718 = vsel %vm1360, %v2686, %v1892
        %v2719 = vsel %vm1360, %v2687, %v1894
        %v2720 = vsel %vm1360, %v2688, %v1896
        %v2721 = vsel %vm1360, %v2689, %v1898
        %v2722 = vsel %vm1360, %v2690, %v1900
        %v2723 = vsel %vm1360, %v2691, %v1902
        %v2724 = vsel %vm1360, %v2692, %v1904
        %v2725 = vsel %vm1360, %v2693, %v1906
        %v2726 = vsel %vm1360, %v2694, %v1908
        %v2727 = vsel %vm1360, %v2695, %v1910
        %v2728 = vsel %vm1360, %v2696, %v1912
        %v2729 = vsel %vm1360, %v2697, %v1914
        %v2730 = vsel %vm1360, %v2698, %v1916
        %v2731 = vsel %vm1360, %v2699, %v1918
        %v2732 = vsel %vm1360, %v2700, %v1920
        %v2733 = vsel %vm1360, %v2701, %v1922
        %v2734 = vsel %vm1360, %v2702, %v1924
        %v2735 = vsel %vm1360, %v2703, %v1926
        %v2736 = vsel %vm1360, %v2704, %v1928
        %v2737 = vsel %vm1360, %v2705, %v1930
        %v2738 = vsel %vm1360, %v2706, %v1932
        %v2739 = vsel %vm1360, %v2707, %v1934
        %v2740 = vsel %vm1360, %v2708, %v1936
        %v2741 = vsel %vm1360, %v2709, %v1938
        %v2742 = vsel %vm1360, %v2710, %v1940
        %v2743 = vsel %vm1360, %v2711, %v1942
        %v2744 = vsel %vm1360, %v2712, %v1944
        %v2745 = vsel %vm1393, %v2713, %v2058
        %v2746 = vsel %vm1393, %v2714, %v2060
        %v2747 = vsel %vm1393, %v2715, %v2062
        %v2748 = vsel %vm1393, %v2716, %v2064
        %v2749 = vsel %vm1393, %v2717, %v2066
        %v2750 = vsel %vm1393, %v2718, %v2068
        %v2751 = vsel %vm1393, %v2719, %v2070
        %v2752 = vsel %vm1393, %v2720, %v2072
        %v2753 = vsel %vm1393, %v2721, %v2074
        %v2754 = vsel %vm1393, %v2722, %v2076
        %v2755 = vsel %vm1393, %v2723, %v2078
        %v2756 = vsel %vm1393, %v2724, %v2080
        %v2757 = vsel %vm1393, %v2725, %v2082
        %v2758 = vsel %vm1393, %v2726, %v2084
        %v2759 = vsel %vm1393, %v2727, %v2086
        %v2760 = vsel %vm1393, %v2728, %v2088
        %v2761 = vsel %vm1393, %v2729, %v2090
        %v2762 = vsel %vm1393, %v2730, %v2092
        %v2763 = vsel %vm1393, %v2731, %v2094
        %v2764 = vsel %vm1393, %v2732, %v2096
        %v2765 = vsel %vm1393, %v2733, %v2098
        %v2766 = vsel %vm1393, %v2734, %v2100
        %v2767 = vsel %vm1393, %v2735, %v2102
        %v2768 = vsel %vm1393, %v2736, %v2104
        %v2769 = vsel %vm1393, %v2737, %v2106
        %v2770 = vsel %vm1393, %v2738, %v2108
        %v2771 = vsel %vm1393, %v2739, %v2110
        %v2772 = vsel %vm1393, %v2740, %v2112
        %v2773 = vsel %vm1393, %v2741, %v2114
        %v2774 = vsel %vm1393, %v2742, %v2116
        %v2775 = vsel %vm1393, %v2743, %v2118
        %v2776 = vsel %vm1393, %v2744, %v2120
        %v2777 = vsel %vm1426, %v2745, %v2234
        %v2778 = vsel %vm1426, %v2746, %v2236
        %v2779 = vsel %vm1426, %v2747, %v2238
        %v2780 = vsel %vm1426, %v2748, %v2240
        %v2781 = vsel %vm1426, %v2749, %v2242
        %v2782 = vsel %vm1426, %v2750, %v2244
        %v2783 = vsel %vm1426, %v2751, %v2246
        %v2784 = vsel %vm1426, %v2752, %v2248
        %v2785 = vsel %vm1426, %v2753, %v2250
        %v2786 = vsel %vm1426, %v2754, %v2252
        %v2787 = vsel %vm1426, %v2755, %v2254
        %v2788 = vsel %vm1426, %v2756, %v2256
        %v2789 = vsel %vm1426, %v2757, %v2258
        %v2790 = vsel %vm1426, %v2758, %v2260
        %v2791 = vsel %vm1426, %v2759, %v2262
        %v2792 = vsel %vm1426, %v2760, %v2264
        %v2793 = vsel %vm1426, %v2761, %v2266
        %v2794 = vsel %vm1426, %v2762, %v2268
        %v2795 = vsel %vm1426, %v2763, %v2270
        %v2796 = vsel %vm1426, %v2764, %v2272
        %v2797 = vsel %vm1426, %v2765, %v2274
        %v2798 = vsel %vm1426, %v2766, %v2276
        %v2799 = vsel %vm1426, %v2767, %v2278
        %v2800 = vsel %vm1426, %v2768, %v2280
        %v2801 = vsel %vm1426, %v2769, %v2282
        %v2802 = vsel %vm1426, %v2770, %v2284
        %v2803 = vsel %vm1426, %v2771, %v2286
        %v2804 = vsel %vm1426, %v2772, %v2288
        %v2805 = vsel %vm1426, %v2773, %v2290
        %v2806 = vsel %vm1426, %v2774, %v2292
        %v2807 = vsel %vm1426, %v2775, %v2294
        %v2808 = vsel %vm1426, %v2776, %v2296
        %v2809 = vsel %vm1459, %v2777, %v2410
        %v2810 = vsel %vm1459, %v2778, %v2412
        %v2811 = vsel %vm1459, %v2779, %v2414
        %v2812 = vsel %vm1459, %v2780, %v2416
        %v2813 = vsel %vm1459, %v2781, %v2418
        %v2814 = vsel %vm1459, %v2782, %v2420
        %v2815 = vsel %vm1459, %v2783, %v2422
        %v2816 = vsel %vm1459, %v2784, %v2424
        %v2817 = vsel %vm1459, %v2785, %v2426
        %v2818 = vsel %vm1459, %v2786, %v2428
        %v2819 = vsel %vm1459, %v2787, %v2430
        %v2820 = vsel %vm1459, %v2788, %v2432
        %v2821 = vsel %vm1459, %v2789, %v2434
        %v2822 = vsel %vm1459, %v2790, %v2436
        %v2823 = vsel %vm1459, %v2791, %v2438
        %v2824 = vsel %vm1459, %v2792, %v2440
        %v2825 = vsel %vm1459, %v2793, %v2442
        %v2826 = vsel %vm1459, %v2794, %v2444
        %v2827 = vsel %vm1459, %v2795, %v2446
        %v2828 = vsel %vm1459, %v2796, %v2448
        %v2829 = vsel %vm1459, %v2797, %v2450
        %v2830 = vsel %vm1459, %v2798, %v2452
        %v2831 = vsel %vm1459, %v2799, %v2454
        %v2832 = vsel %vm1459, %v2800, %v2456
        %v2833 = vsel %vm1459, %v2801, %v2458
        %v2834 = vsel %vm1459, %v2802, %v2460
        %v2835 = vsel %vm1459, %v2803, %v2462
        %v2836 = vsel %vm1459, %v2804, %v2464
        %v2837 = vsel %vm1459, %v2805, %v2466
        %v2838 = vsel %vm1459, %v2806, %v2468
        %v2839 = vsel %vm1459, %v2807, %v2470
        %v2840 = vsel %vm1459, %v2808, %v2472
        %v2841 = vsel %vm1492, %v2809, %v2586
        %v2842 = vsel %vm1492, %v2810, %v2588
        %v2843 = vsel %vm1492, %v2811, %v2590
        %v2844 = vsel %vm1492, %v2812, %v2592
        %v2845 = vsel %vm1492, %v2813, %v2594
        %v2846 = vsel %vm1492, %v2814, %v2596
        %v2847 = vsel %vm1492, %v2815, %v2598
        %v2848 = vsel %vm1492, %v2816, %v2600
        %v2849 = vsel %vm1492, %v2817, %v2602
        %v2850 = vsel %vm1492, %v2818, %v2604
        %v2851 = vsel %vm1492, %v2819, %v2606
        %v2852 = vsel %vm1492, %v2820, %v2608
        %v2853 = vsel %vm1492, %v2821, %v2610
        %v2854 = vsel %vm1492, %v2822, %v2612
        %v2855 = vsel %vm1492, %v2823, %v2614
        %v2856 = vsel %vm1492, %v2824, %v2616
        %v2857 = vsel %vm1492, %v2825, %v2618
        %v2858 = vsel %vm1492, %v2826, %v2620
        %v2859 = vsel %vm1492, %v2827, %v2622
        %v2860 = vsel %vm1492, %v2828, %v2624
        %v2861 = vsel %vm1492, %v2829, %v2626
        %v2862 = vsel %vm1492, %v2830, %v2628
        %v2863 = vsel %vm1492, %v2831, %v2630
        %v2864 = vsel %vm1492, %v2832, %v2632
        %v2865 = vsel %vm1492, %v2833, %v2634
        %v2866 = vsel %vm1492, %v2834, %v2636
        %v2867 = vsel %vm1492, %v2835, %v2638
        %v2868 = vsel %vm1492, %v2836, %v2640
        %v2869 = vsel %vm1492, %v2837, %v2642
        %v2870 = vsel %vm1492, %v2838, %v2644
        %v2871 = vsel %vm1492, %v2839, %v2646
        %v2872 = vsel %vm1492, %v2840, %v2648
        %s2873 = scalar_lea.vmem %s1, 24
        %v2874 = vld [vmem:[%s2873] sm:$0xff]
        %v2875 = vld [vmem:[%s2873 + $0x8] sm:$0xff]
        %v2876 = vld [vmem:[%s2873 + $0x10] sm:$0x1f]
        %vm2877 = vcmask 171008
        %v2879 = vsel %vm2877, %v2841, 0
        %v2882 = vsel %vm2877, %v2842, 0
        %v2885 = vsel %vm2877, %v2843, 0
        %v2888 = vsel %vm2877, %v2844, 0
        %v2891 = vsel %vm2877, %v2845, 0
        %v2894 = vsel %vm2877, %v2846, 0
        %v2897 = vsel %vm2877, %v2847, 0
        %v2900 = vsel %vm2877, %v2848, 0
        %v2903 = vsel %vm2877, %v2849, 0
        %v2906 = vsel %vm2877, %v2850, 0
        %v2909 = vsel %vm2877, %v2851, 0
        %v2912 = vsel %vm2877, %v2852, 0
        %v2915 = vsel %vm2877, %v2853, 0
        %v2918 = vsel %vm2877, %v2854, 0
        %v2921 = vsel %vm2877, %v2855, 0
        %v2924 = vsel %vm2877, %v2856, 0
        %v2927 = vsel %vm2877, %v2857, 0
        %v2930 = vsel %vm2877, %v2858, 0
        %v2933 = vsel %vm2877, %v2859, 0
        %v2936 = vsel %vm2877, %v2860, 0
        %v2939 = vsel %vm2877, %v2861, 0
        %v2942 = vsel %vm2877, %v2862, 0
        %v2945 = vsel %vm2877, %v2863, 0
        %v2948 = vsel %vm2877, %v2864, 0
        %v2951 = vsel %vm2877, %v2865, 0
        %v2954 = vsel %vm2877, %v2866, 0
        %v2957 = vsel %vm2877, %v2867, 0
        %v2960 = vsel %vm2877, %v2868, 0
        %v2963 = vsel %vm2877, %v2869, 0
        %v2966 = vsel %vm2877, %v2870, 0
        %v2969 = vsel %vm2877, %v2871, 0
        %v2972 = vsel %vm2877, %v2872, 0
        %v2975 = vsel %vm619, %v2876, 0
        %2977 = vmatprep.subr.mxu0 0.0
        %2978 = vmatpush1.msra.mxu0 0.0
        %2979 = vmatprep.subr.mxu0 0.0
        %2980 = vmatpush1.msra.mxu0 0.0
        %2981 = vmatprep.subr.mxu0 0.0
        %2982 = vmatpush1.msra.mxu0 0.0
        %2983 = vmatprep.subr.mxu0 0.0
        %2984 = vmatpush1.msra.mxu0 0.0
        %2985 = vmatprep.subr.mxu0 0.0
        %2986 = vmatpush1.msra.mxu0 0.0
        %2987 = vmatprep.subr.mxu0 0.0
        %2988 = vmatpush1.msra.mxu0 0.0
        %2989 = vmatprep.subr.mxu0 0.0
        %2990 = vmatpush1.msra.mxu0 0.0
        %2991 = vmatprep.subr.mxu0 0.0
        %2992 = vmatpush1.msra.mxu0 0.0
        %2993 = vmatprep.subr.mxu0 0.0
        %2994 = vmatpush1.msra.mxu0 0.0
        %2995 = vmatprep.subr.mxu0 0.0
        %2996 = vmatpush1.msra.mxu0 0.0
        %2997 = vmatprep.subr.mxu0 0.0
        %2998 = vmatpush1.msra.mxu0 0.0
        %2999 = vmatprep.subr.mxu0 0.0
        %3000 = vmatpush1.msra.mxu0 0.0
        %3001 = vmatprep.subr.mxu0 0.0
        %3002 = vmatpush1.msra.mxu0 0.0
        %3003 = vmatprep.subr.mxu0 0.0
        %3004 = vmatpush1.msra.mxu0 %v2975
        %3005 = vmatprep.subr.mxu0 0.0
        %3006 = vmatpush1.msra.mxu0 %v2875
        %3007 = vmatprep.subr.mxu0 0.0
        %3008 = vmatpush1.msra.mxu0 %v2874
        %3009 = vmatprep.subr.mxu0 0.0
        %3010 = vmatpush2.msra.mxu0 0.0
        %3011 = vmatprep.subr.mxu0 0.0
        %3012 = vmatpush2.msra.mxu0 0.0
        %3013 = vmatprep.subr.mxu0 0.0
        %3014 = vmatpush2.msra.mxu0 0.0
        %3015 = vmatprep.subr.mxu0 0.0
        %3016 = vmatpush2.msra.mxu0 0.0
        %3017 = vmatprep.subr.mxu0 0.0
        %3018 = vmatpush2.msra.mxu0 0.0
        %3019 = vmatprep.subr.mxu0 0.0
        %3020 = vmatpush2.msra.mxu0 0.0
        %3021 = vmatprep.subr.mxu0 0.0
        %3022 = vmatpush2.msra.mxu0 0.0
        %3023 = vmatprep.subr.mxu0 0.0
        %3024 = vmatpush2.msra.mxu0 0.0
        %3025 = vmatprep.subr.mxu0 0.0
        %3026 = vmatpush2.msra.mxu0 0.0
        %3027 = vmatprep.subr.mxu0 0.0
        %3028 = vmatpush2.msra.mxu0 0.0
        %3029 = vmatprep.subr.mxu0 0.0
        %3030 = vmatpush2.msra.mxu0 0.0
        %3031 = vmatprep.subr.mxu0 0.0
        %3032 = vmatpush2.msra.mxu0 0.0
        %3033 = vmatprep.subr.mxu0 0.0
        %3034 = vmatpush2.msra.mxu0 0.0
        %3035 = vmatprep.subr.mxu0 0.0
        %3036 = vmatpush2.msra.mxu0 0.0
        %3037 = vmatprep.subr.mxu0 0.0
        %3038 = vmatpush2.msra.mxu0 0.0
        %3039 = vmatprep.subr.mxu0 0.0
        %3040 = vmatpush2.msra.mxu0 0.0
        %3041 = vmatprep.mubr.f32.mxu0 0.0
        %3042 = vmatmul.mubr.f32.gmra.mxu0 %v2879
        %v3043 = vpop.f32.mrf.mxu0
        %v3044 = vadd.f32 0.0, %v3043
        %v3045 = vpop.f32.mrf.mxu0
        %3046 = vmatprep.mubr.f32.mxu0 0.0
        %3047 = vmatmul.mubr.f32.gmra.mxu0 %v2882
        %v3048 = vpop.f32.mrf.mxu0
        %v3049 = vadd.f32 0.0, %v3048
        %v3050 = vpop.f32.mrf.mxu0
        %3051 = vmatprep.mubr.f32.mxu0 0.0
        %3052 = vmatmul.mubr.f32.gmra.mxu0 %v2885
        %v3053 = vpop.f32.mrf.mxu0
        %v3054 = vadd.f32 0.0, %v3053
        %v3055 = vpop.f32.mrf.mxu0
        %3056 = vmatprep.mubr.f32.mxu0 0.0
        %3057 = vmatmul.mubr.f32.gmra.mxu0 %v2888
        %v3058 = vpop.f32.mrf.mxu0
        %v3059 = vadd.f32 0.0, %v3058
        %v3060 = vpop.f32.mrf.mxu0
        %3061 = vmatprep.mubr.f32.mxu0 0.0
        %3062 = vmatmul.mubr.f32.gmra.mxu0 %v2891
        %v3063 = vpop.f32.mrf.mxu0
        %v3064 = vadd.f32 0.0, %v3063
        %v3065 = vpop.f32.mrf.mxu0
        %3066 = vmatprep.mubr.f32.mxu0 0.0
        %3067 = vmatmul.mubr.f32.gmra.mxu0 %v2894
        %v3068 = vpop.f32.mrf.mxu0
        %v3069 = vadd.f32 0.0, %v3068
        %v3070 = vpop.f32.mrf.mxu0
        %3071 = vmatprep.mubr.f32.mxu0 0.0
        %3072 = vmatmul.mubr.f32.gmra.mxu0 %v2897
        %v3073 = vpop.f32.mrf.mxu0
        %v3074 = vadd.f32 0.0, %v3073
        %v3075 = vpop.f32.mrf.mxu0
        %3076 = vmatprep.mubr.f32.mxu0 0.0
        %3077 = vmatmul.mubr.f32.gmra.mxu0 %v2900
        %v3078 = vpop.f32.mrf.mxu0
        %v3079 = vadd.f32 0.0, %v3078
        %v3080 = vpop.f32.mrf.mxu0
        %3081 = vmatprep.mubr.f32.mxu0 0.0
        %3082 = vmatmul.mubr.f32.gmra.mxu0 %v2903
        %v3083 = vpop.f32.mrf.mxu0
        %v3084 = vadd.f32 0.0, %v3083
        %v3085 = vpop.f32.mrf.mxu0
        %3086 = vmatprep.mubr.f32.mxu0 0.0
        %3087 = vmatmul.mubr.f32.gmra.mxu0 %v2906
        %v3088 = vpop.f32.mrf.mxu0
        %v3089 = vadd.f32 0.0, %v3088
        %v3090 = vpop.f32.mrf.mxu0
        %3091 = vmatprep.mubr.f32.mxu0 0.0
        %3092 = vmatmul.mubr.f32.gmra.mxu0 %v2909
        %v3093 = vpop.f32.mrf.mxu0
        %v3094 = vadd.f32 0.0, %v3093
        %v3095 = vpop.f32.mrf.mxu0
        %3096 = vmatprep.mubr.f32.mxu0 0.0
        %3097 = vmatmul.mubr.f32.gmra.mxu0 %v2912
        %v3098 = vpop.f32.mrf.mxu0
        %v3099 = vadd.f32 0.0, %v3098
        %v3100 = vpop.f32.mrf.mxu0
        %3101 = vmatprep.mubr.f32.mxu0 0.0
        %3102 = vmatmul.mubr.f32.gmra.mxu0 %v2915
        %v3103 = vpop.f32.mrf.mxu0
        %v3104 = vadd.f32 0.0, %v3103
        %v3105 = vpop.f32.mrf.mxu0
        %3106 = vmatprep.mubr.f32.mxu0 0.0
        %3107 = vmatmul.mubr.f32.gmra.mxu0 %v2918
        %v3108 = vpop.f32.mrf.mxu0
        %v3109 = vadd.f32 0.0, %v3108
        %v3110 = vpop.f32.mrf.mxu0
        %3111 = vmatprep.mubr.f32.mxu0 0.0
        %3112 = vmatmul.mubr.f32.gmra.mxu0 %v2921
        %v3113 = vpop.f32.mrf.mxu0
        %v3114 = vadd.f32 0.0, %v3113
        %v3115 = vpop.f32.mrf.mxu0
        %3116 = vmatprep.mubr.f32.mxu0 0.0
        %3117 = vmatmul.mubr.f32.gmra.mxu0 %v2924
        %v3118 = vpop.f32.mrf.mxu0
        %v3119 = vadd.f32 0.0, %v3118
        %v3120 = vpop.f32.mrf.mxu0
        %3121 = vmatprep.mubr.f32.mxu0 0.0
        %3122 = vmatmul.mubr.f32.gmra.mxu0 %v2927
        %v3123 = vpop.f32.mrf.mxu0
        %v3124 = vadd.f32 0.0, %v3123
        %v3125 = vpop.f32.mrf.mxu0
        %3126 = vmatprep.mubr.f32.mxu0 0.0
        %3127 = vmatmul.mubr.f32.gmra.mxu0 %v2930
        %v3128 = vpop.f32.mrf.mxu0
        %v3129 = vadd.f32 0.0, %v3128
        %v3130 = vpop.f32.mrf.mxu0
        %3131 = vmatprep.mubr.f32.mxu0 0.0
        %3132 = vmatmul.mubr.f32.gmra.mxu0 %v2933
        %v3133 = vpop.f32.mrf.mxu0
        %v3134 = vadd.f32 0.0, %v3133
        %v3135 = vpop.f32.mrf.mxu0
        %3136 = vmatprep.mubr.f32.mxu0 0.0
        %3137 = vmatmul.mubr.f32.gmra.mxu0 %v2936
        %v3138 = vpop.f32.mrf.mxu0
        %v3139 = vadd.f32 0.0, %v3138
        %v3140 = vpop.f32.mrf.mxu0
        %3141 = vmatprep.mubr.f32.mxu0 0.0
        %3142 = vmatmul.mubr.f32.gmra.mxu0 %v2939
        %v3143 = vpop.f32.mrf.mxu0
        %v3144 = vadd.f32 0.0, %v3143
        %v3145 = vpop.f32.mrf.mxu0
        %3146 = vmatprep.mubr.f32.mxu0 0.0
        %3147 = vmatmul.mubr.f32.gmra.mxu0 %v2942
        %v3148 = vpop.f32.mrf.mxu0
        %v3149 = vadd.f32 0.0, %v3148
        %v3150 = vpop.f32.mrf.mxu0
        %3151 = vmatprep.mubr.f32.mxu0 0.0
        %3152 = vmatmul.mubr.f32.gmra.mxu0 %v2945
        %v3153 = vpop.f32.mrf.mxu0
        %v3154 = vadd.f32 0.0, %v3153
        %v3155 = vpop.f32.mrf.mxu0
        %3156 = vmatprep.mubr.f32.mxu0 0.0
        %3157 = vmatmul.mubr.f32.gmra.mxu0 %v2948
        %v3158 = vpop.f32.mrf.mxu0
        %v3159 = vadd.f32 0.0, %v3158
        %v3160 = vpop.f32.mrf.mxu0
        %3161 = vmatprep.mubr.f32.mxu0 0.0
        %3162 = vmatmul.mubr.f32.gmra.mxu0 %v2951
        %v3163 = vpop.f32.mrf.mxu0
        %v3164 = vadd.f32 0.0, %v3163
        %v3165 = vpop.f32.mrf.mxu0
        %3166 = vmatprep.mubr.f32.mxu0 0.0
        %3167 = vmatmul.mubr.f32.gmra.mxu0 %v2954
        %v3168 = vpop.f32.mrf.mxu0
        %v3169 = vadd.f32 0.0, %v3168
        %v3170 = vpop.f32.mrf.mxu0
        %3171 = vmatprep.mubr.f32.mxu0 0.0
        %3172 = vmatmul.mubr.f32.gmra.mxu0 %v2957
        %v3173 = vpop.f32.mrf.mxu0
        %v3174 = vadd.f32 0.0, %v3173
        %v3175 = vpop.f32.mrf.mxu0
        %3176 = vmatprep.mubr.f32.mxu0 0.0
        %3177 = vmatmul.mubr.f32.gmra.mxu0 %v2960
        %v3178 = vpop.f32.mrf.mxu0
        %v3179 = vadd.f32 0.0, %v3178
        %v3180 = vpop.f32.mrf.mxu0
        %3181 = vmatprep.mubr.f32.mxu0 0.0
        %3182 = vmatmul.mubr.f32.gmra.mxu0 %v2963
        %v3183 = vpop.f32.mrf.mxu0
        %v3184 = vadd.f32 0.0, %v3183
        %v3185 = vpop.f32.mrf.mxu0
        %3186 = vmatprep.mubr.f32.mxu0 0.0
        %3187 = vmatmul.mubr.f32.gmra.mxu0 %v2966
        %v3188 = vpop.f32.mrf.mxu0
        %v3189 = vadd.f32 0.0, %v3188
        %v3190 = vpop.f32.mrf.mxu0
        %3191 = vmatprep.mubr.f32.mxu0 0.0
        %3192 = vmatmul.mubr.f32.gmra.mxu0 %v2969
        %v3193 = vpop.f32.mrf.mxu0
        %v3194 = vadd.f32 0.0, %v3193
        %v3195 = vpop.f32.mrf.mxu0
        %3196 = vmatprep.mubr.f32.mxu0 0.0
        %3197 = vmatmul.mubr.f32.gmra.mxu0 %v2972
        %v3198 = vpop.f32.mrf.mxu0
        %v3199 = vadd.f32 0.0, %v3198
        %v3200 = vpop.f32.mrf.mxu0
        %3201 = vdwg.mxu0
        %v3203 = vsel %vm2877, %v1493, 0
        %v3206 = vsel %vm2877, %v1494, 0
        %v3209 = vsel %vm2877, %v1495, 0
        %v3212 = vsel %vm2877, %v1496, 0
        %v3215 = vsel %vm2877, %v1497, 0
        %v3218 = vsel %vm2877, %v1498, 0
        %v3221 = vsel %vm2877, %v1499, 0
        %v3224 = vsel %vm2877, %v1500, 0
        %v3227 = vsel %vm2877, %v1501, 0
        %v3230 = vsel %vm2877, %v1502, 0
        %v3233 = vsel %vm2877, %v1503, 0
        %v3236 = vsel %vm2877, %v1504, 0
        %v3239 = vsel %vm2877, %v1505, 0
        %v3242 = vsel %vm2877, %v1506, 0
        %v3245 = vsel %vm2877, %v1507, 0
        %v3248 = vsel %vm2877, %v1508, 0
        %v3251 = vsel %vm2877, %v1509, 0
        %v3254 = vsel %vm2877, %v1510, 0
        %v3257 = vsel %vm2877, %v1511, 0
        %v3260 = vsel %vm2877, %v1512, 0
        %v3263 = vsel %vm2877, %v1513, 0
        %v3266 = vsel %vm2877, %v1514, 0
        %v3269 = vsel %vm2877, %v1515, 0
        %v3272 = vsel %vm2877, %v1516, 0
        %v3275 = vsel %vm2877, %v1517, 0
        %v3278 = vsel %vm2877, %v1518, 0
        %v3281 = vsel %vm2877, %v1519, 0
        %v3284 = vsel %vm2877, %v1520, 0
        %v3287 = vsel %vm2877, %v1521, 0
        %v3290 = vsel %vm2877, %v1522, 0
        %v3293 = vsel %vm2877, %v1523, 0
        %v3296 = vsel %vm2877, %v1524, 0
        %v3299 = vsel %vm619, %v1527, 0
        %3301 = vmatprep.subr.mxu0 0.0
        %3302 = vmatpush1.msra.mxu0 0.0
        %3303 = vmatprep.subr.mxu0 0.0
        %3304 = vmatpush1.msra.mxu0 0.0
        %3305 = vmatprep.subr.mxu0 0.0
        %3306 = vmatpush1.msra.mxu0 0.0
        %3307 = vmatprep.subr.mxu0 0.0
        %3308 = vmatpush1.msra.mxu0 0.0
        %3309 = vmatprep.subr.mxu0 0.0
        %3310 = vmatpush1.msra.mxu0 0.0
        %3311 = vmatprep.subr.mxu0 0.0
        %3312 = vmatpush1.msra.mxu0 0.0
        %3313 = vmatprep.subr.mxu0 0.0
        %3314 = vmatpush1.msra.mxu0 0.0
        %3315 = vmatprep.subr.mxu0 0.0
        %3316 = vmatpush1.msra.mxu0 0.0
        %3317 = vmatprep.subr.mxu0 0.0
        %3318 = vmatpush1.msra.mxu0 0.0
        %3319 = vmatprep.subr.mxu0 0.0
        %3320 = vmatpush1.msra.mxu0 0.0
        %3321 = vmatprep.subr.mxu0 0.0
        %3322 = vmatpush1.msra.mxu0 0.0
        %3323 = vmatprep.subr.mxu0 0.0
        %3324 = vmatpush1.msra.mxu0 0.0
        %3325 = vmatprep.subr.mxu0 0.0
        %3326 = vmatpush1.msra.mxu0 0.0
        %3327 = vmatprep.subr.mxu0 0.0
        %3328 = vmatpush1.msra.mxu0 %v3299
        %3329 = vmatprep.subr.mxu0 0.0
        %3330 = vmatpush1.msra.mxu0 %v1526
        %3331 = vmatprep.subr.mxu0 0.0
        %3332 = vmatpush1.msra.mxu0 %v1525
        %3333 = vmatprep.subr.mxu0 0.0
        %3334 = vmatpush2.msra.mxu0 0.0
        %3335 = vmatprep.subr.mxu0 0.0
        %3336 = vmatpush2.msra.mxu0 0.0
        %3337 = vmatprep.subr.mxu0 0.0
        %3338 = vmatpush2.msra.mxu0 0.0
        %3339 = vmatprep.subr.mxu0 0.0
        %3340 = vmatpush2.msra.mxu0 0.0
        %3341 = vmatprep.subr.mxu0 0.0
        %3342 = vmatpush2.msra.mxu0 0.0
        %3343 = vmatprep.subr.mxu0 0.0
        %3344 = vmatpush2.msra.mxu0 0.0
        %3345 = vmatprep.subr.mxu0 0.0
        %3346 = vmatpush2.msra.mxu0 0.0
        %3347 = vmatprep.subr.mxu0 0.0
        %3348 = vmatpush2.msra.mxu0 0.0
        %3349 = vmatprep.subr.mxu0 0.0
        %3350 = vmatpush2.msra.mxu0 0.0
        %3351 = vmatprep.subr.mxu0 0.0
        %3352 = vmatpush2.msra.mxu0 0.0
        %3353 = vmatprep.subr.mxu0 0.0
        %3354 = vmatpush2.msra.mxu0 0.0
        %3355 = vmatprep.subr.mxu0 0.0
        %3356 = vmatpush2.msra.mxu0 0.0
        %3357 = vmatprep.subr.mxu0 0.0
        %3358 = vmatpush2.msra.mxu0 0.0
        %3359 = vmatprep.subr.mxu0 0.0
        %3360 = vmatpush2.msra.mxu0 0.0
        %3361 = vmatprep.subr.mxu0 0.0
        %3362 = vmatpush2.msra.mxu0 0.0
        %3363 = vmatprep.subr.mxu0 0.0
        %3364 = vmatpush2.msra.mxu0 0.0
        %3365 = vmatprep.mubr.f32.mxu0 0.0
        %3366 = vmatmul.mubr.f32.gmra.mxu0 %v3203
        %v3367 = vpop.f32.mrf.mxu0
        %v3368 = vadd.f32 %v3044, %v3367
        %v3369 = vpop.f32.mrf.mxu0
        %3370 = vmatprep.mubr.f32.mxu0 0.0
        %3371 = vmatmul.mubr.f32.gmra.mxu0 %v3206
        %v3372 = vpop.f32.mrf.mxu0
        %v3373 = vadd.f32 %v3049, %v3372
        %v3374 = vpop.f32.mrf.mxu0
        %3375 = vmatprep.mubr.f32.mxu0 0.0
        %3376 = vmatmul.mubr.f32.gmra.mxu0 %v3209
        %v3377 = vpop.f32.mrf.mxu0
        %v3378 = vadd.f32 %v3054, %v3377
        %v3379 = vpop.f32.mrf.mxu0
        %3380 = vmatprep.mubr.f32.mxu0 0.0
        %3381 = vmatmul.mubr.f32.gmra.mxu0 %v3212
        %v3382 = vpop.f32.mrf.mxu0
        %v3383 = vadd.f32 %v3059, %v3382
        %v3384 = vpop.f32.mrf.mxu0
        %3385 = vmatprep.mubr.f32.mxu0 0.0
        %3386 = vmatmul.mubr.f32.gmra.mxu0 %v3215
        %v3387 = vpop.f32.mrf.mxu0
        %v3388 = vadd.f32 %v3064, %v3387
        %v3389 = vpop.f32.mrf.mxu0
        %3390 = vmatprep.mubr.f32.mxu0 0.0
        %3391 = vmatmul.mubr.f32.gmra.mxu0 %v3218
        %v3392 = vpop.f32.mrf.mxu0
        %v3393 = vadd.f32 %v3069, %v3392
        %v3394 = vpop.f32.mrf.mxu0
        %3395 = vmatprep.mubr.f32.mxu0 0.0
        %3396 = vmatmul.mubr.f32.gmra.mxu0 %v3221
        %v3397 = vpop.f32.mrf.mxu0
        %v3398 = vadd.f32 %v3074, %v3397
        %v3399 = vpop.f32.mrf.mxu0
        %3400 = vmatprep.mubr.f32.mxu0 0.0
        %3401 = vmatmul.mubr.f32.gmra.mxu0 %v3224
        %v3402 = vpop.f32.mrf.mxu0
        %v3403 = vadd.f32 %v3079, %v3402
        %v3404 = vpop.f32.mrf.mxu0
        %3405 = vmatprep.mubr.f32.mxu0 0.0
        %3406 = vmatmul.mubr.f32.gmra.mxu0 %v3227
        %v3407 = vpop.f32.mrf.mxu0
        %v3408 = vadd.f32 %v3084, %v3407
        %v3409 = vpop.f32.mrf.mxu0
        %3410 = vmatprep.mubr.f32.mxu0 0.0
        %3411 = vmatmul.mubr.f32.gmra.mxu0 %v3230
        %v3412 = vpop.f32.mrf.mxu0
        %v3413 = vadd.f32 %v3089, %v3412
        %v3414 = vpop.f32.mrf.mxu0
        %3415 = vmatprep.mubr.f32.mxu0 0.0
        %3416 = vmatmul.mubr.f32.gmra.mxu0 %v3233
        %v3417 = vpop.f32.mrf.mxu0
        %v3418 = vadd.f32 %v3094, %v3417
        %v3419 = vpop.f32.mrf.mxu0
        %3420 = vmatprep.mubr.f32.mxu0 0.0
        %3421 = vmatmul.mubr.f32.gmra.mxu0 %v3236
        %v3422 = vpop.f32.mrf.mxu0
        %v3423 = vadd.f32 %v3099, %v3422
        %v3424 = vpop.f32.mrf.mxu0
        %3425 = vmatprep.mubr.f32.mxu0 0.0
        %3426 = vmatmul.mubr.f32.gmra.mxu0 %v3239
        %v3427 = vpop.f32.mrf.mxu0
        %v3428 = vadd.f32 %v3104, %v3427
        %v3429 = vpop.f32.mrf.mxu0
        %3430 = vmatprep.mubr.f32.mxu0 0.0
        %3431 = vmatmul.mubr.f32.gmra.mxu0 %v3242
        %v3432 = vpop.f32.mrf.mxu0
        %v3433 = vadd.f32 %v3109, %v3432
        %v3434 = vpop.f32.mrf.mxu0
        %3435 = vmatprep.mubr.f32.mxu0 0.0
        %3436 = vmatmul.mubr.f32.gmra.mxu0 %v3245
        %v3437 = vpop.f32.mrf.mxu0
        %v3438 = vadd.f32 %v3114, %v3437
        %v3439 = vpop.f32.mrf.mxu0
        %3440 = vmatprep.mubr.f32.mxu0 0.0
        %3441 = vmatmul.mubr.f32.gmra.mxu0 %v3248
        %v3442 = vpop.f32.mrf.mxu0
        %v3443 = vadd.f32 %v3119, %v3442
        %v3444 = vpop.f32.mrf.mxu0
        %3445 = vmatprep.mubr.f32.mxu0 0.0
        %3446 = vmatmul.mubr.f32.gmra.mxu0 %v3251
        %v3447 = vpop.f32.mrf.mxu0
        %v3448 = vadd.f32 %v3124, %v3447
        %v3449 = vpop.f32.mrf.mxu0
        %3450 = vmatprep.mubr.f32.mxu0 0.0
        %3451 = vmatmul.mubr.f32.gmra.mxu0 %v3254
        %v3452 = vpop.f32.mrf.mxu0
        %v3453 = vadd.f32 %v3129, %v3452
        %v3454 = vpop.f32.mrf.mxu0
        %3455 = vmatprep.mubr.f32.mxu0 0.0
        %3456 = vmatmul.mubr.f32.gmra.mxu0 %v3257
        %v3457 = vpop.f32.mrf.mxu0
        %v3458 = vadd.f32 %v3134, %v3457
        %v3459 = vpop.f32.mrf.mxu0
        %3460 = vmatprep.mubr.f32.mxu0 0.0
        %3461 = vmatmul.mubr.f32.gmra.mxu0 %v3260
        %v3462 = vpop.f32.mrf.mxu0
        %v3463 = vadd.f32 %v3139, %v3462
        %v3464 = vpop.f32.mrf.mxu0
        %3465 = vmatprep.mubr.f32.mxu0 0.0
        %3466 = vmatmul.mubr.f32.gmra.mxu0 %v3263
        %v3467 = vpop.f32.mrf.mxu0
        %v3468 = vadd.f32 %v3144, %v3467
        %v3469 = vpop.f32.mrf.mxu0
        %3470 = vmatprep.mubr.f32.mxu0 0.0
        %3471 = vmatmul.mubr.f32.gmra.mxu0 %v3266
        %v3472 = vpop.f32.mrf.mxu0
        %v3473 = vadd.f32 %v3149, %v3472
        %v3474 = vpop.f32.mrf.mxu0
        %3475 = vmatprep.mubr.f32.mxu0 0.0
        %3476 = vmatmul.mubr.f32.gmra.mxu0 %v3269
        %v3477 = vpop.f32.mrf.mxu0
        %v3478 = vadd.f32 %v3154, %v3477
        %v3479 = vpop.f32.mrf.mxu0
        %3480 = vmatprep.mubr.f32.mxu0 0.0
        %3481 = vmatmul.mubr.f32.gmra.mxu0 %v3272
        %v3482 = vpop.f32.mrf.mxu0
        %v3483 = vadd.f32 %v3159, %v3482
        %v3484 = vpop.f32.mrf.mxu0
        %3485 = vmatprep.mubr.f32.mxu0 0.0
        %3486 = vmatmul.mubr.f32.gmra.mxu0 %v3275
        %v3487 = vpop.f32.mrf.mxu0
        %v3488 = vadd.f32 %v3164, %v3487
        %v3489 = vpop.f32.mrf.mxu0
        %3490 = vmatprep.mubr.f32.mxu0 0.0
        %3491 = vmatmul.mubr.f32.gmra.mxu0 %v3278
        %v3492 = vpop.f32.mrf.mxu0
        %v3493 = vadd.f32 %v3169, %v3492
        %v3494 = vpop.f32.mrf.mxu0
        %3495 = vmatprep.mubr.f32.mxu0 0.0
        %3496 = vmatmul.mubr.f32.gmra.mxu0 %v3281
        %v3497 = vpop.f32.mrf.mxu0
        %v3498 = vadd.f32 %v3174, %v3497
        %v3499 = vpop.f32.mrf.mxu0
        %3500 = vmatprep.mubr.f32.mxu0 0.0
        %3501 = vmatmul.mubr.f32.gmra.mxu0 %v3284
        %v3502 = vpop.f32.mrf.mxu0
        %v3503 = vadd.f32 %v3179, %v3502
        %v3504 = vpop.f32.mrf.mxu0
        %3505 = vmatprep.mubr.f32.mxu0 0.0
        %3506 = vmatmul.mubr.f32.gmra.mxu0 %v3287
        %v3507 = vpop.f32.mrf.mxu0
        %v3508 = vadd.f32 %v3184, %v3507
        %v3509 = vpop.f32.mrf.mxu0
        %3510 = vmatprep.mubr.f32.mxu0 0.0
        %3511 = vmatmul.mubr.f32.gmra.mxu0 %v3290
        %v3512 = vpop.f32.mrf.mxu0
        %v3513 = vadd.f32 %v3189, %v3512
        %v3514 = vpop.f32.mrf.mxu0
        %3515 = vmatprep.mubr.f32.mxu0 0.0
        %3516 = vmatmul.mubr.f32.gmra.mxu0 %v3293
        %v3517 = vpop.f32.mrf.mxu0
        %v3518 = vadd.f32 %v3194, %v3517
        %v3519 = vpop.f32.mrf.mxu0
        %3520 = vmatprep.mubr.f32.mxu0 0.0
        %3521 = vmatmul.mubr.f32.gmra.mxu0 %v3296
        %v3522 = vpop.f32.mrf.mxu0
        %v3523 = vadd.f32 %v3199, %v3522
        %v3524 = vpop.f32.mrf.mxu0
        %3525 = vdwg.mxu0
        %s3526 = scalar_lea.vmem %s168, 48
        %v3527 = vld [vmem:[%s3526] sm:$0xff]
        %v3528 = vld [vmem:[%s3526 + $0x8] sm:$0xff]
        %v3529 = vld [vmem:[%s3526 + $0x10] sm:$0x3f]
        %v3530 = vld [vmem:[%s3526 + $0x18] sm:$0xff]
        %v3531 = vld [vmem:[%s3526 + $0x20] sm:$0xff]
        %v3532 = vld [vmem:[%s3526 + $0x28] sm:$0x3f]
        %v3533 = vld [vmem:[%s3526 + $0x30] sm:$0xff]
        %v3534 = vld [vmem:[%s3526 + $0x38] sm:$0xff]
        %v3535 = vld [vmem:[%s3526 + $0x40] sm:$0x3f]
        %v3536 = vld [vmem:[%s3526 + $0x48] sm:$0xff]
        %v3537 = vld [vmem:[%s3526 + $0x50] sm:$0xff]
        %v3538 = vld [vmem:[%s3526 + $0x58] sm:$0x3f]
        %v3539 = vld [vmem:[%s3526 + $0x60] sm:$0xff]
        %v3540 = vld [vmem:[%s3526 + $0x68] sm:$0xff]
        %v3541 = vld [vmem:[%s3526 + $0x70] sm:$0x3f]
        %v3542 = vld [vmem:[%s3526 + $0x78] sm:$0xff]
        %v3543 = vld [vmem:[%s3526 + $0x80] sm:$0xff]
        %v3544 = vld [vmem:[%s3526 + $0x88] sm:$0x3f]
        %v3545 = vld [vmem:[%s3526 + $0x90] sm:$0xff]
        %v3546 = vld [vmem:[%s3526 + $0x98] sm:$0xff]
        %v3547 = vld [vmem:[%s3526 + $0xa0] sm:$0x3f]
        %v3548 = vld [vmem:[%s3526 + $0xa8] sm:$0xff]
        %v3549 = vld [vmem:[%s3526 + $0xb0] sm:$0xff]
        %v3550 = vld [vmem:[%s3526 + $0xb8] sm:$0x3f]
        %v3551 = vld [vmem:[%s3526 + $0xc0] sm:$0xff]
        %v3552 = vld [vmem:[%s3526 + $0xc8] sm:$0xff]
        %v3553 = vld [vmem:[%s3526 + $0xd0] sm:$0x3f]
        %v3554 = vld [vmem:[%s3526 + $0xd8] sm:$0xff]
        %v3555 = vld [vmem:[%s3526 + $0xe0] sm:$0xff]
        %v3556 = vld [vmem:[%s3526 + $0xe8] sm:$0x3f]
        %v3557 = vld [vmem:[%s3526 + $0xf0] sm:$0xff]
        %v3558 = vld [vmem:[%s3526 + $0xf8] sm:$0xff]
        %v3559 = vld [vmem:[%s3526 + $0x100] sm:$0x3f]
        %v3560 = vld [vmem:[%s3526 + $0x108] sm:$0xff]
        %v3561 = vld [vmem:[%s3526 + $0x110] sm:$0xff]
        %v3562 = vld [vmem:[%s3526 + $0x118] sm:$0x3f]
        %v3563 = vld [vmem:[%s3526 + $0x120] sm:$0xff]
        %v3564 = vld [vmem:[%s3526 + $0x128] sm:$0xff]
        %v3565 = vld [vmem:[%s3526 + $0x130] sm:$0x3f]
        %v3566 = vld [vmem:[%s3526 + $0x138] sm:$0xff]
        %v3567 = vld [vmem:[%s3526 + $0x140] sm:$0xff]
        %v3568 = vld [vmem:[%s3526 + $0x148] sm:$0x3f]
        %v3569 = vld [vmem:[%s3526 + $0x150] sm:$0xff]
        %v3570 = vld [vmem:[%s3526 + $0x158] sm:$0xff]
        %v3571 = vld [vmem:[%s3526 + $0x160] sm:$0x3f]
        %v3572 = vld [vmem:[%s3526 + $0x168] sm:$0xff]
        %v3573 = vld [vmem:[%s3526 + $0x170] sm:$0xff]
        %v3574 = vld [vmem:[%s3526 + $0x178] sm:$0x3f]
        %v3623 = vrot.slane %v3527, 1
        %v3624 = vrot.slane %v3528, 1
        %v3625 = vsel %vm265, %v3623, %v3624
        %v3626 = vrot.slane %v3529, 1
        %v3627 = vsel %vm265, %v3624, %v3626
        %v3628 = vrot.slane %v3530, 1
        %v3629 = vrot.slane %v3531, 1
        %v3630 = vsel %vm265, %v3628, %v3629
        %v3631 = vrot.slane %v3532, 1
        %v3632 = vsel %vm265, %v3629, %v3631
        %v3633 = vrot.slane %v3533, 1
        %v3634 = vrot.slane %v3534, 1
        %v3635 = vsel %vm265, %v3633, %v3634
        %v3636 = vrot.slane %v3535, 1
        %v3637 = vsel %vm265, %v3634, %v3636
        %v3638 = vrot.slane %v3536, 1
        %v3639 = vrot.slane %v3537, 1
        %v3640 = vsel %vm265, %v3638, %v3639
        %v3641 = vrot.slane %v3538, 1
        %v3642 = vsel %vm265, %v3639, %v3641
        %v3643 = vrot.slane %v3539, 1
        %v3644 = vrot.slane %v3540, 1
        %v3645 = vsel %vm265, %v3643, %v3644
        %v3646 = vrot.slane %v3541, 1
        %v3647 = vsel %vm265, %v3644, %v3646
        %v3648 = vrot.slane %v3542, 1
        %v3649 = vrot.slane %v3543, 1
        %v3650 = vsel %vm265, %v3648, %v3649
        %v3651 = vrot.slane %v3544, 1
        %v3652 = vsel %vm265, %v3649, %v3651
        %v3653 = vrot.slane %v3545, 1
        %v3654 = vrot.slane %v3546, 1
        %v3655 = vsel %vm265, %v3653, %v3654
        %v3656 = vrot.slane %v3547, 1
        %v3657 = vsel %vm265, %v3654, %v3656
        %v3658 = vrot.slane %v3548, 1
        %v3659 = vrot.slane %v3549, 1
        %v3660 = vsel %vm265, %v3658, %v3659
        %v3661 = vrot.slane %v3550, 1
        %v3662 = vsel %vm265, %v3659, %v3661
        %v3663 = vrot.slane %v3551, 1
        %v3664 = vrot.slane %v3552, 1
        %v3665 = vsel %vm265, %v3663, %v3664
        %v3666 = vrot.slane %v3553, 1
        %v3667 = vsel %vm265, %v3664, %v3666
        %v3668 = vrot.slane %v3554, 1
        %v3669 = vrot.slane %v3555, 1
        %v3670 = vsel %vm265, %v3668, %v3669
        %v3671 = vrot.slane %v3556, 1
        %v3672 = vsel %vm265, %v3669, %v3671
        %v3673 = vrot.slane %v3557, 1
        %v3674 = vrot.slane %v3558, 1
        %v3675 = vsel %vm265, %v3673, %v3674
        %v3676 = vrot.slane %v3559, 1
        %v3677 = vsel %vm265, %v3674, %v3676
        %v3678 = vrot.slane %v3560, 1
        %v3679 = vrot.slane %v3561, 1
        %v3680 = vsel %vm265, %v3678, %v3679
        %v3681 = vrot.slane %v3562, 1
        %v3682 = vsel %vm265, %v3679, %v3681
        %v3683 = vrot.slane %v3563, 1
        %v3684 = vrot.slane %v3564, 1
        %v3685 = vsel %vm265, %v3683, %v3684
        %v3686 = vrot.slane %v3565, 1
        %v3687 = vsel %vm265, %v3684, %v3686
        %v3688 = vrot.slane %v3566, 1
        %v3689 = vrot.slane %v3567, 1
        %v3690 = vsel %vm265, %v3688, %v3689
        %v3691 = vrot.slane %v3568, 1
        %v3692 = vsel %vm265, %v3689, %v3691
        %v3693 = vrot.slane %v3569, 1
        %v3694 = vrot.slane %v3570, 1
        %v3695 = vsel %vm265, %v3693, %v3694
        %v3696 = vrot.slane %v3571, 1
        %v3697 = vsel %vm265, %v3694, %v3696
        %v3698 = vrot.slane %v3572, 1
        %v3699 = vrot.slane %v3573, 1
        %v3700 = vsel %vm265, %v3698, %v3699
        %v3701 = vrot.slane %v3574, 1
        %v3702 = vsel %vm265, %v3699, %v3701
        %3703 = vrot.lane.b32.xlu0 %v3625, 3
        %v3704 = vpop.permute.xlu0 %3703
        %3705 = vrot.lane.b32.xlu0 %v3627, 3
        %v3706 = vpop.permute.xlu0 %3705
        %3707 = vrot.lane.b32.xlu0 %v3630, 3
        %v3708 = vpop.permute.xlu0 %3707
        %3709 = vrot.lane.b32.xlu0 %v3632, 3
        %v3710 = vpop.permute.xlu0 %3709
        %3711 = vrot.lane.b32.xlu0 %v3635, 3
        %v3712 = vpop.permute.xlu0 %3711
        %3713 = vrot.lane.b32.xlu0 %v3637, 3
        %v3714 = vpop.permute.xlu0 %3713
        %3715 = vrot.lane.b32.xlu0 %v3640, 3
        %v3716 = vpop.permute.xlu0 %3715
        %3717 = vrot.lane.b32.xlu0 %v3642, 3
        %v3718 = vpop.permute.xlu0 %3717
        %3719 = vrot.lane.b32.xlu0 %v3645, 3
        %v3720 = vpop.permute.xlu0 %3719
        %3721 = vrot.lane.b32.xlu0 %v3647, 3
        %v3722 = vpop.permute.xlu0 %3721
        %3723 = vrot.lane.b32.xlu0 %v3650, 3
        %v3724 = vpop.permute.xlu0 %3723
        %3725 = vrot.lane.b32.xlu0 %v3652, 3
        %v3726 = vpop.permute.xlu0 %3725
        %3727 = vrot.lane.b32.xlu0 %v3655, 3
        %v3728 = vpop.permute.xlu0 %3727
        %3729 = vrot.lane.b32.xlu0 %v3657, 3
        %v3730 = vpop.permute.xlu0 %3729
        %3731 = vrot.lane.b32.xlu0 %v3660, 3
        %v3732 = vpop.permute.xlu0 %3731
        %3733 = vrot.lane.b32.xlu0 %v3662, 3
        %v3734 = vpop.permute.xlu0 %3733
        %3735 = vrot.lane.b32.xlu0 %v3665, 3
        %v3736 = vpop.permute.xlu0 %3735
        %3737 = vrot.lane.b32.xlu0 %v3667, 3
        %v3738 = vpop.permute.xlu0 %3737
        %3739 = vrot.lane.b32.xlu0 %v3670, 3
        %v3740 = vpop.permute.xlu0 %3739
        %3741 = vrot.lane.b32.xlu0 %v3672, 3
        %v3742 = vpop.permute.xlu0 %3741
        %3743 = vrot.lane.b32.xlu0 %v3675, 3
        %v3744 = vpop.permute.xlu0 %3743
        %3745 = vrot.lane.b32.xlu0 %v3677, 3
        %v3746 = vpop.permute.xlu0 %3745
        %3747 = vrot.lane.b32.xlu0 %v3680, 3
        %v3748 = vpop.permute.xlu0 %3747
        %3749 = vrot.lane.b32.xlu0 %v3682, 3
        %v3750 = vpop.permute.xlu0 %3749
        %3751 = vrot.lane.b32.xlu0 %v3685, 3
        %v3752 = vpop.permute.xlu0 %3751
        %3753 = vrot.lane.b32.xlu0 %v3687, 3
        %v3754 = vpop.permute.xlu0 %3753
        %3755 = vrot.lane.b32.xlu0 %v3690, 3
        %v3756 = vpop.permute.xlu0 %3755
        %3757 = vrot.lane.b32.xlu0 %v3692, 3
        %v3758 = vpop.permute.xlu0 %3757
        %3759 = vrot.lane.b32.xlu0 %v3695, 3
        %v3760 = vpop.permute.xlu0 %3759
        %3761 = vrot.lane.b32.xlu0 %v3697, 3
        %v3762 = vpop.permute.xlu0 %3761
        %3763 = vrot.lane.b32.xlu0 %v3700, 3
        %v3764 = vpop.permute.xlu0 %3763
        %3765 = vrot.lane.b32.xlu0 %v3702, 3
        %v3766 = vpop.permute.xlu0 %3765
        %v3799 = vrot.slane %v3527, 2
        %v3800 = vrot.slane %v3528, 2
        %v3801 = vsel %vm442, %v3799, %v3800
        %v3802 = vrot.slane %v3529, 2
        %v3803 = vsel %vm442, %v3800, %v3802
        %v3804 = vrot.slane %v3530, 2
        %v3805 = vrot.slane %v3531, 2
        %v3806 = vsel %vm442, %v3804, %v3805
        %v3807 = vrot.slane %v3532, 2
        %v3808 = vsel %vm442, %v3805, %v3807
        %v3809 = vrot.slane %v3533, 2
        %v3810 = vrot.slane %v3534, 2
        %v3811 = vsel %vm442, %v3809, %v3810
        %v3812 = vrot.slane %v3535, 2
        %v3813 = vsel %vm442, %v3810, %v3812
        %v3814 = vrot.slane %v3536, 2
        %v3815 = vrot.slane %v3537, 2
        %v3816 = vsel %vm442, %v3814, %v3815
        %v3817 = vrot.slane %v3538, 2
        %v3818 = vsel %vm442, %v3815, %v3817
        %v3819 = vrot.slane %v3539, 2
        %v3820 = vrot.slane %v3540, 2
        %v3821 = vsel %vm442, %v3819, %v3820
        %v3822 = vrot.slane %v3541, 2
        %v3823 = vsel %vm442, %v3820, %v3822
        %v3824 = vrot.slane %v3542, 2
        %v3825 = vrot.slane %v3543, 2
        %v3826 = vsel %vm442, %v3824, %v3825
        %v3827 = vrot.slane %v3544, 2
        %v3828 = vsel %vm442, %v3825, %v3827
        %v3829 = vrot.slane %v3545, 2
        %v3830 = vrot.slane %v3546, 2
        %v3831 = vsel %vm442, %v3829, %v3830
        %v3832 = vrot.slane %v3547, 2
        %v3833 = vsel %vm442, %v3830, %v3832
        %v3834 = vrot.slane %v3548, 2
        %v3835 = vrot.slane %v3549, 2
        %v3836 = vsel %vm442, %v3834, %v3835
        %v3837 = vrot.slane %v3550, 2
        %v3838 = vsel %vm442, %v3835, %v3837
        %v3839 = vrot.slane %v3551, 2
        %v3840 = vrot.slane %v3552, 2
        %v3841 = vsel %vm442, %v3839, %v3840
        %v3842 = vrot.slane %v3553, 2
        %v3843 = vsel %vm442, %v3840, %v3842
        %v3844 = vrot.slane %v3554, 2
        %v3845 = vrot.slane %v3555, 2
        %v3846 = vsel %vm442, %v3844, %v3845
        %v3847 = vrot.slane %v3556, 2
        %v3848 = vsel %vm442, %v3845, %v3847
        %v3849 = vrot.slane %v3557, 2
        %v3850 = vrot.slane %v3558, 2
        %v3851 = vsel %vm442, %v3849, %v3850
        %v3852 = vrot.slane %v3559, 2
        %v3853 = vsel %vm442, %v3850, %v3852
        %v3854 = vrot.slane %v3560, 2
        %v3855 = vrot.slane %v3561, 2
        %v3856 = vsel %vm442, %v3854, %v3855
        %v3857 = vrot.slane %v3562, 2
        %v3858 = vsel %vm442, %v3855, %v3857
        %v3859 = vrot.slane %v3563, 2
        %v3860 = vrot.slane %v3564, 2
        %v3861 = vsel %vm442, %v3859, %v3860
        %v3862 = vrot.slane %v3565, 2
        %v3863 = vsel %vm442, %v3860, %v3862
        %v3864 = vrot.slane %v3566, 2
        %v3865 = vrot.slane %v3567, 2
        %v3866 = vsel %vm442, %v3864, %v3865
        %v3867 = vrot.slane %v3568, 2
        %v3868 = vsel %vm442, %v3865, %v3867
        %v3869 = vrot.slane %v3569, 2
        %v3870 = vrot.slane %v3570, 2
        %v3871 = vsel %vm442, %v3869, %v3870
        %v3872 = vrot.slane %v3571, 2
        %v3873 = vsel %vm442, %v3870, %v3872
        %v3874 = vrot.slane %v3572, 2
        %v3875 = vrot.slane %v3573, 2
        %v3876 = vsel %vm442, %v3874, %v3875
        %v3877 = vrot.slane %v3574, 2
        %v3878 = vsel %vm442, %v3875, %v3877
        %3879 = vrot.lane.b32.xlu0 %v3801, 6
        %v3880 = vpop.permute.xlu0 %3879
        %3881 = vrot.lane.b32.xlu0 %v3803, 6
        %v3882 = vpop.permute.xlu0 %3881
        %3883 = vrot.lane.b32.xlu0 %v3806, 6
        %v3884 = vpop.permute.xlu0 %3883
        %3885 = vrot.lane.b32.xlu0 %v3808, 6
        %v3886 = vpop.permute.xlu0 %3885
        %3887 = vrot.lane.b32.xlu0 %v3811, 6
        %v3888 = vpop.permute.xlu0 %3887
        %3889 = vrot.lane.b32.xlu0 %v3813, 6
        %v3890 = vpop.permute.xlu0 %3889
        %3891 = vrot.lane.b32.xlu0 %v3816, 6
        %v3892 = vpop.permute.xlu0 %3891
        %3893 = vrot.lane.b32.xlu0 %v3818, 6
        %v3894 = vpop.permute.xlu0 %3893
        %3895 = vrot.lane.b32.xlu0 %v3821, 6
        %v3896 = vpop.permute.xlu0 %3895
        %3897 = vrot.lane.b32.xlu0 %v3823, 6
        %v3898 = vpop.permute.xlu0 %3897
        %3899 = vrot.lane.b32.xlu0 %v3826, 6
        %v3900 = vpop.permute.xlu0 %3899
        %3901 = vrot.lane.b32.xlu0 %v3828, 6
        %v3902 = vpop.permute.xlu0 %3901
        %3903 = vrot.lane.b32.xlu0 %v3831, 6
        %v3904 = vpop.permute.xlu0 %3903
        %3905 = vrot.lane.b32.xlu0 %v3833, 6
        %v3906 = vpop.permute.xlu0 %3905
        %3907 = vrot.lane.b32.xlu0 %v3836, 6
        %v3908 = vpop.permute.xlu0 %3907
        %3909 = vrot.lane.b32.xlu0 %v3838, 6
        %v3910 = vpop.permute.xlu0 %3909
        %3911 = vrot.lane.b32.xlu0 %v3841, 6
        %v3912 = vpop.permute.xlu0 %3911
        %3913 = vrot.lane.b32.xlu0 %v3843, 6
        %v3914 = vpop.permute.xlu0 %3913
        %3915 = vrot.lane.b32.xlu0 %v3846, 6
        %v3916 = vpop.permute.xlu0 %3915
        %3917 = vrot.lane.b32.xlu0 %v3848, 6
        %v3918 = vpop.permute.xlu0 %3917
        %3919 = vrot.lane.b32.xlu0 %v3851, 6
        %v3920 = vpop.permute.xlu0 %3919
        %3921 = vrot.lane.b32.xlu0 %v3853, 6
        %v3922 = vpop.permute.xlu0 %3921
        %3923 = vrot.lane.b32.xlu0 %v3856, 6
        %v3924 = vpop.permute.xlu0 %3923
        %3925 = vrot.lane.b32.xlu0 %v3858, 6
        %v3926 = vpop.permute.xlu0 %3925
        %3927 = vrot.lane.b32.xlu0 %v3861, 6
        %v3928 = vpop.permute.xlu0 %3927
        %3929 = vrot.lane.b32.xlu0 %v3863, 6
        %v3930 = vpop.permute.xlu0 %3929
        %3931 = vrot.lane.b32.xlu0 %v3866, 6
        %v3932 = vpop.permute.xlu0 %3931
        %3933 = vrot.lane.b32.xlu0 %v3868, 6
        %v3934 = vpop.permute.xlu0 %3933
        %3935 = vrot.lane.b32.xlu0 %v3871, 6
        %v3936 = vpop.permute.xlu0 %3935
        %3937 = vrot.lane.b32.xlu0 %v3873, 6
        %v3938 = vpop.permute.xlu0 %3937
        %3939 = vrot.lane.b32.xlu0 %v3876, 6
        %v3940 = vpop.permute.xlu0 %3939
        %3941 = vrot.lane.b32.xlu0 %v3878, 6
        %v3942 = vpop.permute.xlu0 %3941
        %v3975 = vrot.slane %v3527, 3
        %v3976 = vrot.slane %v3528, 3
        %v3977 = vsel %vm619, %v3975, %v3976
        %v3978 = vrot.slane %v3529, 3
        %v3979 = vsel %vm619, %v3976, %v3978
        %v3980 = vrot.slane %v3530, 3
        %v3981 = vrot.slane %v3531, 3
        %v3982 = vsel %vm619, %v3980, %v3981
        %v3983 = vrot.slane %v3532, 3
        %v3984 = vsel %vm619, %v3981, %v3983
        %v3985 = vrot.slane %v3533, 3
        %v3986 = vrot.slane %v3534, 3
        %v3987 = vsel %vm619, %v3985, %v3986
        %v3988 = vrot.slane %v3535, 3
        %v3989 = vsel %vm619, %v3986, %v3988
        %v3990 = vrot.slane %v3536, 3
        %v3991 = vrot.slane %v3537, 3
        %v3992 = vsel %vm619, %v3990, %v3991
        %v3993 = vrot.slane %v3538, 3
        %v3994 = vsel %vm619, %v3991, %v3993
        %v3995 = vrot.slane %v3539, 3
        %v3996 = vrot.slane %v3540, 3
        %v3997 = vsel %vm619, %v3995, %v3996
        %v3998 = vrot.slane %v3541, 3
        %v3999 = vsel %vm619, %v3996, %v3998
        %v4000 = vrot.slane %v3542, 3
        %v4001 = vrot.slane %v3543, 3
        %v4002 = vsel %vm619, %v4000, %v4001
        %v4003 = vrot.slane %v3544, 3
        %v4004 = vsel %vm619, %v4001, %v4003
        %v4005 = vrot.slane %v3545, 3
        %v4006 = vrot.slane %v3546, 3
        %v4007 = vsel %vm619, %v4005, %v4006
        %v4008 = vrot.slane %v3547, 3
        %v4009 = vsel %vm619, %v4006, %v4008
        %v4010 = vrot.slane %v3548, 3
        %v4011 = vrot.slane %v3549, 3
        %v4012 = vsel %vm619, %v4010, %v4011
        %v4013 = vrot.slane %v3550, 3
        %v4014 = vsel %vm619, %v4011, %v4013
        %v4015 = vrot.slane %v3551, 3
        %v4016 = vrot.slane %v3552, 3
        %v4017 = vsel %vm619, %v4015, %v4016
        %v4018 = vrot.slane %v3553, 3
        %v4019 = vsel %vm619, %v4016, %v4018
        %v4020 = vrot.slane %v3554, 3
        %v4021 = vrot.slane %v3555, 3
        %v4022 = vsel %vm619, %v4020, %v4021
        %v4023 = vrot.slane %v3556, 3
        %v4024 = vsel %vm619, %v4021, %v4023
        %v4025 = vrot.slane %v3557, 3
        %v4026 = vrot.slane %v3558, 3
        %v4027 = vsel %vm619, %v4025, %v4026
        %v4028 = vrot.slane %v3559, 3
        %v4029 = vsel %vm619, %v4026, %v4028
        %v4030 = vrot.slane %v3560, 3
        %v4031 = vrot.slane %v3561, 3
        %v4032 = vsel %vm619, %v4030, %v4031
        %v4033 = vrot.slane %v3562, 3
        %v4034 = vsel %vm619, %v4031, %v4033
        %v4035 = vrot.slane %v3563, 3
        %v4036 = vrot.slane %v3564, 3
        %v4037 = vsel %vm619, %v4035, %v4036
        %v4038 = vrot.slane %v3565, 3
        %v4039 = vsel %vm619, %v4036, %v4038
        %v4040 = vrot.slane %v3566, 3
        %v4041 = vrot.slane %v3567, 3
        %v4042 = vsel %vm619, %v4040, %v4041
        %v4043 = vrot.slane %v3568, 3
        %v4044 = vsel %vm619, %v4041, %v4043
        %v4045 = vrot.slane %v3569, 3
        %v4046 = vrot.slane %v3570, 3
        %v4047 = vsel %vm619, %v4045, %v4046
        %v4048 = vrot.slane %v3571, 3
        %v4049 = vsel %vm619, %v4046, %v4048
        %v4050 = vrot.slane %v3572, 3
        %v4051 = vrot.slane %v3573, 3
        %v4052 = vsel %vm619, %v4050, %v4051
        %v4053 = vrot.slane %v3574, 3
        %v4054 = vsel %vm619, %v4051, %v4053
        %4055 = vrot.lane.b32.xlu0 %v3977, 9
        %v4056 = vpop.permute.xlu0 %4055
        %4057 = vrot.lane.b32.xlu0 %v3979, 9
        %v4058 = vpop.permute.xlu0 %4057
        %4059 = vrot.lane.b32.xlu0 %v3982, 9
        %v4060 = vpop.permute.xlu0 %4059
        %4061 = vrot.lane.b32.xlu0 %v3984, 9
        %v4062 = vpop.permute.xlu0 %4061
        %4063 = vrot.lane.b32.xlu0 %v3987, 9
        %v4064 = vpop.permute.xlu0 %4063
        %4065 = vrot.lane.b32.xlu0 %v3989, 9
        %v4066 = vpop.permute.xlu0 %4065
        %4067 = vrot.lane.b32.xlu0 %v3992, 9
        %v4068 = vpop.permute.xlu0 %4067
        %4069 = vrot.lane.b32.xlu0 %v3994, 9
        %v4070 = vpop.permute.xlu0 %4069
        %4071 = vrot.lane.b32.xlu0 %v3997, 9
        %v4072 = vpop.permute.xlu0 %4071
        %4073 = vrot.lane.b32.xlu0 %v3999, 9
        %v4074 = vpop.permute.xlu0 %4073
        %4075 = vrot.lane.b32.xlu0 %v4002, 9
        %v4076 = vpop.permute.xlu0 %4075
        %4077 = vrot.lane.b32.xlu0 %v4004, 9
        %v4078 = vpop.permute.xlu0 %4077
        %4079 = vrot.lane.b32.xlu0 %v4007, 9
        %v4080 = vpop.permute.xlu0 %4079
        %4081 = vrot.lane.b32.xlu0 %v4009, 9
        %v4082 = vpop.permute.xlu0 %4081
        %4083 = vrot.lane.b32.xlu0 %v4012, 9
        %v4084 = vpop.permute.xlu0 %4083
        %4085 = vrot.lane.b32.xlu0 %v4014, 9
        %v4086 = vpop.permute.xlu0 %4085
        %4087 = vrot.lane.b32.xlu0 %v4017, 9
        %v4088 = vpop.permute.xlu0 %4087
        %4089 = vrot.lane.b32.xlu0 %v4019, 9
        %v4090 = vpop.permute.xlu0 %4089
        %4091 = vrot.lane.b32.xlu0 %v4022, 9
        %v4092 = vpop.permute.xlu0 %4091
        %4093 = vrot.lane.b32.xlu0 %v4024, 9
        %v4094 = vpop.permute.xlu0 %4093
        %4095 = vrot.lane.b32.xlu0 %v4027, 9
        %v4096 = vpop.permute.xlu0 %4095
        %4097 = vrot.lane.b32.xlu0 %v4029, 9
        %v4098 = vpop.permute.xlu0 %4097
        %4099 = vrot.lane.b32.xlu0 %v4032, 9
        %v4100 = vpop.permute.xlu0 %4099
        %4101 = vrot.lane.b32.xlu0 %v4034, 9
        %v4102 = vpop.permute.xlu0 %4101
        %4103 = vrot.lane.b32.xlu0 %v4037, 9
        %v4104 = vpop.permute.xlu0 %4103
        %4105 = vrot.lane.b32.xlu0 %v4039, 9
        %v4106 = vpop.permute.xlu0 %4105
        %4107 = vrot.lane.b32.xlu0 %v4042, 9
        %v4108 = vpop.permute.xlu0 %4107
        %4109 = vrot.lane.b32.xlu0 %v4044, 9
        %v4110 = vpop.permute.xlu0 %4109
        %4111 = vrot.lane.b32.xlu0 %v4047, 9
        %v4112 = vpop.permute.xlu0 %4111
        %4113 = vrot.lane.b32.xlu0 %v4049, 9
        %v4114 = vpop.permute.xlu0 %4113
        %4115 = vrot.lane.b32.xlu0 %v4052, 9
        %v4116 = vpop.permute.xlu0 %4115
        %4117 = vrot.lane.b32.xlu0 %v4054, 9
        %v4118 = vpop.permute.xlu0 %4117
        %v4151 = vrot.slane %v3527, 4
        %v4152 = vrot.slane %v3528, 4
        %v4153 = vsel %vm796, %v4151, %v4152
        %v4154 = vrot.slane %v3529, 4
        %v4155 = vsel %vm796, %v4152, %v4154
        %v4156 = vrot.slane %v3530, 4
        %v4157 = vrot.slane %v3531, 4
        %v4158 = vsel %vm796, %v4156, %v4157
        %v4159 = vrot.slane %v3532, 4
        %v4160 = vsel %vm796, %v4157, %v4159
        %v4161 = vrot.slane %v3533, 4
        %v4162 = vrot.slane %v3534, 4
        %v4163 = vsel %vm796, %v4161, %v4162
        %v4164 = vrot.slane %v3535, 4
        %v4165 = vsel %vm796, %v4162, %v4164
        %v4166 = vrot.slane %v3536, 4
        %v4167 = vrot.slane %v3537, 4
        %v4168 = vsel %vm796, %v4166, %v4167
        %v4169 = vrot.slane %v3538, 4
        %v4170 = vsel %vm796, %v4167, %v4169
        %v4171 = vrot.slane %v3539, 4
        %v4172 = vrot.slane %v3540, 4
        %v4173 = vsel %vm796, %v4171, %v4172
        %v4174 = vrot.slane %v3541, 4
        %v4175 = vsel %vm796, %v4172, %v4174
        %v4176 = vrot.slane %v3542, 4
        %v4177 = vrot.slane %v3543, 4
        %v4178 = vsel %vm796, %v4176, %v4177
        %v4179 = vrot.slane %v3544, 4
        %v4180 = vsel %vm796, %v4177, %v4179
        %v4181 = vrot.slane %v3545, 4
        %v4182 = vrot.slane %v3546, 4
        %v4183 = vsel %vm796, %v4181, %v4182
        %v4184 = vrot.slane %v3547, 4
        %v4185 = vsel %vm796, %v4182, %v4184
        %v4186 = vrot.slane %v3548, 4
        %v4187 = vrot.slane %v3549, 4
        %v4188 = vsel %vm796, %v4186, %v4187
        %v4189 = vrot.slane %v3550, 4
        %v4190 = vsel %vm796, %v4187, %v4189
        %v4191 = vrot.slane %v3551, 4
        %v4192 = vrot.slane %v3552, 4
        %v4193 = vsel %vm796, %v4191, %v4192
        %v4194 = vrot.slane %v3553, 4
        %v4195 = vsel %vm796, %v4192, %v4194
        %v4196 = vrot.slane %v3554, 4
        %v4197 = vrot.slane %v3555, 4
        %v4198 = vsel %vm796, %v4196, %v4197
        %v4199 = vrot.slane %v3556, 4
        %v4200 = vsel %vm796, %v4197, %v4199
        %v4201 = vrot.slane %v3557, 4
        %v4202 = vrot.slane %v3558, 4
        %v4203 = vsel %vm796, %v4201, %v4202
        %v4204 = vrot.slane %v3559, 4
        %v4205 = vsel %vm796, %v4202, %v4204
        %v4206 = vrot.slane %v3560, 4
        %v4207 = vrot.slane %v3561, 4
        %v4208 = vsel %vm796, %v4206, %v4207
        %v4209 = vrot.slane %v3562, 4
        %v4210 = vsel %vm796, %v4207, %v4209
        %v4211 = vrot.slane %v3563, 4
        %v4212 = vrot.slane %v3564, 4
        %v4213 = vsel %vm796, %v4211, %v4212
        %v4214 = vrot.slane %v3565, 4
        %v4215 = vsel %vm796, %v4212, %v4214
        %v4216 = vrot.slane %v3566, 4
        %v4217 = vrot.slane %v3567, 4
        %v4218 = vsel %vm796, %v4216, %v4217
        %v4219 = vrot.slane %v3568, 4
        %v4220 = vsel %vm796, %v4217, %v4219
        %v4221 = vrot.slane %v3569, 4
        %v4222 = vrot.slane %v3570, 4
        %v4223 = vsel %vm796, %v4221, %v4222
        %v4224 = vrot.slane %v3571, 4
        %v4225 = vsel %vm796, %v4222, %v4224
        %v4226 = vrot.slane %v3572, 4
        %v4227 = vrot.slane %v3573, 4
        %v4228 = vsel %vm796, %v4226, %v4227
        %v4229 = vrot.slane %v3574, 4
        %v4230 = vsel %vm796, %v4227, %v4229
        %4231 = vrot.lane.b32.xlu0 %v4153, 12
        %v4232 = vpop.permute.xlu0 %4231
        %4233 = vrot.lane.b32.xlu0 %v4155, 12
        %v4234 = vpop.permute.xlu0 %4233
        %4235 = vrot.lane.b32.xlu0 %v4158, 12
        %v4236 = vpop.permute.xlu0 %4235
        %4237 = vrot.lane.b32.xlu0 %v4160, 12
        %v4238 = vpop.permute.xlu0 %4237
        %4239 = vrot.lane.b32.xlu0 %v4163, 12
        %v4240 = vpop.permute.xlu0 %4239
        %4241 = vrot.lane.b32.xlu0 %v4165, 12
        %v4242 = vpop.permute.xlu0 %4241
        %4243 = vrot.lane.b32.xlu0 %v4168, 12
        %v4244 = vpop.permute.xlu0 %4243
        %4245 = vrot.lane.b32.xlu0 %v4170, 12
        %v4246 = vpop.permute.xlu0 %4245
        %4247 = vrot.lane.b32.xlu0 %v4173, 12
        %v4248 = vpop.permute.xlu0 %4247
        %4249 = vrot.lane.b32.xlu0 %v4175, 12
        %v4250 = vpop.permute.xlu0 %4249
        %4251 = vrot.lane.b32.xlu0 %v4178, 12
        %v4252 = vpop.permute.xlu0 %4251
        %4253 = vrot.lane.b32.xlu0 %v4180, 12
        %v4254 = vpop.permute.xlu0 %4253
        %4255 = vrot.lane.b32.xlu0 %v4183, 12
        %v4256 = vpop.permute.xlu0 %4255
        %4257 = vrot.lane.b32.xlu0 %v4185, 12
        %v4258 = vpop.permute.xlu0 %4257
        %4259 = vrot.lane.b32.xlu0 %v4188, 12
        %v4260 = vpop.permute.xlu0 %4259
        %4261 = vrot.lane.b32.xlu0 %v4190, 12
        %v4262 = vpop.permute.xlu0 %4261
        %4263 = vrot.lane.b32.xlu0 %v4193, 12
        %v4264 = vpop.permute.xlu0 %4263
        %4265 = vrot.lane.b32.xlu0 %v4195, 12
        %v4266 = vpop.permute.xlu0 %4265
        %4267 = vrot.lane.b32.xlu0 %v4198, 12
        %v4268 = vpop.permute.xlu0 %4267
        %4269 = vrot.lane.b32.xlu0 %v4200, 12
        %v4270 = vpop.permute.xlu0 %4269
        %4271 = vrot.lane.b32.xlu0 %v4203, 12
        %v4272 = vpop.permute.xlu0 %4271
        %4273 = vrot.lane.b32.xlu0 %v4205, 12
        %v4274 = vpop.permute.xlu0 %4273
        %4275 = vrot.lane.b32.xlu0 %v4208, 12
        %v4276 = vpop.permute.xlu0 %4275
        %4277 = vrot.lane.b32.xlu0 %v4210, 12
        %v4278 = vpop.permute.xlu0 %4277
        %4279 = vrot.lane.b32.xlu0 %v4213, 12
        %v4280 = vpop.permute.xlu0 %4279
        %4281 = vrot.lane.b32.xlu0 %v4215, 12
        %v4282 = vpop.permute.xlu0 %4281
        %4283 = vrot.lane.b32.xlu0 %v4218, 12
        %v4284 = vpop.permute.xlu0 %4283
        %4285 = vrot.lane.b32.xlu0 %v4220, 12
        %v4286 = vpop.permute.xlu0 %4285
        %4287 = vrot.lane.b32.xlu0 %v4223, 12
        %v4288 = vpop.permute.xlu0 %4287
        %4289 = vrot.lane.b32.xlu0 %v4225, 12
        %v4290 = vpop.permute.xlu0 %4289
        %4291 = vrot.lane.b32.xlu0 %v4228, 12
        %v4292 = vpop.permute.xlu0 %4291
        %4293 = vrot.lane.b32.xlu0 %v4230, 12
        %v4294 = vpop.permute.xlu0 %4293
        %v4327 = vrot.slane %v3527, 5
        %v4328 = vrot.slane %v3528, 5
        %v4329 = vsel %vm973, %v4327, %v4328
        %v4330 = vrot.slane %v3529, 5
        %v4331 = vsel %vm973, %v4328, %v4330
        %v4332 = vrot.slane %v3530, 5
        %v4333 = vrot.slane %v3531, 5
        %v4334 = vsel %vm973, %v4332, %v4333
        %v4335 = vrot.slane %v3532, 5
        %v4336 = vsel %vm973, %v4333, %v4335
        %v4337 = vrot.slane %v3533, 5
        %v4338 = vrot.slane %v3534, 5
        %v4339 = vsel %vm973, %v4337, %v4338
        %v4340 = vrot.slane %v3535, 5
        %v4341 = vsel %vm973, %v4338, %v4340
        %v4342 = vrot.slane %v3536, 5
        %v4343 = vrot.slane %v3537, 5
        %v4344 = vsel %vm973, %v4342, %v4343
        %v4345 = vrot.slane %v3538, 5
        %v4346 = vsel %vm973, %v4343, %v4345
        %v4347 = vrot.slane %v3539, 5
        %v4348 = vrot.slane %v3540, 5
        %v4349 = vsel %vm973, %v4347, %v4348
        %v4350 = vrot.slane %v3541, 5
        %v4351 = vsel %vm973, %v4348, %v4350
        %v4352 = vrot.slane %v3542, 5
        %v4353 = vrot.slane %v3543, 5
        %v4354 = vsel %vm973, %v4352, %v4353
        %v4355 = vrot.slane %v3544, 5
        %v4356 = vsel %vm973, %v4353, %v4355
        %v4357 = vrot.slane %v3545, 5
        %v4358 = vrot.slane %v3546, 5
        %v4359 = vsel %vm973, %v4357, %v4358
        %v4360 = vrot.slane %v3547, 5
        %v4361 = vsel %vm973, %v4358, %v4360
        %v4362 = vrot.slane %v3548, 5
        %v4363 = vrot.slane %v3549, 5
        %v4364 = vsel %vm973, %v4362, %v4363
        %v4365 = vrot.slane %v3550, 5
        %v4366 = vsel %vm973, %v4363, %v4365
        %v4367 = vrot.slane %v3551, 5
        %v4368 = vrot.slane %v3552, 5
        %v4369 = vsel %vm973, %v4367, %v4368
        %v4370 = vrot.slane %v3553, 5
        %v4371 = vsel %vm973, %v4368, %v4370
        %v4372 = vrot.slane %v3554, 5
        %v4373 = vrot.slane %v3555, 5
        %v4374 = vsel %vm973, %v4372, %v4373
        %v4375 = vrot.slane %v3556, 5
        %v4376 = vsel %vm973, %v4373, %v4375
        %v4377 = vrot.slane %v3557, 5
        %v4378 = vrot.slane %v3558, 5
        %v4379 = vsel %vm973, %v4377, %v4378
        %v4380 = vrot.slane %v3559, 5
        %v4381 = vsel %vm973, %v4378, %v4380
        %v4382 = vrot.slane %v3560, 5
        %v4383 = vrot.slane %v3561, 5
        %v4384 = vsel %vm973, %v4382, %v4383
        %v4385 = vrot.slane %v3562, 5
        %v4386 = vsel %vm973, %v4383, %v4385
        %v4387 = vrot.slane %v3563, 5
        %v4388 = vrot.slane %v3564, 5
        %v4389 = vsel %vm973, %v4387, %v4388
        %v4390 = vrot.slane %v3565, 5
        %v4391 = vsel %vm973, %v4388, %v4390
        %v4392 = vrot.slane %v3566, 5
        %v4393 = vrot.slane %v3567, 5
        %v4394 = vsel %vm973, %v4392, %v4393
        %v4395 = vrot.slane %v3568, 5
        %v4396 = vsel %vm973, %v4393, %v4395
        %v4397 = vrot.slane %v3569, 5
        %v4398 = vrot.slane %v3570, 5
        %v4399 = vsel %vm973, %v4397, %v4398
        %v4400 = vrot.slane %v3571, 5
        %v4401 = vsel %vm973, %v4398, %v4400
        %v4402 = vrot.slane %v3572, 5
        %v4403 = vrot.slane %v3573, 5
        %v4404 = vsel %vm973, %v4402, %v4403
        %v4405 = vrot.slane %v3574, 5
        %v4406 = vsel %vm973, %v4403, %v4405
        %4407 = vrot.lane.b32.xlu0 %v4329, 15
        %v4408 = vpop.permute.xlu0 %4407
        %4409 = vrot.lane.b32.xlu0 %v4331, 15
        %v4410 = vpop.permute.xlu0 %4409
        %4411 = vrot.lane.b32.xlu0 %v4334, 15
        %v4412 = vpop.permute.xlu0 %4411
        %4413 = vrot.lane.b32.xlu0 %v4336, 15
        %v4414 = vpop.permute.xlu0 %4413
        %4415 = vrot.lane.b32.xlu0 %v4339, 15
        %v4416 = vpop.permute.xlu0 %4415
        %4417 = vrot.lane.b32.xlu0 %v4341, 15
        %v4418 = vpop.permute.xlu0 %4417
        %4419 = vrot.lane.b32.xlu0 %v4344, 15
        %v4420 = vpop.permute.xlu0 %4419
        %4421 = vrot.lane.b32.xlu0 %v4346, 15
        %v4422 = vpop.permute.xlu0 %4421
        %4423 = vrot.lane.b32.xlu0 %v4349, 15
        %v4424 = vpop.permute.xlu0 %4423
        %4425 = vrot.lane.b32.xlu0 %v4351, 15
        %v4426 = vpop.permute.xlu0 %4425
        %4427 = vrot.lane.b32.xlu0 %v4354, 15
        %v4428 = vpop.permute.xlu0 %4427
        %4429 = vrot.lane.b32.xlu0 %v4356, 15
        %v4430 = vpop.permute.xlu0 %4429
        %4431 = vrot.lane.b32.xlu0 %v4359, 15
        %v4432 = vpop.permute.xlu0 %4431
        %4433 = vrot.lane.b32.xlu0 %v4361, 15
        %v4434 = vpop.permute.xlu0 %4433
        %4435 = vrot.lane.b32.xlu0 %v4364, 15
        %v4436 = vpop.permute.xlu0 %4435
        %4437 = vrot.lane.b32.xlu0 %v4366, 15
        %v4438 = vpop.permute.xlu0 %4437
        %4439 = vrot.lane.b32.xlu0 %v4369, 15
        %v4440 = vpop.permute.xlu0 %4439
        %4441 = vrot.lane.b32.xlu0 %v4371, 15
        %v4442 = vpop.permute.xlu0 %4441
        %4443 = vrot.lane.b32.xlu0 %v4374, 15
        %v4444 = vpop.permute.xlu0 %4443
        %4445 = vrot.lane.b32.xlu0 %v4376, 15
        %v4446 = vpop.permute.xlu0 %4445
        %4447 = vrot.lane.b32.xlu0 %v4379, 15
        %v4448 = vpop.permute.xlu0 %4447
        %4449 = vrot.lane.b32.xlu0 %v4381, 15
        %v4450 = vpop.permute.xlu0 %4449
        %4451 = vrot.lane.b32.xlu0 %v4384, 15
        %v4452 = vpop.permute.xlu0 %4451
        %4453 = vrot.lane.b32.xlu0 %v4386, 15
        %v4454 = vpop.permute.xlu0 %4453
        %4455 = vrot.lane.b32.xlu0 %v4389, 15
        %v4456 = vpop.permute.xlu0 %4455
        %4457 = vrot.lane.b32.xlu0 %v4391, 15
        %v4458 = vpop.permute.xlu0 %4457
        %4459 = vrot.lane.b32.xlu0 %v4394, 15
        %v4460 = vpop.permute.xlu0 %4459
        %4461 = vrot.lane.b32.xlu0 %v4396, 15
        %v4462 = vpop.permute.xlu0 %4461
        %4463 = vrot.lane.b32.xlu0 %v4399, 15
        %v4464 = vpop.permute.xlu0 %4463
        %4465 = vrot.lane.b32.xlu0 %v4401, 15
        %v4466 = vpop.permute.xlu0 %4465
        %4467 = vrot.lane.b32.xlu0 %v4404, 15
        %v4468 = vpop.permute.xlu0 %4467
        %4469 = vrot.lane.b32.xlu0 %v4406, 15
        %v4470 = vpop.permute.xlu0 %4469
        %v4503 = vrot.slane %v3527, 6
        %v4504 = vrot.slane %v3528, 6
        %v4505 = vsel %vm1150, %v4503, %v4504
        %v4506 = vrot.slane %v3529, 6
        %v4507 = vsel %vm1150, %v4504, %v4506
        %v4508 = vrot.slane %v3530, 6
        %v4509 = vrot.slane %v3531, 6
        %v4510 = vsel %vm1150, %v4508, %v4509
        %v4511 = vrot.slane %v3532, 6
        %v4512 = vsel %vm1150, %v4509, %v4511
        %v4513 = vrot.slane %v3533, 6
        %v4514 = vrot.slane %v3534, 6
        %v4515 = vsel %vm1150, %v4513, %v4514
        %v4516 = vrot.slane %v3535, 6
        %v4517 = vsel %vm1150, %v4514, %v4516
        %v4518 = vrot.slane %v3536, 6
        %v4519 = vrot.slane %v3537, 6
        %v4520 = vsel %vm1150, %v4518, %v4519
        %v4521 = vrot.slane %v3538, 6
        %v4522 = vsel %vm1150, %v4519, %v4521
        %v4523 = vrot.slane %v3539, 6
        %v4524 = vrot.slane %v3540, 6
        %v4525 = vsel %vm1150, %v4523, %v4524
        %v4526 = vrot.slane %v3541, 6
        %v4527 = vsel %vm1150, %v4524, %v4526
        %v4528 = vrot.slane %v3542, 6
        %v4529 = vrot.slane %v3543, 6
        %v4530 = vsel %vm1150, %v4528, %v4529
        %v4531 = vrot.slane %v3544, 6
        %v4532 = vsel %vm1150, %v4529, %v4531
        %v4533 = vrot.slane %v3545, 6
        %v4534 = vrot.slane %v3546, 6
        %v4535 = vsel %vm1150, %v4533, %v4534
        %v4536 = vrot.slane %v3547, 6
        %v4537 = vsel %vm1150, %v4534, %v4536
        %v4538 = vrot.slane %v3548, 6
        %v4539 = vrot.slane %v3549, 6
        %v4540 = vsel %vm1150, %v4538, %v4539
        %v4541 = vrot.slane %v3550, 6
        %v4542 = vsel %vm1150, %v4539, %v4541
        %v4543 = vrot.slane %v3551, 6
        %v4544 = vrot.slane %v3552, 6
        %v4545 = vsel %vm1150, %v4543, %v4544
        %v4546 = vrot.slane %v3553, 6
        %v4547 = vsel %vm1150, %v4544, %v4546
        %v4548 = vrot.slane %v3554, 6
        %v4549 = vrot.slane %v3555, 6
        %v4550 = vsel %vm1150, %v4548, %v4549
        %v4551 = vrot.slane %v3556, 6
        %v4552 = vsel %vm1150, %v4549, %v4551
        %v4553 = vrot.slane %v3557, 6
        %v4554 = vrot.slane %v3558, 6
        %v4555 = vsel %vm1150, %v4553, %v4554
        %v4556 = vrot.slane %v3559, 6
        %v4557 = vsel %vm1150, %v4554, %v4556
        %v4558 = vrot.slane %v3560, 6
        %v4559 = vrot.slane %v3561, 6
        %v4560 = vsel %vm1150, %v4558, %v4559
        %v4561 = vrot.slane %v3562, 6
        %v4562 = vsel %vm1150, %v4559, %v4561
        %v4563 = vrot.slane %v3563, 6
        %v4564 = vrot.slane %v3564, 6
        %v4565 = vsel %vm1150, %v4563, %v4564
        %v4566 = vrot.slane %v3565, 6
        %v4567 = vsel %vm1150, %v4564, %v4566
        %v4568 = vrot.slane %v3566, 6
        %v4569 = vrot.slane %v3567, 6
        %v4570 = vsel %vm1150, %v4568, %v4569
        %v4571 = vrot.slane %v3568, 6
        %v4572 = vsel %vm1150, %v4569, %v4571
        %v4573 = vrot.slane %v3569, 6
        %v4574 = vrot.slane %v3570, 6
        %v4575 = vsel %vm1150, %v4573, %v4574
        %v4576 = vrot.slane %v3571, 6
        %v4577 = vsel %vm1150, %v4574, %v4576
        %v4578 = vrot.slane %v3572, 6
        %v4579 = vrot.slane %v3573, 6
        %v4580 = vsel %vm1150, %v4578, %v4579
        %v4581 = vrot.slane %v3574, 6
        %v4582 = vsel %vm1150, %v4579, %v4581
        %4583 = vrot.lane.b32.xlu0 %v4505, 18
        %v4584 = vpop.permute.xlu0 %4583
        %4585 = vrot.lane.b32.xlu0 %v4507, 18
        %v4586 = vpop.permute.xlu0 %4585
        %4587 = vrot.lane.b32.xlu0 %v4510, 18
        %v4588 = vpop.permute.xlu0 %4587
        %4589 = vrot.lane.b32.xlu0 %v4512, 18
        %v4590 = vpop.permute.xlu0 %4589
        %4591 = vrot.lane.b32.xlu0 %v4515, 18
        %v4592 = vpop.permute.xlu0 %4591
        %4593 = vrot.lane.b32.xlu0 %v4517, 18
        %v4594 = vpop.permute.xlu0 %4593
        %4595 = vrot.lane.b32.xlu0 %v4520, 18
        %v4596 = vpop.permute.xlu0 %4595
        %4597 = vrot.lane.b32.xlu0 %v4522, 18
        %v4598 = vpop.permute.xlu0 %4597
        %4599 = vrot.lane.b32.xlu0 %v4525, 18
        %v4600 = vpop.permute.xlu0 %4599
        %4601 = vrot.lane.b32.xlu0 %v4527, 18
        %v4602 = vpop.permute.xlu0 %4601
        %4603 = vrot.lane.b32.xlu0 %v4530, 18
        %v4604 = vpop.permute.xlu0 %4603
        %4605 = vrot.lane.b32.xlu0 %v4532, 18
        %v4606 = vpop.permute.xlu0 %4605
        %4607 = vrot.lane.b32.xlu0 %v4535, 18
        %v4608 = vpop.permute.xlu0 %4607
        %4609 = vrot.lane.b32.xlu0 %v4537, 18
        %v4610 = vpop.permute.xlu0 %4609
        %4611 = vrot.lane.b32.xlu0 %v4540, 18
        %v4612 = vpop.permute.xlu0 %4611
        %4613 = vrot.lane.b32.xlu0 %v4542, 18
        %v4614 = vpop.permute.xlu0 %4613
        %4615 = vrot.lane.b32.xlu0 %v4545, 18
        %v4616 = vpop.permute.xlu0 %4615
        %4617 = vrot.lane.b32.xlu0 %v4547, 18
        %v4618 = vpop.permute.xlu0 %4617
        %4619 = vrot.lane.b32.xlu0 %v4550, 18
        %v4620 = vpop.permute.xlu0 %4619
        %4621 = vrot.lane.b32.xlu0 %v4552, 18
        %v4622 = vpop.permute.xlu0 %4621
        %4623 = vrot.lane.b32.xlu0 %v4555, 18
        %v4624 = vpop.permute.xlu0 %4623
        %4625 = vrot.lane.b32.xlu0 %v4557, 18
        %v4626 = vpop.permute.xlu0 %4625
        %4627 = vrot.lane.b32.xlu0 %v4560, 18
        %v4628 = vpop.permute.xlu0 %4627
        %4629 = vrot.lane.b32.xlu0 %v4562, 18
        %v4630 = vpop.permute.xlu0 %4629
        %4631 = vrot.lane.b32.xlu0 %v4565, 18
        %v4632 = vpop.permute.xlu0 %4631
        %4633 = vrot.lane.b32.xlu0 %v4567, 18
        %v4634 = vpop.permute.xlu0 %4633
        %4635 = vrot.lane.b32.xlu0 %v4570, 18
        %v4636 = vpop.permute.xlu0 %4635
        %4637 = vrot.lane.b32.xlu0 %v4572, 18
        %v4638 = vpop.permute.xlu0 %4637
        %4639 = vrot.lane.b32.xlu0 %v4575, 18
        %v4640 = vpop.permute.xlu0 %4639
        %4641 = vrot.lane.b32.xlu0 %v4577, 18
        %v4642 = vpop.permute.xlu0 %4641
        %4643 = vrot.lane.b32.xlu0 %v4580, 18
        %v4644 = vpop.permute.xlu0 %4643
        %4645 = vrot.lane.b32.xlu0 %v4582, 18
        %v4646 = vpop.permute.xlu0 %4645
        %v4679 = vsel %vm1327, %v3527, %v3704
        %v4680 = vsel %vm1327, %v3528, %v3706
        %v4681 = vsel %vm1327, %v3530, %v3708
        %v4682 = vsel %vm1327, %v3531, %v3710
        %v4683 = vsel %vm1327, %v3533, %v3712
        %v4684 = vsel %vm1327, %v3534, %v3714
        %v4685 = vsel %vm1327, %v3536, %v3716
        %v4686 = vsel %vm1327, %v3537, %v3718
        %v4687 = vsel %vm1327, %v3539, %v3720
        %v4688 = vsel %vm1327, %v3540, %v3722
        %v4689 = vsel %vm1327, %v3542, %v3724
        %v4690 = vsel %vm1327, %v3543, %v3726
        %v4691 = vsel %vm1327, %v3545, %v3728
        %v4692 = vsel %vm1327, %v3546, %v3730
        %v4693 = vsel %vm1327, %v3548, %v3732
        %v4694 = vsel %vm1327, %v3549, %v3734
        %v4695 = vsel %vm1327, %v3551, %v3736
        %v4696 = vsel %vm1327, %v3552, %v3738
        %v4697 = vsel %vm1327, %v3554, %v3740
        %v4698 = vsel %vm1327, %v3555, %v3742
        %v4699 = vsel %vm1327, %v3557, %v3744
        %v4700 = vsel %vm1327, %v3558, %v3746
        %v4701 = vsel %vm1327, %v3560, %v3748
        %v4702 = vsel %vm1327, %v3561, %v3750
        %v4703 = vsel %vm1327, %v3563, %v3752
        %v4704 = vsel %vm1327, %v3564, %v3754
        %v4705 = vsel %vm1327, %v3566, %v3756
        %v4706 = vsel %vm1327, %v3567, %v3758
        %v4707 = vsel %vm1327, %v3569, %v3760
        %v4708 = vsel %vm1327, %v3570, %v3762
        %v4709 = vsel %vm1327, %v3572, %v3764
        %v4710 = vsel %vm1327, %v3573, %v3766
        %v4711 = vsel %vm1360, %v4679, %v3880
        %v4712 = vsel %vm1360, %v4680, %v3882
        %v4713 = vsel %vm1360, %v4681, %v3884
        %v4714 = vsel %vm1360, %v4682, %v3886
        %v4715 = vsel %vm1360, %v4683, %v3888
        %v4716 = vsel %vm1360, %v4684, %v3890
        %v4717 = vsel %vm1360, %v4685, %v3892
        %v4718 = vsel %vm1360, %v4686, %v3894
        %v4719 = vsel %vm1360, %v4687, %v3896
        %v4720 = vsel %vm1360, %v4688, %v3898
        %v4721 = vsel %vm1360, %v4689, %v3900
        %v4722 = vsel %vm1360, %v4690, %v3902
        %v4723 = vsel %vm1360, %v4691, %v3904
        %v4724 = vsel %vm1360, %v4692, %v3906
        %v4725 = vsel %vm1360, %v4693, %v3908
        %v4726 = vsel %vm1360, %v4694, %v3910
        %v4727 = vsel %vm1360, %v4695, %v3912
        %v4728 = vsel %vm1360, %v4696, %v3914
        %v4729 = vsel %vm1360, %v4697, %v3916
        %v4730 = vsel %vm1360, %v4698, %v3918
        %v4731 = vsel %vm1360, %v4699, %v3920
        %v4732 = vsel %vm1360, %v4700, %v3922
        %v4733 = vsel %vm1360, %v4701, %v3924
        %v4734 = vsel %vm1360, %v4702, %v3926
        %v4735 = vsel %vm1360, %v4703, %v3928
        %v4736 = vsel %vm1360, %v4704, %v3930
        %v4737 = vsel %vm1360, %v4705, %v3932
        %v4738 = vsel %vm1360, %v4706, %v3934
        %v4739 = vsel %vm1360, %v4707, %v3936
        %v4740 = vsel %vm1360, %v4708, %v3938
        %v4741 = vsel %vm1360, %v4709, %v3940
        %v4742 = vsel %vm1360, %v4710, %v3942
        %v4743 = vsel %vm1393, %v4711, %v4056
        %v4744 = vsel %vm1393, %v4712, %v4058
        %v4745 = vsel %vm1393, %v4713, %v4060
        %v4746 = vsel %vm1393, %v4714, %v4062
        %v4747 = vsel %vm1393, %v4715, %v4064
        %v4748 = vsel %vm1393, %v4716, %v4066
        %v4749 = vsel %vm1393, %v4717, %v4068
        %v4750 = vsel %vm1393, %v4718, %v4070
        %v4751 = vsel %vm1393, %v4719, %v4072
        %v4752 = vsel %vm1393, %v4720, %v4074
        %v4753 = vsel %vm1393, %v4721, %v4076
        %v4754 = vsel %vm1393, %v4722, %v4078
        %v4755 = vsel %vm1393, %v4723, %v4080
        %v4756 = vsel %vm1393, %v4724, %v4082
        %v4757 = vsel %vm1393, %v4725, %v4084
        %v4758 = vsel %vm1393, %v4726, %v4086
        %v4759 = vsel %vm1393, %v4727, %v4088
        %v4760 = vsel %vm1393, %v4728, %v4090
        %v4761 = vsel %vm1393, %v4729, %v4092
        %v4762 = vsel %vm1393, %v4730, %v4094
        %v4763 = vsel %vm1393, %v4731, %v4096
        %v4764 = vsel %vm1393, %v4732, %v4098
        %v4765 = vsel %vm1393, %v4733, %v4100
        %v4766 = vsel %vm1393, %v4734, %v4102
        %v4767 = vsel %vm1393, %v4735, %v4104
        %v4768 = vsel %vm1393, %v4736, %v4106
        %v4769 = vsel %vm1393, %v4737, %v4108
        %v4770 = vsel %vm1393, %v4738, %v4110
        %v4771 = vsel %vm1393, %v4739, %v4112
        %v4772 = vsel %vm1393, %v4740, %v4114
        %v4773 = vsel %vm1393, %v4741, %v4116
        %v4774 = vsel %vm1393, %v4742, %v4118
        %v4775 = vsel %vm1426, %v4743, %v4232
        %v4776 = vsel %vm1426, %v4744, %v4234
        %v4777 = vsel %vm1426, %v4745, %v4236
        %v4778 = vsel %vm1426, %v4746, %v4238
        %v4779 = vsel %vm1426, %v4747, %v4240
        %v4780 = vsel %vm1426, %v4748, %v4242
        %v4781 = vsel %vm1426, %v4749, %v4244
        %v4782 = vsel %vm1426, %v4750, %v4246
        %v4783 = vsel %vm1426, %v4751, %v4248
        %v4784 = vsel %vm1426, %v4752, %v4250
        %v4785 = vsel %vm1426, %v4753, %v4252
        %v4786 = vsel %vm1426, %v4754, %v4254
        %v4787 = vsel %vm1426, %v4755, %v4256
        %v4788 = vsel %vm1426, %v4756, %v4258
        %v4789 = vsel %vm1426, %v4757, %v4260
        %v4790 = vsel %vm1426, %v4758, %v4262
        %v4791 = vsel %vm1426, %v4759, %v4264
        %v4792 = vsel %vm1426, %v4760, %v4266
        %v4793 = vsel %vm1426, %v4761, %v4268
        %v4794 = vsel %vm1426, %v4762, %v4270
        %v4795 = vsel %vm1426, %v4763, %v4272
        %v4796 = vsel %vm1426, %v4764, %v4274
        %v4797 = vsel %vm1426, %v4765, %v4276
        %v4798 = vsel %vm1426, %v4766, %v4278
        %v4799 = vsel %vm1426, %v4767, %v4280
        %v4800 = vsel %vm1426, %v4768, %v4282
        %v4801 = vsel %vm1426, %v4769, %v4284
        %v4802 = vsel %vm1426, %v4770, %v4286
        %v4803 = vsel %vm1426, %v4771, %v4288
        %v4804 = vsel %vm1426, %v4772, %v4290
        %v4805 = vsel %vm1426, %v4773, %v4292
        %v4806 = vsel %vm1426, %v4774, %v4294
        %v4807 = vsel %vm1459, %v4775, %v4408
        %v4808 = vsel %vm1459, %v4776, %v4410
        %v4809 = vsel %vm1459, %v4777, %v4412
        %v4810 = vsel %vm1459, %v4778, %v4414
        %v4811 = vsel %vm1459, %v4779, %v4416
        %v4812 = vsel %vm1459, %v4780, %v4418
        %v4813 = vsel %vm1459, %v4781, %v4420
        %v4814 = vsel %vm1459, %v4782, %v4422
        %v4815 = vsel %vm1459, %v4783, %v4424
        %v4816 = vsel %vm1459, %v4784, %v4426
        %v4817 = vsel %vm1459, %v4785, %v4428
        %v4818 = vsel %vm1459, %v4786, %v4430
        %v4819 = vsel %vm1459, %v4787, %v4432
        %v4820 = vsel %vm1459, %v4788, %v4434
        %v4821 = vsel %vm1459, %v4789, %v4436
        %v4822 = vsel %vm1459, %v4790, %v4438
        %v4823 = vsel %vm1459, %v4791, %v4440
        %v4824 = vsel %vm1459, %v4792, %v4442
        %v4825 = vsel %vm1459, %v4793, %v4444
        %v4826 = vsel %vm1459, %v4794, %v4446
        %v4827 = vsel %vm1459, %v4795, %v4448
        %v4828 = vsel %vm1459, %v4796, %v4450
        %v4829 = vsel %vm1459, %v4797, %v4452
        %v4830 = vsel %vm1459, %v4798, %v4454
        %v4831 = vsel %vm1459, %v4799, %v4456
        %v4832 = vsel %vm1459, %v4800, %v4458
        %v4833 = vsel %vm1459, %v4801, %v4460
        %v4834 = vsel %vm1459, %v4802, %v4462
        %v4835 = vsel %vm1459, %v4803, %v4464
        %v4836 = vsel %vm1459, %v4804, %v4466
        %v4837 = vsel %vm1459, %v4805, %v4468
        %v4838 = vsel %vm1459, %v4806, %v4470
        %v4839 = vsel %vm1492, %v4807, %v4584
        %v4840 = vsel %vm1492, %v4808, %v4586
        %v4841 = vsel %vm1492, %v4809, %v4588
        %v4842 = vsel %vm1492, %v4810, %v4590
        %v4843 = vsel %vm1492, %v4811, %v4592
        %v4844 = vsel %vm1492, %v4812, %v4594
        %v4845 = vsel %vm1492, %v4813, %v4596
        %v4846 = vsel %vm1492, %v4814, %v4598
        %v4847 = vsel %vm1492, %v4815, %v4600
        %v4848 = vsel %vm1492, %v4816, %v4602
        %v4849 = vsel %vm1492, %v4817, %v4604
        %v4850 = vsel %vm1492, %v4818, %v4606
        %v4851 = vsel %vm1492, %v4819, %v4608
        %v4852 = vsel %vm1492, %v4820, %v4610
        %v4853 = vsel %vm1492, %v4821, %v4612
        %v4854 = vsel %vm1492, %v4822, %v4614
        %v4855 = vsel %vm1492, %v4823, %v4616
        %v4856 = vsel %vm1492, %v4824, %v4618
        %v4857 = vsel %vm1492, %v4825, %v4620
        %v4858 = vsel %vm1492, %v4826, %v4622
        %v4859 = vsel %vm1492, %v4827, %v4624
        %v4860 = vsel %vm1492, %v4828, %v4626
        %v4861 = vsel %vm1492, %v4829, %v4628
        %v4862 = vsel %vm1492, %v4830, %v4630
        %v4863 = vsel %vm1492, %v4831, %v4632
        %v4864 = vsel %vm1492, %v4832, %v4634
        %v4865 = vsel %vm1492, %v4833, %v4636
        %v4866 = vsel %vm1492, %v4834, %v4638
        %v4867 = vsel %vm1492, %v4835, %v4640
        %v4868 = vsel %vm1492, %v4836, %v4642
        %v4869 = vsel %vm1492, %v4837, %v4644
        %v4870 = vsel %vm1492, %v4838, %v4646
        %s4871 = scalar_lea.vmem %s1, 48
        %v4872 = vld [vmem:[%s4871] sm:$0xff]
        %v4873 = vld [vmem:[%s4871 + $0x8] sm:$0xff]
        %v4874 = vld [vmem:[%s4871 + $0x10] sm:$0x1f]
        %v4876 = vsel %vm2877, %v4839, 0
        %v4879 = vsel %vm2877, %v4840, 0
        %v4882 = vsel %vm2877, %v4841, 0
        %v4885 = vsel %vm2877, %v4842, 0
        %v4888 = vsel %vm2877, %v4843, 0
        %v4891 = vsel %vm2877, %v4844, 0
        %v4894 = vsel %vm2877, %v4845, 0
        %v4897 = vsel %vm2877, %v4846, 0
        %v4900 = vsel %vm2877, %v4847, 0
        %v4903 = vsel %vm2877, %v4848, 0
        %v4906 = vsel %vm2877, %v4849, 0
        %v4909 = vsel %vm2877, %v4850, 0
        %v4912 = vsel %vm2877, %v4851, 0
        %v4915 = vsel %vm2877, %v4852, 0
        %v4918 = vsel %vm2877, %v4853, 0
        %v4921 = vsel %vm2877, %v4854, 0
        %v4924 = vsel %vm2877, %v4855, 0
        %v4927 = vsel %vm2877, %v4856, 0
        %v4930 = vsel %vm2877, %v4857, 0
        %v4933 = vsel %vm2877, %v4858, 0
        %v4936 = vsel %vm2877, %v4859, 0
        %v4939 = vsel %vm2877, %v4860, 0
        %v4942 = vsel %vm2877, %v4861, 0
        %v4945 = vsel %vm2877, %v4862, 0
        %v4948 = vsel %vm2877, %v4863, 0
        %v4951 = vsel %vm2877, %v4864, 0
        %v4954 = vsel %vm2877, %v4865, 0
        %v4957 = vsel %vm2877, %v4866, 0
        %v4960 = vsel %vm2877, %v4867, 0
        %v4963 = vsel %vm2877, %v4868, 0
        %v4966 = vsel %vm2877, %v4869, 0
        %v4969 = vsel %vm2877, %v4870, 0
        %v4972 = vsel %vm619, %v4874, 0
        %4974 = vmatprep.subr.mxu0 0.0
        %4975 = vmatpush1.msra.mxu0 0.0
        %4976 = vmatprep.subr.mxu0 0.0
        %4977 = vmatpush1.msra.mxu0 0.0
        %4978 = vmatprep.subr.mxu0 0.0
        %4979 = vmatpush1.msra.mxu0 0.0
        %4980 = vmatprep.subr.mxu0 0.0
        %4981 = vmatpush1.msra.mxu0 0.0
        %4982 = vmatprep.subr.mxu0 0.0
        %4983 = vmatpush1.msra.mxu0 0.0
        %4984 = vmatprep.subr.mxu0 0.0
        %4985 = vmatpush1.msra.mxu0 0.0
        %4986 = vmatprep.subr.mxu0 0.0
        %4987 = vmatpush1.msra.mxu0 0.0
        %4988 = vmatprep.subr.mxu0 0.0
        %4989 = vmatpush1.msra.mxu0 0.0
        %4990 = vmatprep.subr.mxu0 0.0
        %4991 = vmatpush1.msra.mxu0 0.0
        %4992 = vmatprep.subr.mxu0 0.0
        %4993 = vmatpush1.msra.mxu0 0.0
        %4994 = vmatprep.subr.mxu0 0.0
        %4995 = vmatpush1.msra.mxu0 0.0
        %4996 = vmatprep.subr.mxu0 0.0
        %4997 = vmatpush1.msra.mxu0 0.0
        %4998 = vmatprep.subr.mxu0 0.0
        %4999 = vmatpush1.msra.mxu0 0.0
        %5000 = vmatprep.subr.mxu0 0.0
        %5001 = vmatpush1.msra.mxu0 %v4972
        %5002 = vmatprep.subr.mxu0 0.0
        %5003 = vmatpush1.msra.mxu0 %v4873
        %5004 = vmatprep.subr.mxu0 0.0
        %5005 = vmatpush1.msra.mxu0 %v4872
        %5006 = vmatprep.subr.mxu0 0.0
        %5007 = vmatpush2.msra.mxu0 0.0
        %5008 = vmatprep.subr.mxu0 0.0
        %5009 = vmatpush2.msra.mxu0 0.0
        %5010 = vmatprep.subr.mxu0 0.0
        %5011 = vmatpush2.msra.mxu0 0.0
        %5012 = vmatprep.subr.mxu0 0.0
        %5013 = vmatpush2.msra.mxu0 0.0
        %5014 = vmatprep.subr.mxu0 0.0
        %5015 = vmatpush2.msra.mxu0 0.0
        %5016 = vmatprep.subr.mxu0 0.0
        %5017 = vmatpush2.msra.mxu0 0.0
        %5018 = vmatprep.subr.mxu0 0.0
        %5019 = vmatpush2.msra.mxu0 0.0
        %5020 = vmatprep.subr.mxu0 0.0
        %5021 = vmatpush2.msra.mxu0 0.0
        %5022 = vmatprep.subr.mxu0 0.0
        %5023 = vmatpush2.msra.mxu0 0.0
        %5024 = vmatprep.subr.mxu0 0.0
        %5025 = vmatpush2.msra.mxu0 0.0
        %5026 = vmatprep.subr.mxu0 0.0
        %5027 = vmatpush2.msra.mxu0 0.0
        %5028 = vmatprep.subr.mxu0 0.0
        %5029 = vmatpush2.msra.mxu0 0.0
        %5030 = vmatprep.subr.mxu0 0.0
        %5031 = vmatpush2.msra.mxu0 0.0
        %5032 = vmatprep.subr.mxu0 0.0
        %5033 = vmatpush2.msra.mxu0 0.0
        %5034 = vmatprep.subr.mxu0 0.0
        %5035 = vmatpush2.msra.mxu0 0.0
        %5036 = vmatprep.subr.mxu0 0.0
        %5037 = vmatpush2.msra.mxu0 0.0
        %5038 = vmatprep.mubr.f32.mxu0 0.0
        %5039 = vmatmul.mubr.f32.gmra.mxu0 %v4876
        %v5040 = vpop.f32.mrf.mxu0
        %v5041 = vadd.f32 0.0, %v5040
        %v5042 = vpop.f32.mrf.mxu0
        %5043 = vmatprep.mubr.f32.mxu0 0.0
        %5044 = vmatmul.mubr.f32.gmra.mxu0 %v4879
        %v5045 = vpop.f32.mrf.mxu0
        %v5046 = vadd.f32 0.0, %v5045
        %v5047 = vpop.f32.mrf.mxu0
        %5048 = vmatprep.mubr.f32.mxu0 0.0
        %5049 = vmatmul.mubr.f32.gmra.mxu0 %v4882
        %v5050 = vpop.f32.mrf.mxu0
        %v5051 = vadd.f32 0.0, %v5050
        %v5052 = vpop.f32.mrf.mxu0
        %5053 = vmatprep.mubr.f32.mxu0 0.0
        %5054 = vmatmul.mubr.f32.gmra.mxu0 %v4885
        %v5055 = vpop.f32.mrf.mxu0
        %v5056 = vadd.f32 0.0, %v5055
        %v5057 = vpop.f32.mrf.mxu0
        %5058 = vmatprep.mubr.f32.mxu0 0.0
        %5059 = vmatmul.mubr.f32.gmra.mxu0 %v4888
        %v5060 = vpop.f32.mrf.mxu0
        %v5061 = vadd.f32 0.0, %v5060
        %v5062 = vpop.f32.mrf.mxu0
        %5063 = vmatprep.mubr.f32.mxu0 0.0
        %5064 = vmatmul.mubr.f32.gmra.mxu0 %v4891
        %v5065 = vpop.f32.mrf.mxu0
        %v5066 = vadd.f32 0.0, %v5065
        %v5067 = vpop.f32.mrf.mxu0
        %5068 = vmatprep.mubr.f32.mxu0 0.0
        %5069 = vmatmul.mubr.f32.gmra.mxu0 %v4894
        %v5070 = vpop.f32.mrf.mxu0
        %v5071 = vadd.f32 0.0, %v5070
        %v5072 = vpop.f32.mrf.mxu0
        %5073 = vmatprep.mubr.f32.mxu0 0.0
        %5074 = vmatmul.mubr.f32.gmra.mxu0 %v4897
        %v5075 = vpop.f32.mrf.mxu0
        %v5076 = vadd.f32 0.0, %v5075
        %v5077 = vpop.f32.mrf.mxu0
        %5078 = vmatprep.mubr.f32.mxu0 0.0
        %5079 = vmatmul.mubr.f32.gmra.mxu0 %v4900
        %v5080 = vpop.f32.mrf.mxu0
        %v5081 = vadd.f32 0.0, %v5080
        %v5082 = vpop.f32.mrf.mxu0
        %5083 = vmatprep.mubr.f32.mxu0 0.0
        %5084 = vmatmul.mubr.f32.gmra.mxu0 %v4903
        %v5085 = vpop.f32.mrf.mxu0
        %v5086 = vadd.f32 0.0, %v5085
        %v5087 = vpop.f32.mrf.mxu0
        %5088 = vmatprep.mubr.f32.mxu0 0.0
        %5089 = vmatmul.mubr.f32.gmra.mxu0 %v4906
        %v5090 = vpop.f32.mrf.mxu0
        %v5091 = vadd.f32 0.0, %v5090
        %v5092 = vpop.f32.mrf.mxu0
        %5093 = vmatprep.mubr.f32.mxu0 0.0
        %5094 = vmatmul.mubr.f32.gmra.mxu0 %v4909
        %v5095 = vpop.f32.mrf.mxu0
        %v5096 = vadd.f32 0.0, %v5095
        %v5097 = vpop.f32.mrf.mxu0
        %5098 = vmatprep.mubr.f32.mxu0 0.0
        %5099 = vmatmul.mubr.f32.gmra.mxu0 %v4912
        %v5100 = vpop.f32.mrf.mxu0
        %v5101 = vadd.f32 0.0, %v5100
        %v5102 = vpop.f32.mrf.mxu0
        %5103 = vmatprep.mubr.f32.mxu0 0.0
        %5104 = vmatmul.mubr.f32.gmra.mxu0 %v4915
        %v5105 = vpop.f32.mrf.mxu0
        %v5106 = vadd.f32 0.0, %v5105
        %v5107 = vpop.f32.mrf.mxu0
        %5108 = vmatprep.mubr.f32.mxu0 0.0
        %5109 = vmatmul.mubr.f32.gmra.mxu0 %v4918
        %v5110 = vpop.f32.mrf.mxu0
        %v5111 = vadd.f32 0.0, %v5110
        %v5112 = vpop.f32.mrf.mxu0
        %5113 = vmatprep.mubr.f32.mxu0 0.0
        %5114 = vmatmul.mubr.f32.gmra.mxu0 %v4921
        %v5115 = vpop.f32.mrf.mxu0
        %v5116 = vadd.f32 0.0, %v5115
        %v5117 = vpop.f32.mrf.mxu0
        %5118 = vmatprep.mubr.f32.mxu0 0.0
        %5119 = vmatmul.mubr.f32.gmra.mxu0 %v4924
        %v5120 = vpop.f32.mrf.mxu0
        %v5121 = vadd.f32 0.0, %v5120
        %v5122 = vpop.f32.mrf.mxu0
        %5123 = vmatprep.mubr.f32.mxu0 0.0
        %5124 = vmatmul.mubr.f32.gmra.mxu0 %v4927
        %v5125 = vpop.f32.mrf.mxu0
        %v5126 = vadd.f32 0.0, %v5125
        %v5127 = vpop.f32.mrf.mxu0
        %5128 = vmatprep.mubr.f32.mxu0 0.0
        %5129 = vmatmul.mubr.f32.gmra.mxu0 %v4930
        %v5130 = vpop.f32.mrf.mxu0
        %v5131 = vadd.f32 0.0, %v5130
        %v5132 = vpop.f32.mrf.mxu0
        %5133 = vmatprep.mubr.f32.mxu0 0.0
        %5134 = vmatmul.mubr.f32.gmra.mxu0 %v4933
        %v5135 = vpop.f32.mrf.mxu0
        %v5136 = vadd.f32 0.0, %v5135
        %v5137 = vpop.f32.mrf.mxu0
        %5138 = vmatprep.mubr.f32.mxu0 0.0
        %5139 = vmatmul.mubr.f32.gmra.mxu0 %v4936
        %v5140 = vpop.f32.mrf.mxu0
        %v5141 = vadd.f32 0.0, %v5140
        %v5142 = vpop.f32.mrf.mxu0
        %5143 = vmatprep.mubr.f32.mxu0 0.0
        %5144 = vmatmul.mubr.f32.gmra.mxu0 %v4939
        %v5145 = vpop.f32.mrf.mxu0
        %v5146 = vadd.f32 0.0, %v5145
        %v5147 = vpop.f32.mrf.mxu0
        %5148 = vmatprep.mubr.f32.mxu0 0.0
        %5149 = vmatmul.mubr.f32.gmra.mxu0 %v4942
        %v5150 = vpop.f32.mrf.mxu0
        %v5151 = vadd.f32 0.0, %v5150
        %v5152 = vpop.f32.mrf.mxu0
        %5153 = vmatprep.mubr.f32.mxu0 0.0
        %5154 = vmatmul.mubr.f32.gmra.mxu0 %v4945
        %v5155 = vpop.f32.mrf.mxu0
        %v5156 = vadd.f32 0.0, %v5155
        %v5157 = vpop.f32.mrf.mxu0
        %5158 = vmatprep.mubr.f32.mxu0 0.0
        %5159 = vmatmul.mubr.f32.gmra.mxu0 %v4948
        %v5160 = vpop.f32.mrf.mxu0
        %v5161 = vadd.f32 0.0, %v5160
        %v5162 = vpop.f32.mrf.mxu0
        %5163 = vmatprep.mubr.f32.mxu0 0.0
        %5164 = vmatmul.mubr.f32.gmra.mxu0 %v4951
        %v5165 = vpop.f32.mrf.mxu0
        %v5166 = vadd.f32 0.0, %v5165
        %v5167 = vpop.f32.mrf.mxu0
        %5168 = vmatprep.mubr.f32.mxu0 0.0
        %5169 = vmatmul.mubr.f32.gmra.mxu0 %v4954
        %v5170 = vpop.f32.mrf.mxu0
        %v5171 = vadd.f32 0.0, %v5170
        %v5172 = vpop.f32.mrf.mxu0
        %5173 = vmatprep.mubr.f32.mxu0 0.0
        %5174 = vmatmul.mubr.f32.gmra.mxu0 %v4957
        %v5175 = vpop.f32.mrf.mxu0
        %v5176 = vadd.f32 0.0, %v5175
        %v5177 = vpop.f32.mrf.mxu0
        %5178 = vmatprep.mubr.f32.mxu0 0.0
        %5179 = vmatmul.mubr.f32.gmra.mxu0 %v4960
        %v5180 = vpop.f32.mrf.mxu0
        %v5181 = vadd.f32 0.0, %v5180
        %v5182 = vpop.f32.mrf.mxu0
        %5183 = vmatprep.mubr.f32.mxu0 0.0
        %5184 = vmatmul.mubr.f32.gmra.mxu0 %v4963
        %v5185 = vpop.f32.mrf.mxu0
        %v5186 = vadd.f32 0.0, %v5185
        %v5187 = vpop.f32.mrf.mxu0
        %5188 = vmatprep.mubr.f32.mxu0 0.0
        %5189 = vmatmul.mubr.f32.gmra.mxu0 %v4966
        %v5190 = vpop.f32.mrf.mxu0
        %v5191 = vadd.f32 0.0, %v5190
        %v5192 = vpop.f32.mrf.mxu0
        %5193 = vmatprep.mubr.f32.mxu0 0.0
        %5194 = vmatmul.mubr.f32.gmra.mxu0 %v4969
        %v5195 = vpop.f32.mrf.mxu0
        %v5196 = vadd.f32 0.0, %v5195
        %v5197 = vpop.f32.mrf.mxu0
        %5198 = vdwg.mxu0
        %v5199 = vadd.f32 %v3368, %v5041
        %v5200 = vadd.f32 %v3373, %v5046
        %v5201 = vadd.f32 %v3378, %v5051
        %v5202 = vadd.f32 %v3383, %v5056
        %v5203 = vadd.f32 %v3388, %v5061
        %v5204 = vadd.f32 %v3393, %v5066
        %v5205 = vadd.f32 %v3398, %v5071
        %v5206 = vadd.f32 %v3403, %v5076
        %v5207 = vadd.f32 %v3408, %v5081
        %v5208 = vadd.f32 %v3413, %v5086
        %v5209 = vadd.f32 %v3418, %v5091
        %v5210 = vadd.f32 %v3423, %v5096
        %v5211 = vadd.f32 %v3428, %v5101
        %v5212 = vadd.f32 %v3433, %v5106
        %v5213 = vadd.f32 %v3438, %v5111
        %v5214 = vadd.f32 %v3443, %v5116
        %v5215 = vadd.f32 %v3448, %v5121
        %v5216 = vadd.f32 %v3453, %v5126
        %v5217 = vadd.f32 %v3458, %v5131
        %v5218 = vadd.f32 %v3463, %v5136
        %v5219 = vadd.f32 %v3468, %v5141
        %v5220 = vadd.f32 %v3473, %v5146
        %v5221 = vadd.f32 %v3478, %v5151
        %v5222 = vadd.f32 %v3483, %v5156
        %v5223 = vadd.f32 %v3488, %v5161
        %v5224 = vadd.f32 %v3493, %v5166
        %v5225 = vadd.f32 %v3498, %v5171
        %v5226 = vadd.f32 %v3503, %v5176
        %v5227 = vadd.f32 %v3508, %v5181
        %v5228 = vadd.f32 %v3513, %v5186
        %v5229 = vadd.f32 %v3518, %v5191
        %v5230 = vadd.f32 %v3523, %v5196
        %s5231 = scalar_lea.vmem %s168, 72
        %v5232 = vld [vmem:[%s5231] sm:$0xff]
        %v5233 = vld [vmem:[%s5231 + $0x8] sm:$0xff]
        %v5234 = vld [vmem:[%s5231 + $0x10] sm:$0x3f]
        %v5235 = vld [vmem:[%s5231 + $0x18] sm:$0xff]
        %v5236 = vld [vmem:[%s5231 + $0x20] sm:$0xff]
        %v5237 = vld [vmem:[%s5231 + $0x28] sm:$0x3f]
        %v5238 = vld [vmem:[%s5231 + $0x30] sm:$0xff]
        %v5239 = vld [vmem:[%s5231 + $0x38] sm:$0xff]
        %v5240 = vld [vmem:[%s5231 + $0x40] sm:$0x3f]
        %v5241 = vld [vmem:[%s5231 + $0x48] sm:$0xff]
        %v5242 = vld [vmem:[%s5231 + $0x50] sm:$0xff]
        %v5243 = vld [vmem:[%s5231 + $0x58] sm:$0x3f]
        %v5244 = vld [vmem:[%s5231 + $0x60] sm:$0xff]
        %v5245 = vld [vmem:[%s5231 + $0x68] sm:$0xff]
        %v5246 = vld [vmem:[%s5231 + $0x70] sm:$0x3f]
        %v5247 = vld [vmem:[%s5231 + $0x78] sm:$0xff]
        %v5248 = vld [vmem:[%s5231 + $0x80] sm:$0xff]
        %v5249 = vld [vmem:[%s5231 + $0x88] sm:$0x3f]
        %v5250 = vld [vmem:[%s5231 + $0x90] sm:$0xff]
        %v5251 = vld [vmem:[%s5231 + $0x98] sm:$0xff]
        %v5252 = vld [vmem:[%s5231 + $0xa0] sm:$0x3f]
        %v5253 = vld [vmem:[%s5231 + $0xa8] sm:$0xff]
        %v5254 = vld [vmem:[%s5231 + $0xb0] sm:$0xff]
        %v5255 = vld [vmem:[%s5231 + $0xb8] sm:$0x3f]
        %v5256 = vld [vmem:[%s5231 + $0xc0] sm:$0xff]
        %v5257 = vld [vmem:[%s5231 + $0xc8] sm:$0xff]
        %v5258 = vld [vmem:[%s5231 + $0xd0] sm:$0x3f]
        %v5259 = vld [vmem:[%s5231 + $0xd8] sm:$0xff]
        %v5260 = vld [vmem:[%s5231 + $0xe0] sm:$0xff]
        %v5261 = vld [vmem:[%s5231 + $0xe8] sm:$0x3f]
        %v5262 = vld [vmem:[%s5231 + $0xf0] sm:$0xff]
        %v5263 = vld [vmem:[%s5231 + $0xf8] sm:$0xff]
        %v5264 = vld [vmem:[%s5231 + $0x100] sm:$0x3f]
        %v5265 = vld [vmem:[%s5231 + $0x108] sm:$0xff]
        %v5266 = vld [vmem:[%s5231 + $0x110] sm:$0xff]
        %v5267 = vld [vmem:[%s5231 + $0x118] sm:$0x3f]
        %v5268 = vld [vmem:[%s5231 + $0x120] sm:$0xff]
        %v5269 = vld [vmem:[%s5231 + $0x128] sm:$0xff]
        %v5270 = vld [vmem:[%s5231 + $0x130] sm:$0x3f]
        %v5271 = vld [vmem:[%s5231 + $0x138] sm:$0xff]
        %v5272 = vld [vmem:[%s5231 + $0x140] sm:$0xff]
        %v5273 = vld [vmem:[%s5231 + $0x148] sm:$0x3f]
        %v5274 = vld [vmem:[%s5231 + $0x150] sm:$0xff]
        %v5275 = vld [vmem:[%s5231 + $0x158] sm:$0xff]
        %v5276 = vld [vmem:[%s5231 + $0x160] sm:$0x3f]
        %v5277 = vld [vmem:[%s5231 + $0x168] sm:$0xff]
        %v5278 = vld [vmem:[%s5231 + $0x170] sm:$0xff]
        %v5279 = vld [vmem:[%s5231 + $0x178] sm:$0x3f]
        %v5328 = vrot.slane %v5232, 1
        %v5329 = vrot.slane %v5233, 1
        %v5330 = vsel %vm265, %v5328, %v5329
        %v5331 = vrot.slane %v5234, 1
        %v5332 = vsel %vm265, %v5329, %v5331
        %v5333 = vrot.slane %v5235, 1
        %v5334 = vrot.slane %v5236, 1
        %v5335 = vsel %vm265, %v5333, %v5334
        %v5336 = vrot.slane %v5237, 1
        %v5337 = vsel %vm265, %v5334, %v5336
        %v5338 = vrot.slane %v5238, 1
        %v5339 = vrot.slane %v5239, 1
        %v5340 = vsel %vm265, %v5338, %v5339
        %v5341 = vrot.slane %v5240, 1
        %v5342 = vsel %vm265, %v5339, %v5341
        %v5343 = vrot.slane %v5241, 1
        %v5344 = vrot.slane %v5242, 1
        %v5345 = vsel %vm265, %v5343, %v5344
        %v5346 = vrot.slane %v5243, 1
        %v5347 = vsel %vm265, %v5344, %v5346
        %v5348 = vrot.slane %v5244, 1
        %v5349 = vrot.slane %v5245, 1
        %v5350 = vsel %vm265, %v5348, %v5349
        %v5351 = vrot.slane %v5246, 1
        %v5352 = vsel %vm265, %v5349, %v5351
        %v5353 = vrot.slane %v5247, 1
        %v5354 = vrot.slane %v5248, 1
        %v5355 = vsel %vm265, %v5353, %v5354
        %v5356 = vrot.slane %v5249, 1
        %v5357 = vsel %vm265, %v5354, %v5356
        %v5358 = vrot.slane %v5250, 1
        %v5359 = vrot.slane %v5251, 1
        %v5360 = vsel %vm265, %v5358, %v5359
        %v5361 = vrot.slane %v5252, 1
        %v5362 = vsel %vm265, %v5359, %v5361
        %v5363 = vrot.slane %v5253, 1
        %v5364 = vrot.slane %v5254, 1
        %v5365 = vsel %vm265, %v5363, %v5364
        %v5366 = vrot.slane %v5255, 1
        %v5367 = vsel %vm265, %v5364, %v5366
        %v5368 = vrot.slane %v5256, 1
        %v5369 = vrot.slane %v5257, 1
        %v5370 = vsel %vm265, %v5368, %v5369
        %v5371 = vrot.slane %v5258, 1
        %v5372 = vsel %vm265, %v5369, %v5371
        %v5373 = vrot.slane %v5259, 1
        %v5374 = vrot.slane %v5260, 1
        %v5375 = vsel %vm265, %v5373, %v5374
        %v5376 = vrot.slane %v5261, 1
        %v5377 = vsel %vm265, %v5374, %v5376
        %v5378 = vrot.slane %v5262, 1
        %v5379 = vrot.slane %v5263, 1
        %v5380 = vsel %vm265, %v5378, %v5379
        %v5381 = vrot.slane %v5264, 1
        %v5382 = vsel %vm265, %v5379, %v5381
        %v5383 = vrot.slane %v5265, 1
        %v5384 = vrot.slane %v5266, 1
        %v5385 = vsel %vm265, %v5383, %v5384
        %v5386 = vrot.slane %v5267, 1
        %v5387 = vsel %vm265, %v5384, %v5386
        %v5388 = vrot.slane %v5268, 1
        %v5389 = vrot.slane %v5269, 1
        %v5390 = vsel %vm265, %v5388, %v5389
        %v5391 = vrot.slane %v5270, 1
        %v5392 = vsel %vm265, %v5389, %v5391
        %v5393 = vrot.slane %v5271, 1
        %v5394 = vrot.slane %v5272, 1
        %v5395 = vsel %vm265, %v5393, %v5394
        %v5396 = vrot.slane %v5273, 1
        %v5397 = vsel %vm265, %v5394, %v5396
        %v5398 = vrot.slane %v5274, 1
        %v5399 = vrot.slane %v5275, 1
        %v5400 = vsel %vm265, %v5398, %v5399
        %v5401 = vrot.slane %v5276, 1
        %v5402 = vsel %vm265, %v5399, %v5401
        %v5403 = vrot.slane %v5277, 1
        %v5404 = vrot.slane %v5278, 1
        %v5405 = vsel %vm265, %v5403, %v5404
        %v5406 = vrot.slane %v5279, 1
        %v5407 = vsel %vm265, %v5404, %v5406
        %5408 = vrot.lane.b32.xlu0 %v5330, 3
        %v5409 = vpop.permute.xlu0 %5408
        %5410 = vrot.lane.b32.xlu0 %v5332, 3
        %v5411 = vpop.permute.xlu0 %5410
        %5412 = vrot.lane.b32.xlu0 %v5335, 3
        %v5413 = vpop.permute.xlu0 %5412
        %5414 = vrot.lane.b32.xlu0 %v5337, 3
        %v5415 = vpop.permute.xlu0 %5414
        %5416 = vrot.lane.b32.xlu0 %v5340, 3
        %v5417 = vpop.permute.xlu0 %5416
        %5418 = vrot.lane.b32.xlu0 %v5342, 3
        %v5419 = vpop.permute.xlu0 %5418
        %5420 = vrot.lane.b32.xlu0 %v5345, 3
        %v5421 = vpop.permute.xlu0 %5420
        %5422 = vrot.lane.b32.xlu0 %v5347, 3
        %v5423 = vpop.permute.xlu0 %5422
        %5424 = vrot.lane.b32.xlu0 %v5350, 3
        %v5425 = vpop.permute.xlu0 %5424
        %5426 = vrot.lane.b32.xlu0 %v5352, 3
        %v5427 = vpop.permute.xlu0 %5426
        %5428 = vrot.lane.b32.xlu0 %v5355, 3
        %v5429 = vpop.permute.xlu0 %5428
        %5430 = vrot.lane.b32.xlu0 %v5357, 3
        %v5431 = vpop.permute.xlu0 %5430
        %5432 = vrot.lane.b32.xlu0 %v5360, 3
        %v5433 = vpop.permute.xlu0 %5432
        %5434 = vrot.lane.b32.xlu0 %v5362, 3
        %v5435 = vpop.permute.xlu0 %5434
        %5436 = vrot.lane.b32.xlu0 %v5365, 3
        %v5437 = vpop.permute.xlu0 %5436
        %5438 = vrot.lane.b32.xlu0 %v5367, 3
        %v5439 = vpop.permute.xlu0 %5438
        %5440 = vrot.lane.b32.xlu0 %v5370, 3
        %v5441 = vpop.permute.xlu0 %5440
        %5442 = vrot.lane.b32.xlu0 %v5372, 3
        %v5443 = vpop.permute.xlu0 %5442
        %5444 = vrot.lane.b32.xlu0 %v5375, 3
        %v5445 = vpop.permute.xlu0 %5444
        %5446 = vrot.lane.b32.xlu0 %v5377, 3
        %v5447 = vpop.permute.xlu0 %5446
        %5448 = vrot.lane.b32.xlu0 %v5380, 3
        %v5449 = vpop.permute.xlu0 %5448
        %5450 = vrot.lane.b32.xlu0 %v5382, 3
        %v5451 = vpop.permute.xlu0 %5450
        %5452 = vrot.lane.b32.xlu0 %v5385, 3
        %v5453 = vpop.permute.xlu0 %5452
        %5454 = vrot.lane.b32.xlu0 %v5387, 3
        %v5455 = vpop.permute.xlu0 %5454
        %5456 = vrot.lane.b32.xlu0 %v5390, 3
        %v5457 = vpop.permute.xlu0 %5456
        %5458 = vrot.lane.b32.xlu0 %v5392, 3
        %v5459 = vpop.permute.xlu0 %5458
        %5460 = vrot.lane.b32.xlu0 %v5395, 3
        %v5461 = vpop.permute.xlu0 %5460
        %5462 = vrot.lane.b32.xlu0 %v5397, 3
        %v5463 = vpop.permute.xlu0 %5462
        %5464 = vrot.lane.b32.xlu0 %v5400, 3
        %v5465 = vpop.permute.xlu0 %5464
        %5466 = vrot.lane.b32.xlu0 %v5402, 3
        %v5467 = vpop.permute.xlu0 %5466
        %5468 = vrot.lane.b32.xlu0 %v5405, 3
        %v5469 = vpop.permute.xlu0 %5468
        %5470 = vrot.lane.b32.xlu0 %v5407, 3
        %v5471 = vpop.permute.xlu0 %5470
        %v5504 = vrot.slane %v5232, 2
        %v5505 = vrot.slane %v5233, 2
        %v5506 = vsel %vm442, %v5504, %v5505
        %v5507 = vrot.slane %v5234, 2
        %v5508 = vsel %vm442, %v5505, %v5507
        %v5509 = vrot.slane %v5235, 2
        %v5510 = vrot.slane %v5236, 2
        %v5511 = vsel %vm442, %v5509, %v5510
        %v5512 = vrot.slane %v5237, 2
        %v5513 = vsel %vm442, %v5510, %v5512
        %v5514 = vrot.slane %v5238, 2
        %v5515 = vrot.slane %v5239, 2
        %v5516 = vsel %vm442, %v5514, %v5515
        %v5517 = vrot.slane %v5240, 2
        %v5518 = vsel %vm442, %v5515, %v5517
        %v5519 = vrot.slane %v5241, 2
        %v5520 = vrot.slane %v5242, 2
        %v5521 = vsel %vm442, %v5519, %v5520
        %v5522 = vrot.slane %v5243, 2
        %v5523 = vsel %vm442, %v5520, %v5522
        %v5524 = vrot.slane %v5244, 2
        %v5525 = vrot.slane %v5245, 2
        %v5526 = vsel %vm442, %v5524, %v5525
        %v5527 = vrot.slane %v5246, 2
        %v5528 = vsel %vm442, %v5525, %v5527
        %v5529 = vrot.slane %v5247, 2
        %v5530 = vrot.slane %v5248, 2
        %v5531 = vsel %vm442, %v5529, %v5530
        %v5532 = vrot.slane %v5249, 2
        %v5533 = vsel %vm442, %v5530, %v5532
        %v5534 = vrot.slane %v5250, 2
        %v5535 = vrot.slane %v5251, 2
        %v5536 = vsel %vm442, %v5534, %v5535
        %v5537 = vrot.slane %v5252, 2
        %v5538 = vsel %vm442, %v5535, %v5537
        %v5539 = vrot.slane %v5253, 2
        %v5540 = vrot.slane %v5254, 2
        %v5541 = vsel %vm442, %v5539, %v5540
        %v5542 = vrot.slane %v5255, 2
        %v5543 = vsel %vm442, %v5540, %v5542
        %v5544 = vrot.slane %v5256, 2
        %v5545 = vrot.slane %v5257, 2
        %v5546 = vsel %vm442, %v5544, %v5545
        %v5547 = vrot.slane %v5258, 2
        %v5548 = vsel %vm442, %v5545, %v5547
        %v5549 = vrot.slane %v5259, 2
        %v5550 = vrot.slane %v5260, 2
        %v5551 = vsel %vm442, %v5549, %v5550
        %v5552 = vrot.slane %v5261, 2
        %v5553 = vsel %vm442, %v5550, %v5552
        %v5554 = vrot.slane %v5262, 2
        %v5555 = vrot.slane %v5263, 2
        %v5556 = vsel %vm442, %v5554, %v5555
        %v5557 = vrot.slane %v5264, 2
        %v5558 = vsel %vm442, %v5555, %v5557
        %v5559 = vrot.slane %v5265, 2
        %v5560 = vrot.slane %v5266, 2
        %v5561 = vsel %vm442, %v5559, %v5560
        %v5562 = vrot.slane %v5267, 2
        %v5563 = vsel %vm442, %v5560, %v5562
        %v5564 = vrot.slane %v5268, 2
        %v5565 = vrot.slane %v5269, 2
        %v5566 = vsel %vm442, %v5564, %v5565
        %v5567 = vrot.slane %v5270, 2
        %v5568 = vsel %vm442, %v5565, %v5567
        %v5569 = vrot.slane %v5271, 2
        %v5570 = vrot.slane %v5272, 2
        %v5571 = vsel %vm442, %v5569, %v5570
        %v5572 = vrot.slane %v5273, 2
        %v5573 = vsel %vm442, %v5570, %v5572
        %v5574 = vrot.slane %v5274, 2
        %v5575 = vrot.slane %v5275, 2
        %v5576 = vsel %vm442, %v5574, %v5575
        %v5577 = vrot.slane %v5276, 2
        %v5578 = vsel %vm442, %v5575, %v5577
        %v5579 = vrot.slane %v5277, 2
        %v5580 = vrot.slane %v5278, 2
        %v5581 = vsel %vm442, %v5579, %v5580
        %v5582 = vrot.slane %v5279, 2
        %v5583 = vsel %vm442, %v5580, %v5582
        %5584 = vrot.lane.b32.xlu0 %v5506, 6
        %v5585 = vpop.permute.xlu0 %5584
        %5586 = vrot.lane.b32.xlu0 %v5508, 6
        %v5587 = vpop.permute.xlu0 %5586
        %5588 = vrot.lane.b32.xlu0 %v5511, 6
        %v5589 = vpop.permute.xlu0 %5588
        %5590 = vrot.lane.b32.xlu0 %v5513, 6
        %v5591 = vpop.permute.xlu0 %5590
        %5592 = vrot.lane.b32.xlu0 %v5516, 6
        %v5593 = vpop.permute.xlu0 %5592
        %5594 = vrot.lane.b32.xlu0 %v5518, 6
        %v5595 = vpop.permute.xlu0 %5594
        %5596 = vrot.lane.b32.xlu0 %v5521, 6
        %v5597 = vpop.permute.xlu0 %5596
        %5598 = vrot.lane.b32.xlu0 %v5523, 6
        %v5599 = vpop.permute.xlu0 %5598
        %5600 = vrot.lane.b32.xlu0 %v5526, 6
        %v5601 = vpop.permute.xlu0 %5600
        %5602 = vrot.lane.b32.xlu0 %v5528, 6
        %v5603 = vpop.permute.xlu0 %5602
        %5604 = vrot.lane.b32.xlu0 %v5531, 6
        %v5605 = vpop.permute.xlu0 %5604
        %5606 = vrot.lane.b32.xlu0 %v5533, 6
        %v5607 = vpop.permute.xlu0 %5606
        %5608 = vrot.lane.b32.xlu0 %v5536, 6
        %v5609 = vpop.permute.xlu0 %5608
        %5610 = vrot.lane.b32.xlu0 %v5538, 6
        %v5611 = vpop.permute.xlu0 %5610
        %5612 = vrot.lane.b32.xlu0 %v5541, 6
        %v5613 = vpop.permute.xlu0 %5612
        %5614 = vrot.lane.b32.xlu0 %v5543, 6
        %v5615 = vpop.permute.xlu0 %5614
        %5616 = vrot.lane.b32.xlu0 %v5546, 6
        %v5617 = vpop.permute.xlu0 %5616
        %5618 = vrot.lane.b32.xlu0 %v5548, 6
        %v5619 = vpop.permute.xlu0 %5618
        %5620 = vrot.lane.b32.xlu0 %v5551, 6
        %v5621 = vpop.permute.xlu0 %5620
        %5622 = vrot.lane.b32.xlu0 %v5553, 6
        %v5623 = vpop.permute.xlu0 %5622
        %5624 = vrot.lane.b32.xlu0 %v5556, 6
        %v5625 = vpop.permute.xlu0 %5624
        %5626 = vrot.lane.b32.xlu0 %v5558, 6
        %v5627 = vpop.permute.xlu0 %5626
        %5628 = vrot.lane.b32.xlu0 %v5561, 6
        %v5629 = vpop.permute.xlu0 %5628
        %5630 = vrot.lane.b32.xlu0 %v5563, 6
        %v5631 = vpop.permute.xlu0 %5630
        %5632 = vrot.lane.b32.xlu0 %v5566, 6
        %v5633 = vpop.permute.xlu0 %5632
        %5634 = vrot.lane.b32.xlu0 %v5568, 6
        %v5635 = vpop.permute.xlu0 %5634
        %5636 = vrot.lane.b32.xlu0 %v5571, 6
        %v5637 = vpop.permute.xlu0 %5636
        %5638 = vrot.lane.b32.xlu0 %v5573, 6
        %v5639 = vpop.permute.xlu0 %5638
        %5640 = vrot.lane.b32.xlu0 %v5576, 6
        %v5641 = vpop.permute.xlu0 %5640
        %5642 = vrot.lane.b32.xlu0 %v5578, 6
        %v5643 = vpop.permute.xlu0 %5642
        %5644 = vrot.lane.b32.xlu0 %v5581, 6
        %v5645 = vpop.permute.xlu0 %5644
        %5646 = vrot.lane.b32.xlu0 %v5583, 6
        %v5647 = vpop.permute.xlu0 %5646
        %v5680 = vrot.slane %v5232, 3
        %v5681 = vrot.slane %v5233, 3
        %v5682 = vsel %vm619, %v5680, %v5681
        %v5683 = vrot.slane %v5234, 3
        %v5684 = vsel %vm619, %v5681, %v5683
        %v5685 = vrot.slane %v5235, 3
        %v5686 = vrot.slane %v5236, 3
        %v5687 = vsel %vm619, %v5685, %v5686
        %v5688 = vrot.slane %v5237, 3
        %v5689 = vsel %vm619, %v5686, %v5688
        %v5690 = vrot.slane %v5238, 3
        %v5691 = vrot.slane %v5239, 3
        %v5692 = vsel %vm619, %v5690, %v5691
        %v5693 = vrot.slane %v5240, 3
        %v5694 = vsel %vm619, %v5691, %v5693
        %v5695 = vrot.slane %v5241, 3
        %v5696 = vrot.slane %v5242, 3
        %v5697 = vsel %vm619, %v5695, %v5696
        %v5698 = vrot.slane %v5243, 3
        %v5699 = vsel %vm619, %v5696, %v5698
        %v5700 = vrot.slane %v5244, 3
        %v5701 = vrot.slane %v5245, 3
        %v5702 = vsel %vm619, %v5700, %v5701
        %v5703 = vrot.slane %v5246, 3
        %v5704 = vsel %vm619, %v5701, %v5703
        %v5705 = vrot.slane %v5247, 3
        %v5706 = vrot.slane %v5248, 3
        %v5707 = vsel %vm619, %v5705, %v5706
        %v5708 = vrot.slane %v5249, 3
        %v5709 = vsel %vm619, %v5706, %v5708
        %v5710 = vrot.slane %v5250, 3
        %v5711 = vrot.slane %v5251, 3
        %v5712 = vsel %vm619, %v5710, %v5711
        %v5713 = vrot.slane %v5252, 3
        %v5714 = vsel %vm619, %v5711, %v5713
        %v5715 = vrot.slane %v5253, 3
        %v5716 = vrot.slane %v5254, 3
        %v5717 = vsel %vm619, %v5715, %v5716
        %v5718 = vrot.slane %v5255, 3
        %v5719 = vsel %vm619, %v5716, %v5718
        %v5720 = vrot.slane %v5256, 3
        %v5721 = vrot.slane %v5257, 3
        %v5722 = vsel %vm619, %v5720, %v5721
        %v5723 = vrot.slane %v5258, 3
        %v5724 = vsel %vm619, %v5721, %v5723
        %v5725 = vrot.slane %v5259, 3
        %v5726 = vrot.slane %v5260, 3
        %v5727 = vsel %vm619, %v5725, %v5726
        %v5728 = vrot.slane %v5261, 3
        %v5729 = vsel %vm619, %v5726, %v5728
        %v5730 = vrot.slane %v5262, 3
        %v5731 = vrot.slane %v5263, 3
        %v5732 = vsel %vm619, %v5730, %v5731
        %v5733 = vrot.slane %v5264, 3
        %v5734 = vsel %vm619, %v5731, %v5733
        %v5735 = vrot.slane %v5265, 3
        %v5736 = vrot.slane %v5266, 3
        %v5737 = vsel %vm619, %v5735, %v5736
        %v5738 = vrot.slane %v5267, 3
        %v5739 = vsel %vm619, %v5736, %v5738
        %v5740 = vrot.slane %v5268, 3
        %v5741 = vrot.slane %v5269, 3
        %v5742 = vsel %vm619, %v5740, %v5741
        %v5743 = vrot.slane %v5270, 3
        %v5744 = vsel %vm619, %v5741, %v5743
        %v5745 = vrot.slane %v5271, 3
        %v5746 = vrot.slane %v5272, 3
        %v5747 = vsel %vm619, %v5745, %v5746
        %v5748 = vrot.slane %v5273, 3
        %v5749 = vsel %vm619, %v5746, %v5748
        %v5750 = vrot.slane %v5274, 3
        %v5751 = vrot.slane %v5275, 3
        %v5752 = vsel %vm619, %v5750, %v5751
        %v5753 = vrot.slane %v5276, 3
        %v5754 = vsel %vm619, %v5751, %v5753
        %v5755 = vrot.slane %v5277, 3
        %v5756 = vrot.slane %v5278, 3
        %v5757 = vsel %vm619, %v5755, %v5756
        %v5758 = vrot.slane %v5279, 3
        %v5759 = vsel %vm619, %v5756, %v5758
        %5760 = vrot.lane.b32.xlu0 %v5682, 9
        %v5761 = vpop.permute.xlu0 %5760
        %5762 = vrot.lane.b32.xlu0 %v5684, 9
        %v5763 = vpop.permute.xlu0 %5762
        %5764 = vrot.lane.b32.xlu0 %v5687, 9
        %v5765 = vpop.permute.xlu0 %5764
        %5766 = vrot.lane.b32.xlu0 %v5689, 9
        %v5767 = vpop.permute.xlu0 %5766
        %5768 = vrot.lane.b32.xlu0 %v5692, 9
        %v5769 = vpop.permute.xlu0 %5768
        %5770 = vrot.lane.b32.xlu0 %v5694, 9
        %v5771 = vpop.permute.xlu0 %5770
        %5772 = vrot.lane.b32.xlu0 %v5697, 9
        %v5773 = vpop.permute.xlu0 %5772
        %5774 = vrot.lane.b32.xlu0 %v5699, 9
        %v5775 = vpop.permute.xlu0 %5774
        %5776 = vrot.lane.b32.xlu0 %v5702, 9
        %v5777 = vpop.permute.xlu0 %5776
        %5778 = vrot.lane.b32.xlu0 %v5704, 9
        %v5779 = vpop.permute.xlu0 %5778
        %5780 = vrot.lane.b32.xlu0 %v5707, 9
        %v5781 = vpop.permute.xlu0 %5780
        %5782 = vrot.lane.b32.xlu0 %v5709, 9
        %v5783 = vpop.permute.xlu0 %5782
        %5784 = vrot.lane.b32.xlu0 %v5712, 9
        %v5785 = vpop.permute.xlu0 %5784
        %5786 = vrot.lane.b32.xlu0 %v5714, 9
        %v5787 = vpop.permute.xlu0 %5786
        %5788 = vrot.lane.b32.xlu0 %v5717, 9
        %v5789 = vpop.permute.xlu0 %5788
        %5790 = vrot.lane.b32.xlu0 %v5719, 9
        %v5791 = vpop.permute.xlu0 %5790
        %5792 = vrot.lane.b32.xlu0 %v5722, 9
        %v5793 = vpop.permute.xlu0 %5792
        %5794 = vrot.lane.b32.xlu0 %v5724, 9
        %v5795 = vpop.permute.xlu0 %5794
        %5796 = vrot.lane.b32.xlu0 %v5727, 9
        %v5797 = vpop.permute.xlu0 %5796
        %5798 = vrot.lane.b32.xlu0 %v5729, 9
        %v5799 = vpop.permute.xlu0 %5798
        %5800 = vrot.lane.b32.xlu0 %v5732, 9
        %v5801 = vpop.permute.xlu0 %5800
        %5802 = vrot.lane.b32.xlu0 %v5734, 9
        %v5803 = vpop.permute.xlu0 %5802
        %5804 = vrot.lane.b32.xlu0 %v5737, 9
        %v5805 = vpop.permute.xlu0 %5804
        %5806 = vrot.lane.b32.xlu0 %v5739, 9
        %v5807 = vpop.permute.xlu0 %5806
        %5808 = vrot.lane.b32.xlu0 %v5742, 9
        %v5809 = vpop.permute.xlu0 %5808
        %5810 = vrot.lane.b32.xlu0 %v5744, 9
        %v5811 = vpop.permute.xlu0 %5810
        %5812 = vrot.lane.b32.xlu0 %v5747, 9
        %v5813 = vpop.permute.xlu0 %5812
        %5814 = vrot.lane.b32.xlu0 %v5749, 9
        %v5815 = vpop.permute.xlu0 %5814
        %5816 = vrot.lane.b32.xlu0 %v5752, 9
        %v5817 = vpop.permute.xlu0 %5816
        %5818 = vrot.lane.b32.xlu0 %v5754, 9
        %v5819 = vpop.permute.xlu0 %5818
        %5820 = vrot.lane.b32.xlu0 %v5757, 9
        %v5821 = vpop.permute.xlu0 %5820
        %5822 = vrot.lane.b32.xlu0 %v5759, 9
        %v5823 = vpop.permute.xlu0 %5822
        %v5856 = vrot.slane %v5232, 4
        %v5857 = vrot.slane %v5233, 4
        %v5858 = vsel %vm796, %v5856, %v5857
        %v5859 = vrot.slane %v5234, 4
        %v5860 = vsel %vm796, %v5857, %v5859
        %v5861 = vrot.slane %v5235, 4
        %v5862 = vrot.slane %v5236, 4
        %v5863 = vsel %vm796, %v5861, %v5862
        %v5864 = vrot.slane %v5237, 4
        %v5865 = vsel %vm796, %v5862, %v5864
        %v5866 = vrot.slane %v5238, 4
        %v5867 = vrot.slane %v5239, 4
        %v5868 = vsel %vm796, %v5866, %v5867
        %v5869 = vrot.slane %v5240, 4
        %v5870 = vsel %vm796, %v5867, %v5869
        %v5871 = vrot.slane %v5241, 4
        %v5872 = vrot.slane %v5242, 4
        %v5873 = vsel %vm796, %v5871, %v5872
        %v5874 = vrot.slane %v5243, 4
        %v5875 = vsel %vm796, %v5872, %v5874
        %v5876 = vrot.slane %v5244, 4
        %v5877 = vrot.slane %v5245, 4
        %v5878 = vsel %vm796, %v5876, %v5877
        %v5879 = vrot.slane %v5246, 4
        %v5880 = vsel %vm796, %v5877, %v5879
        %v5881 = vrot.slane %v5247, 4
        %v5882 = vrot.slane %v5248, 4
        %v5883 = vsel %vm796, %v5881, %v5882
        %v5884 = vrot.slane %v5249, 4
        %v5885 = vsel %vm796, %v5882, %v5884
        %v5886 = vrot.slane %v5250, 4
        %v5887 = vrot.slane %v5251, 4
        %v5888 = vsel %vm796, %v5886, %v5887
        %v5889 = vrot.slane %v5252, 4
        %v5890 = vsel %vm796, %v5887, %v5889
        %v5891 = vrot.slane %v5253, 4
        %v5892 = vrot.slane %v5254, 4
        %v5893 = vsel %vm796, %v5891, %v5892
        %v5894 = vrot.slane %v5255, 4
        %v5895 = vsel %vm796, %v5892, %v5894
        %v5896 = vrot.slane %v5256, 4
        %v5897 = vrot.slane %v5257, 4
        %v5898 = vsel %vm796, %v5896, %v5897
        %v5899 = vrot.slane %v5258, 4
        %v5900 = vsel %vm796, %v5897, %v5899
        %v5901 = vrot.slane %v5259, 4
        %v5902 = vrot.slane %v5260, 4
        %v5903 = vsel %vm796, %v5901, %v5902
        %v5904 = vrot.slane %v5261, 4
        %v5905 = vsel %vm796, %v5902, %v5904
        %v5906 = vrot.slane %v5262, 4
        %v5907 = vrot.slane %v5263, 4
        %v5908 = vsel %vm796, %v5906, %v5907
        %v5909 = vrot.slane %v5264, 4
        %v5910 = vsel %vm796, %v5907, %v5909
        %v5911 = vrot.slane %v5265, 4
        %v5912 = vrot.slane %v5266, 4
        %v5913 = vsel %vm796, %v5911, %v5912
        %v5914 = vrot.slane %v5267, 4
        %v5915 = vsel %vm796, %v5912, %v5914
        %v5916 = vrot.slane %v5268, 4
        %v5917 = vrot.slane %v5269, 4
        %v5918 = vsel %vm796, %v5916, %v5917
        %v5919 = vrot.slane %v5270, 4
        %v5920 = vsel %vm796, %v5917, %v5919
        %v5921 = vrot.slane %v5271, 4
        %v5922 = vrot.slane %v5272, 4
        %v5923 = vsel %vm796, %v5921, %v5922
        %v5924 = vrot.slane %v5273, 4
        %v5925 = vsel %vm796, %v5922, %v5924
        %v5926 = vrot.slane %v5274, 4
        %v5927 = vrot.slane %v5275, 4
        %v5928 = vsel %vm796, %v5926, %v5927
        %v5929 = vrot.slane %v5276, 4
        %v5930 = vsel %vm796, %v5927, %v5929
        %v5931 = vrot.slane %v5277, 4
        %v5932 = vrot.slane %v5278, 4
        %v5933 = vsel %vm796, %v5931, %v5932
        %v5934 = vrot.slane %v5279, 4
        %v5935 = vsel %vm796, %v5932, %v5934
        %5936 = vrot.lane.b32.xlu0 %v5858, 12
        %v5937 = vpop.permute.xlu0 %5936
        %5938 = vrot.lane.b32.xlu0 %v5860, 12
        %v5939 = vpop.permute.xlu0 %5938
        %5940 = vrot.lane.b32.xlu0 %v5863, 12
        %v5941 = vpop.permute.xlu0 %5940
        %5942 = vrot.lane.b32.xlu0 %v5865, 12
        %v5943 = vpop.permute.xlu0 %5942
        %5944 = vrot.lane.b32.xlu0 %v5868, 12
        %v5945 = vpop.permute.xlu0 %5944
        %5946 = vrot.lane.b32.xlu0 %v5870, 12
        %v5947 = vpop.permute.xlu0 %5946
        %5948 = vrot.lane.b32.xlu0 %v5873, 12
        %v5949 = vpop.permute.xlu0 %5948
        %5950 = vrot.lane.b32.xlu0 %v5875, 12
        %v5951 = vpop.permute.xlu0 %5950
        %5952 = vrot.lane.b32.xlu0 %v5878, 12
        %v5953 = vpop.permute.xlu0 %5952
        %5954 = vrot.lane.b32.xlu0 %v5880, 12
        %v5955 = vpop.permute.xlu0 %5954
        %5956 = vrot.lane.b32.xlu0 %v5883, 12
        %v5957 = vpop.permute.xlu0 %5956
        %5958 = vrot.lane.b32.xlu0 %v5885, 12
        %v5959 = vpop.permute.xlu0 %5958
        %5960 = vrot.lane.b32.xlu0 %v5888, 12
        %v5961 = vpop.permute.xlu0 %5960
        %5962 = vrot.lane.b32.xlu0 %v5890, 12
        %v5963 = vpop.permute.xlu0 %5962
        %5964 = vrot.lane.b32.xlu0 %v5893, 12
        %v5965 = vpop.permute.xlu0 %5964
        %5966 = vrot.lane.b32.xlu0 %v5895, 12
        %v5967 = vpop.permute.xlu0 %5966
        %5968 = vrot.lane.b32.xlu0 %v5898, 12
        %v5969 = vpop.permute.xlu0 %5968
        %5970 = vrot.lane.b32.xlu0 %v5900, 12
        %v5971 = vpop.permute.xlu0 %5970
        %5972 = vrot.lane.b32.xlu0 %v5903, 12
        %v5973 = vpop.permute.xlu0 %5972
        %5974 = vrot.lane.b32.xlu0 %v5905, 12
        %v5975 = vpop.permute.xlu0 %5974
        %5976 = vrot.lane.b32.xlu0 %v5908, 12
        %v5977 = vpop.permute.xlu0 %5976
        %5978 = vrot.lane.b32.xlu0 %v5910, 12
        %v5979 = vpop.permute.xlu0 %5978
        %5980 = vrot.lane.b32.xlu0 %v5913, 12
        %v5981 = vpop.permute.xlu0 %5980
        %5982 = vrot.lane.b32.xlu0 %v5915, 12
        %v5983 = vpop.permute.xlu0 %5982
        %5984 = vrot.lane.b32.xlu0 %v5918, 12
        %v5985 = vpop.permute.xlu0 %5984
        %5986 = vrot.lane.b32.xlu0 %v5920, 12
        %v5987 = vpop.permute.xlu0 %5986
        %5988 = vrot.lane.b32.xlu0 %v5923, 12
        %v5989 = vpop.permute.xlu0 %5988
        %5990 = vrot.lane.b32.xlu0 %v5925, 12
        %v5991 = vpop.permute.xlu0 %5990
        %5992 = vrot.lane.b32.xlu0 %v5928, 12
        %v5993 = vpop.permute.xlu0 %5992
        %5994 = vrot.lane.b32.xlu0 %v5930, 12
        %v5995 = vpop.permute.xlu0 %5994
        %5996 = vrot.lane.b32.xlu0 %v5933, 12
        %v5997 = vpop.permute.xlu0 %5996
        %5998 = vrot.lane.b32.xlu0 %v5935, 12
        %v5999 = vpop.permute.xlu0 %5998
        %v6032 = vrot.slane %v5232, 5
        %v6033 = vrot.slane %v5233, 5
        %v6034 = vsel %vm973, %v6032, %v6033
        %v6035 = vrot.slane %v5234, 5
        %v6036 = vsel %vm973, %v6033, %v6035
        %v6037 = vrot.slane %v5235, 5
        %v6038 = vrot.slane %v5236, 5
        %v6039 = vsel %vm973, %v6037, %v6038
        %v6040 = vrot.slane %v5237, 5
        %v6041 = vsel %vm973, %v6038, %v6040
        %v6042 = vrot.slane %v5238, 5
        %v6043 = vrot.slane %v5239, 5
        %v6044 = vsel %vm973, %v6042, %v6043
        %v6045 = vrot.slane %v5240, 5
        %v6046 = vsel %vm973, %v6043, %v6045
        %v6047 = vrot.slane %v5241, 5
        %v6048 = vrot.slane %v5242, 5
        %v6049 = vsel %vm973, %v6047, %v6048
        %v6050 = vrot.slane %v5243, 5
        %v6051 = vsel %vm973, %v6048, %v6050
        %v6052 = vrot.slane %v5244, 5
        %v6053 = vrot.slane %v5245, 5
        %v6054 = vsel %vm973, %v6052, %v6053
        %v6055 = vrot.slane %v5246, 5
        %v6056 = vsel %vm973, %v6053, %v6055
        %v6057 = vrot.slane %v5247, 5
        %v6058 = vrot.slane %v5248, 5
        %v6059 = vsel %vm973, %v6057, %v6058
        %v6060 = vrot.slane %v5249, 5
        %v6061 = vsel %vm973, %v6058, %v6060
        %v6062 = vrot.slane %v5250, 5
        %v6063 = vrot.slane %v5251, 5
        %v6064 = vsel %vm973, %v6062, %v6063
        %v6065 = vrot.slane %v5252, 5
        %v6066 = vsel %vm973, %v6063, %v6065
        %v6067 = vrot.slane %v5253, 5
        %v6068 = vrot.slane %v5254, 5
        %v6069 = vsel %vm973, %v6067, %v6068
        %v6070 = vrot.slane %v5255, 5
        %v6071 = vsel %vm973, %v6068, %v6070
        %v6072 = vrot.slane %v5256, 5
        %v6073 = vrot.slane %v5257, 5
        %v6074 = vsel %vm973, %v6072, %v6073
        %v6075 = vrot.slane %v5258, 5
        %v6076 = vsel %vm973, %v6073, %v6075
        %v6077 = vrot.slane %v5259, 5
        %v6078 = vrot.slane %v5260, 5
        %v6079 = vsel %vm973, %v6077, %v6078
        %v6080 = vrot.slane %v5261, 5
        %v6081 = vsel %vm973, %v6078, %v6080
        %v6082 = vrot.slane %v5262, 5
        %v6083 = vrot.slane %v5263, 5
        %v6084 = vsel %vm973, %v6082, %v6083
        %v6085 = vrot.slane %v5264, 5
        %v6086 = vsel %vm973, %v6083, %v6085
        %v6087 = vrot.slane %v5265, 5
        %v6088 = vrot.slane %v5266, 5
        %v6089 = vsel %vm973, %v6087, %v6088
        %v6090 = vrot.slane %v5267, 5
        %v6091 = vsel %vm973, %v6088, %v6090
        %v6092 = vrot.slane %v5268, 5
        %v6093 = vrot.slane %v5269, 5
        %v6094 = vsel %vm973, %v6092, %v6093
        %v6095 = vrot.slane %v5270, 5
        %v6096 = vsel %vm973, %v6093, %v6095
        %v6097 = vrot.slane %v5271, 5
        %v6098 = vrot.slane %v5272, 5
        %v6099 = vsel %vm973, %v6097, %v6098
        %v6100 = vrot.slane %v5273, 5
        %v6101 = vsel %vm973, %v6098, %v6100
        %v6102 = vrot.slane %v5274, 5
        %v6103 = vrot.slane %v5275, 5
        %v6104 = vsel %vm973, %v6102, %v6103
        %v6105 = vrot.slane %v5276, 5
        %v6106 = vsel %vm973, %v6103, %v6105
        %v6107 = vrot.slane %v5277, 5
        %v6108 = vrot.slane %v5278, 5
        %v6109 = vsel %vm973, %v6107, %v6108
        %v6110 = vrot.slane %v5279, 5
        %v6111 = vsel %vm973, %v6108, %v6110
        %6112 = vrot.lane.b32.xlu0 %v6034, 15
        %v6113 = vpop.permute.xlu0 %6112
        %6114 = vrot.lane.b32.xlu0 %v6036, 15
        %v6115 = vpop.permute.xlu0 %6114
        %6116 = vrot.lane.b32.xlu0 %v6039, 15
        %v6117 = vpop.permute.xlu0 %6116
        %6118 = vrot.lane.b32.xlu0 %v6041, 15
        %v6119 = vpop.permute.xlu0 %6118
        %6120 = vrot.lane.b32.xlu0 %v6044, 15
        %v6121 = vpop.permute.xlu0 %6120
        %6122 = vrot.lane.b32.xlu0 %v6046, 15
        %v6123 = vpop.permute.xlu0 %6122
        %6124 = vrot.lane.b32.xlu0 %v6049, 15
        %v6125 = vpop.permute.xlu0 %6124
        %6126 = vrot.lane.b32.xlu0 %v6051, 15
        %v6127 = vpop.permute.xlu0 %6126
        %6128 = vrot.lane.b32.xlu0 %v6054, 15
        %v6129 = vpop.permute.xlu0 %6128
        %6130 = vrot.lane.b32.xlu0 %v6056, 15
        %v6131 = vpop.permute.xlu0 %6130
        %6132 = vrot.lane.b32.xlu0 %v6059, 15
        %v6133 = vpop.permute.xlu0 %6132
        %6134 = vrot.lane.b32.xlu0 %v6061, 15
        %v6135 = vpop.permute.xlu0 %6134
        %6136 = vrot.lane.b32.xlu0 %v6064, 15
        %v6137 = vpop.permute.xlu0 %6136
        %6138 = vrot.lane.b32.xlu0 %v6066, 15
        %v6139 = vpop.permute.xlu0 %6138
        %6140 = vrot.lane.b32.xlu0 %v6069, 15
        %v6141 = vpop.permute.xlu0 %6140
        %6142 = vrot.lane.b32.xlu0 %v6071, 15
        %v6143 = vpop.permute.xlu0 %6142
        %6144 = vrot.lane.b32.xlu0 %v6074, 15
        %v6145 = vpop.permute.xlu0 %6144
        %6146 = vrot.lane.b32.xlu0 %v6076, 15
        %v6147 = vpop.permute.xlu0 %6146
        %6148 = vrot.lane.b32.xlu0 %v6079, 15
        %v6149 = vpop.permute.xlu0 %6148
        %6150 = vrot.lane.b32.xlu0 %v6081, 15
        %v6151 = vpop.permute.xlu0 %6150
        %6152 = vrot.lane.b32.xlu0 %v6084, 15
        %v6153 = vpop.permute.xlu0 %6152
        %6154 = vrot.lane.b32.xlu0 %v6086, 15
        %v6155 = vpop.permute.xlu0 %6154
        %6156 = vrot.lane.b32.xlu0 %v6089, 15
        %v6157 = vpop.permute.xlu0 %6156
        %6158 = vrot.lane.b32.xlu0 %v6091, 15
        %v6159 = vpop.permute.xlu0 %6158
        %6160 = vrot.lane.b32.xlu0 %v6094, 15
        %v6161 = vpop.permute.xlu0 %6160
        %6162 = vrot.lane.b32.xlu0 %v6096, 15
        %v6163 = vpop.permute.xlu0 %6162
        %6164 = vrot.lane.b32.xlu0 %v6099, 15
        %v6165 = vpop.permute.xlu0 %6164
        %6166 = vrot.lane.b32.xlu0 %v6101, 15
        %v6167 = vpop.permute.xlu0 %6166
        %6168 = vrot.lane.b32.xlu0 %v6104, 15
        %v6169 = vpop.permute.xlu0 %6168
        %6170 = vrot.lane.b32.xlu0 %v6106, 15
        %v6171 = vpop.permute.xlu0 %6170
        %6172 = vrot.lane.b32.xlu0 %v6109, 15
        %v6173 = vpop.permute.xlu0 %6172
        %6174 = vrot.lane.b32.xlu0 %v6111, 15
        %v6175 = vpop.permute.xlu0 %6174
        %v6208 = vrot.slane %v5232, 6
        %v6209 = vrot.slane %v5233, 6
        %v6210 = vsel %vm1150, %v6208, %v6209
        %v6211 = vrot.slane %v5234, 6
        %v6212 = vsel %vm1150, %v6209, %v6211
        %v6213 = vrot.slane %v5235, 6
        %v6214 = vrot.slane %v5236, 6
        %v6215 = vsel %vm1150, %v6213, %v6214
        %v6216 = vrot.slane %v5237, 6
        %v6217 = vsel %vm1150, %v6214, %v6216
        %v6218 = vrot.slane %v5238, 6
        %v6219 = vrot.slane %v5239, 6
        %v6220 = vsel %vm1150, %v6218, %v6219
        %v6221 = vrot.slane %v5240, 6
        %v6222 = vsel %vm1150, %v6219, %v6221
        %v6223 = vrot.slane %v5241, 6
        %v6224 = vrot.slane %v5242, 6
        %v6225 = vsel %vm1150, %v6223, %v6224
        %v6226 = vrot.slane %v5243, 6
        %v6227 = vsel %vm1150, %v6224, %v6226
        %v6228 = vrot.slane %v5244, 6
        %v6229 = vrot.slane %v5245, 6
        %v6230 = vsel %vm1150, %v6228, %v6229
        %v6231 = vrot.slane %v5246, 6
        %v6232 = vsel %vm1150, %v6229, %v6231
        %v6233 = vrot.slane %v5247, 6
        %v6234 = vrot.slane %v5248, 6
        %v6235 = vsel %vm1150, %v6233, %v6234
        %v6236 = vrot.slane %v5249, 6
        %v6237 = vsel %vm1150, %v6234, %v6236
        %v6238 = vrot.slane %v5250, 6
        %v6239 = vrot.slane %v5251, 6
        %v6240 = vsel %vm1150, %v6238, %v6239
        %v6241 = vrot.slane %v5252, 6
        %v6242 = vsel %vm1150, %v6239, %v6241
        %v6243 = vrot.slane %v5253, 6
        %v6244 = vrot.slane %v5254, 6
        %v6245 = vsel %vm1150, %v6243, %v6244
        %v6246 = vrot.slane %v5255, 6
        %v6247 = vsel %vm1150, %v6244, %v6246
        %v6248 = vrot.slane %v5256, 6
        %v6249 = vrot.slane %v5257, 6
        %v6250 = vsel %vm1150, %v6248, %v6249
        %v6251 = vrot.slane %v5258, 6
        %v6252 = vsel %vm1150, %v6249, %v6251
        %v6253 = vrot.slane %v5259, 6
        %v6254 = vrot.slane %v5260, 6
        %v6255 = vsel %vm1150, %v6253, %v6254
        %v6256 = vrot.slane %v5261, 6
        %v6257 = vsel %vm1150, %v6254, %v6256
        %v6258 = vrot.slane %v5262, 6
        %v6259 = vrot.slane %v5263, 6
        %v6260 = vsel %vm1150, %v6258, %v6259
        %v6261 = vrot.slane %v5264, 6
        %v6262 = vsel %vm1150, %v6259, %v6261
        %v6263 = vrot.slane %v5265, 6
        %v6264 = vrot.slane %v5266, 6
        %v6265 = vsel %vm1150, %v6263, %v6264
        %v6266 = vrot.slane %v5267, 6
        %v6267 = vsel %vm1150, %v6264, %v6266
        %v6268 = vrot.slane %v5268, 6
        %v6269 = vrot.slane %v5269, 6
        %v6270 = vsel %vm1150, %v6268, %v6269
        %v6271 = vrot.slane %v5270, 6
        %v6272 = vsel %vm1150, %v6269, %v6271
        %v6273 = vrot.slane %v5271, 6
        %v6274 = vrot.slane %v5272, 6
        %v6275 = vsel %vm1150, %v6273, %v6274
        %v6276 = vrot.slane %v5273, 6
        %v6277 = vsel %vm1150, %v6274, %v6276
        %v6278 = vrot.slane %v5274, 6
        %v6279 = vrot.slane %v5275, 6
        %v6280 = vsel %vm1150, %v6278, %v6279
        %v6281 = vrot.slane %v5276, 6
        %v6282 = vsel %vm1150, %v6279, %v6281
        %v6283 = vrot.slane %v5277, 6
        %v6284 = vrot.slane %v5278, 6
        %v6285 = vsel %vm1150, %v6283, %v6284
        %v6286 = vrot.slane %v5279, 6
        %v6287 = vsel %vm1150, %v6284, %v6286
        %6288 = vrot.lane.b32.xlu0 %v6210, 18
        %v6289 = vpop.permute.xlu0 %6288
        %6290 = vrot.lane.b32.xlu0 %v6212, 18
        %v6291 = vpop.permute.xlu0 %6290
        %6292 = vrot.lane.b32.xlu0 %v6215, 18
        %v6293 = vpop.permute.xlu0 %6292
        %6294 = vrot.lane.b32.xlu0 %v6217, 18
        %v6295 = vpop.permute.xlu0 %6294
        %6296 = vrot.lane.b32.xlu0 %v6220, 18
        %v6297 = vpop.permute.xlu0 %6296
        %6298 = vrot.lane.b32.xlu0 %v6222, 18
        %v6299 = vpop.permute.xlu0 %6298
        %6300 = vrot.lane.b32.xlu0 %v6225, 18
        %v6301 = vpop.permute.xlu0 %6300
        %6302 = vrot.lane.b32.xlu0 %v6227, 18
        %v6303 = vpop.permute.xlu0 %6302
        %6304 = vrot.lane.b32.xlu0 %v6230, 18
        %v6305 = vpop.permute.xlu0 %6304
        %6306 = vrot.lane.b32.xlu0 %v6232, 18
        %v6307 = vpop.permute.xlu0 %6306
        %6308 = vrot.lane.b32.xlu0 %v6235, 18
        %v6309 = vpop.permute.xlu0 %6308
        %6310 = vrot.lane.b32.xlu0 %v6237, 18
        %v6311 = vpop.permute.xlu0 %6310
        %6312 = vrot.lane.b32.xlu0 %v6240, 18
        %v6313 = vpop.permute.xlu0 %6312
        %6314 = vrot.lane.b32.xlu0 %v6242, 18
        %v6315 = vpop.permute.xlu0 %6314
        %6316 = vrot.lane.b32.xlu0 %v6245, 18
        %v6317 = vpop.permute.xlu0 %6316
        %6318 = vrot.lane.b32.xlu0 %v6247, 18
        %v6319 = vpop.permute.xlu0 %6318
        %6320 = vrot.lane.b32.xlu0 %v6250, 18
        %v6321 = vpop.permute.xlu0 %6320
        %6322 = vrot.lane.b32.xlu0 %v6252, 18
        %v6323 = vpop.permute.xlu0 %6322
        %6324 = vrot.lane.b32.xlu0 %v6255, 18
        %v6325 = vpop.permute.xlu0 %6324
        %6326 = vrot.lane.b32.xlu0 %v6257, 18
        %v6327 = vpop.permute.xlu0 %6326
        %6328 = vrot.lane.b32.xlu0 %v6260, 18
        %v6329 = vpop.permute.xlu0 %6328
        %6330 = vrot.lane.b32.xlu0 %v6262, 18
        %v6331 = vpop.permute.xlu0 %6330
        %6332 = vrot.lane.b32.xlu0 %v6265, 18
        %v6333 = vpop.permute.xlu0 %6332
        %6334 = vrot.lane.b32.xlu0 %v6267, 18
        %v6335 = vpop.permute.xlu0 %6334
        %6336 = vrot.lane.b32.xlu0 %v6270, 18
        %v6337 = vpop.permute.xlu0 %6336
        %6338 = vrot.lane.b32.xlu0 %v6272, 18
        %v6339 = vpop.permute.xlu0 %6338
        %6340 = vrot.lane.b32.xlu0 %v6275, 18
        %v6341 = vpop.permute.xlu0 %6340
        %6342 = vrot.lane.b32.xlu0 %v6277, 18
        %v6343 = vpop.permute.xlu0 %6342
        %6344 = vrot.lane.b32.xlu0 %v6280, 18
        %v6345 = vpop.permute.xlu0 %6344
        %6346 = vrot.lane.b32.xlu0 %v6282, 18
        %v6347 = vpop.permute.xlu0 %6346
        %6348 = vrot.lane.b32.xlu0 %v6285, 18
        %v6349 = vpop.permute.xlu0 %6348
        %6350 = vrot.lane.b32.xlu0 %v6287, 18
        %v6351 = vpop.permute.xlu0 %6350
        %v6384 = vsel %vm1327, %v5232, %v5409
        %v6385 = vsel %vm1327, %v5233, %v5411
        %v6386 = vsel %vm1327, %v5235, %v5413
        %v6387 = vsel %vm1327, %v5236, %v5415
        %v6388 = vsel %vm1327, %v5238, %v5417
        %v6389 = vsel %vm1327, %v5239, %v5419
        %v6390 = vsel %vm1327, %v5241, %v5421
        %v6391 = vsel %vm1327, %v5242, %v5423
        %v6392 = vsel %vm1327, %v5244, %v5425
        %v6393 = vsel %vm1327, %v5245, %v5427
        %v6394 = vsel %vm1327, %v5247, %v5429
        %v6395 = vsel %vm1327, %v5248, %v5431
        %v6396 = vsel %vm1327, %v5250, %v5433
        %v6397 = vsel %vm1327, %v5251, %v5435
        %v6398 = vsel %vm1327, %v5253, %v5437
        %v6399 = vsel %vm1327, %v5254, %v5439
        %v6400 = vsel %vm1327, %v5256, %v5441
        %v6401 = vsel %vm1327, %v5257, %v5443
        %v6402 = vsel %vm1327, %v5259, %v5445
        %v6403 = vsel %vm1327, %v5260, %v5447
        %v6404 = vsel %vm1327, %v5262, %v5449
        %v6405 = vsel %vm1327, %v5263, %v5451
        %v6406 = vsel %vm1327, %v5265, %v5453
        %v6407 = vsel %vm1327, %v5266, %v5455
        %v6408 = vsel %vm1327, %v5268, %v5457
        %v6409 = vsel %vm1327, %v5269, %v5459
        %v6410 = vsel %vm1327, %v5271, %v5461
        %v6411 = vsel %vm1327, %v5272, %v5463
        %v6412 = vsel %vm1327, %v5274, %v5465
        %v6413 = vsel %vm1327, %v5275, %v5467
        %v6414 = vsel %vm1327, %v5277, %v5469
        %v6415 = vsel %vm1327, %v5278, %v5471
        %v6416 = vsel %vm1360, %v6384, %v5585
        %v6417 = vsel %vm1360, %v6385, %v5587
        %v6418 = vsel %vm1360, %v6386, %v5589
        %v6419 = vsel %vm1360, %v6387, %v5591
        %v6420 = vsel %vm1360, %v6388, %v5593
        %v6421 = vsel %vm1360, %v6389, %v5595
        %v6422 = vsel %vm1360, %v6390, %v5597
        %v6423 = vsel %vm1360, %v6391, %v5599
        %v6424 = vsel %vm1360, %v6392, %v5601
        %v6425 = vsel %vm1360, %v6393, %v5603
        %v6426 = vsel %vm1360, %v6394, %v5605
        %v6427 = vsel %vm1360, %v6395, %v5607
        %v6428 = vsel %vm1360, %v6396, %v5609
        %v6429 = vsel %vm1360, %v6397, %v5611
        %v6430 = vsel %vm1360, %v6398, %v5613
        %v6431 = vsel %vm1360, %v6399, %v5615
        %v6432 = vsel %vm1360, %v6400, %v5617
        %v6433 = vsel %vm1360, %v6401, %v5619
        %v6434 = vsel %vm1360, %v6402, %v5621
        %v6435 = vsel %vm1360, %v6403, %v5623
        %v6436 = vsel %vm1360, %v6404, %v5625
        %v6437 = vsel %vm1360, %v6405, %v5627
        %v6438 = vsel %vm1360, %v6406, %v5629
        %v6439 = vsel %vm1360, %v6407, %v5631
        %v6440 = vsel %vm1360, %v6408, %v5633
        %v6441 = vsel %vm1360, %v6409, %v5635
        %v6442 = vsel %vm1360, %v6410, %v5637
        %v6443 = vsel %vm1360, %v6411, %v5639
        %v6444 = vsel %vm1360, %v6412, %v5641
        %v6445 = vsel %vm1360, %v6413, %v5643
        %v6446 = vsel %vm1360, %v6414, %v5645
        %v6447 = vsel %vm1360, %v6415, %v5647
        %v6448 = vsel %vm1393, %v6416, %v5761
        %v6449 = vsel %vm1393, %v6417, %v5763
        %v6450 = vsel %vm1393, %v6418, %v5765
        %v6451 = vsel %vm1393, %v6419, %v5767
        %v6452 = vsel %vm1393, %v6420, %v5769
        %v6453 = vsel %vm1393, %v6421, %v5771
        %v6454 = vsel %vm1393, %v6422, %v5773
        %v6455 = vsel %vm1393, %v6423, %v5775
        %v6456 = vsel %vm1393, %v6424, %v5777
        %v6457 = vsel %vm1393, %v6425, %v5779
        %v6458 = vsel %vm1393, %v6426, %v5781
        %v6459 = vsel %vm1393, %v6427, %v5783
        %v6460 = vsel %vm1393, %v6428, %v5785
        %v6461 = vsel %vm1393, %v6429, %v5787
        %v6462 = vsel %vm1393, %v6430, %v5789
        %v6463 = vsel %vm1393, %v6431, %v5791
        %v6464 = vsel %vm1393, %v6432, %v5793
        %v6465 = vsel %vm1393, %v6433, %v5795
        %v6466 = vsel %vm1393, %v6434, %v5797
        %v6467 = vsel %vm1393, %v6435, %v5799
        %v6468 = vsel %vm1393, %v6436, %v5801
        %v6469 = vsel %vm1393, %v6437, %v5803
        %v6470 = vsel %vm1393, %v6438, %v5805
        %v6471 = vsel %vm1393, %v6439, %v5807
        %v6472 = vsel %vm1393, %v6440, %v5809
        %v6473 = vsel %vm1393, %v6441, %v5811
        %v6474 = vsel %vm1393, %v6442, %v5813
        %v6475 = vsel %vm1393, %v6443, %v5815
        %v6476 = vsel %vm1393, %v6444, %v5817
        %v6477 = vsel %vm1393, %v6445, %v5819
        %v6478 = vsel %vm1393, %v6446, %v5821
        %v6479 = vsel %vm1393, %v6447, %v5823
        %v6480 = vsel %vm1426, %v6448, %v5937
        %v6481 = vsel %vm1426, %v6449, %v5939
        %v6482 = vsel %vm1426, %v6450, %v5941
        %v6483 = vsel %vm1426, %v6451, %v5943
        %v6484 = vsel %vm1426, %v6452, %v5945
        %v6485 = vsel %vm1426, %v6453, %v5947
        %v6486 = vsel %vm1426, %v6454, %v5949
        %v6487 = vsel %vm1426, %v6455, %v5951
        %v6488 = vsel %vm1426, %v6456, %v5953
        %v6489 = vsel %vm1426, %v6457, %v5955
        %v6490 = vsel %vm1426, %v6458, %v5957
        %v6491 = vsel %vm1426, %v6459, %v5959
        %v6492 = vsel %vm1426, %v6460, %v5961
        %v6493 = vsel %vm1426, %v6461, %v5963
        %v6494 = vsel %vm1426, %v6462, %v5965
        %v6495 = vsel %vm1426, %v6463, %v5967
        %v6496 = vsel %vm1426, %v6464, %v5969
        %v6497 = vsel %vm1426, %v6465, %v5971
        %v6498 = vsel %vm1426, %v6466, %v5973
        %v6499 = vsel %vm1426, %v6467, %v5975
        %v6500 = vsel %vm1426, %v6468, %v5977
        %v6501 = vsel %vm1426, %v6469, %v5979
        %v6502 = vsel %vm1426, %v6470, %v5981
        %v6503 = vsel %vm1426, %v6471, %v5983
        %v6504 = vsel %vm1426, %v6472, %v5985
        %v6505 = vsel %vm1426, %v6473, %v5987
        %v6506 = vsel %vm1426, %v6474, %v5989
        %v6507 = vsel %vm1426, %v6475, %v5991
        %v6508 = vsel %vm1426, %v6476, %v5993
        %v6509 = vsel %vm1426, %v6477, %v5995
        %v6510 = vsel %vm1426, %v6478, %v5997
        %v6511 = vsel %vm1426, %v6479, %v5999
        %v6512 = vsel %vm1459, %v6480, %v6113
        %v6513 = vsel %vm1459, %v6481, %v6115
        %v6514 = vsel %vm1459, %v6482, %v6117
        %v6515 = vsel %vm1459, %v6483, %v6119
        %v6516 = vsel %vm1459, %v6484, %v6121
        %v6517 = vsel %vm1459, %v6485, %v6123
        %v6518 = vsel %vm1459, %v6486, %v6125
        %v6519 = vsel %vm1459, %v6487, %v6127
        %v6520 = vsel %vm1459, %v6488, %v6129
        %v6521 = vsel %vm1459, %v6489, %v6131
        %v6522 = vsel %vm1459, %v6490, %v6133
        %v6523 = vsel %vm1459, %v6491, %v6135
        %v6524 = vsel %vm1459, %v6492, %v6137
        %v6525 = vsel %vm1459, %v6493, %v6139
        %v6526 = vsel %vm1459, %v6494, %v6141
        %v6527 = vsel %vm1459, %v6495, %v6143
        %v6528 = vsel %vm1459, %v6496, %v6145
        %v6529 = vsel %vm1459, %v6497, %v6147
        %v6530 = vsel %vm1459, %v6498, %v6149
        %v6531 = vsel %vm1459, %v6499, %v6151
        %v6532 = vsel %vm1459, %v6500, %v6153
        %v6533 = vsel %vm1459, %v6501, %v6155
        %v6534 = vsel %vm1459, %v6502, %v6157
        %v6535 = vsel %vm1459, %v6503, %v6159
        %v6536 = vsel %vm1459, %v6504, %v6161
        %v6537 = vsel %vm1459, %v6505, %v6163
        %v6538 = vsel %vm1459, %v6506, %v6165
        %v6539 = vsel %vm1459, %v6507, %v6167
        %v6540 = vsel %vm1459, %v6508, %v6169
        %v6541 = vsel %vm1459, %v6509, %v6171
        %v6542 = vsel %vm1459, %v6510, %v6173
        %v6543 = vsel %vm1459, %v6511, %v6175
        %v6544 = vsel %vm1492, %v6512, %v6289
        %v6545 = vsel %vm1492, %v6513, %v6291
        %v6546 = vsel %vm1492, %v6514, %v6293
        %v6547 = vsel %vm1492, %v6515, %v6295
        %v6548 = vsel %vm1492, %v6516, %v6297
        %v6549 = vsel %vm1492, %v6517, %v6299
        %v6550 = vsel %vm1492, %v6518, %v6301
        %v6551 = vsel %vm1492, %v6519, %v6303
        %v6552 = vsel %vm1492, %v6520, %v6305
        %v6553 = vsel %vm1492, %v6521, %v6307
        %v6554 = vsel %vm1492, %v6522, %v6309
        %v6555 = vsel %vm1492, %v6523, %v6311
        %v6556 = vsel %vm1492, %v6524, %v6313
        %v6557 = vsel %vm1492, %v6525, %v6315
        %v6558 = vsel %vm1492, %v6526, %v6317
        %v6559 = vsel %vm1492, %v6527, %v6319
        %v6560 = vsel %vm1492, %v6528, %v6321
        %v6561 = vsel %vm1492, %v6529, %v6323
        %v6562 = vsel %vm1492, %v6530, %v6325
        %v6563 = vsel %vm1492, %v6531, %v6327
        %v6564 = vsel %vm1492, %v6532, %v6329
        %v6565 = vsel %vm1492, %v6533, %v6331
        %v6566 = vsel %vm1492, %v6534, %v6333
        %v6567 = vsel %vm1492, %v6535, %v6335
        %v6568 = vsel %vm1492, %v6536, %v6337
        %v6569 = vsel %vm1492, %v6537, %v6339
        %v6570 = vsel %vm1492, %v6538, %v6341
        %v6571 = vsel %vm1492, %v6539, %v6343
        %v6572 = vsel %vm1492, %v6540, %v6345
        %v6573 = vsel %vm1492, %v6541, %v6347
        %v6574 = vsel %vm1492, %v6542, %v6349
        %v6575 = vsel %vm1492, %v6543, %v6351
        %s6576 = scalar_lea.vmem %s1, 72
        %v6577 = vld [vmem:[%s6576] sm:$0xff]
        %v6578 = vld [vmem:[%s6576 + $0x8] sm:$0xff]
        %v6579 = vld [vmem:[%s6576 + $0x10] sm:$0x1f]
        %v6581 = vsel %vm2877, %v6544, 0
        %v6584 = vsel %vm2877, %v6545, 0
        %v6587 = vsel %vm2877, %v6546, 0
        %v6590 = vsel %vm2877, %v6547, 0
        %v6593 = vsel %vm2877, %v6548, 0
        %v6596 = vsel %vm2877, %v6549, 0
        %v6599 = vsel %vm2877, %v6550, 0
        %v6602 = vsel %vm2877, %v6551, 0
        %v6605 = vsel %vm2877, %v6552, 0
        %v6608 = vsel %vm2877, %v6553, 0
        %v6611 = vsel %vm2877, %v6554, 0
        %v6614 = vsel %vm2877, %v6555, 0
        %v6617 = vsel %vm2877, %v6556, 0
        %v6620 = vsel %vm2877, %v6557, 0
        %v6623 = vsel %vm2877, %v6558, 0
        %v6626 = vsel %vm2877, %v6559, 0
        %v6629 = vsel %vm2877, %v6560, 0
        %v6632 = vsel %vm2877, %v6561, 0
        %v6635 = vsel %vm2877, %v6562, 0
        %v6638 = vsel %vm2877, %v6563, 0
        %v6641 = vsel %vm2877, %v6564, 0
        %v6644 = vsel %vm2877, %v6565, 0
        %v6647 = vsel %vm2877, %v6566, 0
        %v6650 = vsel %vm2877, %v6567, 0
        %v6653 = vsel %vm2877, %v6568, 0
        %v6656 = vsel %vm2877, %v6569, 0
        %v6659 = vsel %vm2877, %v6570, 0
        %v6662 = vsel %vm2877, %v6571, 0
        %v6665 = vsel %vm2877, %v6572, 0
        %v6668 = vsel %vm2877, %v6573, 0
        %v6671 = vsel %vm2877, %v6574, 0
        %v6674 = vsel %vm2877, %v6575, 0
        %v6677 = vsel %vm619, %v6579, 0
        %6679 = vmatprep.subr.mxu0 0.0
        %6680 = vmatpush1.msra.mxu0 0.0
        %6681 = vmatprep.subr.mxu0 0.0
        %6682 = vmatpush1.msra.mxu0 0.0
        %6683 = vmatprep.subr.mxu0 0.0
        %6684 = vmatpush1.msra.mxu0 0.0
        %6685 = vmatprep.subr.mxu0 0.0
        %6686 = vmatpush1.msra.mxu0 0.0
        %6687 = vmatprep.subr.mxu0 0.0
        %6688 = vmatpush1.msra.mxu0 0.0
        %6689 = vmatprep.subr.mxu0 0.0
        %6690 = vmatpush1.msra.mxu0 0.0
        %6691 = vmatprep.subr.mxu0 0.0
        %6692 = vmatpush1.msra.mxu0 0.0
        %6693 = vmatprep.subr.mxu0 0.0
        %6694 = vmatpush1.msra.mxu0 0.0
        %6695 = vmatprep.subr.mxu0 0.0
        %6696 = vmatpush1.msra.mxu0 0.0
        %6697 = vmatprep.subr.mxu0 0.0
        %6698 = vmatpush1.msra.mxu0 0.0
        %6699 = vmatprep.subr.mxu0 0.0
        %6700 = vmatpush1.msra.mxu0 0.0
        %6701 = vmatprep.subr.mxu0 0.0
        %6702 = vmatpush1.msra.mxu0 0.0
        %6703 = vmatprep.subr.mxu0 0.0
        %6704 = vmatpush1.msra.mxu0 0.0
        %6705 = vmatprep.subr.mxu0 0.0
        %6706 = vmatpush1.msra.mxu0 %v6677
        %6707 = vmatprep.subr.mxu0 0.0
        %6708 = vmatpush1.msra.mxu0 %v6578
        %6709 = vmatprep.subr.mxu0 0.0
        %6710 = vmatpush1.msra.mxu0 %v6577
        %6711 = vmatprep.subr.mxu0 0.0
        %6712 = vmatpush2.msra.mxu0 0.0
        %6713 = vmatprep.subr.mxu0 0.0
        %6714 = vmatpush2.msra.mxu0 0.0
        %6715 = vmatprep.subr.mxu0 0.0
        %6716 = vmatpush2.msra.mxu0 0.0
        %6717 = vmatprep.subr.mxu0 0.0
        %6718 = vmatpush2.msra.mxu0 0.0
        %6719 = vmatprep.subr.mxu0 0.0
        %6720 = vmatpush2.msra.mxu0 0.0
        %6721 = vmatprep.subr.mxu0 0.0
        %6722 = vmatpush2.msra.mxu0 0.0
        %6723 = vmatprep.subr.mxu0 0.0
        %6724 = vmatpush2.msra.mxu0 0.0
        %6725 = vmatprep.subr.mxu0 0.0
        %6726 = vmatpush2.msra.mxu0 0.0
        %6727 = vmatprep.subr.mxu0 0.0
        %6728 = vmatpush2.msra.mxu0 0.0
        %6729 = vmatprep.subr.mxu0 0.0
        %6730 = vmatpush2.msra.mxu0 0.0
        %6731 = vmatprep.subr.mxu0 0.0
        %6732 = vmatpush2.msra.mxu0 0.0
        %6733 = vmatprep.subr.mxu0 0.0
        %6734 = vmatpush2.msra.mxu0 0.0
        %6735 = vmatprep.subr.mxu0 0.0
        %6736 = vmatpush2.msra.mxu0 0.0
        %6737 = vmatprep.subr.mxu0 0.0
        %6738 = vmatpush2.msra.mxu0 0.0
        %6739 = vmatprep.subr.mxu0 0.0
        %6740 = vmatpush2.msra.mxu0 0.0
        %6741 = vmatprep.subr.mxu0 0.0
        %6742 = vmatpush2.msra.mxu0 0.0
        %6743 = vmatprep.mubr.f32.mxu0 0.0
        %6744 = vmatmul.mubr.f32.gmra.mxu0 %v6581
        %v6745 = vpop.f32.mrf.mxu0
        %v6746 = vadd.f32 0.0, %v6745
        %v6747 = vpop.f32.mrf.mxu0
        %6748 = vmatprep.mubr.f32.mxu0 0.0
        %6749 = vmatmul.mubr.f32.gmra.mxu0 %v6584
        %v6750 = vpop.f32.mrf.mxu0
        %v6751 = vadd.f32 0.0, %v6750
        %v6752 = vpop.f32.mrf.mxu0
        %6753 = vmatprep.mubr.f32.mxu0 0.0
        %6754 = vmatmul.mubr.f32.gmra.mxu0 %v6587
        %v6755 = vpop.f32.mrf.mxu0
        %v6756 = vadd.f32 0.0, %v6755
        %v6757 = vpop.f32.mrf.mxu0
        %6758 = vmatprep.mubr.f32.mxu0 0.0
        %6759 = vmatmul.mubr.f32.gmra.mxu0 %v6590
        %v6760 = vpop.f32.mrf.mxu0
        %v6761 = vadd.f32 0.0, %v6760
        %v6762 = vpop.f32.mrf.mxu0
        %6763 = vmatprep.mubr.f32.mxu0 0.0
        %6764 = vmatmul.mubr.f32.gmra.mxu0 %v6593
        %v6765 = vpop.f32.mrf.mxu0
        %v6766 = vadd.f32 0.0, %v6765
        %v6767 = vpop.f32.mrf.mxu0
        %6768 = vmatprep.mubr.f32.mxu0 0.0
        %6769 = vmatmul.mubr.f32.gmra.mxu0 %v6596
        %v6770 = vpop.f32.mrf.mxu0
        %v6771 = vadd.f32 0.0, %v6770
        %v6772 = vpop.f32.mrf.mxu0
        %6773 = vmatprep.mubr.f32.mxu0 0.0
        %6774 = vmatmul.mubr.f32.gmra.mxu0 %v6599
        %v6775 = vpop.f32.mrf.mxu0
        %v6776 = vadd.f32 0.0, %v6775
        %v6777 = vpop.f32.mrf.mxu0
        %6778 = vmatprep.mubr.f32.mxu0 0.0
        %6779 = vmatmul.mubr.f32.gmra.mxu0 %v6602
        %v6780 = vpop.f32.mrf.mxu0
        %v6781 = vadd.f32 0.0, %v6780
        %v6782 = vpop.f32.mrf.mxu0
        %6783 = vmatprep.mubr.f32.mxu0 0.0
        %6784 = vmatmul.mubr.f32.gmra.mxu0 %v6605
        %v6785 = vpop.f32.mrf.mxu0
        %v6786 = vadd.f32 0.0, %v6785
        %v6787 = vpop.f32.mrf.mxu0
        %6788 = vmatprep.mubr.f32.mxu0 0.0
        %6789 = vmatmul.mubr.f32.gmra.mxu0 %v6608
        %v6790 = vpop.f32.mrf.mxu0
        %v6791 = vadd.f32 0.0, %v6790
        %v6792 = vpop.f32.mrf.mxu0
        %6793 = vmatprep.mubr.f32.mxu0 0.0
        %6794 = vmatmul.mubr.f32.gmra.mxu0 %v6611
        %v6795 = vpop.f32.mrf.mxu0
        %v6796 = vadd.f32 0.0, %v6795
        %v6797 = vpop.f32.mrf.mxu0
        %6798 = vmatprep.mubr.f32.mxu0 0.0
        %6799 = vmatmul.mubr.f32.gmra.mxu0 %v6614
        %v6800 = vpop.f32.mrf.mxu0
        %v6801 = vadd.f32 0.0, %v6800
        %v6802 = vpop.f32.mrf.mxu0
        %6803 = vmatprep.mubr.f32.mxu0 0.0
        %6804 = vmatmul.mubr.f32.gmra.mxu0 %v6617
        %v6805 = vpop.f32.mrf.mxu0
        %v6806 = vadd.f32 0.0, %v6805
        %v6807 = vpop.f32.mrf.mxu0
        %6808 = vmatprep.mubr.f32.mxu0 0.0
        %6809 = vmatmul.mubr.f32.gmra.mxu0 %v6620
        %v6810 = vpop.f32.mrf.mxu0
        %v6811 = vadd.f32 0.0, %v6810
        %v6812 = vpop.f32.mrf.mxu0
        %6813 = vmatprep.mubr.f32.mxu0 0.0
        %6814 = vmatmul.mubr.f32.gmra.mxu0 %v6623
        %v6815 = vpop.f32.mrf.mxu0
        %v6816 = vadd.f32 0.0, %v6815
        %v6817 = vpop.f32.mrf.mxu0
        %6818 = vmatprep.mubr.f32.mxu0 0.0
        %6819 = vmatmul.mubr.f32.gmra.mxu0 %v6626
        %v6820 = vpop.f32.mrf.mxu0
        %v6821 = vadd.f32 0.0, %v6820
        %v6822 = vpop.f32.mrf.mxu0
        %6823 = vmatprep.mubr.f32.mxu0 0.0
        %6824 = vmatmul.mubr.f32.gmra.mxu0 %v6629
        %v6825 = vpop.f32.mrf.mxu0
        %v6826 = vadd.f32 0.0, %v6825
        %v6827 = vpop.f32.mrf.mxu0
        %6828 = vmatprep.mubr.f32.mxu0 0.0
        %6829 = vmatmul.mubr.f32.gmra.mxu0 %v6632
        %v6830 = vpop.f32.mrf.mxu0
        %v6831 = vadd.f32 0.0, %v6830
        %v6832 = vpop.f32.mrf.mxu0
        %6833 = vmatprep.mubr.f32.mxu0 0.0
        %6834 = vmatmul.mubr.f32.gmra.mxu0 %v6635
        %v6835 = vpop.f32.mrf.mxu0
        %v6836 = vadd.f32 0.0, %v6835
        %v6837 = vpop.f32.mrf.mxu0
        %6838 = vmatprep.mubr.f32.mxu0 0.0
        %6839 = vmatmul.mubr.f32.gmra.mxu0 %v6638
        %v6840 = vpop.f32.mrf.mxu0
        %v6841 = vadd.f32 0.0, %v6840
        %v6842 = vpop.f32.mrf.mxu0
        %6843 = vmatprep.mubr.f32.mxu0 0.0
        %6844 = vmatmul.mubr.f32.gmra.mxu0 %v6641
        %v6845 = vpop.f32.mrf.mxu0
        %v6846 = vadd.f32 0.0, %v6845
        %v6847 = vpop.f32.mrf.mxu0
        %6848 = vmatprep.mubr.f32.mxu0 0.0
        %6849 = vmatmul.mubr.f32.gmra.mxu0 %v6644
        %v6850 = vpop.f32.mrf.mxu0
        %v6851 = vadd.f32 0.0, %v6850
        %v6852 = vpop.f32.mrf.mxu0
        %6853 = vmatprep.mubr.f32.mxu0 0.0
        %6854 = vmatmul.mubr.f32.gmra.mxu0 %v6647
        %v6855 = vpop.f32.mrf.mxu0
        %v6856 = vadd.f32 0.0, %v6855
        %v6857 = vpop.f32.mrf.mxu0
        %6858 = vmatprep.mubr.f32.mxu0 0.0
        %6859 = vmatmul.mubr.f32.gmra.mxu0 %v6650
        %v6860 = vpop.f32.mrf.mxu0
        %v6861 = vadd.f32 0.0, %v6860
        %v6862 = vpop.f32.mrf.mxu0
        %6863 = vmatprep.mubr.f32.mxu0 0.0
        %6864 = vmatmul.mubr.f32.gmra.mxu0 %v6653
        %v6865 = vpop.f32.mrf.mxu0
        %v6866 = vadd.f32 0.0, %v6865
        %v6867 = vpop.f32.mrf.mxu0
        %6868 = vmatprep.mubr.f32.mxu0 0.0
        %6869 = vmatmul.mubr.f32.gmra.mxu0 %v6656
        %v6870 = vpop.f32.mrf.mxu0
        %v6871 = vadd.f32 0.0, %v6870
        %v6872 = vpop.f32.mrf.mxu0
        %6873 = vmatprep.mubr.f32.mxu0 0.0
        %6874 = vmatmul.mubr.f32.gmra.mxu0 %v6659
        %v6875 = vpop.f32.mrf.mxu0
        %v6876 = vadd.f32 0.0, %v6875
        %v6877 = vpop.f32.mrf.mxu0
        %6878 = vmatprep.mubr.f32.mxu0 0.0
        %6879 = vmatmul.mubr.f32.gmra.mxu0 %v6662
        %v6880 = vpop.f32.mrf.mxu0
        %v6881 = vadd.f32 0.0, %v6880
        %v6882 = vpop.f32.mrf.mxu0
        %6883 = vmatprep.mubr.f32.mxu0 0.0
        %6884 = vmatmul.mubr.f32.gmra.mxu0 %v6665
        %v6885 = vpop.f32.mrf.mxu0
        %v6886 = vadd.f32 0.0, %v6885
        %v6887 = vpop.f32.mrf.mxu0
        %6888 = vmatprep.mubr.f32.mxu0 0.0
        %6889 = vmatmul.mubr.f32.gmra.mxu0 %v6668
        %v6890 = vpop.f32.mrf.mxu0
        %v6891 = vadd.f32 0.0, %v6890
        %v6892 = vpop.f32.mrf.mxu0
        %6893 = vmatprep.mubr.f32.mxu0 0.0
        %6894 = vmatmul.mubr.f32.gmra.mxu0 %v6671
        %v6895 = vpop.f32.mrf.mxu0
        %v6896 = vadd.f32 0.0, %v6895
        %v6897 = vpop.f32.mrf.mxu0
        %6898 = vmatprep.mubr.f32.mxu0 0.0
        %6899 = vmatmul.mubr.f32.gmra.mxu0 %v6674
        %v6900 = vpop.f32.mrf.mxu0
        %v6901 = vadd.f32 0.0, %v6900
        %v6902 = vpop.f32.mrf.mxu0
        %6903 = vdwg.mxu0
        %v6904 = vadd.f32 %v5199, %v6746
        %v6905 = vadd.f32 %v5200, %v6751
        %v6906 = vadd.f32 %v5201, %v6756
        %v6907 = vadd.f32 %v5202, %v6761
        %v6908 = vadd.f32 %v5203, %v6766
        %v6909 = vadd.f32 %v5204, %v6771
        %v6910 = vadd.f32 %v5205, %v6776
        %v6911 = vadd.f32 %v5206, %v6781
        %v6912 = vadd.f32 %v5207, %v6786
        %v6913 = vadd.f32 %v5208, %v6791
        %v6914 = vadd.f32 %v5209, %v6796
        %v6915 = vadd.f32 %v5210, %v6801
        %v6916 = vadd.f32 %v5211, %v6806
        %v6917 = vadd.f32 %v5212, %v6811
        %v6918 = vadd.f32 %v5213, %v6816
        %v6919 = vadd.f32 %v5214, %v6821
        %v6920 = vadd.f32 %v5215, %v6826
        %v6921 = vadd.f32 %v5216, %v6831
        %v6922 = vadd.f32 %v5217, %v6836
        %v6923 = vadd.f32 %v5218, %v6841
        %v6924 = vadd.f32 %v5219, %v6846
        %v6925 = vadd.f32 %v5220, %v6851
        %v6926 = vadd.f32 %v5221, %v6856
        %v6927 = vadd.f32 %v5222, %v6861
        %v6928 = vadd.f32 %v5223, %v6866
        %v6929 = vadd.f32 %v5224, %v6871
        %v6930 = vadd.f32 %v5225, %v6876
        %v6931 = vadd.f32 %v5226, %v6881
        %v6932 = vadd.f32 %v5227, %v6886
        %v6933 = vadd.f32 %v5228, %v6891
        %v6934 = vadd.f32 %v5229, %v6896
        %v6935 = vadd.f32 %v5230, %v6901
        %s6936 = scalar_lea.vmem %s168, 96
        %v6937 = vld [vmem:[%s6936] sm:$0xff]
        %v6938 = vld [vmem:[%s6936 + $0x8] sm:$0xff]
        %v6939 = vld [vmem:[%s6936 + $0x10] sm:$0x3f]
        %v6940 = vld [vmem:[%s6936 + $0x18] sm:$0xff]
        %v6941 = vld [vmem:[%s6936 + $0x20] sm:$0xff]
        %v6942 = vld [vmem:[%s6936 + $0x28] sm:$0x3f]
        %v6943 = vld [vmem:[%s6936 + $0x30] sm:$0xff]
        %v6944 = vld [vmem:[%s6936 + $0x38] sm:$0xff]
        %v6945 = vld [vmem:[%s6936 + $0x40] sm:$0x3f]
        %v6946 = vld [vmem:[%s6936 + $0x48] sm:$0xff]
        %v6947 = vld [vmem:[%s6936 + $0x50] sm:$0xff]
        %v6948 = vld [vmem:[%s6936 + $0x58] sm:$0x3f]
        %v6949 = vld [vmem:[%s6936 + $0x60] sm:$0xff]
        %v6950 = vld [vmem:[%s6936 + $0x68] sm:$0xff]
        %v6951 = vld [vmem:[%s6936 + $0x70] sm:$0x3f]
        %v6952 = vld [vmem:[%s6936 + $0x78] sm:$0xff]
        %v6953 = vld [vmem:[%s6936 + $0x80] sm:$0xff]
        %v6954 = vld [vmem:[%s6936 + $0x88] sm:$0x3f]
        %v6955 = vld [vmem:[%s6936 + $0x90] sm:$0xff]
        %v6956 = vld [vmem:[%s6936 + $0x98] sm:$0xff]
        %v6957 = vld [vmem:[%s6936 + $0xa0] sm:$0x3f]
        %v6958 = vld [vmem:[%s6936 + $0xa8] sm:$0xff]
        %v6959 = vld [vmem:[%s6936 + $0xb0] sm:$0xff]
        %v6960 = vld [vmem:[%s6936 + $0xb8] sm:$0x3f]
        %v6961 = vld [vmem:[%s6936 + $0xc0] sm:$0xff]
        %v6962 = vld [vmem:[%s6936 + $0xc8] sm:$0xff]
        %v6963 = vld [vmem:[%s6936 + $0xd0] sm:$0x3f]
        %v6964 = vld [vmem:[%s6936 + $0xd8] sm:$0xff]
        %v6965 = vld [vmem:[%s6936 + $0xe0] sm:$0xff]
        %v6966 = vld [vmem:[%s6936 + $0xe8] sm:$0x3f]
        %v6967 = vld [vmem:[%s6936 + $0xf0] sm:$0xff]
        %v6968 = vld [vmem:[%s6936 + $0xf8] sm:$0xff]
        %v6969 = vld [vmem:[%s6936 + $0x100] sm:$0x3f]
        %v6970 = vld [vmem:[%s6936 + $0x108] sm:$0xff]
        %v6971 = vld [vmem:[%s6936 + $0x110] sm:$0xff]
        %v6972 = vld [vmem:[%s6936 + $0x118] sm:$0x3f]
        %v6973 = vld [vmem:[%s6936 + $0x120] sm:$0xff]
        %v6974 = vld [vmem:[%s6936 + $0x128] sm:$0xff]
        %v6975 = vld [vmem:[%s6936 + $0x130] sm:$0x3f]
        %v6976 = vld [vmem:[%s6936 + $0x138] sm:$0xff]
        %v6977 = vld [vmem:[%s6936 + $0x140] sm:$0xff]
        %v6978 = vld [vmem:[%s6936 + $0x148] sm:$0x3f]
        %v6979 = vld [vmem:[%s6936 + $0x150] sm:$0xff]
        %v6980 = vld [vmem:[%s6936 + $0x158] sm:$0xff]
        %v6981 = vld [vmem:[%s6936 + $0x160] sm:$0x3f]
        %v6982 = vld [vmem:[%s6936 + $0x168] sm:$0xff]
        %v6983 = vld [vmem:[%s6936 + $0x170] sm:$0xff]
        %v6984 = vld [vmem:[%s6936 + $0x178] sm:$0x3f]
        %v7033 = vrot.slane %v6937, 1
        %v7034 = vrot.slane %v6938, 1
        %v7035 = vsel %vm265, %v7033, %v7034
        %v7036 = vrot.slane %v6939, 1
        %v7037 = vsel %vm265, %v7034, %v7036
        %v7038 = vrot.slane %v6940, 1
        %v7039 = vrot.slane %v6941, 1
        %v7040 = vsel %vm265, %v7038, %v7039
        %v7041 = vrot.slane %v6942, 1
        %v7042 = vsel %vm265, %v7039, %v7041
        %v7043 = vrot.slane %v6943, 1
        %v7044 = vrot.slane %v6944, 1
        %v7045 = vsel %vm265, %v7043, %v7044
        %v7046 = vrot.slane %v6945, 1
        %v7047 = vsel %vm265, %v7044, %v7046
        %v7048 = vrot.slane %v6946, 1
        %v7049 = vrot.slane %v6947, 1
        %v7050 = vsel %vm265, %v7048, %v7049
        %v7051 = vrot.slane %v6948, 1
        %v7052 = vsel %vm265, %v7049, %v7051
        %v7053 = vrot.slane %v6949, 1
        %v7054 = vrot.slane %v6950, 1
        %v7055 = vsel %vm265, %v7053, %v7054
        %v7056 = vrot.slane %v6951, 1
        %v7057 = vsel %vm265, %v7054, %v7056
        %v7058 = vrot.slane %v6952, 1
        %v7059 = vrot.slane %v6953, 1
        %v7060 = vsel %vm265, %v7058, %v7059
        %v7061 = vrot.slane %v6954, 1
        %v7062 = vsel %vm265, %v7059, %v7061
        %v7063 = vrot.slane %v6955, 1
        %v7064 = vrot.slane %v6956, 1
        %v7065 = vsel %vm265, %v7063, %v7064
        %v7066 = vrot.slane %v6957, 1
        %v7067 = vsel %vm265, %v7064, %v7066
        %v7068 = vrot.slane %v6958, 1
        %v7069 = vrot.slane %v6959, 1
        %v7070 = vsel %vm265, %v7068, %v7069
        %v7071 = vrot.slane %v6960, 1
        %v7072 = vsel %vm265, %v7069, %v7071
        %v7073 = vrot.slane %v6961, 1
        %v7074 = vrot.slane %v6962, 1
        %v7075 = vsel %vm265, %v7073, %v7074
        %v7076 = vrot.slane %v6963, 1
        %v7077 = vsel %vm265, %v7074, %v7076
        %v7078 = vrot.slane %v6964, 1
        %v7079 = vrot.slane %v6965, 1
        %v7080 = vsel %vm265, %v7078, %v7079
        %v7081 = vrot.slane %v6966, 1
        %v7082 = vsel %vm265, %v7079, %v7081
        %v7083 = vrot.slane %v6967, 1
        %v7084 = vrot.slane %v6968, 1
        %v7085 = vsel %vm265, %v7083, %v7084
        %v7086 = vrot.slane %v6969, 1
        %v7087 = vsel %vm265, %v7084, %v7086
        %v7088 = vrot.slane %v6970, 1
        %v7089 = vrot.slane %v6971, 1
        %v7090 = vsel %vm265, %v7088, %v7089
        %v7091 = vrot.slane %v6972, 1
        %v7092 = vsel %vm265, %v7089, %v7091
        %v7093 = vrot.slane %v6973, 1
        %v7094 = vrot.slane %v6974, 1
        %v7095 = vsel %vm265, %v7093, %v7094
        %v7096 = vrot.slane %v6975, 1
        %v7097 = vsel %vm265, %v7094, %v7096
        %v7098 = vrot.slane %v6976, 1
        %v7099 = vrot.slane %v6977, 1
        %v7100 = vsel %vm265, %v7098, %v7099
        %v7101 = vrot.slane %v6978, 1
        %v7102 = vsel %vm265, %v7099, %v7101
        %v7103 = vrot.slane %v6979, 1
        %v7104 = vrot.slane %v6980, 1
        %v7105 = vsel %vm265, %v7103, %v7104
        %v7106 = vrot.slane %v6981, 1
        %v7107 = vsel %vm265, %v7104, %v7106
        %v7108 = vrot.slane %v6982, 1
        %v7109 = vrot.slane %v6983, 1
        %v7110 = vsel %vm265, %v7108, %v7109
        %v7111 = vrot.slane %v6984, 1
        %v7112 = vsel %vm265, %v7109, %v7111
        %7113 = vrot.lane.b32.xlu0 %v7035, 3
        %v7114 = vpop.permute.xlu0 %7113
        %7115 = vrot.lane.b32.xlu0 %v7037, 3
        %v7116 = vpop.permute.xlu0 %7115
        %7117 = vrot.lane.b32.xlu0 %v7040, 3
        %v7118 = vpop.permute.xlu0 %7117
        %7119 = vrot.lane.b32.xlu0 %v7042, 3
        %v7120 = vpop.permute.xlu0 %7119
        %7121 = vrot.lane.b32.xlu0 %v7045, 3
        %v7122 = vpop.permute.xlu0 %7121
        %7123 = vrot.lane.b32.xlu0 %v7047, 3
        %v7124 = vpop.permute.xlu0 %7123
        %7125 = vrot.lane.b32.xlu0 %v7050, 3
        %v7126 = vpop.permute.xlu0 %7125
        %7127 = vrot.lane.b32.xlu0 %v7052, 3
        %v7128 = vpop.permute.xlu0 %7127
        %7129 = vrot.lane.b32.xlu0 %v7055, 3
        %v7130 = vpop.permute.xlu0 %7129
        %7131 = vrot.lane.b32.xlu0 %v7057, 3
        %v7132 = vpop.permute.xlu0 %7131
        %7133 = vrot.lane.b32.xlu0 %v7060, 3
        %v7134 = vpop.permute.xlu0 %7133
        %7135 = vrot.lane.b32.xlu0 %v7062, 3
        %v7136 = vpop.permute.xlu0 %7135
        %7137 = vrot.lane.b32.xlu0 %v7065, 3
        %v7138 = vpop.permute.xlu0 %7137
        %7139 = vrot.lane.b32.xlu0 %v7067, 3
        %v7140 = vpop.permute.xlu0 %7139
        %7141 = vrot.lane.b32.xlu0 %v7070, 3
        %v7142 = vpop.permute.xlu0 %7141
        %7143 = vrot.lane.b32.xlu0 %v7072, 3
        %v7144 = vpop.permute.xlu0 %7143
        %7145 = vrot.lane.b32.xlu0 %v7075, 3
        %v7146 = vpop.permute.xlu0 %7145
        %7147 = vrot.lane.b32.xlu0 %v7077, 3
        %v7148 = vpop.permute.xlu0 %7147
        %7149 = vrot.lane.b32.xlu0 %v7080, 3
        %v7150 = vpop.permute.xlu0 %7149
        %7151 = vrot.lane.b32.xlu0 %v7082, 3
        %v7152 = vpop.permute.xlu0 %7151
        %7153 = vrot.lane.b32.xlu0 %v7085, 3
        %v7154 = vpop.permute.xlu0 %7153
        %7155 = vrot.lane.b32.xlu0 %v7087, 3
        %v7156 = vpop.permute.xlu0 %7155
        %7157 = vrot.lane.b32.xlu0 %v7090, 3
        %v7158 = vpop.permute.xlu0 %7157
        %7159 = vrot.lane.b32.xlu0 %v7092, 3
        %v7160 = vpop.permute.xlu0 %7159
        %7161 = vrot.lane.b32.xlu0 %v7095, 3
        %v7162 = vpop.permute.xlu0 %7161
        %7163 = vrot.lane.b32.xlu0 %v7097, 3
        %v7164 = vpop.permute.xlu0 %7163
        %7165 = vrot.lane.b32.xlu0 %v7100, 3
        %v7166 = vpop.permute.xlu0 %7165
        %7167 = vrot.lane.b32.xlu0 %v7102, 3
        %v7168 = vpop.permute.xlu0 %7167
        %7169 = vrot.lane.b32.xlu0 %v7105, 3
        %v7170 = vpop.permute.xlu0 %7169
        %7171 = vrot.lane.b32.xlu0 %v7107, 3
        %v7172 = vpop.permute.xlu0 %7171
        %7173 = vrot.lane.b32.xlu0 %v7110, 3
        %v7174 = vpop.permute.xlu0 %7173
        %7175 = vrot.lane.b32.xlu0 %v7112, 3
        %v7176 = vpop.permute.xlu0 %7175
        %v7209 = vrot.slane %v6937, 2
        %v7210 = vrot.slane %v6938, 2
        %v7211 = vsel %vm442, %v7209, %v7210
        %v7212 = vrot.slane %v6939, 2
        %v7213 = vsel %vm442, %v7210, %v7212
        %v7214 = vrot.slane %v6940, 2
        %v7215 = vrot.slane %v6941, 2
        %v7216 = vsel %vm442, %v7214, %v7215
        %v7217 = vrot.slane %v6942, 2
        %v7218 = vsel %vm442, %v7215, %v7217
        %v7219 = vrot.slane %v6943, 2
        %v7220 = vrot.slane %v6944, 2
        %v7221 = vsel %vm442, %v7219, %v7220
        %v7222 = vrot.slane %v6945, 2
        %v7223 = vsel %vm442, %v7220, %v7222
        %v7224 = vrot.slane %v6946, 2
        %v7225 = vrot.slane %v6947, 2
        %v7226 = vsel %vm442, %v7224, %v7225
        %v7227 = vrot.slane %v6948, 2
        %v7228 = vsel %vm442, %v7225, %v7227
        %v7229 = vrot.slane %v6949, 2
        %v7230 = vrot.slane %v6950, 2
        %v7231 = vsel %vm442, %v7229, %v7230
        %v7232 = vrot.slane %v6951, 2
        %v7233 = vsel %vm442, %v7230, %v7232
        %v7234 = vrot.slane %v6952, 2
        %v7235 = vrot.slane %v6953, 2
        %v7236 = vsel %vm442, %v7234, %v7235
        %v7237 = vrot.slane %v6954, 2
        %v7238 = vsel %vm442, %v7235, %v7237
        %v7239 = vrot.slane %v6955, 2
        %v7240 = vrot.slane %v6956, 2
        %v7241 = vsel %vm442, %v7239, %v7240
        %v7242 = vrot.slane %v6957, 2
        %v7243 = vsel %vm442, %v7240, %v7242
        %v7244 = vrot.slane %v6958, 2
        %v7245 = vrot.slane %v6959, 2
        %v7246 = vsel %vm442, %v7244, %v7245
        %v7247 = vrot.slane %v6960, 2
        %v7248 = vsel %vm442, %v7245, %v7247
        %v7249 = vrot.slane %v6961, 2
        %v7250 = vrot.slane %v6962, 2
        %v7251 = vsel %vm442, %v7249, %v7250
        %v7252 = vrot.slane %v6963, 2
        %v7253 = vsel %vm442, %v7250, %v7252
        %v7254 = vrot.slane %v6964, 2
        %v7255 = vrot.slane %v6965, 2
        %v7256 = vsel %vm442, %v7254, %v7255
        %v7257 = vrot.slane %v6966, 2
        %v7258 = vsel %vm442, %v7255, %v7257
        %v7259 = vrot.slane %v6967, 2
        %v7260 = vrot.slane %v6968, 2
        %v7261 = vsel %vm442, %v7259, %v7260
        %v7262 = vrot.slane %v6969, 2
        %v7263 = vsel %vm442, %v7260, %v7262
        %v7264 = vrot.slane %v6970, 2
        %v7265 = vrot.slane %v6971, 2
        %v7266 = vsel %vm442, %v7264, %v7265
        %v7267 = vrot.slane %v6972, 2
        %v7268 = vsel %vm442, %v7265, %v7267
        %v7269 = vrot.slane %v6973, 2
        %v7270 = vrot.slane %v6974, 2
        %v7271 = vsel %vm442, %v7269, %v7270
        %v7272 = vrot.slane %v6975, 2
        %v7273 = vsel %vm442, %v7270, %v7272
        %v7274 = vrot.slane %v6976, 2
        %v7275 = vrot.slane %v6977, 2
        %v7276 = vsel %vm442, %v7274, %v7275
        %v7277 = vrot.slane %v6978, 2
        %v7278 = vsel %vm442, %v7275, %v7277
        %v7279 = vrot.slane %v6979, 2
        %v7280 = vrot.slane %v6980, 2
        %v7281 = vsel %vm442, %v7279, %v7280
        %v7282 = vrot.slane %v6981, 2
        %v7283 = vsel %vm442, %v7280, %v7282
        %v7284 = vrot.slane %v6982, 2
        %v7285 = vrot.slane %v6983, 2
        %v7286 = vsel %vm442, %v7284, %v7285
        %v7287 = vrot.slane %v6984, 2
        %v7288 = vsel %vm442, %v7285, %v7287
        %7289 = vrot.lane.b32.xlu0 %v7211, 6
        %v7290 = vpop.permute.xlu0 %7289
        %7291 = vrot.lane.b32.xlu0 %v7213, 6
        %v7292 = vpop.permute.xlu0 %7291
        %7293 = vrot.lane.b32.xlu0 %v7216, 6
        %v7294 = vpop.permute.xlu0 %7293
        %7295 = vrot.lane.b32.xlu0 %v7218, 6
        %v7296 = vpop.permute.xlu0 %7295
        %7297 = vrot.lane.b32.xlu0 %v7221, 6
        %v7298 = vpop.permute.xlu0 %7297
        %7299 = vrot.lane.b32.xlu0 %v7223, 6
        %v7300 = vpop.permute.xlu0 %7299
        %7301 = vrot.lane.b32.xlu0 %v7226, 6
        %v7302 = vpop.permute.xlu0 %7301
        %7303 = vrot.lane.b32.xlu0 %v7228, 6
        %v7304 = vpop.permute.xlu0 %7303
        %7305 = vrot.lane.b32.xlu0 %v7231, 6
        %v7306 = vpop.permute.xlu0 %7305
        %7307 = vrot.lane.b32.xlu0 %v7233, 6
        %v7308 = vpop.permute.xlu0 %7307
        %7309 = vrot.lane.b32.xlu0 %v7236, 6
        %v7310 = vpop.permute.xlu0 %7309
        %7311 = vrot.lane.b32.xlu0 %v7238, 6
        %v7312 = vpop.permute.xlu0 %7311
        %7313 = vrot.lane.b32.xlu0 %v7241, 6
        %v7314 = vpop.permute.xlu0 %7313
        %7315 = vrot.lane.b32.xlu0 %v7243, 6
        %v7316 = vpop.permute.xlu0 %7315
        %7317 = vrot.lane.b32.xlu0 %v7246, 6
        %v7318 = vpop.permute.xlu0 %7317
        %7319 = vrot.lane.b32.xlu0 %v7248, 6
        %v7320 = vpop.permute.xlu0 %7319
        %7321 = vrot.lane.b32.xlu0 %v7251, 6
        %v7322 = vpop.permute.xlu0 %7321
        %7323 = vrot.lane.b32.xlu0 %v7253, 6
        %v7324 = vpop.permute.xlu0 %7323
        %7325 = vrot.lane.b32.xlu0 %v7256, 6
        %v7326 = vpop.permute.xlu0 %7325
        %7327 = vrot.lane.b32.xlu0 %v7258, 6
        %v7328 = vpop.permute.xlu0 %7327
        %7329 = vrot.lane.b32.xlu0 %v7261, 6
        %v7330 = vpop.permute.xlu0 %7329
        %7331 = vrot.lane.b32.xlu0 %v7263, 6
        %v7332 = vpop.permute.xlu0 %7331
        %7333 = vrot.lane.b32.xlu0 %v7266, 6
        %v7334 = vpop.permute.xlu0 %7333
        %7335 = vrot.lane.b32.xlu0 %v7268, 6
        %v7336 = vpop.permute.xlu0 %7335
        %7337 = vrot.lane.b32.xlu0 %v7271, 6
        %v7338 = vpop.permute.xlu0 %7337
        %7339 = vrot.lane.b32.xlu0 %v7273, 6
        %v7340 = vpop.permute.xlu0 %7339
        %7341 = vrot.lane.b32.xlu0 %v7276, 6
        %v7342 = vpop.permute.xlu0 %7341
        %7343 = vrot.lane.b32.xlu0 %v7278, 6
        %v7344 = vpop.permute.xlu0 %7343
        %7345 = vrot.lane.b32.xlu0 %v7281, 6
        %v7346 = vpop.permute.xlu0 %7345
        %7347 = vrot.lane.b32.xlu0 %v7283, 6
        %v7348 = vpop.permute.xlu0 %7347
        %7349 = vrot.lane.b32.xlu0 %v7286, 6
        %v7350 = vpop.permute.xlu0 %7349
        %7351 = vrot.lane.b32.xlu0 %v7288, 6
        %v7352 = vpop.permute.xlu0 %7351
        %v7385 = vrot.slane %v6937, 3
        %v7386 = vrot.slane %v6938, 3
        %v7387 = vsel %vm619, %v7385, %v7386
        %v7388 = vrot.slane %v6939, 3
        %v7389 = vsel %vm619, %v7386, %v7388
        %v7390 = vrot.slane %v6940, 3
        %v7391 = vrot.slane %v6941, 3
        %v7392 = vsel %vm619, %v7390, %v7391
        %v7393 = vrot.slane %v6942, 3
        %v7394 = vsel %vm619, %v7391, %v7393
        %v7395 = vrot.slane %v6943, 3
        %v7396 = vrot.slane %v6944, 3
        %v7397 = vsel %vm619, %v7395, %v7396
        %v7398 = vrot.slane %v6945, 3
        %v7399 = vsel %vm619, %v7396, %v7398
        %v7400 = vrot.slane %v6946, 3
        %v7401 = vrot.slane %v6947, 3
        %v7402 = vsel %vm619, %v7400, %v7401
        %v7403 = vrot.slane %v6948, 3
        %v7404 = vsel %vm619, %v7401, %v7403
        %v7405 = vrot.slane %v6949, 3
        %v7406 = vrot.slane %v6950, 3
        %v7407 = vsel %vm619, %v7405, %v7406
        %v7408 = vrot.slane %v6951, 3
        %v7409 = vsel %vm619, %v7406, %v7408
        %v7410 = vrot.slane %v6952, 3
        %v7411 = vrot.slane %v6953, 3
        %v7412 = vsel %vm619, %v7410, %v7411
        %v7413 = vrot.slane %v6954, 3
        %v7414 = vsel %vm619, %v7411, %v7413
        %v7415 = vrot.slane %v6955, 3
        %v7416 = vrot.slane %v6956, 3
        %v7417 = vsel %vm619, %v7415, %v7416
        %v7418 = vrot.slane %v6957, 3
        %v7419 = vsel %vm619, %v7416, %v7418
        %v7420 = vrot.slane %v6958, 3
        %v7421 = vrot.slane %v6959, 3
        %v7422 = vsel %vm619, %v7420, %v7421
        %v7423 = vrot.slane %v6960, 3
        %v7424 = vsel %vm619, %v7421, %v7423
        %v7425 = vrot.slane %v6961, 3
        %v7426 = vrot.slane %v6962, 3
        %v7427 = vsel %vm619, %v7425, %v7426
        %v7428 = vrot.slane %v6963, 3
        %v7429 = vsel %vm619, %v7426, %v7428
        %v7430 = vrot.slane %v6964, 3
        %v7431 = vrot.slane %v6965, 3
        %v7432 = vsel %vm619, %v7430, %v7431
        %v7433 = vrot.slane %v6966, 3
        %v7434 = vsel %vm619, %v7431, %v7433
        %v7435 = vrot.slane %v6967, 3
        %v7436 = vrot.slane %v6968, 3
        %v7437 = vsel %vm619, %v7435, %v7436
        %v7438 = vrot.slane %v6969, 3
        %v7439 = vsel %vm619, %v7436, %v7438
        %v7440 = vrot.slane %v6970, 3
        %v7441 = vrot.slane %v6971, 3
        %v7442 = vsel %vm619, %v7440, %v7441
        %v7443 = vrot.slane %v6972, 3
        %v7444 = vsel %vm619, %v7441, %v7443
        %v7445 = vrot.slane %v6973, 3
        %v7446 = vrot.slane %v6974, 3
        %v7447 = vsel %vm619, %v7445, %v7446
        %v7448 = vrot.slane %v6975, 3
        %v7449 = vsel %vm619, %v7446, %v7448
        %v7450 = vrot.slane %v6976, 3
        %v7451 = vrot.slane %v6977, 3
        %v7452 = vsel %vm619, %v7450, %v7451
        %v7453 = vrot.slane %v6978, 3
        %v7454 = vsel %vm619, %v7451, %v7453
        %v7455 = vrot.slane %v6979, 3
        %v7456 = vrot.slane %v6980, 3
        %v7457 = vsel %vm619, %v7455, %v7456
        %v7458 = vrot.slane %v6981, 3
        %v7459 = vsel %vm619, %v7456, %v7458
        %v7460 = vrot.slane %v6982, 3
        %v7461 = vrot.slane %v6983, 3
        %v7462 = vsel %vm619, %v7460, %v7461
        %v7463 = vrot.slane %v6984, 3
        %v7464 = vsel %vm619, %v7461, %v7463
        %7465 = vrot.lane.b32.xlu0 %v7387, 9
        %v7466 = vpop.permute.xlu0 %7465
        %7467 = vrot.lane.b32.xlu0 %v7389, 9
        %v7468 = vpop.permute.xlu0 %7467
        %7469 = vrot.lane.b32.xlu0 %v7392, 9
        %v7470 = vpop.permute.xlu0 %7469
        %7471 = vrot.lane.b32.xlu0 %v7394, 9
        %v7472 = vpop.permute.xlu0 %7471
        %7473 = vrot.lane.b32.xlu0 %v7397, 9
        %v7474 = vpop.permute.xlu0 %7473
        %7475 = vrot.lane.b32.xlu0 %v7399, 9
        %v7476 = vpop.permute.xlu0 %7475
        %7477 = vrot.lane.b32.xlu0 %v7402, 9
        %v7478 = vpop.permute.xlu0 %7477
        %7479 = vrot.lane.b32.xlu0 %v7404, 9
        %v7480 = vpop.permute.xlu0 %7479
        %7481 = vrot.lane.b32.xlu0 %v7407, 9
        %v7482 = vpop.permute.xlu0 %7481
        %7483 = vrot.lane.b32.xlu0 %v7409, 9
        %v7484 = vpop.permute.xlu0 %7483
        %7485 = vrot.lane.b32.xlu0 %v7412, 9
        %v7486 = vpop.permute.xlu0 %7485
        %7487 = vrot.lane.b32.xlu0 %v7414, 9
        %v7488 = vpop.permute.xlu0 %7487
        %7489 = vrot.lane.b32.xlu0 %v7417, 9
        %v7490 = vpop.permute.xlu0 %7489
        %7491 = vrot.lane.b32.xlu0 %v7419, 9
        %v7492 = vpop.permute.xlu0 %7491
        %7493 = vrot.lane.b32.xlu0 %v7422, 9
        %v7494 = vpop.permute.xlu0 %7493
        %7495 = vrot.lane.b32.xlu0 %v7424, 9
        %v7496 = vpop.permute.xlu0 %7495
        %7497 = vrot.lane.b32.xlu0 %v7427, 9
        %v7498 = vpop.permute.xlu0 %7497
        %7499 = vrot.lane.b32.xlu0 %v7429, 9
        %v7500 = vpop.permute.xlu0 %7499
        %7501 = vrot.lane.b32.xlu0 %v7432, 9
        %v7502 = vpop.permute.xlu0 %7501
        %7503 = vrot.lane.b32.xlu0 %v7434, 9
        %v7504 = vpop.permute.xlu0 %7503
        %7505 = vrot.lane.b32.xlu0 %v7437, 9
        %v7506 = vpop.permute.xlu0 %7505
        %7507 = vrot.lane.b32.xlu0 %v7439, 9
        %v7508 = vpop.permute.xlu0 %7507
        %7509 = vrot.lane.b32.xlu0 %v7442, 9
        %v7510 = vpop.permute.xlu0 %7509
        %7511 = vrot.lane.b32.xlu0 %v7444, 9
        %v7512 = vpop.permute.xlu0 %7511
        %7513 = vrot.lane.b32.xlu0 %v7447, 9
        %v7514 = vpop.permute.xlu0 %7513
        %7515 = vrot.lane.b32.xlu0 %v7449, 9
        %v7516 = vpop.permute.xlu0 %7515
        %7517 = vrot.lane.b32.xlu0 %v7452, 9
        %v7518 = vpop.permute.xlu0 %7517
        %7519 = vrot.lane.b32.xlu0 %v7454, 9
        %v7520 = vpop.permute.xlu0 %7519
        %7521 = vrot.lane.b32.xlu0 %v7457, 9
        %v7522 = vpop.permute.xlu0 %7521
        %7523 = vrot.lane.b32.xlu0 %v7459, 9
        %v7524 = vpop.permute.xlu0 %7523
        %7525 = vrot.lane.b32.xlu0 %v7462, 9
        %v7526 = vpop.permute.xlu0 %7525
        %7527 = vrot.lane.b32.xlu0 %v7464, 9
        %v7528 = vpop.permute.xlu0 %7527
        %v7561 = vrot.slane %v6937, 4
        %v7562 = vrot.slane %v6938, 4
        %v7563 = vsel %vm796, %v7561, %v7562
        %v7564 = vrot.slane %v6939, 4
        %v7565 = vsel %vm796, %v7562, %v7564
        %v7566 = vrot.slane %v6940, 4
        %v7567 = vrot.slane %v6941, 4
        %v7568 = vsel %vm796, %v7566, %v7567
        %v7569 = vrot.slane %v6942, 4
        %v7570 = vsel %vm796, %v7567, %v7569
        %v7571 = vrot.slane %v6943, 4
        %v7572 = vrot.slane %v6944, 4
        %v7573 = vsel %vm796, %v7571, %v7572
        %v7574 = vrot.slane %v6945, 4
        %v7575 = vsel %vm796, %v7572, %v7574
        %v7576 = vrot.slane %v6946, 4
        %v7577 = vrot.slane %v6947, 4
        %v7578 = vsel %vm796, %v7576, %v7577
        %v7579 = vrot.slane %v6948, 4
        %v7580 = vsel %vm796, %v7577, %v7579
        %v7581 = vrot.slane %v6949, 4
        %v7582 = vrot.slane %v6950, 4
        %v7583 = vsel %vm796, %v7581, %v7582
        %v7584 = vrot.slane %v6951, 4
        %v7585 = vsel %vm796, %v7582, %v7584
        %v7586 = vrot.slane %v6952, 4
        %v7587 = vrot.slane %v6953, 4
        %v7588 = vsel %vm796, %v7586, %v7587
        %v7589 = vrot.slane %v6954, 4
        %v7590 = vsel %vm796, %v7587, %v7589
        %v7591 = vrot.slane %v6955, 4
        %v7592 = vrot.slane %v6956, 4
        %v7593 = vsel %vm796, %v7591, %v7592
        %v7594 = vrot.slane %v6957, 4
        %v7595 = vsel %vm796, %v7592, %v7594
        %v7596 = vrot.slane %v6958, 4
        %v7597 = vrot.slane %v6959, 4
        %v7598 = vsel %vm796, %v7596, %v7597
        %v7599 = vrot.slane %v6960, 4
        %v7600 = vsel %vm796, %v7597, %v7599
        %v7601 = vrot.slane %v6961, 4
        %v7602 = vrot.slane %v6962, 4
        %v7603 = vsel %vm796, %v7601, %v7602
        %v7604 = vrot.slane %v6963, 4
        %v7605 = vsel %vm796, %v7602, %v7604
        %v7606 = vrot.slane %v6964, 4
        %v7607 = vrot.slane %v6965, 4
        %v7608 = vsel %vm796, %v7606, %v7607
        %v7609 = vrot.slane %v6966, 4
        %v7610 = vsel %vm796, %v7607, %v7609
        %v7611 = vrot.slane %v6967, 4
        %v7612 = vrot.slane %v6968, 4
        %v7613 = vsel %vm796, %v7611, %v7612
        %v7614 = vrot.slane %v6969, 4
        %v7615 = vsel %vm796, %v7612, %v7614
        %v7616 = vrot.slane %v6970, 4
        %v7617 = vrot.slane %v6971, 4
        %v7618 = vsel %vm796, %v7616, %v7617
        %v7619 = vrot.slane %v6972, 4
        %v7620 = vsel %vm796, %v7617, %v7619
        %v7621 = vrot.slane %v6973, 4
        %v7622 = vrot.slane %v6974, 4
        %v7623 = vsel %vm796, %v7621, %v7622
        %v7624 = vrot.slane %v6975, 4
        %v7625 = vsel %vm796, %v7622, %v7624
        %v7626 = vrot.slane %v6976, 4
        %v7627 = vrot.slane %v6977, 4
        %v7628 = vsel %vm796, %v7626, %v7627
        %v7629 = vrot.slane %v6978, 4
        %v7630 = vsel %vm796, %v7627, %v7629
        %v7631 = vrot.slane %v6979, 4
        %v7632 = vrot.slane %v6980, 4
        %v7633 = vsel %vm796, %v7631, %v7632
        %v7634 = vrot.slane %v6981, 4
        %v7635 = vsel %vm796, %v7632, %v7634
        %v7636 = vrot.slane %v6982, 4
        %v7637 = vrot.slane %v6983, 4
        %v7638 = vsel %vm796, %v7636, %v7637
        %v7639 = vrot.slane %v6984, 4
        %v7640 = vsel %vm796, %v7637, %v7639
        %7641 = vrot.lane.b32.xlu0 %v7563, 12
        %v7642 = vpop.permute.xlu0 %7641
        %7643 = vrot.lane.b32.xlu0 %v7565, 12
        %v7644 = vpop.permute.xlu0 %7643
        %7645 = vrot.lane.b32.xlu0 %v7568, 12
        %v7646 = vpop.permute.xlu0 %7645
        %7647 = vrot.lane.b32.xlu0 %v7570, 12
        %v7648 = vpop.permute.xlu0 %7647
        %7649 = vrot.lane.b32.xlu0 %v7573, 12
        %v7650 = vpop.permute.xlu0 %7649
        %7651 = vrot.lane.b32.xlu0 %v7575, 12
        %v7652 = vpop.permute.xlu0 %7651
        %7653 = vrot.lane.b32.xlu0 %v7578, 12
        %v7654 = vpop.permute.xlu0 %7653
        %7655 = vrot.lane.b32.xlu0 %v7580, 12
        %v7656 = vpop.permute.xlu0 %7655
        %7657 = vrot.lane.b32.xlu0 %v7583, 12
        %v7658 = vpop.permute.xlu0 %7657
        %7659 = vrot.lane.b32.xlu0 %v7585, 12
        %v7660 = vpop.permute.xlu0 %7659
        %7661 = vrot.lane.b32.xlu0 %v7588, 12
        %v7662 = vpop.permute.xlu0 %7661
        %7663 = vrot.lane.b32.xlu0 %v7590, 12
        %v7664 = vpop.permute.xlu0 %7663
        %7665 = vrot.lane.b32.xlu0 %v7593, 12
        %v7666 = vpop.permute.xlu0 %7665
        %7667 = vrot.lane.b32.xlu0 %v7595, 12
        %v7668 = vpop.permute.xlu0 %7667
        %7669 = vrot.lane.b32.xlu0 %v7598, 12
        %v7670 = vpop.permute.xlu0 %7669
        %7671 = vrot.lane.b32.xlu0 %v7600, 12
        %v7672 = vpop.permute.xlu0 %7671
        %7673 = vrot.lane.b32.xlu0 %v7603, 12
        %v7674 = vpop.permute.xlu0 %7673
        %7675 = vrot.lane.b32.xlu0 %v7605, 12
        %v7676 = vpop.permute.xlu0 %7675
        %7677 = vrot.lane.b32.xlu0 %v7608, 12
        %v7678 = vpop.permute.xlu0 %7677
        %7679 = vrot.lane.b32.xlu0 %v7610, 12
        %v7680 = vpop.permute.xlu0 %7679
        %7681 = vrot.lane.b32.xlu0 %v7613, 12
        %v7682 = vpop.permute.xlu0 %7681
        %7683 = vrot.lane.b32.xlu0 %v7615, 12
        %v7684 = vpop.permute.xlu0 %7683
        %7685 = vrot.lane.b32.xlu0 %v7618, 12
        %v7686 = vpop.permute.xlu0 %7685
        %7687 = vrot.lane.b32.xlu0 %v7620, 12
        %v7688 = vpop.permute.xlu0 %7687
        %7689 = vrot.lane.b32.xlu0 %v7623, 12
        %v7690 = vpop.permute.xlu0 %7689
        %7691 = vrot.lane.b32.xlu0 %v7625, 12
        %v7692 = vpop.permute.xlu0 %7691
        %7693 = vrot.lane.b32.xlu0 %v7628, 12
        %v7694 = vpop.permute.xlu0 %7693
        %7695 = vrot.lane.b32.xlu0 %v7630, 12
        %v7696 = vpop.permute.xlu0 %7695
        %7697 = vrot.lane.b32.xlu0 %v7633, 12
        %v7698 = vpop.permute.xlu0 %7697
        %7699 = vrot.lane.b32.xlu0 %v7635, 12
        %v7700 = vpop.permute.xlu0 %7699
        %7701 = vrot.lane.b32.xlu0 %v7638, 12
        %v7702 = vpop.permute.xlu0 %7701
        %7703 = vrot.lane.b32.xlu0 %v7640, 12
        %v7704 = vpop.permute.xlu0 %7703
        %v7737 = vrot.slane %v6937, 5
        %v7738 = vrot.slane %v6938, 5
        %v7739 = vsel %vm973, %v7737, %v7738
        %v7740 = vrot.slane %v6939, 5
        %v7741 = vsel %vm973, %v7738, %v7740
        %v7742 = vrot.slane %v6940, 5
        %v7743 = vrot.slane %v6941, 5
        %v7744 = vsel %vm973, %v7742, %v7743
        %v7745 = vrot.slane %v6942, 5
        %v7746 = vsel %vm973, %v7743, %v7745
        %v7747 = vrot.slane %v6943, 5
        %v7748 = vrot.slane %v6944, 5
        %v7749 = vsel %vm973, %v7747, %v7748
        %v7750 = vrot.slane %v6945, 5
        %v7751 = vsel %vm973, %v7748, %v7750
        %v7752 = vrot.slane %v6946, 5
        %v7753 = vrot.slane %v6947, 5
        %v7754 = vsel %vm973, %v7752, %v7753
        %v7755 = vrot.slane %v6948, 5
        %v7756 = vsel %vm973, %v7753, %v7755
        %v7757 = vrot.slane %v6949, 5
        %v7758 = vrot.slane %v6950, 5
        %v7759 = vsel %vm973, %v7757, %v7758
        %v7760 = vrot.slane %v6951, 5
        %v7761 = vsel %vm973, %v7758, %v7760
        %v7762 = vrot.slane %v6952, 5
        %v7763 = vrot.slane %v6953, 5
        %v7764 = vsel %vm973, %v7762, %v7763
        %v7765 = vrot.slane %v6954, 5
        %v7766 = vsel %vm973, %v7763, %v7765
        %v7767 = vrot.slane %v6955, 5
        %v7768 = vrot.slane %v6956, 5
        %v7769 = vsel %vm973, %v7767, %v7768
        %v7770 = vrot.slane %v6957, 5
        %v7771 = vsel %vm973, %v7768, %v7770
        %v7772 = vrot.slane %v6958, 5
        %v7773 = vrot.slane %v6959, 5
        %v7774 = vsel %vm973, %v7772, %v7773
        %v7775 = vrot.slane %v6960, 5
        %v7776 = vsel %vm973, %v7773, %v7775
        %v7777 = vrot.slane %v6961, 5
        %v7778 = vrot.slane %v6962, 5
        %v7779 = vsel %vm973, %v7777, %v7778
        %v7780 = vrot.slane %v6963, 5
        %v7781 = vsel %vm973, %v7778, %v7780
        %v7782 = vrot.slane %v6964, 5
        %v7783 = vrot.slane %v6965, 5
        %v7784 = vsel %vm973, %v7782, %v7783
        %v7785 = vrot.slane %v6966, 5
        %v7786 = vsel %vm973, %v7783, %v7785
        %v7787 = vrot.slane %v6967, 5
        %v7788 = vrot.slane %v6968, 5
        %v7789 = vsel %vm973, %v7787, %v7788
        %v7790 = vrot.slane %v6969, 5
        %v7791 = vsel %vm973, %v7788, %v7790
        %v7792 = vrot.slane %v6970, 5
        %v7793 = vrot.slane %v6971, 5
        %v7794 = vsel %vm973, %v7792, %v7793
        %v7795 = vrot.slane %v6972, 5
        %v7796 = vsel %vm973, %v7793, %v7795
        %v7797 = vrot.slane %v6973, 5
        %v7798 = vrot.slane %v6974, 5
        %v7799 = vsel %vm973, %v7797, %v7798
        %v7800 = vrot.slane %v6975, 5
        %v7801 = vsel %vm973, %v7798, %v7800
        %v7802 = vrot.slane %v6976, 5
        %v7803 = vrot.slane %v6977, 5
        %v7804 = vsel %vm973, %v7802, %v7803
        %v7805 = vrot.slane %v6978, 5
        %v7806 = vsel %vm973, %v7803, %v7805
        %v7807 = vrot.slane %v6979, 5
        %v7808 = vrot.slane %v6980, 5
        %v7809 = vsel %vm973, %v7807, %v7808
        %v7810 = vrot.slane %v6981, 5
        %v7811 = vsel %vm973, %v7808, %v7810
        %v7812 = vrot.slane %v6982, 5
        %v7813 = vrot.slane %v6983, 5
        %v7814 = vsel %vm973, %v7812, %v7813
        %v7815 = vrot.slane %v6984, 5
        %v7816 = vsel %vm973, %v7813, %v7815
        %7817 = vrot.lane.b32.xlu0 %v7739, 15
        %v7818 = vpop.permute.xlu0 %7817
        %7819 = vrot.lane.b32.xlu0 %v7741, 15
        %v7820 = vpop.permute.xlu0 %7819
        %7821 = vrot.lane.b32.xlu0 %v7744, 15
        %v7822 = vpop.permute.xlu0 %7821
        %7823 = vrot.lane.b32.xlu0 %v7746, 15
        %v7824 = vpop.permute.xlu0 %7823
        %7825 = vrot.lane.b32.xlu0 %v7749, 15
        %v7826 = vpop.permute.xlu0 %7825
        %7827 = vrot.lane.b32.xlu0 %v7751, 15
        %v7828 = vpop.permute.xlu0 %7827
        %7829 = vrot.lane.b32.xlu0 %v7754, 15
        %v7830 = vpop.permute.xlu0 %7829
        %7831 = vrot.lane.b32.xlu0 %v7756, 15
        %v7832 = vpop.permute.xlu0 %7831
        %7833 = vrot.lane.b32.xlu0 %v7759, 15
        %v7834 = vpop.permute.xlu0 %7833
        %7835 = vrot.lane.b32.xlu0 %v7761, 15
        %v7836 = vpop.permute.xlu0 %7835
        %7837 = vrot.lane.b32.xlu0 %v7764, 15
        %v7838 = vpop.permute.xlu0 %7837
        %7839 = vrot.lane.b32.xlu0 %v7766, 15
        %v7840 = vpop.permute.xlu0 %7839
        %7841 = vrot.lane.b32.xlu0 %v7769, 15
        %v7842 = vpop.permute.xlu0 %7841
        %7843 = vrot.lane.b32.xlu0 %v7771, 15
        %v7844 = vpop.permute.xlu0 %7843
        %7845 = vrot.lane.b32.xlu0 %v7774, 15
        %v7846 = vpop.permute.xlu0 %7845
        %7847 = vrot.lane.b32.xlu0 %v7776, 15
        %v7848 = vpop.permute.xlu0 %7847
        %7849 = vrot.lane.b32.xlu0 %v7779, 15
        %v7850 = vpop.permute.xlu0 %7849
        %7851 = vrot.lane.b32.xlu0 %v7781, 15
        %v7852 = vpop.permute.xlu0 %7851
        %7853 = vrot.lane.b32.xlu0 %v7784, 15
        %v7854 = vpop.permute.xlu0 %7853
        %7855 = vrot.lane.b32.xlu0 %v7786, 15
        %v7856 = vpop.permute.xlu0 %7855
        %7857 = vrot.lane.b32.xlu0 %v7789, 15
        %v7858 = vpop.permute.xlu0 %7857
        %7859 = vrot.lane.b32.xlu0 %v7791, 15
        %v7860 = vpop.permute.xlu0 %7859
        %7861 = vrot.lane.b32.xlu0 %v7794, 15
        %v7862 = vpop.permute.xlu0 %7861
        %7863 = vrot.lane.b32.xlu0 %v7796, 15
        %v7864 = vpop.permute.xlu0 %7863
        %7865 = vrot.lane.b32.xlu0 %v7799, 15
        %v7866 = vpop.permute.xlu0 %7865
        %7867 = vrot.lane.b32.xlu0 %v7801, 15
        %v7868 = vpop.permute.xlu0 %7867
        %7869 = vrot.lane.b32.xlu0 %v7804, 15
        %v7870 = vpop.permute.xlu0 %7869
        %7871 = vrot.lane.b32.xlu0 %v7806, 15
        %v7872 = vpop.permute.xlu0 %7871
        %7873 = vrot.lane.b32.xlu0 %v7809, 15
        %v7874 = vpop.permute.xlu0 %7873
        %7875 = vrot.lane.b32.xlu0 %v7811, 15
        %v7876 = vpop.permute.xlu0 %7875
        %7877 = vrot.lane.b32.xlu0 %v7814, 15
        %v7878 = vpop.permute.xlu0 %7877
        %7879 = vrot.lane.b32.xlu0 %v7816, 15
        %v7880 = vpop.permute.xlu0 %7879
        %v7913 = vrot.slane %v6937, 6
        %v7914 = vrot.slane %v6938, 6
        %v7915 = vsel %vm1150, %v7913, %v7914
        %v7916 = vrot.slane %v6939, 6
        %v7917 = vsel %vm1150, %v7914, %v7916
        %v7918 = vrot.slane %v6940, 6
        %v7919 = vrot.slane %v6941, 6
        %v7920 = vsel %vm1150, %v7918, %v7919
        %v7921 = vrot.slane %v6942, 6
        %v7922 = vsel %vm1150, %v7919, %v7921
        %v7923 = vrot.slane %v6943, 6
        %v7924 = vrot.slane %v6944, 6
        %v7925 = vsel %vm1150, %v7923, %v7924
        %v7926 = vrot.slane %v6945, 6
        %v7927 = vsel %vm1150, %v7924, %v7926
        %v7928 = vrot.slane %v6946, 6
        %v7929 = vrot.slane %v6947, 6
        %v7930 = vsel %vm1150, %v7928, %v7929
        %v7931 = vrot.slane %v6948, 6
        %v7932 = vsel %vm1150, %v7929, %v7931
        %v7933 = vrot.slane %v6949, 6
        %v7934 = vrot.slane %v6950, 6
        %v7935 = vsel %vm1150, %v7933, %v7934
        %v7936 = vrot.slane %v6951, 6
        %v7937 = vsel %vm1150, %v7934, %v7936
        %v7938 = vrot.slane %v6952, 6
        %v7939 = vrot.slane %v6953, 6
        %v7940 = vsel %vm1150, %v7938, %v7939
        %v7941 = vrot.slane %v6954, 6
        %v7942 = vsel %vm1150, %v7939, %v7941
        %v7943 = vrot.slane %v6955, 6
        %v7944 = vrot.slane %v6956, 6
        %v7945 = vsel %vm1150, %v7943, %v7944
        %v7946 = vrot.slane %v6957, 6
        %v7947 = vsel %vm1150, %v7944, %v7946
        %v7948 = vrot.slane %v6958, 6
        %v7949 = vrot.slane %v6959, 6
        %v7950 = vsel %vm1150, %v7948, %v7949
        %v7951 = vrot.slane %v6960, 6
        %v7952 = vsel %vm1150, %v7949, %v7951
        %v7953 = vrot.slane %v6961, 6
        %v7954 = vrot.slane %v6962, 6
        %v7955 = vsel %vm1150, %v7953, %v7954
        %v7956 = vrot.slane %v6963, 6
        %v7957 = vsel %vm1150, %v7954, %v7956
        %v7958 = vrot.slane %v6964, 6
        %v7959 = vrot.slane %v6965, 6
        %v7960 = vsel %vm1150, %v7958, %v7959
        %v7961 = vrot.slane %v6966, 6
        %v7962 = vsel %vm1150, %v7959, %v7961
        %v7963 = vrot.slane %v6967, 6
        %v7964 = vrot.slane %v6968, 6
        %v7965 = vsel %vm1150, %v7963, %v7964
        %v7966 = vrot.slane %v6969, 6
        %v7967 = vsel %vm1150, %v7964, %v7966
        %v7968 = vrot.slane %v6970, 6
        %v7969 = vrot.slane %v6971, 6
        %v7970 = vsel %vm1150, %v7968, %v7969
        %v7971 = vrot.slane %v6972, 6
        %v7972 = vsel %vm1150, %v7969, %v7971
        %v7973 = vrot.slane %v6973, 6
        %v7974 = vrot.slane %v6974, 6
        %v7975 = vsel %vm1150, %v7973, %v7974
        %v7976 = vrot.slane %v6975, 6
        %v7977 = vsel %vm1150, %v7974, %v7976
        %v7978 = vrot.slane %v6976, 6
        %v7979 = vrot.slane %v6977, 6
        %v7980 = vsel %vm1150, %v7978, %v7979
        %v7981 = vrot.slane %v6978, 6
        %v7982 = vsel %vm1150, %v7979, %v7981
        %v7983 = vrot.slane %v6979, 6
        %v7984 = vrot.slane %v6980, 6
        %v7985 = vsel %vm1150, %v7983, %v7984
        %v7986 = vrot.slane %v6981, 6
        %v7987 = vsel %vm1150, %v7984, %v7986
        %v7988 = vrot.slane %v6982, 6
        %v7989 = vrot.slane %v6983, 6
        %v7990 = vsel %vm1150, %v7988, %v7989
        %v7991 = vrot.slane %v6984, 6
        %v7992 = vsel %vm1150, %v7989, %v7991
        %7993 = vrot.lane.b32.xlu0 %v7915, 18
        %v7994 = vpop.permute.xlu0 %7993
        %7995 = vrot.lane.b32.xlu0 %v7917, 18
        %v7996 = vpop.permute.xlu0 %7995
        %7997 = vrot.lane.b32.xlu0 %v7920, 18
        %v7998 = vpop.permute.xlu0 %7997
        %7999 = vrot.lane.b32.xlu0 %v7922, 18
        %v8000 = vpop.permute.xlu0 %7999
        %8001 = vrot.lane.b32.xlu0 %v7925, 18
        %v8002 = vpop.permute.xlu0 %8001
        %8003 = vrot.lane.b32.xlu0 %v7927, 18
        %v8004 = vpop.permute.xlu0 %8003
        %8005 = vrot.lane.b32.xlu0 %v7930, 18
        %v8006 = vpop.permute.xlu0 %8005
        %8007 = vrot.lane.b32.xlu0 %v7932, 18
        %v8008 = vpop.permute.xlu0 %8007
        %8009 = vrot.lane.b32.xlu0 %v7935, 18
        %v8010 = vpop.permute.xlu0 %8009
        %8011 = vrot.lane.b32.xlu0 %v7937, 18
        %v8012 = vpop.permute.xlu0 %8011
        %8013 = vrot.lane.b32.xlu0 %v7940, 18
        %v8014 = vpop.permute.xlu0 %8013
        %8015 = vrot.lane.b32.xlu0 %v7942, 18
        %v8016 = vpop.permute.xlu0 %8015
        %8017 = vrot.lane.b32.xlu0 %v7945, 18
        %v8018 = vpop.permute.xlu0 %8017
        %8019 = vrot.lane.b32.xlu0 %v7947, 18
        %v8020 = vpop.permute.xlu0 %8019
        %8021 = vrot.lane.b32.xlu0 %v7950, 18
        %v8022 = vpop.permute.xlu0 %8021
        %8023 = vrot.lane.b32.xlu0 %v7952, 18
        %v8024 = vpop.permute.xlu0 %8023
        %8025 = vrot.lane.b32.xlu0 %v7955, 18
        %v8026 = vpop.permute.xlu0 %8025
        %8027 = vrot.lane.b32.xlu0 %v7957, 18
        %v8028 = vpop.permute.xlu0 %8027
        %8029 = vrot.lane.b32.xlu0 %v7960, 18
        %v8030 = vpop.permute.xlu0 %8029
        %8031 = vrot.lane.b32.xlu0 %v7962, 18
        %v8032 = vpop.permute.xlu0 %8031
        %8033 = vrot.lane.b32.xlu0 %v7965, 18
        %v8034 = vpop.permute.xlu0 %8033
        %8035 = vrot.lane.b32.xlu0 %v7967, 18
        %v8036 = vpop.permute.xlu0 %8035
        %8037 = vrot.lane.b32.xlu0 %v7970, 18
        %v8038 = vpop.permute.xlu0 %8037
        %8039 = vrot.lane.b32.xlu0 %v7972, 18
        %v8040 = vpop.permute.xlu0 %8039
        %8041 = vrot.lane.b32.xlu0 %v7975, 18
        %v8042 = vpop.permute.xlu0 %8041
        %8043 = vrot.lane.b32.xlu0 %v7977, 18
        %v8044 = vpop.permute.xlu0 %8043
        %8045 = vrot.lane.b32.xlu0 %v7980, 18
        %v8046 = vpop.permute.xlu0 %8045
        %8047 = vrot.lane.b32.xlu0 %v7982, 18
        %v8048 = vpop.permute.xlu0 %8047
        %8049 = vrot.lane.b32.xlu0 %v7985, 18
        %v8050 = vpop.permute.xlu0 %8049
        %8051 = vrot.lane.b32.xlu0 %v7987, 18
        %v8052 = vpop.permute.xlu0 %8051
        %8053 = vrot.lane.b32.xlu0 %v7990, 18
        %v8054 = vpop.permute.xlu0 %8053
        %8055 = vrot.lane.b32.xlu0 %v7992, 18
        %v8056 = vpop.permute.xlu0 %8055
        %v8089 = vsel %vm1327, %v6937, %v7114
        %v8090 = vsel %vm1327, %v6938, %v7116
        %v8091 = vsel %vm1327, %v6940, %v7118
        %v8092 = vsel %vm1327, %v6941, %v7120
        %v8093 = vsel %vm1327, %v6943, %v7122
        %v8094 = vsel %vm1327, %v6944, %v7124
        %v8095 = vsel %vm1327, %v6946, %v7126
        %v8096 = vsel %vm1327, %v6947, %v7128
        %v8097 = vsel %vm1327, %v6949, %v7130
        %v8098 = vsel %vm1327, %v6950, %v7132
        %v8099 = vsel %vm1327, %v6952, %v7134
        %v8100 = vsel %vm1327, %v6953, %v7136
        %v8101 = vsel %vm1327, %v6955, %v7138
        %v8102 = vsel %vm1327, %v6956, %v7140
        %v8103 = vsel %vm1327, %v6958, %v7142
        %v8104 = vsel %vm1327, %v6959, %v7144
        %v8105 = vsel %vm1327, %v6961, %v7146
        %v8106 = vsel %vm1327, %v6962, %v7148
        %v8107 = vsel %vm1327, %v6964, %v7150
        %v8108 = vsel %vm1327, %v6965, %v7152
        %v8109 = vsel %vm1327, %v6967, %v7154
        %v8110 = vsel %vm1327, %v6968, %v7156
        %v8111 = vsel %vm1327, %v6970, %v7158
        %v8112 = vsel %vm1327, %v6971, %v7160
        %v8113 = vsel %vm1327, %v6973, %v7162
        %v8114 = vsel %vm1327, %v6974, %v7164
        %v8115 = vsel %vm1327, %v6976, %v7166
        %v8116 = vsel %vm1327, %v6977, %v7168
        %v8117 = vsel %vm1327, %v6979, %v7170
        %v8118 = vsel %vm1327, %v6980, %v7172
        %v8119 = vsel %vm1327, %v6982, %v7174
        %v8120 = vsel %vm1327, %v6983, %v7176
        %v8121 = vsel %vm1360, %v8089, %v7290
        %v8122 = vsel %vm1360, %v8090, %v7292
        %v8123 = vsel %vm1360, %v8091, %v7294
        %v8124 = vsel %vm1360, %v8092, %v7296
        %v8125 = vsel %vm1360, %v8093, %v7298
        %v8126 = vsel %vm1360, %v8094, %v7300
        %v8127 = vsel %vm1360, %v8095, %v7302
        %v8128 = vsel %vm1360, %v8096, %v7304
        %v8129 = vsel %vm1360, %v8097, %v7306
        %v8130 = vsel %vm1360, %v8098, %v7308
        %v8131 = vsel %vm1360, %v8099, %v7310
        %v8132 = vsel %vm1360, %v8100, %v7312
        %v8133 = vsel %vm1360, %v8101, %v7314
        %v8134 = vsel %vm1360, %v8102, %v7316
        %v8135 = vsel %vm1360, %v8103, %v7318
        %v8136 = vsel %vm1360, %v8104, %v7320
        %v8137 = vsel %vm1360, %v8105, %v7322
        %v8138 = vsel %vm1360, %v8106, %v7324
        %v8139 = vsel %vm1360, %v8107, %v7326
        %v8140 = vsel %vm1360, %v8108, %v7328
        %v8141 = vsel %vm1360, %v8109, %v7330
        %v8142 = vsel %vm1360, %v8110, %v7332
        %v8143 = vsel %vm1360, %v8111, %v7334
        %v8144 = vsel %vm1360, %v8112, %v7336
        %v8145 = vsel %vm1360, %v8113, %v7338
        %v8146 = vsel %vm1360, %v8114, %v7340
        %v8147 = vsel %vm1360, %v8115, %v7342
        %v8148 = vsel %vm1360, %v8116, %v7344
        %v8149 = vsel %vm1360, %v8117, %v7346
        %v8150 = vsel %vm1360, %v8118, %v7348
        %v8151 = vsel %vm1360, %v8119, %v7350
        %v8152 = vsel %vm1360, %v8120, %v7352
        %v8153 = vsel %vm1393, %v8121, %v7466
        %v8154 = vsel %vm1393, %v8122, %v7468
        %v8155 = vsel %vm1393, %v8123, %v7470
        %v8156 = vsel %vm1393, %v8124, %v7472
        %v8157 = vsel %vm1393, %v8125, %v7474
        %v8158 = vsel %vm1393, %v8126, %v7476
        %v8159 = vsel %vm1393, %v8127, %v7478
        %v8160 = vsel %vm1393, %v8128, %v7480
        %v8161 = vsel %vm1393, %v8129, %v7482
        %v8162 = vsel %vm1393, %v8130, %v7484
        %v8163 = vsel %vm1393, %v8131, %v7486
        %v8164 = vsel %vm1393, %v8132, %v7488
        %v8165 = vsel %vm1393, %v8133, %v7490
        %v8166 = vsel %vm1393, %v8134, %v7492
        %v8167 = vsel %vm1393, %v8135, %v7494
        %v8168 = vsel %vm1393, %v8136, %v7496
        %v8169 = vsel %vm1393, %v8137, %v7498
        %v8170 = vsel %vm1393, %v8138, %v7500
        %v8171 = vsel %vm1393, %v8139, %v7502
        %v8172 = vsel %vm1393, %v8140, %v7504
        %v8173 = vsel %vm1393, %v8141, %v7506
        %v8174 = vsel %vm1393, %v8142, %v7508
        %v8175 = vsel %vm1393, %v8143, %v7510
        %v8176 = vsel %vm1393, %v8144, %v7512
        %v8177 = vsel %vm1393, %v8145, %v7514
        %v8178 = vsel %vm1393, %v8146, %v7516
        %v8179 = vsel %vm1393, %v8147, %v7518
        %v8180 = vsel %vm1393, %v8148, %v7520
        %v8181 = vsel %vm1393, %v8149, %v7522
        %v8182 = vsel %vm1393, %v8150, %v7524
        %v8183 = vsel %vm1393, %v8151, %v7526
        %v8184 = vsel %vm1393, %v8152, %v7528
        %v8185 = vsel %vm1426, %v8153, %v7642
        %v8186 = vsel %vm1426, %v8154, %v7644
        %v8187 = vsel %vm1426, %v8155, %v7646
        %v8188 = vsel %vm1426, %v8156, %v7648
        %v8189 = vsel %vm1426, %v8157, %v7650
        %v8190 = vsel %vm1426, %v8158, %v7652
        %v8191 = vsel %vm1426, %v8159, %v7654
        %v8192 = vsel %vm1426, %v8160, %v7656
        %v8193 = vsel %vm1426, %v8161, %v7658
        %v8194 = vsel %vm1426, %v8162, %v7660
        %v8195 = vsel %vm1426, %v8163, %v7662
        %v8196 = vsel %vm1426, %v8164, %v7664
        %v8197 = vsel %vm1426, %v8165, %v7666
        %v8198 = vsel %vm1426, %v8166, %v7668
        %v8199 = vsel %vm1426, %v8167, %v7670
        %v8200 = vsel %vm1426, %v8168, %v7672
        %v8201 = vsel %vm1426, %v8169, %v7674
        %v8202 = vsel %vm1426, %v8170, %v7676
        %v8203 = vsel %vm1426, %v8171, %v7678
        %v8204 = vsel %vm1426, %v8172, %v7680
        %v8205 = vsel %vm1426, %v8173, %v7682
        %v8206 = vsel %vm1426, %v8174, %v7684
        %v8207 = vsel %vm1426, %v8175, %v7686
        %v8208 = vsel %vm1426, %v8176, %v7688
        %v8209 = vsel %vm1426, %v8177, %v7690
        %v8210 = vsel %vm1426, %v8178, %v7692
        %v8211 = vsel %vm1426, %v8179, %v7694
        %v8212 = vsel %vm1426, %v8180, %v7696
        %v8213 = vsel %vm1426, %v8181, %v7698
        %v8214 = vsel %vm1426, %v8182, %v7700
        %v8215 = vsel %vm1426, %v8183, %v7702
        %v8216 = vsel %vm1426, %v8184, %v7704
        %v8217 = vsel %vm1459, %v8185, %v7818
        %v8218 = vsel %vm1459, %v8186, %v7820
        %v8219 = vsel %vm1459, %v8187, %v7822
        %v8220 = vsel %vm1459, %v8188, %v7824
        %v8221 = vsel %vm1459, %v8189, %v7826
        %v8222 = vsel %vm1459, %v8190, %v7828
        %v8223 = vsel %vm1459, %v8191, %v7830
        %v8224 = vsel %vm1459, %v8192, %v7832
        %v8225 = vsel %vm1459, %v8193, %v7834
        %v8226 = vsel %vm1459, %v8194, %v7836
        %v8227 = vsel %vm1459, %v8195, %v7838
        %v8228 = vsel %vm1459, %v8196, %v7840
        %v8229 = vsel %vm1459, %v8197, %v7842
        %v8230 = vsel %vm1459, %v8198, %v7844
        %v8231 = vsel %vm1459, %v8199, %v7846
        %v8232 = vsel %vm1459, %v8200, %v7848
        %v8233 = vsel %vm1459, %v8201, %v7850
        %v8234 = vsel %vm1459, %v8202, %v7852
        %v8235 = vsel %vm1459, %v8203, %v7854
        %v8236 = vsel %vm1459, %v8204, %v7856
        %v8237 = vsel %vm1459, %v8205, %v7858
        %v8238 = vsel %vm1459, %v8206, %v7860
        %v8239 = vsel %vm1459, %v8207, %v7862
        %v8240 = vsel %vm1459, %v8208, %v7864
        %v8241 = vsel %vm1459, %v8209, %v7866
        %v8242 = vsel %vm1459, %v8210, %v7868
        %v8243 = vsel %vm1459, %v8211, %v7870
        %v8244 = vsel %vm1459, %v8212, %v7872
        %v8245 = vsel %vm1459, %v8213, %v7874
        %v8246 = vsel %vm1459, %v8214, %v7876
        %v8247 = vsel %vm1459, %v8215, %v7878
        %v8248 = vsel %vm1459, %v8216, %v7880
        %v8249 = vsel %vm1492, %v8217, %v7994
        %v8250 = vsel %vm1492, %v8218, %v7996
        %v8251 = vsel %vm1492, %v8219, %v7998
        %v8252 = vsel %vm1492, %v8220, %v8000
        %v8253 = vsel %vm1492, %v8221, %v8002
        %v8254 = vsel %vm1492, %v8222, %v8004
        %v8255 = vsel %vm1492, %v8223, %v8006
        %v8256 = vsel %vm1492, %v8224, %v8008
        %v8257 = vsel %vm1492, %v8225, %v8010
        %v8258 = vsel %vm1492, %v8226, %v8012
        %v8259 = vsel %vm1492, %v8227, %v8014
        %v8260 = vsel %vm1492, %v8228, %v8016
        %v8261 = vsel %vm1492, %v8229, %v8018
        %v8262 = vsel %vm1492, %v8230, %v8020
        %v8263 = vsel %vm1492, %v8231, %v8022
        %v8264 = vsel %vm1492, %v8232, %v8024
        %v8265 = vsel %vm1492, %v8233, %v8026
        %v8266 = vsel %vm1492, %v8234, %v8028
        %v8267 = vsel %vm1492, %v8235, %v8030
        %v8268 = vsel %vm1492, %v8236, %v8032
        %v8269 = vsel %vm1492, %v8237, %v8034
        %v8270 = vsel %vm1492, %v8238, %v8036
        %v8271 = vsel %vm1492, %v8239, %v8038
        %v8272 = vsel %vm1492, %v8240, %v8040
        %v8273 = vsel %vm1492, %v8241, %v8042
        %v8274 = vsel %vm1492, %v8242, %v8044
        %v8275 = vsel %vm1492, %v8243, %v8046
        %v8276 = vsel %vm1492, %v8244, %v8048
        %v8277 = vsel %vm1492, %v8245, %v8050
        %v8278 = vsel %vm1492, %v8246, %v8052
        %v8279 = vsel %vm1492, %v8247, %v8054
        %v8280 = vsel %vm1492, %v8248, %v8056
        %s8281 = scalar_lea.vmem %s1, 96
        %v8282 = vld [vmem:[%s8281] sm:$0xff]
        %v8283 = vld [vmem:[%s8281 + $0x8] sm:$0xff]
        %v8284 = vld [vmem:[%s8281 + $0x10] sm:$0x1f]
        %v8286 = vsel %vm2877, %v8249, 0
        %v8289 = vsel %vm2877, %v8250, 0
        %v8292 = vsel %vm2877, %v8251, 0
        %v8295 = vsel %vm2877, %v8252, 0
        %v8298 = vsel %vm2877, %v8253, 0
        %v8301 = vsel %vm2877, %v8254, 0
        %v8304 = vsel %vm2877, %v8255, 0
        %v8307 = vsel %vm2877, %v8256, 0
        %v8310 = vsel %vm2877, %v8257, 0
        %v8313 = vsel %vm2877, %v8258, 0
        %v8316 = vsel %vm2877, %v8259, 0
        %v8319 = vsel %vm2877, %v8260, 0
        %v8322 = vsel %vm2877, %v8261, 0
        %v8325 = vsel %vm2877, %v8262, 0
        %v8328 = vsel %vm2877, %v8263, 0
        %v8331 = vsel %vm2877, %v8264, 0
        %v8334 = vsel %vm2877, %v8265, 0
        %v8337 = vsel %vm2877, %v8266, 0
        %v8340 = vsel %vm2877, %v8267, 0
        %v8343 = vsel %vm2877, %v8268, 0
        %v8346 = vsel %vm2877, %v8269, 0
        %v8349 = vsel %vm2877, %v8270, 0
        %v8352 = vsel %vm2877, %v8271, 0
        %v8355 = vsel %vm2877, %v8272, 0
        %v8358 = vsel %vm2877, %v8273, 0
        %v8361 = vsel %vm2877, %v8274, 0
        %v8364 = vsel %vm2877, %v8275, 0
        %v8367 = vsel %vm2877, %v8276, 0
        %v8370 = vsel %vm2877, %v8277, 0
        %v8373 = vsel %vm2877, %v8278, 0
        %v8376 = vsel %vm2877, %v8279, 0
        %v8379 = vsel %vm2877, %v8280, 0
        %v8382 = vsel %vm619, %v8284, 0
        %8384 = vmatprep.subr.mxu0 0.0
        %8385 = vmatpush1.msra.mxu0 0.0
        %8386 = vmatprep.subr.mxu0 0.0
        %8387 = vmatpush1.msra.mxu0 0.0
        %8388 = vmatprep.subr.mxu0 0.0
        %8389 = vmatpush1.msra.mxu0 0.0
        %8390 = vmatprep.subr.mxu0 0.0
        %8391 = vmatpush1.msra.mxu0 0.0
        %8392 = vmatprep.subr.mxu0 0.0
        %8393 = vmatpush1.msra.mxu0 0.0
        %8394 = vmatprep.subr.mxu0 0.0
        %8395 = vmatpush1.msra.mxu0 0.0
        %8396 = vmatprep.subr.mxu0 0.0
        %8397 = vmatpush1.msra.mxu0 0.0
        %8398 = vmatprep.subr.mxu0 0.0
        %8399 = vmatpush1.msra.mxu0 0.0
        %8400 = vmatprep.subr.mxu0 0.0
        %8401 = vmatpush1.msra.mxu0 0.0
        %8402 = vmatprep.subr.mxu0 0.0
        %8403 = vmatpush1.msra.mxu0 0.0
        %8404 = vmatprep.subr.mxu0 0.0
        %8405 = vmatpush1.msra.mxu0 0.0
        %8406 = vmatprep.subr.mxu0 0.0
        %8407 = vmatpush1.msra.mxu0 0.0
        %8408 = vmatprep.subr.mxu0 0.0
        %8409 = vmatpush1.msra.mxu0 0.0
        %8410 = vmatprep.subr.mxu0 0.0
        %8411 = vmatpush1.msra.mxu0 %v8382
        %8412 = vmatprep.subr.mxu0 0.0
        %8413 = vmatpush1.msra.mxu0 %v8283
        %8414 = vmatprep.subr.mxu0 0.0
        %8415 = vmatpush1.msra.mxu0 %v8282
        %8416 = vmatprep.subr.mxu0 0.0
        %8417 = vmatpush2.msra.mxu0 0.0
        %8418 = vmatprep.subr.mxu0 0.0
        %8419 = vmatpush2.msra.mxu0 0.0
        %8420 = vmatprep.subr.mxu0 0.0
        %8421 = vmatpush2.msra.mxu0 0.0
        %8422 = vmatprep.subr.mxu0 0.0
        %8423 = vmatpush2.msra.mxu0 0.0
        %8424 = vmatprep.subr.mxu0 0.0
        %8425 = vmatpush2.msra.mxu0 0.0
        %8426 = vmatprep.subr.mxu0 0.0
        %8427 = vmatpush2.msra.mxu0 0.0
        %8428 = vmatprep.subr.mxu0 0.0
        %8429 = vmatpush2.msra.mxu0 0.0
        %8430 = vmatprep.subr.mxu0 0.0
        %8431 = vmatpush2.msra.mxu0 0.0
        %8432 = vmatprep.subr.mxu0 0.0
        %8433 = vmatpush2.msra.mxu0 0.0
        %8434 = vmatprep.subr.mxu0 0.0
        %8435 = vmatpush2.msra.mxu0 0.0
        %8436 = vmatprep.subr.mxu0 0.0
        %8437 = vmatpush2.msra.mxu0 0.0
        %8438 = vmatprep.subr.mxu0 0.0
        %8439 = vmatpush2.msra.mxu0 0.0
        %8440 = vmatprep.subr.mxu0 0.0
        %8441 = vmatpush2.msra.mxu0 0.0
        %8442 = vmatprep.subr.mxu0 0.0
        %8443 = vmatpush2.msra.mxu0 0.0
        %8444 = vmatprep.subr.mxu0 0.0
        %8445 = vmatpush2.msra.mxu0 0.0
        %8446 = vmatprep.subr.mxu0 0.0
        %8447 = vmatpush2.msra.mxu0 0.0
        %8448 = vmatprep.mubr.f32.mxu0 0.0
        %8449 = vmatmul.mubr.f32.gmra.mxu0 %v8286
        %v8450 = vpop.f32.mrf.mxu0
        %v8451 = vadd.f32 0.0, %v8450
        %v8452 = vpop.f32.mrf.mxu0
        %8453 = vmatprep.mubr.f32.mxu0 0.0
        %8454 = vmatmul.mubr.f32.gmra.mxu0 %v8289
        %v8455 = vpop.f32.mrf.mxu0
        %v8456 = vadd.f32 0.0, %v8455
        %v8457 = vpop.f32.mrf.mxu0
        %8458 = vmatprep.mubr.f32.mxu0 0.0
        %8459 = vmatmul.mubr.f32.gmra.mxu0 %v8292
        %v8460 = vpop.f32.mrf.mxu0
        %v8461 = vadd.f32 0.0, %v8460
        %v8462 = vpop.f32.mrf.mxu0
        %8463 = vmatprep.mubr.f32.mxu0 0.0
        %8464 = vmatmul.mubr.f32.gmra.mxu0 %v8295
        %v8465 = vpop.f32.mrf.mxu0
        %v8466 = vadd.f32 0.0, %v8465
        %v8467 = vpop.f32.mrf.mxu0
        %8468 = vmatprep.mubr.f32.mxu0 0.0
        %8469 = vmatmul.mubr.f32.gmra.mxu0 %v8298
        %v8470 = vpop.f32.mrf.mxu0
        %v8471 = vadd.f32 0.0, %v8470
        %v8472 = vpop.f32.mrf.mxu0
        %8473 = vmatprep.mubr.f32.mxu0 0.0
        %8474 = vmatmul.mubr.f32.gmra.mxu0 %v8301
        %v8475 = vpop.f32.mrf.mxu0
        %v8476 = vadd.f32 0.0, %v8475
        %v8477 = vpop.f32.mrf.mxu0
        %8478 = vmatprep.mubr.f32.mxu0 0.0
        %8479 = vmatmul.mubr.f32.gmra.mxu0 %v8304
        %v8480 = vpop.f32.mrf.mxu0
        %v8481 = vadd.f32 0.0, %v8480
        %v8482 = vpop.f32.mrf.mxu0
        %8483 = vmatprep.mubr.f32.mxu0 0.0
        %8484 = vmatmul.mubr.f32.gmra.mxu0 %v8307
        %v8485 = vpop.f32.mrf.mxu0
        %v8486 = vadd.f32 0.0, %v8485
        %v8487 = vpop.f32.mrf.mxu0
        %8488 = vmatprep.mubr.f32.mxu0 0.0
        %8489 = vmatmul.mubr.f32.gmra.mxu0 %v8310
        %v8490 = vpop.f32.mrf.mxu0
        %v8491 = vadd.f32 0.0, %v8490
        %v8492 = vpop.f32.mrf.mxu0
        %8493 = vmatprep.mubr.f32.mxu0 0.0
        %8494 = vmatmul.mubr.f32.gmra.mxu0 %v8313
        %v8495 = vpop.f32.mrf.mxu0
        %v8496 = vadd.f32 0.0, %v8495
        %v8497 = vpop.f32.mrf.mxu0
        %8498 = vmatprep.mubr.f32.mxu0 0.0
        %8499 = vmatmul.mubr.f32.gmra.mxu0 %v8316
        %v8500 = vpop.f32.mrf.mxu0
        %v8501 = vadd.f32 0.0, %v8500
        %v8502 = vpop.f32.mrf.mxu0
        %8503 = vmatprep.mubr.f32.mxu0 0.0
        %8504 = vmatmul.mubr.f32.gmra.mxu0 %v8319
        %v8505 = vpop.f32.mrf.mxu0
        %v8506 = vadd.f32 0.0, %v8505
        %v8507 = vpop.f32.mrf.mxu0
        %8508 = vmatprep.mubr.f32.mxu0 0.0
        %8509 = vmatmul.mubr.f32.gmra.mxu0 %v8322
        %v8510 = vpop.f32.mrf.mxu0
        %v8511 = vadd.f32 0.0, %v8510
        %v8512 = vpop.f32.mrf.mxu0
        %8513 = vmatprep.mubr.f32.mxu0 0.0
        %8514 = vmatmul.mubr.f32.gmra.mxu0 %v8325
        %v8515 = vpop.f32.mrf.mxu0
        %v8516 = vadd.f32 0.0, %v8515
        %v8517 = vpop.f32.mrf.mxu0
        %8518 = vmatprep.mubr.f32.mxu0 0.0
        %8519 = vmatmul.mubr.f32.gmra.mxu0 %v8328
        %v8520 = vpop.f32.mrf.mxu0
        %v8521 = vadd.f32 0.0, %v8520
        %v8522 = vpop.f32.mrf.mxu0
        %8523 = vmatprep.mubr.f32.mxu0 0.0
        %8524 = vmatmul.mubr.f32.gmra.mxu0 %v8331
        %v8525 = vpop.f32.mrf.mxu0
        %v8526 = vadd.f32 0.0, %v8525
        %v8527 = vpop.f32.mrf.mxu0
        %8528 = vmatprep.mubr.f32.mxu0 0.0
        %8529 = vmatmul.mubr.f32.gmra.mxu0 %v8334
        %v8530 = vpop.f32.mrf.mxu0
        %v8531 = vadd.f32 0.0, %v8530
        %v8532 = vpop.f32.mrf.mxu0
        %8533 = vmatprep.mubr.f32.mxu0 0.0
        %8534 = vmatmul.mubr.f32.gmra.mxu0 %v8337
        %v8535 = vpop.f32.mrf.mxu0
        %v8536 = vadd.f32 0.0, %v8535
        %v8537 = vpop.f32.mrf.mxu0
        %8538 = vmatprep.mubr.f32.mxu0 0.0
        %8539 = vmatmul.mubr.f32.gmra.mxu0 %v8340
        %v8540 = vpop.f32.mrf.mxu0
        %v8541 = vadd.f32 0.0, %v8540
        %v8542 = vpop.f32.mrf.mxu0
        %8543 = vmatprep.mubr.f32.mxu0 0.0
        %8544 = vmatmul.mubr.f32.gmra.mxu0 %v8343
        %v8545 = vpop.f32.mrf.mxu0
        %v8546 = vadd.f32 0.0, %v8545
        %v8547 = vpop.f32.mrf.mxu0
        %8548 = vmatprep.mubr.f32.mxu0 0.0
        %8549 = vmatmul.mubr.f32.gmra.mxu0 %v8346
        %v8550 = vpop.f32.mrf.mxu0
        %v8551 = vadd.f32 0.0, %v8550
        %v8552 = vpop.f32.mrf.mxu0
        %8553 = vmatprep.mubr.f32.mxu0 0.0
        %8554 = vmatmul.mubr.f32.gmra.mxu0 %v8349
        %v8555 = vpop.f32.mrf.mxu0
        %v8556 = vadd.f32 0.0, %v8555
        %v8557 = vpop.f32.mrf.mxu0
        %8558 = vmatprep.mubr.f32.mxu0 0.0
        %8559 = vmatmul.mubr.f32.gmra.mxu0 %v8352
        %v8560 = vpop.f32.mrf.mxu0
        %v8561 = vadd.f32 0.0, %v8560
        %v8562 = vpop.f32.mrf.mxu0
        %8563 = vmatprep.mubr.f32.mxu0 0.0
        %8564 = vmatmul.mubr.f32.gmra.mxu0 %v8355
        %v8565 = vpop.f32.mrf.mxu0
        %v8566 = vadd.f32 0.0, %v8565
        %v8567 = vpop.f32.mrf.mxu0
        %8568 = vmatprep.mubr.f32.mxu0 0.0
        %8569 = vmatmul.mubr.f32.gmra.mxu0 %v8358
        %v8570 = vpop.f32.mrf.mxu0
        %v8571 = vadd.f32 0.0, %v8570
        %v8572 = vpop.f32.mrf.mxu0
        %8573 = vmatprep.mubr.f32.mxu0 0.0
        %8574 = vmatmul.mubr.f32.gmra.mxu0 %v8361
        %v8575 = vpop.f32.mrf.mxu0
        %v8576 = vadd.f32 0.0, %v8575
        %v8577 = vpop.f32.mrf.mxu0
        %8578 = vmatprep.mubr.f32.mxu0 0.0
        %8579 = vmatmul.mubr.f32.gmra.mxu0 %v8364
        %v8580 = vpop.f32.mrf.mxu0
        %v8581 = vadd.f32 0.0, %v8580
        %v8582 = vpop.f32.mrf.mxu0
        %8583 = vmatprep.mubr.f32.mxu0 0.0
        %8584 = vmatmul.mubr.f32.gmra.mxu0 %v8367
        %v8585 = vpop.f32.mrf.mxu0
        %v8586 = vadd.f32 0.0, %v8585
        %v8587 = vpop.f32.mrf.mxu0
        %8588 = vmatprep.mubr.f32.mxu0 0.0
        %8589 = vmatmul.mubr.f32.gmra.mxu0 %v8370
        %v8590 = vpop.f32.mrf.mxu0
        %v8591 = vadd.f32 0.0, %v8590
        %v8592 = vpop.f32.mrf.mxu0
        %8593 = vmatprep.mubr.f32.mxu0 0.0
        %8594 = vmatmul.mubr.f32.gmra.mxu0 %v8373
        %v8595 = vpop.f32.mrf.mxu0
        %v8596 = vadd.f32 0.0, %v8595
        %v8597 = vpop.f32.mrf.mxu0
        %8598 = vmatprep.mubr.f32.mxu0 0.0
        %8599 = vmatmul.mubr.f32.gmra.mxu0 %v8376
        %v8600 = vpop.f32.mrf.mxu0
        %v8601 = vadd.f32 0.0, %v8600
        %v8602 = vpop.f32.mrf.mxu0
        %8603 = vmatprep.mubr.f32.mxu0 0.0
        %8604 = vmatmul.mubr.f32.gmra.mxu0 %v8379
        %v8605 = vpop.f32.mrf.mxu0
        %v8606 = vadd.f32 0.0, %v8605
        %v8607 = vpop.f32.mrf.mxu0
        %8608 = vdwg.mxu0
        %v8609 = vadd.f32 %v6904, %v8451
        %v8610 = vadd.f32 %v6905, %v8456
        %v8611 = vadd.f32 %v6906, %v8461
        %v8612 = vadd.f32 %v6907, %v8466
        %v8613 = vadd.f32 %v6908, %v8471
        %v8614 = vadd.f32 %v6909, %v8476
        %v8615 = vadd.f32 %v6910, %v8481
        %v8616 = vadd.f32 %v6911, %v8486
        %v8617 = vadd.f32 %v6912, %v8491
        %v8618 = vadd.f32 %v6913, %v8496
        %v8619 = vadd.f32 %v6914, %v8501
        %v8620 = vadd.f32 %v6915, %v8506
        %v8621 = vadd.f32 %v6916, %v8511
        %v8622 = vadd.f32 %v6917, %v8516
        %v8623 = vadd.f32 %v6918, %v8521
        %v8624 = vadd.f32 %v6919, %v8526
        %v8625 = vadd.f32 %v6920, %v8531
        %v8626 = vadd.f32 %v6921, %v8536
        %v8627 = vadd.f32 %v6922, %v8541
        %v8628 = vadd.f32 %v6923, %v8546
        %v8629 = vadd.f32 %v6924, %v8551
        %v8630 = vadd.f32 %v6925, %v8556
        %v8631 = vadd.f32 %v6926, %v8561
        %v8632 = vadd.f32 %v6927, %v8566
        %v8633 = vadd.f32 %v6928, %v8571
        %v8634 = vadd.f32 %v6929, %v8576
        %v8635 = vadd.f32 %v6930, %v8581
        %v8636 = vadd.f32 %v6931, %v8586
        %v8637 = vadd.f32 %v6932, %v8591
        %v8638 = vadd.f32 %v6933, %v8596
        %v8639 = vadd.f32 %v6934, %v8601
        %v8640 = vadd.f32 %v6935, %v8606
        %s8641 = scalar_lea.vmem %s168, 120
        %v8642 = vld [vmem:[%s8641] sm:$0xff]
        %v8643 = vld [vmem:[%s8641 + $0x8] sm:$0xff]
        %v8644 = vld [vmem:[%s8641 + $0x10] sm:$0x3f]
        %v8645 = vld [vmem:[%s8641 + $0x18] sm:$0xff]
        %v8646 = vld [vmem:[%s8641 + $0x20] sm:$0xff]
        %v8647 = vld [vmem:[%s8641 + $0x28] sm:$0x3f]
        %v8648 = vld [vmem:[%s8641 + $0x30] sm:$0xff]
        %v8649 = vld [vmem:[%s8641 + $0x38] sm:$0xff]
        %v8650 = vld [vmem:[%s8641 + $0x40] sm:$0x3f]
        %v8651 = vld [vmem:[%s8641 + $0x48] sm:$0xff]
        %v8652 = vld [vmem:[%s8641 + $0x50] sm:$0xff]
        %v8653 = vld [vmem:[%s8641 + $0x58] sm:$0x3f]
        %v8654 = vld [vmem:[%s8641 + $0x60] sm:$0xff]
        %v8655 = vld [vmem:[%s8641 + $0x68] sm:$0xff]
        %v8656 = vld [vmem:[%s8641 + $0x70] sm:$0x3f]
        %v8657 = vld [vmem:[%s8641 + $0x78] sm:$0xff]
        %v8658 = vld [vmem:[%s8641 + $0x80] sm:$0xff]
        %v8659 = vld [vmem:[%s8641 + $0x88] sm:$0x3f]
        %v8660 = vld [vmem:[%s8641 + $0x90] sm:$0xff]
        %v8661 = vld [vmem:[%s8641 + $0x98] sm:$0xff]
        %v8662 = vld [vmem:[%s8641 + $0xa0] sm:$0x3f]
        %v8663 = vld [vmem:[%s8641 + $0xa8] sm:$0xff]
        %v8664 = vld [vmem:[%s8641 + $0xb0] sm:$0xff]
        %v8665 = vld [vmem:[%s8641 + $0xb8] sm:$0x3f]
        %v8666 = vld [vmem:[%s8641 + $0xc0] sm:$0xff]
        %v8667 = vld [vmem:[%s8641 + $0xc8] sm:$0xff]
        %v8668 = vld [vmem:[%s8641 + $0xd0] sm:$0x3f]
        %v8669 = vld [vmem:[%s8641 + $0xd8] sm:$0xff]
        %v8670 = vld [vmem:[%s8641 + $0xe0] sm:$0xff]
        %v8671 = vld [vmem:[%s8641 + $0xe8] sm:$0x3f]
        %v8672 = vld [vmem:[%s8641 + $0xf0] sm:$0xff]
        %v8673 = vld [vmem:[%s8641 + $0xf8] sm:$0xff]
        %v8674 = vld [vmem:[%s8641 + $0x100] sm:$0x3f]
        %v8675 = vld [vmem:[%s8641 + $0x108] sm:$0xff]
        %v8676 = vld [vmem:[%s8641 + $0x110] sm:$0xff]
        %v8677 = vld [vmem:[%s8641 + $0x118] sm:$0x3f]
        %v8678 = vld [vmem:[%s8641 + $0x120] sm:$0xff]
        %v8679 = vld [vmem:[%s8641 + $0x128] sm:$0xff]
        %v8680 = vld [vmem:[%s8641 + $0x130] sm:$0x3f]
        %v8681 = vld [vmem:[%s8641 + $0x138] sm:$0xff]
        %v8682 = vld [vmem:[%s8641 + $0x140] sm:$0xff]
        %v8683 = vld [vmem:[%s8641 + $0x148] sm:$0x3f]
        %v8684 = vld [vmem:[%s8641 + $0x150] sm:$0xff]
        %v8685 = vld [vmem:[%s8641 + $0x158] sm:$0xff]
        %v8686 = vld [vmem:[%s8641 + $0x160] sm:$0x3f]
        %v8687 = vld [vmem:[%s8641 + $0x168] sm:$0xff]
        %v8688 = vld [vmem:[%s8641 + $0x170] sm:$0xff]
        %v8689 = vld [vmem:[%s8641 + $0x178] sm:$0x3f]
        %v8738 = vrot.slane %v8642, 1
        %v8739 = vrot.slane %v8643, 1
        %v8740 = vsel %vm265, %v8738, %v8739
        %v8741 = vrot.slane %v8644, 1
        %v8742 = vsel %vm265, %v8739, %v8741
        %v8743 = vrot.slane %v8645, 1
        %v8744 = vrot.slane %v8646, 1
        %v8745 = vsel %vm265, %v8743, %v8744
        %v8746 = vrot.slane %v8647, 1
        %v8747 = vsel %vm265, %v8744, %v8746
        %v8748 = vrot.slane %v8648, 1
        %v8749 = vrot.slane %v8649, 1
        %v8750 = vsel %vm265, %v8748, %v8749
        %v8751 = vrot.slane %v8650, 1
        %v8752 = vsel %vm265, %v8749, %v8751
        %v8753 = vrot.slane %v8651, 1
        %v8754 = vrot.slane %v8652, 1
        %v8755 = vsel %vm265, %v8753, %v8754
        %v8756 = vrot.slane %v8653, 1
        %v8757 = vsel %vm265, %v8754, %v8756
        %v8758 = vrot.slane %v8654, 1
        %v8759 = vrot.slane %v8655, 1
        %v8760 = vsel %vm265, %v8758, %v8759
        %v8761 = vrot.slane %v8656, 1
        %v8762 = vsel %vm265, %v8759, %v8761
        %v8763 = vrot.slane %v8657, 1
        %v8764 = vrot.slane %v8658, 1
        %v8765 = vsel %vm265, %v8763, %v8764
        %v8766 = vrot.slane %v8659, 1
        %v8767 = vsel %vm265, %v8764, %v8766
        %v8768 = vrot.slane %v8660, 1
        %v8769 = vrot.slane %v8661, 1
        %v8770 = vsel %vm265, %v8768, %v8769
        %v8771 = vrot.slane %v8662, 1
        %v8772 = vsel %vm265, %v8769, %v8771
        %v8773 = vrot.slane %v8663, 1
        %v8774 = vrot.slane %v8664, 1
        %v8775 = vsel %vm265, %v8773, %v8774
        %v8776 = vrot.slane %v8665, 1
        %v8777 = vsel %vm265, %v8774, %v8776
        %v8778 = vrot.slane %v8666, 1
        %v8779 = vrot.slane %v8667, 1
        %v8780 = vsel %vm265, %v8778, %v8779
        %v8781 = vrot.slane %v8668, 1
        %v8782 = vsel %vm265, %v8779, %v8781
        %v8783 = vrot.slane %v8669, 1
        %v8784 = vrot.slane %v8670, 1
        %v8785 = vsel %vm265, %v8783, %v8784
        %v8786 = vrot.slane %v8671, 1
        %v8787 = vsel %vm265, %v8784, %v8786
        %v8788 = vrot.slane %v8672, 1
        %v8789 = vrot.slane %v8673, 1
        %v8790 = vsel %vm265, %v8788, %v8789
        %v8791 = vrot.slane %v8674, 1
        %v8792 = vsel %vm265, %v8789, %v8791
        %v8793 = vrot.slane %v8675, 1
        %v8794 = vrot.slane %v8676, 1
        %v8795 = vsel %vm265, %v8793, %v8794
        %v8796 = vrot.slane %v8677, 1
        %v8797 = vsel %vm265, %v8794, %v8796
        %v8798 = vrot.slane %v8678, 1
        %v8799 = vrot.slane %v8679, 1
        %v8800 = vsel %vm265, %v8798, %v8799
        %v8801 = vrot.slane %v8680, 1
        %v8802 = vsel %vm265, %v8799, %v8801
        %v8803 = vrot.slane %v8681, 1
        %v8804 = vrot.slane %v8682, 1
        %v8805 = vsel %vm265, %v8803, %v8804
        %v8806 = vrot.slane %v8683, 1
        %v8807 = vsel %vm265, %v8804, %v8806
        %v8808 = vrot.slane %v8684, 1
        %v8809 = vrot.slane %v8685, 1
        %v8810 = vsel %vm265, %v8808, %v8809
        %v8811 = vrot.slane %v8686, 1
        %v8812 = vsel %vm265, %v8809, %v8811
        %v8813 = vrot.slane %v8687, 1
        %v8814 = vrot.slane %v8688, 1
        %v8815 = vsel %vm265, %v8813, %v8814
        %v8816 = vrot.slane %v8689, 1
        %v8817 = vsel %vm265, %v8814, %v8816
        %8818 = vrot.lane.b32.xlu0 %v8740, 3
        %v8819 = vpop.permute.xlu0 %8818
        %8820 = vrot.lane.b32.xlu0 %v8742, 3
        %v8821 = vpop.permute.xlu0 %8820
        %8822 = vrot.lane.b32.xlu0 %v8745, 3
        %v8823 = vpop.permute.xlu0 %8822
        %8824 = vrot.lane.b32.xlu0 %v8747, 3
        %v8825 = vpop.permute.xlu0 %8824
        %8826 = vrot.lane.b32.xlu0 %v8750, 3
        %v8827 = vpop.permute.xlu0 %8826
        %8828 = vrot.lane.b32.xlu0 %v8752, 3
        %v8829 = vpop.permute.xlu0 %8828
        %8830 = vrot.lane.b32.xlu0 %v8755, 3
        %v8831 = vpop.permute.xlu0 %8830
        %8832 = vrot.lane.b32.xlu0 %v8757, 3
        %v8833 = vpop.permute.xlu0 %8832
        %8834 = vrot.lane.b32.xlu0 %v8760, 3
        %v8835 = vpop.permute.xlu0 %8834
        %8836 = vrot.lane.b32.xlu0 %v8762, 3
        %v8837 = vpop.permute.xlu0 %8836
        %8838 = vrot.lane.b32.xlu0 %v8765, 3
        %v8839 = vpop.permute.xlu0 %8838
        %8840 = vrot.lane.b32.xlu0 %v8767, 3
        %v8841 = vpop.permute.xlu0 %8840
        %8842 = vrot.lane.b32.xlu0 %v8770, 3
        %v8843 = vpop.permute.xlu0 %8842
        %8844 = vrot.lane.b32.xlu0 %v8772, 3
        %v8845 = vpop.permute.xlu0 %8844
        %8846 = vrot.lane.b32.xlu0 %v8775, 3
        %v8847 = vpop.permute.xlu0 %8846
        %8848 = vrot.lane.b32.xlu0 %v8777, 3
        %v8849 = vpop.permute.xlu0 %8848
        %8850 = vrot.lane.b32.xlu0 %v8780, 3
        %v8851 = vpop.permute.xlu0 %8850
        %8852 = vrot.lane.b32.xlu0 %v8782, 3
        %v8853 = vpop.permute.xlu0 %8852
        %8854 = vrot.lane.b32.xlu0 %v8785, 3
        %v8855 = vpop.permute.xlu0 %8854
        %8856 = vrot.lane.b32.xlu0 %v8787, 3
        %v8857 = vpop.permute.xlu0 %8856
        %8858 = vrot.lane.b32.xlu0 %v8790, 3
        %v8859 = vpop.permute.xlu0 %8858
        %8860 = vrot.lane.b32.xlu0 %v8792, 3
        %v8861 = vpop.permute.xlu0 %8860
        %8862 = vrot.lane.b32.xlu0 %v8795, 3
        %v8863 = vpop.permute.xlu0 %8862
        %8864 = vrot.lane.b32.xlu0 %v8797, 3
        %v8865 = vpop.permute.xlu0 %8864
        %8866 = vrot.lane.b32.xlu0 %v8800, 3
        %v8867 = vpop.permute.xlu0 %8866
        %8868 = vrot.lane.b32.xlu0 %v8802, 3
        %v8869 = vpop.permute.xlu0 %8868
        %8870 = vrot.lane.b32.xlu0 %v8805, 3
        %v8871 = vpop.permute.xlu0 %8870
        %8872 = vrot.lane.b32.xlu0 %v8807, 3
        %v8873 = vpop.permute.xlu0 %8872
        %8874 = vrot.lane.b32.xlu0 %v8810, 3
        %v8875 = vpop.permute.xlu0 %8874
        %8876 = vrot.lane.b32.xlu0 %v8812, 3
        %v8877 = vpop.permute.xlu0 %8876
        %8878 = vrot.lane.b32.xlu0 %v8815, 3
        %v8879 = vpop.permute.xlu0 %8878
        %8880 = vrot.lane.b32.xlu0 %v8817, 3
        %v8881 = vpop.permute.xlu0 %8880
        %v8914 = vrot.slane %v8642, 2
        %v8915 = vrot.slane %v8643, 2
        %v8916 = vsel %vm442, %v8914, %v8915
        %v8917 = vrot.slane %v8644, 2
        %v8918 = vsel %vm442, %v8915, %v8917
        %v8919 = vrot.slane %v8645, 2
        %v8920 = vrot.slane %v8646, 2
        %v8921 = vsel %vm442, %v8919, %v8920
        %v8922 = vrot.slane %v8647, 2
        %v8923 = vsel %vm442, %v8920, %v8922
        %v8924 = vrot.slane %v8648, 2
        %v8925 = vrot.slane %v8649, 2
        %v8926 = vsel %vm442, %v8924, %v8925
        %v8927 = vrot.slane %v8650, 2
        %v8928 = vsel %vm442, %v8925, %v8927
        %v8929 = vrot.slane %v8651, 2
        %v8930 = vrot.slane %v8652, 2
        %v8931 = vsel %vm442, %v8929, %v8930
        %v8932 = vrot.slane %v8653, 2
        %v8933 = vsel %vm442, %v8930, %v8932
        %v8934 = vrot.slane %v8654, 2
        %v8935 = vrot.slane %v8655, 2
        %v8936 = vsel %vm442, %v8934, %v8935
        %v8937 = vrot.slane %v8656, 2
        %v8938 = vsel %vm442, %v8935, %v8937
        %v8939 = vrot.slane %v8657, 2
        %v8940 = vrot.slane %v8658, 2
        %v8941 = vsel %vm442, %v8939, %v8940
        %v8942 = vrot.slane %v8659, 2
        %v8943 = vsel %vm442, %v8940, %v8942
        %v8944 = vrot.slane %v8660, 2
        %v8945 = vrot.slane %v8661, 2
        %v8946 = vsel %vm442, %v8944, %v8945
        %v8947 = vrot.slane %v8662, 2
        %v8948 = vsel %vm442, %v8945, %v8947
        %v8949 = vrot.slane %v8663, 2
        %v8950 = vrot.slane %v8664, 2
        %v8951 = vsel %vm442, %v8949, %v8950
        %v8952 = vrot.slane %v8665, 2
        %v8953 = vsel %vm442, %v8950, %v8952
        %v8954 = vrot.slane %v8666, 2
        %v8955 = vrot.slane %v8667, 2
        %v8956 = vsel %vm442, %v8954, %v8955
        %v8957 = vrot.slane %v8668, 2
        %v8958 = vsel %vm442, %v8955, %v8957
        %v8959 = vrot.slane %v8669, 2
        %v8960 = vrot.slane %v8670, 2
        %v8961 = vsel %vm442, %v8959, %v8960
        %v8962 = vrot.slane %v8671, 2
        %v8963 = vsel %vm442, %v8960, %v8962
        %v8964 = vrot.slane %v8672, 2
        %v8965 = vrot.slane %v8673, 2
        %v8966 = vsel %vm442, %v8964, %v8965
        %v8967 = vrot.slane %v8674, 2
        %v8968 = vsel %vm442, %v8965, %v8967
        %v8969 = vrot.slane %v8675, 2
        %v8970 = vrot.slane %v8676, 2
        %v8971 = vsel %vm442, %v8969, %v8970
        %v8972 = vrot.slane %v8677, 2
        %v8973 = vsel %vm442, %v8970, %v8972
        %v8974 = vrot.slane %v8678, 2
        %v8975 = vrot.slane %v8679, 2
        %v8976 = vsel %vm442, %v8974, %v8975
        %v8977 = vrot.slane %v8680, 2
        %v8978 = vsel %vm442, %v8975, %v8977
        %v8979 = vrot.slane %v8681, 2
        %v8980 = vrot.slane %v8682, 2
        %v8981 = vsel %vm442, %v8979, %v8980
        %v8982 = vrot.slane %v8683, 2
        %v8983 = vsel %vm442, %v8980, %v8982
        %v8984 = vrot.slane %v8684, 2
        %v8985 = vrot.slane %v8685, 2
        %v8986 = vsel %vm442, %v8984, %v8985
        %v8987 = vrot.slane %v8686, 2
        %v8988 = vsel %vm442, %v8985, %v8987
        %v8989 = vrot.slane %v8687, 2
        %v8990 = vrot.slane %v8688, 2
        %v8991 = vsel %vm442, %v8989, %v8990
        %v8992 = vrot.slane %v8689, 2
        %v8993 = vsel %vm442, %v8990, %v8992
        %8994 = vrot.lane.b32.xlu0 %v8916, 6
        %v8995 = vpop.permute.xlu0 %8994
        %8996 = vrot.lane.b32.xlu0 %v8918, 6
        %v8997 = vpop.permute.xlu0 %8996
        %8998 = vrot.lane.b32.xlu0 %v8921, 6
        %v8999 = vpop.permute.xlu0 %8998
        %9000 = vrot.lane.b32.xlu0 %v8923, 6
        %v9001 = vpop.permute.xlu0 %9000
        %9002 = vrot.lane.b32.xlu0 %v8926, 6
        %v9003 = vpop.permute.xlu0 %9002
        %9004 = vrot.lane.b32.xlu0 %v8928, 6
        %v9005 = vpop.permute.xlu0 %9004
        %9006 = vrot.lane.b32.xlu0 %v8931, 6
        %v9007 = vpop.permute.xlu0 %9006
        %9008 = vrot.lane.b32.xlu0 %v8933, 6
        %v9009 = vpop.permute.xlu0 %9008
        %9010 = vrot.lane.b32.xlu0 %v8936, 6
        %v9011 = vpop.permute.xlu0 %9010
        %9012 = vrot.lane.b32.xlu0 %v8938, 6
        %v9013 = vpop.permute.xlu0 %9012
        %9014 = vrot.lane.b32.xlu0 %v8941, 6
        %v9015 = vpop.permute.xlu0 %9014
        %9016 = vrot.lane.b32.xlu0 %v8943, 6
        %v9017 = vpop.permute.xlu0 %9016
        %9018 = vrot.lane.b32.xlu0 %v8946, 6
        %v9019 = vpop.permute.xlu0 %9018
        %9020 = vrot.lane.b32.xlu0 %v8948, 6
        %v9021 = vpop.permute.xlu0 %9020
        %9022 = vrot.lane.b32.xlu0 %v8951, 6
        %v9023 = vpop.permute.xlu0 %9022
        %9024 = vrot.lane.b32.xlu0 %v8953, 6
        %v9025 = vpop.permute.xlu0 %9024
        %9026 = vrot.lane.b32.xlu0 %v8956, 6
        %v9027 = vpop.permute.xlu0 %9026
        %9028 = vrot.lane.b32.xlu0 %v8958, 6
        %v9029 = vpop.permute.xlu0 %9028
        %9030 = vrot.lane.b32.xlu0 %v8961, 6
        %v9031 = vpop.permute.xlu0 %9030
        %9032 = vrot.lane.b32.xlu0 %v8963, 6
        %v9033 = vpop.permute.xlu0 %9032
        %9034 = vrot.lane.b32.xlu0 %v8966, 6
        %v9035 = vpop.permute.xlu0 %9034
        %9036 = vrot.lane.b32.xlu0 %v8968, 6
        %v9037 = vpop.permute.xlu0 %9036
        %9038 = vrot.lane.b32.xlu0 %v8971, 6
        %v9039 = vpop.permute.xlu0 %9038
        %9040 = vrot.lane.b32.xlu0 %v8973, 6
        %v9041 = vpop.permute.xlu0 %9040
        %9042 = vrot.lane.b32.xlu0 %v8976, 6
        %v9043 = vpop.permute.xlu0 %9042
        %9044 = vrot.lane.b32.xlu0 %v8978, 6
        %v9045 = vpop.permute.xlu0 %9044
        %9046 = vrot.lane.b32.xlu0 %v8981, 6
        %v9047 = vpop.permute.xlu0 %9046
        %9048 = vrot.lane.b32.xlu0 %v8983, 6
        %v9049 = vpop.permute.xlu0 %9048
        %9050 = vrot.lane.b32.xlu0 %v8986, 6
        %v9051 = vpop.permute.xlu0 %9050
        %9052 = vrot.lane.b32.xlu0 %v8988, 6
        %v9053 = vpop.permute.xlu0 %9052
        %9054 = vrot.lane.b32.xlu0 %v8991, 6
        %v9055 = vpop.permute.xlu0 %9054
        %9056 = vrot.lane.b32.xlu0 %v8993, 6
        %v9057 = vpop.permute.xlu0 %9056
        %v9090 = vrot.slane %v8642, 3
        %v9091 = vrot.slane %v8643, 3
        %v9092 = vsel %vm619, %v9090, %v9091
        %v9093 = vrot.slane %v8644, 3
        %v9094 = vsel %vm619, %v9091, %v9093
        %v9095 = vrot.slane %v8645, 3
        %v9096 = vrot.slane %v8646, 3
        %v9097 = vsel %vm619, %v9095, %v9096
        %v9098 = vrot.slane %v8647, 3
        %v9099 = vsel %vm619, %v9096, %v9098
        %v9100 = vrot.slane %v8648, 3
        %v9101 = vrot.slane %v8649, 3
        %v9102 = vsel %vm619, %v9100, %v9101
        %v9103 = vrot.slane %v8650, 3
        %v9104 = vsel %vm619, %v9101, %v9103
        %v9105 = vrot.slane %v8651, 3
        %v9106 = vrot.slane %v8652, 3
        %v9107 = vsel %vm619, %v9105, %v9106
        %v9108 = vrot.slane %v8653, 3
        %v9109 = vsel %vm619, %v9106, %v9108
        %v9110 = vrot.slane %v8654, 3
        %v9111 = vrot.slane %v8655, 3
        %v9112 = vsel %vm619, %v9110, %v9111
        %v9113 = vrot.slane %v8656, 3
        %v9114 = vsel %vm619, %v9111, %v9113
        %v9115 = vrot.slane %v8657, 3
        %v9116 = vrot.slane %v8658, 3
        %v9117 = vsel %vm619, %v9115, %v9116
        %v9118 = vrot.slane %v8659, 3
        %v9119 = vsel %vm619, %v9116, %v9118
        %v9120 = vrot.slane %v8660, 3
        %v9121 = vrot.slane %v8661, 3
        %v9122 = vsel %vm619, %v9120, %v9121
        %v9123 = vrot.slane %v8662, 3
        %v9124 = vsel %vm619, %v9121, %v9123
        %v9125 = vrot.slane %v8663, 3
        %v9126 = vrot.slane %v8664, 3
        %v9127 = vsel %vm619, %v9125, %v9126
        %v9128 = vrot.slane %v8665, 3
        %v9129 = vsel %vm619, %v9126, %v9128
        %v9130 = vrot.slane %v8666, 3
        %v9131 = vrot.slane %v8667, 3
        %v9132 = vsel %vm619, %v9130, %v9131
        %v9133 = vrot.slane %v8668, 3
        %v9134 = vsel %vm619, %v9131, %v9133
        %v9135 = vrot.slane %v8669, 3
        %v9136 = vrot.slane %v8670, 3
        %v9137 = vsel %vm619, %v9135, %v9136
        %v9138 = vrot.slane %v8671, 3
        %v9139 = vsel %vm619, %v9136, %v9138
        %v9140 = vrot.slane %v8672, 3
        %v9141 = vrot.slane %v8673, 3
        %v9142 = vsel %vm619, %v9140, %v9141
        %v9143 = vrot.slane %v8674, 3
        %v9144 = vsel %vm619, %v9141, %v9143
        %v9145 = vrot.slane %v8675, 3
        %v9146 = vrot.slane %v8676, 3
        %v9147 = vsel %vm619, %v9145, %v9146
        %v9148 = vrot.slane %v8677, 3
        %v9149 = vsel %vm619, %v9146, %v9148
        %v9150 = vrot.slane %v8678, 3
        %v9151 = vrot.slane %v8679, 3
        %v9152 = vsel %vm619, %v9150, %v9151
        %v9153 = vrot.slane %v8680, 3
        %v9154 = vsel %vm619, %v9151, %v9153
        %v9155 = vrot.slane %v8681, 3
        %v9156 = vrot.slane %v8682, 3
        %v9157 = vsel %vm619, %v9155, %v9156
        %v9158 = vrot.slane %v8683, 3
        %v9159 = vsel %vm619, %v9156, %v9158
        %v9160 = vrot.slane %v8684, 3
        %v9161 = vrot.slane %v8685, 3
        %v9162 = vsel %vm619, %v9160, %v9161
        %v9163 = vrot.slane %v8686, 3
        %v9164 = vsel %vm619, %v9161, %v9163
        %v9165 = vrot.slane %v8687, 3
        %v9166 = vrot.slane %v8688, 3
        %v9167 = vsel %vm619, %v9165, %v9166
        %v9168 = vrot.slane %v8689, 3
        %v9169 = vsel %vm619, %v9166, %v9168
        %9170 = vrot.lane.b32.xlu0 %v9092, 9
        %v9171 = vpop.permute.xlu0 %9170
        %9172 = vrot.lane.b32.xlu0 %v9094, 9
        %v9173 = vpop.permute.xlu0 %9172
        %9174 = vrot.lane.b32.xlu0 %v9097, 9
        %v9175 = vpop.permute.xlu0 %9174
        %9176 = vrot.lane.b32.xlu0 %v9099, 9
        %v9177 = vpop.permute.xlu0 %9176
        %9178 = vrot.lane.b32.xlu0 %v9102, 9
        %v9179 = vpop.permute.xlu0 %9178
        %9180 = vrot.lane.b32.xlu0 %v9104, 9
        %v9181 = vpop.permute.xlu0 %9180
        %9182 = vrot.lane.b32.xlu0 %v9107, 9
        %v9183 = vpop.permute.xlu0 %9182
        %9184 = vrot.lane.b32.xlu0 %v9109, 9
        %v9185 = vpop.permute.xlu0 %9184
        %9186 = vrot.lane.b32.xlu0 %v9112, 9
        %v9187 = vpop.permute.xlu0 %9186
        %9188 = vrot.lane.b32.xlu0 %v9114, 9
        %v9189 = vpop.permute.xlu0 %9188
        %9190 = vrot.lane.b32.xlu0 %v9117, 9
        %v9191 = vpop.permute.xlu0 %9190
        %9192 = vrot.lane.b32.xlu0 %v9119, 9
        %v9193 = vpop.permute.xlu0 %9192
        %9194 = vrot.lane.b32.xlu0 %v9122, 9
        %v9195 = vpop.permute.xlu0 %9194
        %9196 = vrot.lane.b32.xlu0 %v9124, 9
        %v9197 = vpop.permute.xlu0 %9196
        %9198 = vrot.lane.b32.xlu0 %v9127, 9
        %v9199 = vpop.permute.xlu0 %9198
        %9200 = vrot.lane.b32.xlu0 %v9129, 9
        %v9201 = vpop.permute.xlu0 %9200
        %9202 = vrot.lane.b32.xlu0 %v9132, 9
        %v9203 = vpop.permute.xlu0 %9202
        %9204 = vrot.lane.b32.xlu0 %v9134, 9
        %v9205 = vpop.permute.xlu0 %9204
        %9206 = vrot.lane.b32.xlu0 %v9137, 9
        %v9207 = vpop.permute.xlu0 %9206
        %9208 = vrot.lane.b32.xlu0 %v9139, 9
        %v9209 = vpop.permute.xlu0 %9208
        %9210 = vrot.lane.b32.xlu0 %v9142, 9
        %v9211 = vpop.permute.xlu0 %9210
        %9212 = vrot.lane.b32.xlu0 %v9144, 9
        %v9213 = vpop.permute.xlu0 %9212
        %9214 = vrot.lane.b32.xlu0 %v9147, 9
        %v9215 = vpop.permute.xlu0 %9214
        %9216 = vrot.lane.b32.xlu0 %v9149, 9
        %v9217 = vpop.permute.xlu0 %9216
        %9218 = vrot.lane.b32.xlu0 %v9152, 9
        %v9219 = vpop.permute.xlu0 %9218
        %9220 = vrot.lane.b32.xlu0 %v9154, 9
        %v9221 = vpop.permute.xlu0 %9220
        %9222 = vrot.lane.b32.xlu0 %v9157, 9
        %v9223 = vpop.permute.xlu0 %9222
        %9224 = vrot.lane.b32.xlu0 %v9159, 9
        %v9225 = vpop.permute.xlu0 %9224
        %9226 = vrot.lane.b32.xlu0 %v9162, 9
        %v9227 = vpop.permute.xlu0 %9226
        %9228 = vrot.lane.b32.xlu0 %v9164, 9
        %v9229 = vpop.permute.xlu0 %9228
        %9230 = vrot.lane.b32.xlu0 %v9167, 9
        %v9231 = vpop.permute.xlu0 %9230
        %9232 = vrot.lane.b32.xlu0 %v9169, 9
        %v9233 = vpop.permute.xlu0 %9232
        %v9266 = vrot.slane %v8642, 4
        %v9267 = vrot.slane %v8643, 4
        %v9268 = vsel %vm796, %v9266, %v9267
        %v9269 = vrot.slane %v8644, 4
        %v9270 = vsel %vm796, %v9267, %v9269
        %v9271 = vrot.slane %v8645, 4
        %v9272 = vrot.slane %v8646, 4
        %v9273 = vsel %vm796, %v9271, %v9272
        %v9274 = vrot.slane %v8647, 4
        %v9275 = vsel %vm796, %v9272, %v9274
        %v9276 = vrot.slane %v8648, 4
        %v9277 = vrot.slane %v8649, 4
        %v9278 = vsel %vm796, %v9276, %v9277
        %v9279 = vrot.slane %v8650, 4
        %v9280 = vsel %vm796, %v9277, %v9279
        %v9281 = vrot.slane %v8651, 4
        %v9282 = vrot.slane %v8652, 4
        %v9283 = vsel %vm796, %v9281, %v9282
        %v9284 = vrot.slane %v8653, 4
        %v9285 = vsel %vm796, %v9282, %v9284
        %v9286 = vrot.slane %v8654, 4
        %v9287 = vrot.slane %v8655, 4
        %v9288 = vsel %vm796, %v9286, %v9287
        %v9289 = vrot.slane %v8656, 4
        %v9290 = vsel %vm796, %v9287, %v9289
        %v9291 = vrot.slane %v8657, 4
        %v9292 = vrot.slane %v8658, 4
        %v9293 = vsel %vm796, %v9291, %v9292
        %v9294 = vrot.slane %v8659, 4
        %v9295 = vsel %vm796, %v9292, %v9294
        %v9296 = vrot.slane %v8660, 4
        %v9297 = vrot.slane %v8661, 4
        %v9298 = vsel %vm796, %v9296, %v9297
        %v9299 = vrot.slane %v8662, 4
        %v9300 = vsel %vm796, %v9297, %v9299
        %v9301 = vrot.slane %v8663, 4
        %v9302 = vrot.slane %v8664, 4
        %v9303 = vsel %vm796, %v9301, %v9302
        %v9304 = vrot.slane %v8665, 4
        %v9305 = vsel %vm796, %v9302, %v9304
        %v9306 = vrot.slane %v8666, 4
        %v9307 = vrot.slane %v8667, 4
        %v9308 = vsel %vm796, %v9306, %v9307
        %v9309 = vrot.slane %v8668, 4
        %v9310 = vsel %vm796, %v9307, %v9309
        %v9311 = vrot.slane %v8669, 4
        %v9312 = vrot.slane %v8670, 4
        %v9313 = vsel %vm796, %v9311, %v9312
        %v9314 = vrot.slane %v8671, 4
        %v9315 = vsel %vm796, %v9312, %v9314
        %v9316 = vrot.slane %v8672, 4
        %v9317 = vrot.slane %v8673, 4
        %v9318 = vsel %vm796, %v9316, %v9317
        %v9319 = vrot.slane %v8674, 4
        %v9320 = vsel %vm796, %v9317, %v9319
        %v9321 = vrot.slane %v8675, 4
        %v9322 = vrot.slane %v8676, 4
        %v9323 = vsel %vm796, %v9321, %v9322
        %v9324 = vrot.slane %v8677, 4
        %v9325 = vsel %vm796, %v9322, %v9324
        %v9326 = vrot.slane %v8678, 4
        %v9327 = vrot.slane %v8679, 4
        %v9328 = vsel %vm796, %v9326, %v9327
        %v9329 = vrot.slane %v8680, 4
        %v9330 = vsel %vm796, %v9327, %v9329
        %v9331 = vrot.slane %v8681, 4
        %v9332 = vrot.slane %v8682, 4
        %v9333 = vsel %vm796, %v9331, %v9332
        %v9334 = vrot.slane %v8683, 4
        %v9335 = vsel %vm796, %v9332, %v9334
        %v9336 = vrot.slane %v8684, 4
        %v9337 = vrot.slane %v8685, 4
        %v9338 = vsel %vm796, %v9336, %v9337
        %v9339 = vrot.slane %v8686, 4
        %v9340 = vsel %vm796, %v9337, %v9339
        %v9341 = vrot.slane %v8687, 4
        %v9342 = vrot.slane %v8688, 4
        %v9343 = vsel %vm796, %v9341, %v9342
        %v9344 = vrot.slane %v8689, 4
        %v9345 = vsel %vm796, %v9342, %v9344
        %9346 = vrot.lane.b32.xlu0 %v9268, 12
        %v9347 = vpop.permute.xlu0 %9346
        %9348 = vrot.lane.b32.xlu0 %v9270, 12
        %v9349 = vpop.permute.xlu0 %9348
        %9350 = vrot.lane.b32.xlu0 %v9273, 12
        %v9351 = vpop.permute.xlu0 %9350
        %9352 = vrot.lane.b32.xlu0 %v9275, 12
        %v9353 = vpop.permute.xlu0 %9352
        %9354 = vrot.lane.b32.xlu0 %v9278, 12
        %v9355 = vpop.permute.xlu0 %9354
        %9356 = vrot.lane.b32.xlu0 %v9280, 12
        %v9357 = vpop.permute.xlu0 %9356
        %9358 = vrot.lane.b32.xlu0 %v9283, 12
        %v9359 = vpop.permute.xlu0 %9358
        %9360 = vrot.lane.b32.xlu0 %v9285, 12
        %v9361 = vpop.permute.xlu0 %9360
        %9362 = vrot.lane.b32.xlu0 %v9288, 12
        %v9363 = vpop.permute.xlu0 %9362
        %9364 = vrot.lane.b32.xlu0 %v9290, 12
        %v9365 = vpop.permute.xlu0 %9364
        %9366 = vrot.lane.b32.xlu0 %v9293, 12
        %v9367 = vpop.permute.xlu0 %9366
        %9368 = vrot.lane.b32.xlu0 %v9295, 12
        %v9369 = vpop.permute.xlu0 %9368
        %9370 = vrot.lane.b32.xlu0 %v9298, 12
        %v9371 = vpop.permute.xlu0 %9370
        %9372 = vrot.lane.b32.xlu0 %v9300, 12
        %v9373 = vpop.permute.xlu0 %9372
        %9374 = vrot.lane.b32.xlu0 %v9303, 12
        %v9375 = vpop.permute.xlu0 %9374
        %9376 = vrot.lane.b32.xlu0 %v9305, 12
        %v9377 = vpop.permute.xlu0 %9376
        %9378 = vrot.lane.b32.xlu0 %v9308, 12
        %v9379 = vpop.permute.xlu0 %9378
        %9380 = vrot.lane.b32.xlu0 %v9310, 12
        %v9381 = vpop.permute.xlu0 %9380
        %9382 = vrot.lane.b32.xlu0 %v9313, 12
        %v9383 = vpop.permute.xlu0 %9382
        %9384 = vrot.lane.b32.xlu0 %v9315, 12
        %v9385 = vpop.permute.xlu0 %9384
        %9386 = vrot.lane.b32.xlu0 %v9318, 12
        %v9387 = vpop.permute.xlu0 %9386
        %9388 = vrot.lane.b32.xlu0 %v9320, 12
        %v9389 = vpop.permute.xlu0 %9388
        %9390 = vrot.lane.b32.xlu0 %v9323, 12
        %v9391 = vpop.permute.xlu0 %9390
        %9392 = vrot.lane.b32.xlu0 %v9325, 12
        %v9393 = vpop.permute.xlu0 %9392
        %9394 = vrot.lane.b32.xlu0 %v9328, 12
        %v9395 = vpop.permute.xlu0 %9394
        %9396 = vrot.lane.b32.xlu0 %v9330, 12
        %v9397 = vpop.permute.xlu0 %9396
        %9398 = vrot.lane.b32.xlu0 %v9333, 12
        %v9399 = vpop.permute.xlu0 %9398
        %9400 = vrot.lane.b32.xlu0 %v9335, 12
        %v9401 = vpop.permute.xlu0 %9400
        %9402 = vrot.lane.b32.xlu0 %v9338, 12
        %v9403 = vpop.permute.xlu0 %9402
        %9404 = vrot.lane.b32.xlu0 %v9340, 12
        %v9405 = vpop.permute.xlu0 %9404
        %9406 = vrot.lane.b32.xlu0 %v9343, 12
        %v9407 = vpop.permute.xlu0 %9406
        %9408 = vrot.lane.b32.xlu0 %v9345, 12
        %v9409 = vpop.permute.xlu0 %9408
        %v9442 = vrot.slane %v8642, 5
        %v9443 = vrot.slane %v8643, 5
        %v9444 = vsel %vm973, %v9442, %v9443
        %v9445 = vrot.slane %v8644, 5
        %v9446 = vsel %vm973, %v9443, %v9445
        %v9447 = vrot.slane %v8645, 5
        %v9448 = vrot.slane %v8646, 5
        %v9449 = vsel %vm973, %v9447, %v9448
        %v9450 = vrot.slane %v8647, 5
        %v9451 = vsel %vm973, %v9448, %v9450
        %v9452 = vrot.slane %v8648, 5
        %v9453 = vrot.slane %v8649, 5
        %v9454 = vsel %vm973, %v9452, %v9453
        %v9455 = vrot.slane %v8650, 5
        %v9456 = vsel %vm973, %v9453, %v9455
        %v9457 = vrot.slane %v8651, 5
        %v9458 = vrot.slane %v8652, 5
        %v9459 = vsel %vm973, %v9457, %v9458
        %v9460 = vrot.slane %v8653, 5
        %v9461 = vsel %vm973, %v9458, %v9460
        %v9462 = vrot.slane %v8654, 5
        %v9463 = vrot.slane %v8655, 5
        %v9464 = vsel %vm973, %v9462, %v9463
        %v9465 = vrot.slane %v8656, 5
        %v9466 = vsel %vm973, %v9463, %v9465
        %v9467 = vrot.slane %v8657, 5
        %v9468 = vrot.slane %v8658, 5
        %v9469 = vsel %vm973, %v9467, %v9468
        %v9470 = vrot.slane %v8659, 5
        %v9471 = vsel %vm973, %v9468, %v9470
        %v9472 = vrot.slane %v8660, 5
        %v9473 = vrot.slane %v8661, 5
        %v9474 = vsel %vm973, %v9472, %v9473
        %v9475 = vrot.slane %v8662, 5
        %v9476 = vsel %vm973, %v9473, %v9475
        %v9477 = vrot.slane %v8663, 5
        %v9478 = vrot.slane %v8664, 5
        %v9479 = vsel %vm973, %v9477, %v9478
        %v9480 = vrot.slane %v8665, 5
        %v9481 = vsel %vm973, %v9478, %v9480
        %v9482 = vrot.slane %v8666, 5
        %v9483 = vrot.slane %v8667, 5
        %v9484 = vsel %vm973, %v9482, %v9483
        %v9485 = vrot.slane %v8668, 5
        %v9486 = vsel %vm973, %v9483, %v9485
        %v9487 = vrot.slane %v8669, 5
        %v9488 = vrot.slane %v8670, 5
        %v9489 = vsel %vm973, %v9487, %v9488
        %v9490 = vrot.slane %v8671, 5
        %v9491 = vsel %vm973, %v9488, %v9490
        %v9492 = vrot.slane %v8672, 5
        %v9493 = vrot.slane %v8673, 5
        %v9494 = vsel %vm973, %v9492, %v9493
        %v9495 = vrot.slane %v8674, 5
        %v9496 = vsel %vm973, %v9493, %v9495
        %v9497 = vrot.slane %v8675, 5
        %v9498 = vrot.slane %v8676, 5
        %v9499 = vsel %vm973, %v9497, %v9498
        %v9500 = vrot.slane %v8677, 5
        %v9501 = vsel %vm973, %v9498, %v9500
        %v9502 = vrot.slane %v8678, 5
        %v9503 = vrot.slane %v8679, 5
        %v9504 = vsel %vm973, %v9502, %v9503
        %v9505 = vrot.slane %v8680, 5
        %v9506 = vsel %vm973, %v9503, %v9505
        %v9507 = vrot.slane %v8681, 5
        %v9508 = vrot.slane %v8682, 5
        %v9509 = vsel %vm973, %v9507, %v9508
        %v9510 = vrot.slane %v8683, 5
        %v9511 = vsel %vm973, %v9508, %v9510
        %v9512 = vrot.slane %v8684, 5
        %v9513 = vrot.slane %v8685, 5
        %v9514 = vsel %vm973, %v9512, %v9513
        %v9515 = vrot.slane %v8686, 5
        %v9516 = vsel %vm973, %v9513, %v9515
        %v9517 = vrot.slane %v8687, 5
        %v9518 = vrot.slane %v8688, 5
        %v9519 = vsel %vm973, %v9517, %v9518
        %v9520 = vrot.slane %v8689, 5
        %v9521 = vsel %vm973, %v9518, %v9520
        %9522 = vrot.lane.b32.xlu0 %v9444, 15
        %v9523 = vpop.permute.xlu0 %9522
        %9524 = vrot.lane.b32.xlu0 %v9446, 15
        %v9525 = vpop.permute.xlu0 %9524
        %9526 = vrot.lane.b32.xlu0 %v9449, 15
        %v9527 = vpop.permute.xlu0 %9526
        %9528 = vrot.lane.b32.xlu0 %v9451, 15
        %v9529 = vpop.permute.xlu0 %9528
        %9530 = vrot.lane.b32.xlu0 %v9454, 15
        %v9531 = vpop.permute.xlu0 %9530
        %9532 = vrot.lane.b32.xlu0 %v9456, 15
        %v9533 = vpop.permute.xlu0 %9532
        %9534 = vrot.lane.b32.xlu0 %v9459, 15
        %v9535 = vpop.permute.xlu0 %9534
        %9536 = vrot.lane.b32.xlu0 %v9461, 15
        %v9537 = vpop.permute.xlu0 %9536
        %9538 = vrot.lane.b32.xlu0 %v9464, 15
        %v9539 = vpop.permute.xlu0 %9538
        %9540 = vrot.lane.b32.xlu0 %v9466, 15
        %v9541 = vpop.permute.xlu0 %9540
        %9542 = vrot.lane.b32.xlu0 %v9469, 15
        %v9543 = vpop.permute.xlu0 %9542
        %9544 = vrot.lane.b32.xlu0 %v9471, 15
        %v9545 = vpop.permute.xlu0 %9544
        %9546 = vrot.lane.b32.xlu0 %v9474, 15
        %v9547 = vpop.permute.xlu0 %9546
        %9548 = vrot.lane.b32.xlu0 %v9476, 15
        %v9549 = vpop.permute.xlu0 %9548
        %9550 = vrot.lane.b32.xlu0 %v9479, 15
        %v9551 = vpop.permute.xlu0 %9550
        %9552 = vrot.lane.b32.xlu0 %v9481, 15
        %v9553 = vpop.permute.xlu0 %9552
        %9554 = vrot.lane.b32.xlu0 %v9484, 15
        %v9555 = vpop.permute.xlu0 %9554
        %9556 = vrot.lane.b32.xlu0 %v9486, 15
        %v9557 = vpop.permute.xlu0 %9556
        %9558 = vrot.lane.b32.xlu0 %v9489, 15
        %v9559 = vpop.permute.xlu0 %9558
        %9560 = vrot.lane.b32.xlu0 %v9491, 15
        %v9561 = vpop.permute.xlu0 %9560
        %9562 = vrot.lane.b32.xlu0 %v9494, 15
        %v9563 = vpop.permute.xlu0 %9562
        %9564 = vrot.lane.b32.xlu0 %v9496, 15
        %v9565 = vpop.permute.xlu0 %9564
        %9566 = vrot.lane.b32.xlu0 %v9499, 15
        %v9567 = vpop.permute.xlu0 %9566
        %9568 = vrot.lane.b32.xlu0 %v9501, 15
        %v9569 = vpop.permute.xlu0 %9568
        %9570 = vrot.lane.b32.xlu0 %v9504, 15
        %v9571 = vpop.permute.xlu0 %9570
        %9572 = vrot.lane.b32.xlu0 %v9506, 15
        %v9573 = vpop.permute.xlu0 %9572
        %9574 = vrot.lane.b32.xlu0 %v9509, 15
        %v9575 = vpop.permute.xlu0 %9574
        %9576 = vrot.lane.b32.xlu0 %v9511, 15
        %v9577 = vpop.permute.xlu0 %9576
        %9578 = vrot.lane.b32.xlu0 %v9514, 15
        %v9579 = vpop.permute.xlu0 %9578
        %9580 = vrot.lane.b32.xlu0 %v9516, 15
        %v9581 = vpop.permute.xlu0 %9580
        %9582 = vrot.lane.b32.xlu0 %v9519, 15
        %v9583 = vpop.permute.xlu0 %9582
        %9584 = vrot.lane.b32.xlu0 %v9521, 15
        %v9585 = vpop.permute.xlu0 %9584
        %v9618 = vrot.slane %v8642, 6
        %v9619 = vrot.slane %v8643, 6
        %v9620 = vsel %vm1150, %v9618, %v9619
        %v9621 = vrot.slane %v8644, 6
        %v9622 = vsel %vm1150, %v9619, %v9621
        %v9623 = vrot.slane %v8645, 6
        %v9624 = vrot.slane %v8646, 6
        %v9625 = vsel %vm1150, %v9623, %v9624
        %v9626 = vrot.slane %v8647, 6
        %v9627 = vsel %vm1150, %v9624, %v9626
        %v9628 = vrot.slane %v8648, 6
        %v9629 = vrot.slane %v8649, 6
        %v9630 = vsel %vm1150, %v9628, %v9629
        %v9631 = vrot.slane %v8650, 6
        %v9632 = vsel %vm1150, %v9629, %v9631
        %v9633 = vrot.slane %v8651, 6
        %v9634 = vrot.slane %v8652, 6
        %v9635 = vsel %vm1150, %v9633, %v9634
        %v9636 = vrot.slane %v8653, 6
        %v9637 = vsel %vm1150, %v9634, %v9636
        %v9638 = vrot.slane %v8654, 6
        %v9639 = vrot.slane %v8655, 6
        %v9640 = vsel %vm1150, %v9638, %v9639
        %v9641 = vrot.slane %v8656, 6
        %v9642 = vsel %vm1150, %v9639, %v9641
        %v9643 = vrot.slane %v8657, 6
        %v9644 = vrot.slane %v8658, 6
        %v9645 = vsel %vm1150, %v9643, %v9644
        %v9646 = vrot.slane %v8659, 6
        %v9647 = vsel %vm1150, %v9644, %v9646
        %v9648 = vrot.slane %v8660, 6
        %v9649 = vrot.slane %v8661, 6
        %v9650 = vsel %vm1150, %v9648, %v9649
        %v9651 = vrot.slane %v8662, 6
        %v9652 = vsel %vm1150, %v9649, %v9651
        %v9653 = vrot.slane %v8663, 6
        %v9654 = vrot.slane %v8664, 6
        %v9655 = vsel %vm1150, %v9653, %v9654
        %v9656 = vrot.slane %v8665, 6
        %v9657 = vsel %vm1150, %v9654, %v9656
        %v9658 = vrot.slane %v8666, 6
        %v9659 = vrot.slane %v8667, 6
        %v9660 = vsel %vm1150, %v9658, %v9659
        %v9661 = vrot.slane %v8668, 6
        %v9662 = vsel %vm1150, %v9659, %v9661
        %v9663 = vrot.slane %v8669, 6
        %v9664 = vrot.slane %v8670, 6
        %v9665 = vsel %vm1150, %v9663, %v9664
        %v9666 = vrot.slane %v8671, 6
        %v9667 = vsel %vm1150, %v9664, %v9666
        %v9668 = vrot.slane %v8672, 6
        %v9669 = vrot.slane %v8673, 6
        %v9670 = vsel %vm1150, %v9668, %v9669
        %v9671 = vrot.slane %v8674, 6
        %v9672 = vsel %vm1150, %v9669, %v9671
        %v9673 = vrot.slane %v8675, 6
        %v9674 = vrot.slane %v8676, 6
        %v9675 = vsel %vm1150, %v9673, %v9674
        %v9676 = vrot.slane %v8677, 6
        %v9677 = vsel %vm1150, %v9674, %v9676
        %v9678 = vrot.slane %v8678, 6
        %v9679 = vrot.slane %v8679, 6
        %v9680 = vsel %vm1150, %v9678, %v9679
        %v9681 = vrot.slane %v8680, 6
        %v9682 = vsel %vm1150, %v9679, %v9681
        %v9683 = vrot.slane %v8681, 6
        %v9684 = vrot.slane %v8682, 6
        %v9685 = vsel %vm1150, %v9683, %v9684
        %v9686 = vrot.slane %v8683, 6
        %v9687 = vsel %vm1150, %v9684, %v9686
        %v9688 = vrot.slane %v8684, 6
        %v9689 = vrot.slane %v8685, 6
        %v9690 = vsel %vm1150, %v9688, %v9689
        %v9691 = vrot.slane %v8686, 6
        %v9692 = vsel %vm1150, %v9689, %v9691
        %v9693 = vrot.slane %v8687, 6
        %v9694 = vrot.slane %v8688, 6
        %v9695 = vsel %vm1150, %v9693, %v9694
        %v9696 = vrot.slane %v8689, 6
        %v9697 = vsel %vm1150, %v9694, %v9696
        %9698 = vrot.lane.b32.xlu0 %v9620, 18
        %v9699 = vpop.permute.xlu0 %9698
        %9700 = vrot.lane.b32.xlu0 %v9622, 18
        %v9701 = vpop.permute.xlu0 %9700
        %9702 = vrot.lane.b32.xlu0 %v9625, 18
        %v9703 = vpop.permute.xlu0 %9702
        %9704 = vrot.lane.b32.xlu0 %v9627, 18
        %v9705 = vpop.permute.xlu0 %9704
        %9706 = vrot.lane.b32.xlu0 %v9630, 18
        %v9707 = vpop.permute.xlu0 %9706
        %9708 = vrot.lane.b32.xlu0 %v9632, 18
        %v9709 = vpop.permute.xlu0 %9708
        %9710 = vrot.lane.b32.xlu0 %v9635, 18
        %v9711 = vpop.permute.xlu0 %9710
        %9712 = vrot.lane.b32.xlu0 %v9637, 18
        %v9713 = vpop.permute.xlu0 %9712
        %9714 = vrot.lane.b32.xlu0 %v9640, 18
        %v9715 = vpop.permute.xlu0 %9714
        %9716 = vrot.lane.b32.xlu0 %v9642, 18
        %v9717 = vpop.permute.xlu0 %9716
        %9718 = vrot.lane.b32.xlu0 %v9645, 18
        %v9719 = vpop.permute.xlu0 %9718
        %9720 = vrot.lane.b32.xlu0 %v9647, 18
        %v9721 = vpop.permute.xlu0 %9720
        %9722 = vrot.lane.b32.xlu0 %v9650, 18
        %v9723 = vpop.permute.xlu0 %9722
        %9724 = vrot.lane.b32.xlu0 %v9652, 18
        %v9725 = vpop.permute.xlu0 %9724
        %9726 = vrot.lane.b32.xlu0 %v9655, 18
        %v9727 = vpop.permute.xlu0 %9726
        %9728 = vrot.lane.b32.xlu0 %v9657, 18
        %v9729 = vpop.permute.xlu0 %9728
        %9730 = vrot.lane.b32.xlu0 %v9660, 18
        %v9731 = vpop.permute.xlu0 %9730
        %9732 = vrot.lane.b32.xlu0 %v9662, 18
        %v9733 = vpop.permute.xlu0 %9732
        %9734 = vrot.lane.b32.xlu0 %v9665, 18
        %v9735 = vpop.permute.xlu0 %9734
        %9736 = vrot.lane.b32.xlu0 %v9667, 18
        %v9737 = vpop.permute.xlu0 %9736
        %9738 = vrot.lane.b32.xlu0 %v9670, 18
        %v9739 = vpop.permute.xlu0 %9738
        %9740 = vrot.lane.b32.xlu0 %v9672, 18
        %v9741 = vpop.permute.xlu0 %9740
        %9742 = vrot.lane.b32.xlu0 %v9675, 18
        %v9743 = vpop.permute.xlu0 %9742
        %9744 = vrot.lane.b32.xlu0 %v9677, 18
        %v9745 = vpop.permute.xlu0 %9744
        %9746 = vrot.lane.b32.xlu0 %v9680, 18
        %v9747 = vpop.permute.xlu0 %9746
        %9748 = vrot.lane.b32.xlu0 %v9682, 18
        %v9749 = vpop.permute.xlu0 %9748
        %9750 = vrot.lane.b32.xlu0 %v9685, 18
        %v9751 = vpop.permute.xlu0 %9750
        %9752 = vrot.lane.b32.xlu0 %v9687, 18
        %v9753 = vpop.permute.xlu0 %9752
        %9754 = vrot.lane.b32.xlu0 %v9690, 18
        %v9755 = vpop.permute.xlu0 %9754
        %9756 = vrot.lane.b32.xlu0 %v9692, 18
        %v9757 = vpop.permute.xlu0 %9756
        %9758 = vrot.lane.b32.xlu0 %v9695, 18
        %v9759 = vpop.permute.xlu0 %9758
        %9760 = vrot.lane.b32.xlu0 %v9697, 18
        %v9761 = vpop.permute.xlu0 %9760
        %v9794 = vsel %vm1327, %v8642, %v8819
        %v9795 = vsel %vm1327, %v8643, %v8821
        %v9796 = vsel %vm1327, %v8645, %v8823
        %v9797 = vsel %vm1327, %v8646, %v8825
        %v9798 = vsel %vm1327, %v8648, %v8827
        %v9799 = vsel %vm1327, %v8649, %v8829
        %v9800 = vsel %vm1327, %v8651, %v8831
        %v9801 = vsel %vm1327, %v8652, %v8833
        %v9802 = vsel %vm1327, %v8654, %v8835
        %v9803 = vsel %vm1327, %v8655, %v8837
        %v9804 = vsel %vm1327, %v8657, %v8839
        %v9805 = vsel %vm1327, %v8658, %v8841
        %v9806 = vsel %vm1327, %v8660, %v8843
        %v9807 = vsel %vm1327, %v8661, %v8845
        %v9808 = vsel %vm1327, %v8663, %v8847
        %v9809 = vsel %vm1327, %v8664, %v8849
        %v9810 = vsel %vm1327, %v8666, %v8851
        %v9811 = vsel %vm1327, %v8667, %v8853
        %v9812 = vsel %vm1327, %v8669, %v8855
        %v9813 = vsel %vm1327, %v8670, %v8857
        %v9814 = vsel %vm1327, %v8672, %v8859
        %v9815 = vsel %vm1327, %v8673, %v8861
        %v9816 = vsel %vm1327, %v8675, %v8863
        %v9817 = vsel %vm1327, %v8676, %v8865
        %v9818 = vsel %vm1327, %v8678, %v8867
        %v9819 = vsel %vm1327, %v8679, %v8869
        %v9820 = vsel %vm1327, %v8681, %v8871
        %v9821 = vsel %vm1327, %v8682, %v8873
        %v9822 = vsel %vm1327, %v8684, %v8875
        %v9823 = vsel %vm1327, %v8685, %v8877
        %v9824 = vsel %vm1327, %v8687, %v8879
        %v9825 = vsel %vm1327, %v8688, %v8881
        %v9826 = vsel %vm1360, %v9794, %v8995
        %v9827 = vsel %vm1360, %v9795, %v8997
        %v9828 = vsel %vm1360, %v9796, %v8999
        %v9829 = vsel %vm1360, %v9797, %v9001
        %v9830 = vsel %vm1360, %v9798, %v9003
        %v9831 = vsel %vm1360, %v9799, %v9005
        %v9832 = vsel %vm1360, %v9800, %v9007
        %v9833 = vsel %vm1360, %v9801, %v9009
        %v9834 = vsel %vm1360, %v9802, %v9011
        %v9835 = vsel %vm1360, %v9803, %v9013
        %v9836 = vsel %vm1360, %v9804, %v9015
        %v9837 = vsel %vm1360, %v9805, %v9017
        %v9838 = vsel %vm1360, %v9806, %v9019
        %v9839 = vsel %vm1360, %v9807, %v9021
        %v9840 = vsel %vm1360, %v9808, %v9023
        %v9841 = vsel %vm1360, %v9809, %v9025
        %v9842 = vsel %vm1360, %v9810, %v9027
        %v9843 = vsel %vm1360, %v9811, %v9029
        %v9844 = vsel %vm1360, %v9812, %v9031
        %v9845 = vsel %vm1360, %v9813, %v9033
        %v9846 = vsel %vm1360, %v9814, %v9035
        %v9847 = vsel %vm1360, %v9815, %v9037
        %v9848 = vsel %vm1360, %v9816, %v9039
        %v9849 = vsel %vm1360, %v9817, %v9041
        %v9850 = vsel %vm1360, %v9818, %v9043
        %v9851 = vsel %vm1360, %v9819, %v9045
        %v9852 = vsel %vm1360, %v9820, %v9047
        %v9853 = vsel %vm1360, %v9821, %v9049
        %v9854 = vsel %vm1360, %v9822, %v9051
        %v9855 = vsel %vm1360, %v9823, %v9053
        %v9856 = vsel %vm1360, %v9824, %v9055
        %v9857 = vsel %vm1360, %v9825, %v9057
        %v9858 = vsel %vm1393, %v9826, %v9171
        %v9859 = vsel %vm1393, %v9827, %v9173
        %v9860 = vsel %vm1393, %v9828, %v9175
        %v9861 = vsel %vm1393, %v9829, %v9177
        %v9862 = vsel %vm1393, %v9830, %v9179
        %v9863 = vsel %vm1393, %v9831, %v9181
        %v9864 = vsel %vm1393, %v9832, %v9183
        %v9865 = vsel %vm1393, %v9833, %v9185
        %v9866 = vsel %vm1393, %v9834, %v9187
        %v9867 = vsel %vm1393, %v9835, %v9189
        %v9868 = vsel %vm1393, %v9836, %v9191
        %v9869 = vsel %vm1393, %v9837, %v9193
        %v9870 = vsel %vm1393, %v9838, %v9195
        %v9871 = vsel %vm1393, %v9839, %v9197
        %v9872 = vsel %vm1393, %v9840, %v9199
        %v9873 = vsel %vm1393, %v9841, %v9201
        %v9874 = vsel %vm1393, %v9842, %v9203
        %v9875 = vsel %vm1393, %v9843, %v9205
        %v9876 = vsel %vm1393, %v9844, %v9207
        %v9877 = vsel %vm1393, %v9845, %v9209
        %v9878 = vsel %vm1393, %v9846, %v9211
        %v9879 = vsel %vm1393, %v9847, %v9213
        %v9880 = vsel %vm1393, %v9848, %v9215
        %v9881 = vsel %vm1393, %v9849, %v9217
        %v9882 = vsel %vm1393, %v9850, %v9219
        %v9883 = vsel %vm1393, %v9851, %v9221
        %v9884 = vsel %vm1393, %v9852, %v9223
        %v9885 = vsel %vm1393, %v9853, %v9225
        %v9886 = vsel %vm1393, %v9854, %v9227
        %v9887 = vsel %vm1393, %v9855, %v9229
        %v9888 = vsel %vm1393, %v9856, %v9231
        %v9889 = vsel %vm1393, %v9857, %v9233
        %v9890 = vsel %vm1426, %v9858, %v9347
        %v9891 = vsel %vm1426, %v9859, %v9349
        %v9892 = vsel %vm1426, %v9860, %v9351
        %v9893 = vsel %vm1426, %v9861, %v9353
        %v9894 = vsel %vm1426, %v9862, %v9355
        %v9895 = vsel %vm1426, %v9863, %v9357
        %v9896 = vsel %vm1426, %v9864, %v9359
        %v9897 = vsel %vm1426, %v9865, %v9361
        %v9898 = vsel %vm1426, %v9866, %v9363
        %v9899 = vsel %vm1426, %v9867, %v9365
        %v9900 = vsel %vm1426, %v9868, %v9367
        %v9901 = vsel %vm1426, %v9869, %v9369
        %v9902 = vsel %vm1426, %v9870, %v9371
        %v9903 = vsel %vm1426, %v9871, %v9373
        %v9904 = vsel %vm1426, %v9872, %v9375
        %v9905 = vsel %vm1426, %v9873, %v9377
        %v9906 = vsel %vm1426, %v9874, %v9379
        %v9907 = vsel %vm1426, %v9875, %v9381
        %v9908 = vsel %vm1426, %v9876, %v9383
        %v9909 = vsel %vm1426, %v9877, %v9385
        %v9910 = vsel %vm1426, %v9878, %v9387
        %v9911 = vsel %vm1426, %v9879, %v9389
        %v9912 = vsel %vm1426, %v9880, %v9391
        %v9913 = vsel %vm1426, %v9881, %v9393
        %v9914 = vsel %vm1426, %v9882, %v9395
        %v9915 = vsel %vm1426, %v9883, %v9397
        %v9916 = vsel %vm1426, %v9884, %v9399
        %v9917 = vsel %vm1426, %v9885, %v9401
        %v9918 = vsel %vm1426, %v9886, %v9403
        %v9919 = vsel %vm1426, %v9887, %v9405
        %v9920 = vsel %vm1426, %v9888, %v9407
        %v9921 = vsel %vm1426, %v9889, %v9409
        %v9922 = vsel %vm1459, %v9890, %v9523
        %v9923 = vsel %vm1459, %v9891, %v9525
        %v9924 = vsel %vm1459, %v9892, %v9527
        %v9925 = vsel %vm1459, %v9893, %v9529
        %v9926 = vsel %vm1459, %v9894, %v9531
        %v9927 = vsel %vm1459, %v9895, %v9533
        %v9928 = vsel %vm1459, %v9896, %v9535
        %v9929 = vsel %vm1459, %v9897, %v9537
        %v9930 = vsel %vm1459, %v9898, %v9539
        %v9931 = vsel %vm1459, %v9899, %v9541
        %v9932 = vsel %vm1459, %v9900, %v9543
        %v9933 = vsel %vm1459, %v9901, %v9545
        %v9934 = vsel %vm1459, %v9902, %v9547
        %v9935 = vsel %vm1459, %v9903, %v9549
        %v9936 = vsel %vm1459, %v9904, %v9551
        %v9937 = vsel %vm1459, %v9905, %v9553
        %v9938 = vsel %vm1459, %v9906, %v9555
        %v9939 = vsel %vm1459, %v9907, %v9557
        %v9940 = vsel %vm1459, %v9908, %v9559
        %v9941 = vsel %vm1459, %v9909, %v9561
        %v9942 = vsel %vm1459, %v9910, %v9563
        %v9943 = vsel %vm1459, %v9911, %v9565
        %v9944 = vsel %vm1459, %v9912, %v9567
        %v9945 = vsel %vm1459, %v9913, %v9569
        %v9946 = vsel %vm1459, %v9914, %v9571
        %v9947 = vsel %vm1459, %v9915, %v9573
        %v9948 = vsel %vm1459, %v9916, %v9575
        %v9949 = vsel %vm1459, %v9917, %v9577
        %v9950 = vsel %vm1459, %v9918, %v9579
        %v9951 = vsel %vm1459, %v9919, %v9581
        %v9952 = vsel %vm1459, %v9920, %v9583
        %v9953 = vsel %vm1459, %v9921, %v9585
        %v9954 = vsel %vm1492, %v9922, %v9699
        %v9955 = vsel %vm1492, %v9923, %v9701
        %v9956 = vsel %vm1492, %v9924, %v9703
        %v9957 = vsel %vm1492, %v9925, %v9705
        %v9958 = vsel %vm1492, %v9926, %v9707
        %v9959 = vsel %vm1492, %v9927, %v9709
        %v9960 = vsel %vm1492, %v9928, %v9711
        %v9961 = vsel %vm1492, %v9929, %v9713
        %v9962 = vsel %vm1492, %v9930, %v9715
        %v9963 = vsel %vm1492, %v9931, %v9717
        %v9964 = vsel %vm1492, %v9932, %v9719
        %v9965 = vsel %vm1492, %v9933, %v9721
        %v9966 = vsel %vm1492, %v9934, %v9723
        %v9967 = vsel %vm1492, %v9935, %v9725
        %v9968 = vsel %vm1492, %v9936, %v9727
        %v9969 = vsel %vm1492, %v9937, %v9729
        %v9970 = vsel %vm1492, %v9938, %v9731
        %v9971 = vsel %vm1492, %v9939, %v9733
        %v9972 = vsel %vm1492, %v9940, %v9735
        %v9973 = vsel %vm1492, %v9941, %v9737
        %v9974 = vsel %vm1492, %v9942, %v9739
        %v9975 = vsel %vm1492, %v9943, %v9741
        %v9976 = vsel %vm1492, %v9944, %v9743
        %v9977 = vsel %vm1492, %v9945, %v9745
        %v9978 = vsel %vm1492, %v9946, %v9747
        %v9979 = vsel %vm1492, %v9947, %v9749
        %v9980 = vsel %vm1492, %v9948, %v9751
        %v9981 = vsel %vm1492, %v9949, %v9753
        %v9982 = vsel %vm1492, %v9950, %v9755
        %v9983 = vsel %vm1492, %v9951, %v9757
        %v9984 = vsel %vm1492, %v9952, %v9759
        %v9985 = vsel %vm1492, %v9953, %v9761
        %s9986 = scalar_lea.vmem %s1, 120
        %v9987 = vld [vmem:[%s9986] sm:$0xff]
        %v9988 = vld [vmem:[%s9986 + $0x8] sm:$0xff]
        %v9989 = vld [vmem:[%s9986 + $0x10] sm:$0x1f]
        %v9991 = vsel %vm2877, %v9954, 0
        %v9994 = vsel %vm2877, %v9955, 0
        %v9997 = vsel %vm2877, %v9956, 0
        %v10000 = vsel %vm2877, %v9957, 0
        %v10003 = vsel %vm2877, %v9958, 0
        %v10006 = vsel %vm2877, %v9959, 0
        %v10009 = vsel %vm2877, %v9960, 0
        %v10012 = vsel %vm2877, %v9961, 0
        %v10015 = vsel %vm2877, %v9962, 0
        %v10018 = vsel %vm2877, %v9963, 0
        %v10021 = vsel %vm2877, %v9964, 0
        %v10024 = vsel %vm2877, %v9965, 0
        %v10027 = vsel %vm2877, %v9966, 0
        %v10030 = vsel %vm2877, %v9967, 0
        %v10033 = vsel %vm2877, %v9968, 0
        %v10036 = vsel %vm2877, %v9969, 0
        %v10039 = vsel %vm2877, %v9970, 0
        %v10042 = vsel %vm2877, %v9971, 0
        %v10045 = vsel %vm2877, %v9972, 0
        %v10048 = vsel %vm2877, %v9973, 0
        %v10051 = vsel %vm2877, %v9974, 0
        %v10054 = vsel %vm2877, %v9975, 0
        %v10057 = vsel %vm2877, %v9976, 0
        %v10060 = vsel %vm2877, %v9977, 0
        %v10063 = vsel %vm2877, %v9978, 0
        %v10066 = vsel %vm2877, %v9979, 0
        %v10069 = vsel %vm2877, %v9980, 0
        %v10072 = vsel %vm2877, %v9981, 0
        %v10075 = vsel %vm2877, %v9982, 0
        %v10078 = vsel %vm2877, %v9983, 0
        %v10081 = vsel %vm2877, %v9984, 0
        %v10084 = vsel %vm2877, %v9985, 0
        %v10087 = vsel %vm619, %v9989, 0
        %10089 = vmatprep.subr.mxu0 0.0
        %10090 = vmatpush1.msra.mxu0 0.0
        %10091 = vmatprep.subr.mxu0 0.0
        %10092 = vmatpush1.msra.mxu0 0.0
        %10093 = vmatprep.subr.mxu0 0.0
        %10094 = vmatpush1.msra.mxu0 0.0
        %10095 = vmatprep.subr.mxu0 0.0
        %10096 = vmatpush1.msra.mxu0 0.0
        %10097 = vmatprep.subr.mxu0 0.0
        %10098 = vmatpush1.msra.mxu0 0.0
        %10099 = vmatprep.subr.mxu0 0.0
        %10100 = vmatpush1.msra.mxu0 0.0
        %10101 = vmatprep.subr.mxu0 0.0
        %10102 = vmatpush1.msra.mxu0 0.0
        %10103 = vmatprep.subr.mxu0 0.0
        %10104 = vmatpush1.msra.mxu0 0.0
        %10105 = vmatprep.subr.mxu0 0.0
        %10106 = vmatpush1.msra.mxu0 0.0
        %10107 = vmatprep.subr.mxu0 0.0
        %10108 = vmatpush1.msra.mxu0 0.0
        %10109 = vmatprep.subr.mxu0 0.0
        %10110 = vmatpush1.msra.mxu0 0.0
        %10111 = vmatprep.subr.mxu0 0.0
        %10112 = vmatpush1.msra.mxu0 0.0
        %10113 = vmatprep.subr.mxu0 0.0
        %10114 = vmatpush1.msra.mxu0 0.0
        %10115 = vmatprep.subr.mxu0 0.0
        %10116 = vmatpush1.msra.mxu0 %v10087
        %10117 = vmatprep.subr.mxu0 0.0
        %10118 = vmatpush1.msra.mxu0 %v9988
        %10119 = vmatprep.subr.mxu0 0.0
        %10120 = vmatpush1.msra.mxu0 %v9987
        %10121 = vmatprep.subr.mxu0 0.0
        %10122 = vmatpush2.msra.mxu0 0.0
        %10123 = vmatprep.subr.mxu0 0.0
        %10124 = vmatpush2.msra.mxu0 0.0
        %10125 = vmatprep.subr.mxu0 0.0
        %10126 = vmatpush2.msra.mxu0 0.0
        %10127 = vmatprep.subr.mxu0 0.0
        %10128 = vmatpush2.msra.mxu0 0.0
        %10129 = vmatprep.subr.mxu0 0.0
        %10130 = vmatpush2.msra.mxu0 0.0
        %10131 = vmatprep.subr.mxu0 0.0
        %10132 = vmatpush2.msra.mxu0 0.0
        %10133 = vmatprep.subr.mxu0 0.0
        %10134 = vmatpush2.msra.mxu0 0.0
        %10135 = vmatprep.subr.mxu0 0.0
        %10136 = vmatpush2.msra.mxu0 0.0
        %10137 = vmatprep.subr.mxu0 0.0
        %10138 = vmatpush2.msra.mxu0 0.0
        %10139 = vmatprep.subr.mxu0 0.0
        %10140 = vmatpush2.msra.mxu0 0.0
        %10141 = vmatprep.subr.mxu0 0.0
        %10142 = vmatpush2.msra.mxu0 0.0
        %10143 = vmatprep.subr.mxu0 0.0
        %10144 = vmatpush2.msra.mxu0 0.0
        %10145 = vmatprep.subr.mxu0 0.0
        %10146 = vmatpush2.msra.mxu0 0.0
        %10147 = vmatprep.subr.mxu0 0.0
        %10148 = vmatpush2.msra.mxu0 0.0
        %10149 = vmatprep.subr.mxu0 0.0
        %10150 = vmatpush2.msra.mxu0 0.0
        %10151 = vmatprep.subr.mxu0 0.0
        %10152 = vmatpush2.msra.mxu0 0.0
        %10153 = vmatprep.mubr.f32.mxu0 0.0
        %10154 = vmatmul.mubr.f32.gmra.mxu0 %v9991
        %v10155 = vpop.f32.mrf.mxu0
        %v10156 = vadd.f32 0.0, %v10155
        %v10157 = vpop.f32.mrf.mxu0
        %10158 = vmatprep.mubr.f32.mxu0 0.0
        %10159 = vmatmul.mubr.f32.gmra.mxu0 %v9994
        %v10160 = vpop.f32.mrf.mxu0
        %v10161 = vadd.f32 0.0, %v10160
        %v10162 = vpop.f32.mrf.mxu0
        %10163 = vmatprep.mubr.f32.mxu0 0.0
        %10164 = vmatmul.mubr.f32.gmra.mxu0 %v9997
        %v10165 = vpop.f32.mrf.mxu0
        %v10166 = vadd.f32 0.0, %v10165
        %v10167 = vpop.f32.mrf.mxu0
        %10168 = vmatprep.mubr.f32.mxu0 0.0
        %10169 = vmatmul.mubr.f32.gmra.mxu0 %v10000
        %v10170 = vpop.f32.mrf.mxu0
        %v10171 = vadd.f32 0.0, %v10170
        %v10172 = vpop.f32.mrf.mxu0
        %10173 = vmatprep.mubr.f32.mxu0 0.0
        %10174 = vmatmul.mubr.f32.gmra.mxu0 %v10003
        %v10175 = vpop.f32.mrf.mxu0
        %v10176 = vadd.f32 0.0, %v10175
        %v10177 = vpop.f32.mrf.mxu0
        %10178 = vmatprep.mubr.f32.mxu0 0.0
        %10179 = vmatmul.mubr.f32.gmra.mxu0 %v10006
        %v10180 = vpop.f32.mrf.mxu0
        %v10181 = vadd.f32 0.0, %v10180
        %v10182 = vpop.f32.mrf.mxu0
        %10183 = vmatprep.mubr.f32.mxu0 0.0
        %10184 = vmatmul.mubr.f32.gmra.mxu0 %v10009
        %v10185 = vpop.f32.mrf.mxu0
        %v10186 = vadd.f32 0.0, %v10185
        %v10187 = vpop.f32.mrf.mxu0
        %10188 = vmatprep.mubr.f32.mxu0 0.0
        %10189 = vmatmul.mubr.f32.gmra.mxu0 %v10012
        %v10190 = vpop.f32.mrf.mxu0
        %v10191 = vadd.f32 0.0, %v10190
        %v10192 = vpop.f32.mrf.mxu0
        %10193 = vmatprep.mubr.f32.mxu0 0.0
        %10194 = vmatmul.mubr.f32.gmra.mxu0 %v10015
        %v10195 = vpop.f32.mrf.mxu0
        %v10196 = vadd.f32 0.0, %v10195
        %v10197 = vpop.f32.mrf.mxu0
        %10198 = vmatprep.mubr.f32.mxu0 0.0
        %10199 = vmatmul.mubr.f32.gmra.mxu0 %v10018
        %v10200 = vpop.f32.mrf.mxu0
        %v10201 = vadd.f32 0.0, %v10200
        %v10202 = vpop.f32.mrf.mxu0
        %10203 = vmatprep.mubr.f32.mxu0 0.0
        %10204 = vmatmul.mubr.f32.gmra.mxu0 %v10021
        %v10205 = vpop.f32.mrf.mxu0
        %v10206 = vadd.f32 0.0, %v10205
        %v10207 = vpop.f32.mrf.mxu0
        %10208 = vmatprep.mubr.f32.mxu0 0.0
        %10209 = vmatmul.mubr.f32.gmra.mxu0 %v10024
        %v10210 = vpop.f32.mrf.mxu0
        %v10211 = vadd.f32 0.0, %v10210
        %v10212 = vpop.f32.mrf.mxu0
        %10213 = vmatprep.mubr.f32.mxu0 0.0
        %10214 = vmatmul.mubr.f32.gmra.mxu0 %v10027
        %v10215 = vpop.f32.mrf.mxu0
        %v10216 = vadd.f32 0.0, %v10215
        %v10217 = vpop.f32.mrf.mxu0
        %10218 = vmatprep.mubr.f32.mxu0 0.0
        %10219 = vmatmul.mubr.f32.gmra.mxu0 %v10030
        %v10220 = vpop.f32.mrf.mxu0
        %v10221 = vadd.f32 0.0, %v10220
        %v10222 = vpop.f32.mrf.mxu0
        %10223 = vmatprep.mubr.f32.mxu0 0.0
        %10224 = vmatmul.mubr.f32.gmra.mxu0 %v10033
        %v10225 = vpop.f32.mrf.mxu0
        %v10226 = vadd.f32 0.0, %v10225
        %v10227 = vpop.f32.mrf.mxu0
        %10228 = vmatprep.mubr.f32.mxu0 0.0
        %10229 = vmatmul.mubr.f32.gmra.mxu0 %v10036
        %v10230 = vpop.f32.mrf.mxu0
        %v10231 = vadd.f32 0.0, %v10230
        %v10232 = vpop.f32.mrf.mxu0
        %10233 = vmatprep.mubr.f32.mxu0 0.0
        %10234 = vmatmul.mubr.f32.gmra.mxu0 %v10039
        %v10235 = vpop.f32.mrf.mxu0
        %v10236 = vadd.f32 0.0, %v10235
        %v10237 = vpop.f32.mrf.mxu0
        %10238 = vmatprep.mubr.f32.mxu0 0.0
        %10239 = vmatmul.mubr.f32.gmra.mxu0 %v10042
        %v10240 = vpop.f32.mrf.mxu0
        %v10241 = vadd.f32 0.0, %v10240
        %v10242 = vpop.f32.mrf.mxu0
        %10243 = vmatprep.mubr.f32.mxu0 0.0
        %10244 = vmatmul.mubr.f32.gmra.mxu0 %v10045
        %v10245 = vpop.f32.mrf.mxu0
        %v10246 = vadd.f32 0.0, %v10245
        %v10247 = vpop.f32.mrf.mxu0
        %10248 = vmatprep.mubr.f32.mxu0 0.0
        %10249 = vmatmul.mubr.f32.gmra.mxu0 %v10048
        %v10250 = vpop.f32.mrf.mxu0
        %v10251 = vadd.f32 0.0, %v10250
        %v10252 = vpop.f32.mrf.mxu0
        %10253 = vmatprep.mubr.f32.mxu0 0.0
        %10254 = vmatmul.mubr.f32.gmra.mxu0 %v10051
        %v10255 = vpop.f32.mrf.mxu0
        %v10256 = vadd.f32 0.0, %v10255
        %v10257 = vpop.f32.mrf.mxu0
        %10258 = vmatprep.mubr.f32.mxu0 0.0
        %10259 = vmatmul.mubr.f32.gmra.mxu0 %v10054
        %v10260 = vpop.f32.mrf.mxu0
        %v10261 = vadd.f32 0.0, %v10260
        %v10262 = vpop.f32.mrf.mxu0
        %10263 = vmatprep.mubr.f32.mxu0 0.0
        %10264 = vmatmul.mubr.f32.gmra.mxu0 %v10057
        %v10265 = vpop.f32.mrf.mxu0
        %v10266 = vadd.f32 0.0, %v10265
        %v10267 = vpop.f32.mrf.mxu0
        %10268 = vmatprep.mubr.f32.mxu0 0.0
        %10269 = vmatmul.mubr.f32.gmra.mxu0 %v10060
        %v10270 = vpop.f32.mrf.mxu0
        %v10271 = vadd.f32 0.0, %v10270
        %v10272 = vpop.f32.mrf.mxu0
        %10273 = vmatprep.mubr.f32.mxu0 0.0
        %10274 = vmatmul.mubr.f32.gmra.mxu0 %v10063
        %v10275 = vpop.f32.mrf.mxu0
        %v10276 = vadd.f32 0.0, %v10275
        %v10277 = vpop.f32.mrf.mxu0
        %10278 = vmatprep.mubr.f32.mxu0 0.0
        %10279 = vmatmul.mubr.f32.gmra.mxu0 %v10066
        %v10280 = vpop.f32.mrf.mxu0
        %v10281 = vadd.f32 0.0, %v10280
        %v10282 = vpop.f32.mrf.mxu0
        %10283 = vmatprep.mubr.f32.mxu0 0.0
        %10284 = vmatmul.mubr.f32.gmra.mxu0 %v10069
        %v10285 = vpop.f32.mrf.mxu0
        %v10286 = vadd.f32 0.0, %v10285
        %v10287 = vpop.f32.mrf.mxu0
        %10288 = vmatprep.mubr.f32.mxu0 0.0
        %10289 = vmatmul.mubr.f32.gmra.mxu0 %v10072
        %v10290 = vpop.f32.mrf.mxu0
        %v10291 = vadd.f32 0.0, %v10290
        %v10292 = vpop.f32.mrf.mxu0
        %10293 = vmatprep.mubr.f32.mxu0 0.0
        %10294 = vmatmul.mubr.f32.gmra.mxu0 %v10075
        %v10295 = vpop.f32.mrf.mxu0
        %v10296 = vadd.f32 0.0, %v10295
        %v10297 = vpop.f32.mrf.mxu0
        %10298 = vmatprep.mubr.f32.mxu0 0.0
        %10299 = vmatmul.mubr.f32.gmra.mxu0 %v10078
        %v10300 = vpop.f32.mrf.mxu0
        %v10301 = vadd.f32 0.0, %v10300
        %v10302 = vpop.f32.mrf.mxu0
        %10303 = vmatprep.mubr.f32.mxu0 0.0
        %10304 = vmatmul.mubr.f32.gmra.mxu0 %v10081
        %v10305 = vpop.f32.mrf.mxu0
        %v10306 = vadd.f32 0.0, %v10305
        %v10307 = vpop.f32.mrf.mxu0
        %10308 = vmatprep.mubr.f32.mxu0 0.0
        %10309 = vmatmul.mubr.f32.gmra.mxu0 %v10084
        %v10310 = vpop.f32.mrf.mxu0
        %v10311 = vadd.f32 0.0, %v10310
        %v10312 = vpop.f32.mrf.mxu0
        %10313 = vdwg.mxu0
        %v10314 = vadd.f32 %v8609, %v10156
        %v10315 = vadd.f32 %v8610, %v10161
        %v10316 = vadd.f32 %v8611, %v10166
        %v10317 = vadd.f32 %v8612, %v10171
        %v10318 = vadd.f32 %v8613, %v10176
        %v10319 = vadd.f32 %v8614, %v10181
        %v10320 = vadd.f32 %v8615, %v10186
        %v10321 = vadd.f32 %v8616, %v10191
        %v10322 = vadd.f32 %v8617, %v10196
        %v10323 = vadd.f32 %v8618, %v10201
        %v10324 = vadd.f32 %v8619, %v10206
        %v10325 = vadd.f32 %v8620, %v10211
        %v10326 = vadd.f32 %v8621, %v10216
        %v10327 = vadd.f32 %v8622, %v10221
        %v10328 = vadd.f32 %v8623, %v10226
        %v10329 = vadd.f32 %v8624, %v10231
        %v10330 = vadd.f32 %v8625, %v10236
        %v10331 = vadd.f32 %v8626, %v10241
        %v10332 = vadd.f32 %v8627, %v10246
        %v10333 = vadd.f32 %v8628, %v10251
        %v10334 = vadd.f32 %v8629, %v10256
        %v10335 = vadd.f32 %v8630, %v10261
        %v10336 = vadd.f32 %v8631, %v10266
        %v10337 = vadd.f32 %v8632, %v10271
        %v10338 = vadd.f32 %v8633, %v10276
        %v10339 = vadd.f32 %v8634, %v10281
        %v10340 = vadd.f32 %v8635, %v10286
        %v10341 = vadd.f32 %v8636, %v10291
        %v10342 = vadd.f32 %v8637, %v10296
        %v10343 = vadd.f32 %v8638, %v10301
        %v10344 = vadd.f32 %v8639, %v10306
        %v10345 = vadd.f32 %v8640, %v10311
        %s10346 = scalar_lea.vmem %s168, 144
        %v10347 = vld [vmem:[%s10346] sm:$0xff]
        %v10348 = vld [vmem:[%s10346 + $0x8] sm:$0xff]
        %v10349 = vld [vmem:[%s10346 + $0x10] sm:$0x3f]
        %v10350 = vld [vmem:[%s10346 + $0x18] sm:$0xff]
        %v10351 = vld [vmem:[%s10346 + $0x20] sm:$0xff]
        %v10352 = vld [vmem:[%s10346 + $0x28] sm:$0x3f]
        %v10353 = vld [vmem:[%s10346 + $0x30] sm:$0xff]
        %v10354 = vld [vmem:[%s10346 + $0x38] sm:$0xff]
        %v10355 = vld [vmem:[%s10346 + $0x40] sm:$0x3f]
        %v10356 = vld [vmem:[%s10346 + $0x48] sm:$0xff]
        %v10357 = vld [vmem:[%s10346 + $0x50] sm:$0xff]
        %v10358 = vld [vmem:[%s10346 + $0x58] sm:$0x3f]
        %v10359 = vld [vmem:[%s10346 + $0x60] sm:$0xff]
        %v10360 = vld [vmem:[%s10346 + $0x68] sm:$0xff]
        %v10361 = vld [vmem:[%s10346 + $0x70] sm:$0x3f]
        %v10362 = vld [vmem:[%s10346 + $0x78] sm:$0xff]
        %v10363 = vld [vmem:[%s10346 + $0x80] sm:$0xff]
        %v10364 = vld [vmem:[%s10346 + $0x88] sm:$0x3f]
        %v10365 = vld [vmem:[%s10346 + $0x90] sm:$0xff]
        %v10366 = vld [vmem:[%s10346 + $0x98] sm:$0xff]
        %v10367 = vld [vmem:[%s10346 + $0xa0] sm:$0x3f]
        %v10368 = vld [vmem:[%s10346 + $0xa8] sm:$0xff]
        %v10369 = vld [vmem:[%s10346 + $0xb0] sm:$0xff]
        %v10370 = vld [vmem:[%s10346 + $0xb8] sm:$0x3f]
        %v10371 = vld [vmem:[%s10346 + $0xc0] sm:$0xff]
        %v10372 = vld [vmem:[%s10346 + $0xc8] sm:$0xff]
        %v10373 = vld [vmem:[%s10346 + $0xd0] sm:$0x3f]
        %v10374 = vld [vmem:[%s10346 + $0xd8] sm:$0xff]
        %v10375 = vld [vmem:[%s10346 + $0xe0] sm:$0xff]
        %v10376 = vld [vmem:[%s10346 + $0xe8] sm:$0x3f]
        %v10377 = vld [vmem:[%s10346 + $0xf0] sm:$0xff]
        %v10378 = vld [vmem:[%s10346 + $0xf8] sm:$0xff]
        %v10379 = vld [vmem:[%s10346 + $0x100] sm:$0x3f]
        %v10380 = vld [vmem:[%s10346 + $0x108] sm:$0xff]
        %v10381 = vld [vmem:[%s10346 + $0x110] sm:$0xff]
        %v10382 = vld [vmem:[%s10346 + $0x118] sm:$0x3f]
        %v10383 = vld [vmem:[%s10346 + $0x120] sm:$0xff]
        %v10384 = vld [vmem:[%s10346 + $0x128] sm:$0xff]
        %v10385 = vld [vmem:[%s10346 + $0x130] sm:$0x3f]
        %v10386 = vld [vmem:[%s10346 + $0x138] sm:$0xff]
        %v10387 = vld [vmem:[%s10346 + $0x140] sm:$0xff]
        %v10388 = vld [vmem:[%s10346 + $0x148] sm:$0x3f]
        %v10389 = vld [vmem:[%s10346 + $0x150] sm:$0xff]
        %v10390 = vld [vmem:[%s10346 + $0x158] sm:$0xff]
        %v10391 = vld [vmem:[%s10346 + $0x160] sm:$0x3f]
        %v10392 = vld [vmem:[%s10346 + $0x168] sm:$0xff]
        %v10393 = vld [vmem:[%s10346 + $0x170] sm:$0xff]
        %v10394 = vld [vmem:[%s10346 + $0x178] sm:$0x3f]
        %v10443 = vrot.slane %v10347, 1
        %v10444 = vrot.slane %v10348, 1
        %v10445 = vsel %vm265, %v10443, %v10444
        %v10446 = vrot.slane %v10349, 1
        %v10447 = vsel %vm265, %v10444, %v10446
        %v10448 = vrot.slane %v10350, 1
        %v10449 = vrot.slane %v10351, 1
        %v10450 = vsel %vm265, %v10448, %v10449
        %v10451 = vrot.slane %v10352, 1
        %v10452 = vsel %vm265, %v10449, %v10451
        %v10453 = vrot.slane %v10353, 1
        %v10454 = vrot.slane %v10354, 1
        %v10455 = vsel %vm265, %v10453, %v10454
        %v10456 = vrot.slane %v10355, 1
        %v10457 = vsel %vm265, %v10454, %v10456
        %v10458 = vrot.slane %v10356, 1
        %v10459 = vrot.slane %v10357, 1
        %v10460 = vsel %vm265, %v10458, %v10459
        %v10461 = vrot.slane %v10358, 1
        %v10462 = vsel %vm265, %v10459, %v10461
        %v10463 = vrot.slane %v10359, 1
        %v10464 = vrot.slane %v10360, 1
        %v10465 = vsel %vm265, %v10463, %v10464
        %v10466 = vrot.slane %v10361, 1
        %v10467 = vsel %vm265, %v10464, %v10466
        %v10468 = vrot.slane %v10362, 1
        %v10469 = vrot.slane %v10363, 1
        %v10470 = vsel %vm265, %v10468, %v10469
        %v10471 = vrot.slane %v10364, 1
        %v10472 = vsel %vm265, %v10469, %v10471
        %v10473 = vrot.slane %v10365, 1
        %v10474 = vrot.slane %v10366, 1
        %v10475 = vsel %vm265, %v10473, %v10474
        %v10476 = vrot.slane %v10367, 1
        %v10477 = vsel %vm265, %v10474, %v10476
        %v10478 = vrot.slane %v10368, 1
        %v10479 = vrot.slane %v10369, 1
        %v10480 = vsel %vm265, %v10478, %v10479
        %v10481 = vrot.slane %v10370, 1
        %v10482 = vsel %vm265, %v10479, %v10481
        %v10483 = vrot.slane %v10371, 1
        %v10484 = vrot.slane %v10372, 1
        %v10485 = vsel %vm265, %v10483, %v10484
        %v10486 = vrot.slane %v10373, 1
        %v10487 = vsel %vm265, %v10484, %v10486
        %v10488 = vrot.slane %v10374, 1
        %v10489 = vrot.slane %v10375, 1
        %v10490 = vsel %vm265, %v10488, %v10489
        %v10491 = vrot.slane %v10376, 1
        %v10492 = vsel %vm265, %v10489, %v10491
        %v10493 = vrot.slane %v10377, 1
        %v10494 = vrot.slane %v10378, 1
        %v10495 = vsel %vm265, %v10493, %v10494
        %v10496 = vrot.slane %v10379, 1
        %v10497 = vsel %vm265, %v10494, %v10496
        %v10498 = vrot.slane %v10380, 1
        %v10499 = vrot.slane %v10381, 1
        %v10500 = vsel %vm265, %v10498, %v10499
        %v10501 = vrot.slane %v10382, 1
        %v10502 = vsel %vm265, %v10499, %v10501
        %v10503 = vrot.slane %v10383, 1
        %v10504 = vrot.slane %v10384, 1
        %v10505 = vsel %vm265, %v10503, %v10504
        %v10506 = vrot.slane %v10385, 1
        %v10507 = vsel %vm265, %v10504, %v10506
        %v10508 = vrot.slane %v10386, 1
        %v10509 = vrot.slane %v10387, 1
        %v10510 = vsel %vm265, %v10508, %v10509
        %v10511 = vrot.slane %v10388, 1
        %v10512 = vsel %vm265, %v10509, %v10511
        %v10513 = vrot.slane %v10389, 1
        %v10514 = vrot.slane %v10390, 1
        %v10515 = vsel %vm265, %v10513, %v10514
        %v10516 = vrot.slane %v10391, 1
        %v10517 = vsel %vm265, %v10514, %v10516
        %v10518 = vrot.slane %v10392, 1
        %v10519 = vrot.slane %v10393, 1
        %v10520 = vsel %vm265, %v10518, %v10519
        %v10521 = vrot.slane %v10394, 1
        %v10522 = vsel %vm265, %v10519, %v10521
        %10523 = vrot.lane.b32.xlu0 %v10445, 3
        %v10524 = vpop.permute.xlu0 %10523
        %10525 = vrot.lane.b32.xlu0 %v10447, 3
        %v10526 = vpop.permute.xlu0 %10525
        %10527 = vrot.lane.b32.xlu0 %v10450, 3
        %v10528 = vpop.permute.xlu0 %10527
        %10529 = vrot.lane.b32.xlu0 %v10452, 3
        %v10530 = vpop.permute.xlu0 %10529
        %10531 = vrot.lane.b32.xlu0 %v10455, 3
        %v10532 = vpop.permute.xlu0 %10531
        %10533 = vrot.lane.b32.xlu0 %v10457, 3
        %v10534 = vpop.permute.xlu0 %10533
        %10535 = vrot.lane.b32.xlu0 %v10460, 3
        %v10536 = vpop.permute.xlu0 %10535
        %10537 = vrot.lane.b32.xlu0 %v10462, 3
        %v10538 = vpop.permute.xlu0 %10537
        %10539 = vrot.lane.b32.xlu0 %v10465, 3
        %v10540 = vpop.permute.xlu0 %10539
        %10541 = vrot.lane.b32.xlu0 %v10467, 3
        %v10542 = vpop.permute.xlu0 %10541
        %10543 = vrot.lane.b32.xlu0 %v10470, 3
        %v10544 = vpop.permute.xlu0 %10543
        %10545 = vrot.lane.b32.xlu0 %v10472, 3
        %v10546 = vpop.permute.xlu0 %10545
        %10547 = vrot.lane.b32.xlu0 %v10475, 3
        %v10548 = vpop.permute.xlu0 %10547
        %10549 = vrot.lane.b32.xlu0 %v10477, 3
        %v10550 = vpop.permute.xlu0 %10549
        %10551 = vrot.lane.b32.xlu0 %v10480, 3
        %v10552 = vpop.permute.xlu0 %10551
        %10553 = vrot.lane.b32.xlu0 %v10482, 3
        %v10554 = vpop.permute.xlu0 %10553
        %10555 = vrot.lane.b32.xlu0 %v10485, 3
        %v10556 = vpop.permute.xlu0 %10555
        %10557 = vrot.lane.b32.xlu0 %v10487, 3
        %v10558 = vpop.permute.xlu0 %10557
        %10559 = vrot.lane.b32.xlu0 %v10490, 3
        %v10560 = vpop.permute.xlu0 %10559
        %10561 = vrot.lane.b32.xlu0 %v10492, 3
        %v10562 = vpop.permute.xlu0 %10561
        %10563 = vrot.lane.b32.xlu0 %v10495, 3
        %v10564 = vpop.permute.xlu0 %10563
        %10565 = vrot.lane.b32.xlu0 %v10497, 3
        %v10566 = vpop.permute.xlu0 %10565
        %10567 = vrot.lane.b32.xlu0 %v10500, 3
        %v10568 = vpop.permute.xlu0 %10567
        %10569 = vrot.lane.b32.xlu0 %v10502, 3
        %v10570 = vpop.permute.xlu0 %10569
        %10571 = vrot.lane.b32.xlu0 %v10505, 3
        %v10572 = vpop.permute.xlu0 %10571
        %10573 = vrot.lane.b32.xlu0 %v10507, 3
        %v10574 = vpop.permute.xlu0 %10573
        %10575 = vrot.lane.b32.xlu0 %v10510, 3
        %v10576 = vpop.permute.xlu0 %10575
        %10577 = vrot.lane.b32.xlu0 %v10512, 3
        %v10578 = vpop.permute.xlu0 %10577
        %10579 = vrot.lane.b32.xlu0 %v10515, 3
        %v10580 = vpop.permute.xlu0 %10579
        %10581 = vrot.lane.b32.xlu0 %v10517, 3
        %v10582 = vpop.permute.xlu0 %10581
        %10583 = vrot.lane.b32.xlu0 %v10520, 3
        %v10584 = vpop.permute.xlu0 %10583
        %10585 = vrot.lane.b32.xlu0 %v10522, 3
        %v10586 = vpop.permute.xlu0 %10585
        %v10619 = vrot.slane %v10347, 2
        %v10620 = vrot.slane %v10348, 2
        %v10621 = vsel %vm442, %v10619, %v10620
        %v10622 = vrot.slane %v10349, 2
        %v10623 = vsel %vm442, %v10620, %v10622
        %v10624 = vrot.slane %v10350, 2
        %v10625 = vrot.slane %v10351, 2
        %v10626 = vsel %vm442, %v10624, %v10625
        %v10627 = vrot.slane %v10352, 2
        %v10628 = vsel %vm442, %v10625, %v10627
        %v10629 = vrot.slane %v10353, 2
        %v10630 = vrot.slane %v10354, 2
        %v10631 = vsel %vm442, %v10629, %v10630
        %v10632 = vrot.slane %v10355, 2
        %v10633 = vsel %vm442, %v10630, %v10632
        %v10634 = vrot.slane %v10356, 2
        %v10635 = vrot.slane %v10357, 2
        %v10636 = vsel %vm442, %v10634, %v10635
        %v10637 = vrot.slane %v10358, 2
        %v10638 = vsel %vm442, %v10635, %v10637
        %v10639 = vrot.slane %v10359, 2
        %v10640 = vrot.slane %v10360, 2
        %v10641 = vsel %vm442, %v10639, %v10640
        %v10642 = vrot.slane %v10361, 2
        %v10643 = vsel %vm442, %v10640, %v10642
        %v10644 = vrot.slane %v10362, 2
        %v10645 = vrot.slane %v10363, 2
        %v10646 = vsel %vm442, %v10644, %v10645
        %v10647 = vrot.slane %v10364, 2
        %v10648 = vsel %vm442, %v10645, %v10647
        %v10649 = vrot.slane %v10365, 2
        %v10650 = vrot.slane %v10366, 2
        %v10651 = vsel %vm442, %v10649, %v10650
        %v10652 = vrot.slane %v10367, 2
        %v10653 = vsel %vm442, %v10650, %v10652
        %v10654 = vrot.slane %v10368, 2
        %v10655 = vrot.slane %v10369, 2
        %v10656 = vsel %vm442, %v10654, %v10655
        %v10657 = vrot.slane %v10370, 2
        %v10658 = vsel %vm442, %v10655, %v10657
        %v10659 = vrot.slane %v10371, 2
        %v10660 = vrot.slane %v10372, 2
        %v10661 = vsel %vm442, %v10659, %v10660
        %v10662 = vrot.slane %v10373, 2
        %v10663 = vsel %vm442, %v10660, %v10662
        %v10664 = vrot.slane %v10374, 2
        %v10665 = vrot.slane %v10375, 2
        %v10666 = vsel %vm442, %v10664, %v10665
        %v10667 = vrot.slane %v10376, 2
        %v10668 = vsel %vm442, %v10665, %v10667
        %v10669 = vrot.slane %v10377, 2
        %v10670 = vrot.slane %v10378, 2
        %v10671 = vsel %vm442, %v10669, %v10670
        %v10672 = vrot.slane %v10379, 2
        %v10673 = vsel %vm442, %v10670, %v10672
        %v10674 = vrot.slane %v10380, 2
        %v10675 = vrot.slane %v10381, 2
        %v10676 = vsel %vm442, %v10674, %v10675
        %v10677 = vrot.slane %v10382, 2
        %v10678 = vsel %vm442, %v10675, %v10677
        %v10679 = vrot.slane %v10383, 2
        %v10680 = vrot.slane %v10384, 2
        %v10681 = vsel %vm442, %v10679, %v10680
        %v10682 = vrot.slane %v10385, 2
        %v10683 = vsel %vm442, %v10680, %v10682
        %v10684 = vrot.slane %v10386, 2
        %v10685 = vrot.slane %v10387, 2
        %v10686 = vsel %vm442, %v10684, %v10685
        %v10687 = vrot.slane %v10388, 2
        %v10688 = vsel %vm442, %v10685, %v10687
        %v10689 = vrot.slane %v10389, 2
        %v10690 = vrot.slane %v10390, 2
        %v10691 = vsel %vm442, %v10689, %v10690
        %v10692 = vrot.slane %v10391, 2
        %v10693 = vsel %vm442, %v10690, %v10692
        %v10694 = vrot.slane %v10392, 2
        %v10695 = vrot.slane %v10393, 2
        %v10696 = vsel %vm442, %v10694, %v10695
        %v10697 = vrot.slane %v10394, 2
        %v10698 = vsel %vm442, %v10695, %v10697
        %10699 = vrot.lane.b32.xlu0 %v10621, 6
        %v10700 = vpop.permute.xlu0 %10699
        %10701 = vrot.lane.b32.xlu0 %v10623, 6
        %v10702 = vpop.permute.xlu0 %10701
        %10703 = vrot.lane.b32.xlu0 %v10626, 6
        %v10704 = vpop.permute.xlu0 %10703
        %10705 = vrot.lane.b32.xlu0 %v10628, 6
        %v10706 = vpop.permute.xlu0 %10705
        %10707 = vrot.lane.b32.xlu0 %v10631, 6
        %v10708 = vpop.permute.xlu0 %10707
        %10709 = vrot.lane.b32.xlu0 %v10633, 6
        %v10710 = vpop.permute.xlu0 %10709
        %10711 = vrot.lane.b32.xlu0 %v10636, 6
        %v10712 = vpop.permute.xlu0 %10711
        %10713 = vrot.lane.b32.xlu0 %v10638, 6
        %v10714 = vpop.permute.xlu0 %10713
        %10715 = vrot.lane.b32.xlu0 %v10641, 6
        %v10716 = vpop.permute.xlu0 %10715
        %10717 = vrot.lane.b32.xlu0 %v10643, 6
        %v10718 = vpop.permute.xlu0 %10717
        %10719 = vrot.lane.b32.xlu0 %v10646, 6
        %v10720 = vpop.permute.xlu0 %10719
        %10721 = vrot.lane.b32.xlu0 %v10648, 6
        %v10722 = vpop.permute.xlu0 %10721
        %10723 = vrot.lane.b32.xlu0 %v10651, 6
        %v10724 = vpop.permute.xlu0 %10723
        %10725 = vrot.lane.b32.xlu0 %v10653, 6
        %v10726 = vpop.permute.xlu0 %10725
        %10727 = vrot.lane.b32.xlu0 %v10656, 6
        %v10728 = vpop.permute.xlu0 %10727
        %10729 = vrot.lane.b32.xlu0 %v10658, 6
        %v10730 = vpop.permute.xlu0 %10729
        %10731 = vrot.lane.b32.xlu0 %v10661, 6
        %v10732 = vpop.permute.xlu0 %10731
        %10733 = vrot.lane.b32.xlu0 %v10663, 6
        %v10734 = vpop.permute.xlu0 %10733
        %10735 = vrot.lane.b32.xlu0 %v10666, 6
        %v10736 = vpop.permute.xlu0 %10735
        %10737 = vrot.lane.b32.xlu0 %v10668, 6
        %v10738 = vpop.permute.xlu0 %10737
        %10739 = vrot.lane.b32.xlu0 %v10671, 6
        %v10740 = vpop.permute.xlu0 %10739
        %10741 = vrot.lane.b32.xlu0 %v10673, 6
        %v10742 = vpop.permute.xlu0 %10741
        %10743 = vrot.lane.b32.xlu0 %v10676, 6
        %v10744 = vpop.permute.xlu0 %10743
        %10745 = vrot.lane.b32.xlu0 %v10678, 6
        %v10746 = vpop.permute.xlu0 %10745
        %10747 = vrot.lane.b32.xlu0 %v10681, 6
        %v10748 = vpop.permute.xlu0 %10747
        %10749 = vrot.lane.b32.xlu0 %v10683, 6
        %v10750 = vpop.permute.xlu0 %10749
        %10751 = vrot.lane.b32.xlu0 %v10686, 6
        %v10752 = vpop.permute.xlu0 %10751
        %10753 = vrot.lane.b32.xlu0 %v10688, 6
        %v10754 = vpop.permute.xlu0 %10753
        %10755 = vrot.lane.b32.xlu0 %v10691, 6
        %v10756 = vpop.permute.xlu0 %10755
        %10757 = vrot.lane.b32.xlu0 %v10693, 6
        %v10758 = vpop.permute.xlu0 %10757
        %10759 = vrot.lane.b32.xlu0 %v10696, 6
        %v10760 = vpop.permute.xlu0 %10759
        %10761 = vrot.lane.b32.xlu0 %v10698, 6
        %v10762 = vpop.permute.xlu0 %10761
        %v10795 = vrot.slane %v10347, 3
        %v10796 = vrot.slane %v10348, 3
        %v10797 = vsel %vm619, %v10795, %v10796
        %v10798 = vrot.slane %v10349, 3
        %v10799 = vsel %vm619, %v10796, %v10798
        %v10800 = vrot.slane %v10350, 3
        %v10801 = vrot.slane %v10351, 3
        %v10802 = vsel %vm619, %v10800, %v10801
        %v10803 = vrot.slane %v10352, 3
        %v10804 = vsel %vm619, %v10801, %v10803
        %v10805 = vrot.slane %v10353, 3
        %v10806 = vrot.slane %v10354, 3
        %v10807 = vsel %vm619, %v10805, %v10806
        %v10808 = vrot.slane %v10355, 3
        %v10809 = vsel %vm619, %v10806, %v10808
        %v10810 = vrot.slane %v10356, 3
        %v10811 = vrot.slane %v10357, 3
        %v10812 = vsel %vm619, %v10810, %v10811
        %v10813 = vrot.slane %v10358, 3
        %v10814 = vsel %vm619, %v10811, %v10813
        %v10815 = vrot.slane %v10359, 3
        %v10816 = vrot.slane %v10360, 3
        %v10817 = vsel %vm619, %v10815, %v10816
        %v10818 = vrot.slane %v10361, 3
        %v10819 = vsel %vm619, %v10816, %v10818
        %v10820 = vrot.slane %v10362, 3
        %v10821 = vrot.slane %v10363, 3
        %v10822 = vsel %vm619, %v10820, %v10821
        %v10823 = vrot.slane %v10364, 3
        %v10824 = vsel %vm619, %v10821, %v10823
        %v10825 = vrot.slane %v10365, 3
        %v10826 = vrot.slane %v10366, 3
        %v10827 = vsel %vm619, %v10825, %v10826
        %v10828 = vrot.slane %v10367, 3
        %v10829 = vsel %vm619, %v10826, %v10828
        %v10830 = vrot.slane %v10368, 3
        %v10831 = vrot.slane %v10369, 3
        %v10832 = vsel %vm619, %v10830, %v10831
        %v10833 = vrot.slane %v10370, 3
        %v10834 = vsel %vm619, %v10831, %v10833
        %v10835 = vrot.slane %v10371, 3
        %v10836 = vrot.slane %v10372, 3
        %v10837 = vsel %vm619, %v10835, %v10836
        %v10838 = vrot.slane %v10373, 3
        %v10839 = vsel %vm619, %v10836, %v10838
        %v10840 = vrot.slane %v10374, 3
        %v10841 = vrot.slane %v10375, 3
        %v10842 = vsel %vm619, %v10840, %v10841
        %v10843 = vrot.slane %v10376, 3
        %v10844 = vsel %vm619, %v10841, %v10843
        %v10845 = vrot.slane %v10377, 3
        %v10846 = vrot.slane %v10378, 3
        %v10847 = vsel %vm619, %v10845, %v10846
        %v10848 = vrot.slane %v10379, 3
        %v10849 = vsel %vm619, %v10846, %v10848
        %v10850 = vrot.slane %v10380, 3
        %v10851 = vrot.slane %v10381, 3
        %v10852 = vsel %vm619, %v10850, %v10851
        %v10853 = vrot.slane %v10382, 3
        %v10854 = vsel %vm619, %v10851, %v10853
        %v10855 = vrot.slane %v10383, 3
        %v10856 = vrot.slane %v10384, 3
        %v10857 = vsel %vm619, %v10855, %v10856
        %v10858 = vrot.slane %v10385, 3
        %v10859 = vsel %vm619, %v10856, %v10858
        %v10860 = vrot.slane %v10386, 3
        %v10861 = vrot.slane %v10387, 3
        %v10862 = vsel %vm619, %v10860, %v10861
        %v10863 = vrot.slane %v10388, 3
        %v10864 = vsel %vm619, %v10861, %v10863
        %v10865 = vrot.slane %v10389, 3
        %v10866 = vrot.slane %v10390, 3
        %v10867 = vsel %vm619, %v10865, %v10866
        %v10868 = vrot.slane %v10391, 3
        %v10869 = vsel %vm619, %v10866, %v10868
        %v10870 = vrot.slane %v10392, 3
        %v10871 = vrot.slane %v10393, 3
        %v10872 = vsel %vm619, %v10870, %v10871
        %v10873 = vrot.slane %v10394, 3
        %v10874 = vsel %vm619, %v10871, %v10873
        %10875 = vrot.lane.b32.xlu0 %v10797, 9
        %v10876 = vpop.permute.xlu0 %10875
        %10877 = vrot.lane.b32.xlu0 %v10799, 9
        %v10878 = vpop.permute.xlu0 %10877
        %10879 = vrot.lane.b32.xlu0 %v10802, 9
        %v10880 = vpop.permute.xlu0 %10879
        %10881 = vrot.lane.b32.xlu0 %v10804, 9
        %v10882 = vpop.permute.xlu0 %10881
        %10883 = vrot.lane.b32.xlu0 %v10807, 9
        %v10884 = vpop.permute.xlu0 %10883
        %10885 = vrot.lane.b32.xlu0 %v10809, 9
        %v10886 = vpop.permute.xlu0 %10885
        %10887 = vrot.lane.b32.xlu0 %v10812, 9
        %v10888 = vpop.permute.xlu0 %10887
        %10889 = vrot.lane.b32.xlu0 %v10814, 9
        %v10890 = vpop.permute.xlu0 %10889
        %10891 = vrot.lane.b32.xlu0 %v10817, 9
        %v10892 = vpop.permute.xlu0 %10891
        %10893 = vrot.lane.b32.xlu0 %v10819, 9
        %v10894 = vpop.permute.xlu0 %10893
        %10895 = vrot.lane.b32.xlu0 %v10822, 9
        %v10896 = vpop.permute.xlu0 %10895
        %10897 = vrot.lane.b32.xlu0 %v10824, 9
        %v10898 = vpop.permute.xlu0 %10897
        %10899 = vrot.lane.b32.xlu0 %v10827, 9
        %v10900 = vpop.permute.xlu0 %10899
        %10901 = vrot.lane.b32.xlu0 %v10829, 9
        %v10902 = vpop.permute.xlu0 %10901
        %10903 = vrot.lane.b32.xlu0 %v10832, 9
        %v10904 = vpop.permute.xlu0 %10903
        %10905 = vrot.lane.b32.xlu0 %v10834, 9
        %v10906 = vpop.permute.xlu0 %10905
        %10907 = vrot.lane.b32.xlu0 %v10837, 9
        %v10908 = vpop.permute.xlu0 %10907
        %10909 = vrot.lane.b32.xlu0 %v10839, 9
        %v10910 = vpop.permute.xlu0 %10909
        %10911 = vrot.lane.b32.xlu0 %v10842, 9
        %v10912 = vpop.permute.xlu0 %10911
        %10913 = vrot.lane.b32.xlu0 %v10844, 9
        %v10914 = vpop.permute.xlu0 %10913
        %10915 = vrot.lane.b32.xlu0 %v10847, 9
        %v10916 = vpop.permute.xlu0 %10915
        %10917 = vrot.lane.b32.xlu0 %v10849, 9
        %v10918 = vpop.permute.xlu0 %10917
        %10919 = vrot.lane.b32.xlu0 %v10852, 9
        %v10920 = vpop.permute.xlu0 %10919
        %10921 = vrot.lane.b32.xlu0 %v10854, 9
        %v10922 = vpop.permute.xlu0 %10921
        %10923 = vrot.lane.b32.xlu0 %v10857, 9
        %v10924 = vpop.permute.xlu0 %10923
        %10925 = vrot.lane.b32.xlu0 %v10859, 9
        %v10926 = vpop.permute.xlu0 %10925
        %10927 = vrot.lane.b32.xlu0 %v10862, 9
        %v10928 = vpop.permute.xlu0 %10927
        %10929 = vrot.lane.b32.xlu0 %v10864, 9
        %v10930 = vpop.permute.xlu0 %10929
        %10931 = vrot.lane.b32.xlu0 %v10867, 9
        %v10932 = vpop.permute.xlu0 %10931
        %10933 = vrot.lane.b32.xlu0 %v10869, 9
        %v10934 = vpop.permute.xlu0 %10933
        %10935 = vrot.lane.b32.xlu0 %v10872, 9
        %v10936 = vpop.permute.xlu0 %10935
        %10937 = vrot.lane.b32.xlu0 %v10874, 9
        %v10938 = vpop.permute.xlu0 %10937
        %v10971 = vrot.slane %v10347, 4
        %v10972 = vrot.slane %v10348, 4
        %v10973 = vsel %vm796, %v10971, %v10972
        %v10974 = vrot.slane %v10349, 4
        %v10975 = vsel %vm796, %v10972, %v10974
        %v10976 = vrot.slane %v10350, 4
        %v10977 = vrot.slane %v10351, 4
        %v10978 = vsel %vm796, %v10976, %v10977
        %v10979 = vrot.slane %v10352, 4
        %v10980 = vsel %vm796, %v10977, %v10979
        %v10981 = vrot.slane %v10353, 4
        %v10982 = vrot.slane %v10354, 4
        %v10983 = vsel %vm796, %v10981, %v10982
        %v10984 = vrot.slane %v10355, 4
        %v10985 = vsel %vm796, %v10982, %v10984
        %v10986 = vrot.slane %v10356, 4
        %v10987 = vrot.slane %v10357, 4
        %v10988 = vsel %vm796, %v10986, %v10987
        %v10989 = vrot.slane %v10358, 4
        %v10990 = vsel %vm796, %v10987, %v10989
        %v10991 = vrot.slane %v10359, 4
        %v10992 = vrot.slane %v10360, 4
        %v10993 = vsel %vm796, %v10991, %v10992
        %v10994 = vrot.slane %v10361, 4
        %v10995 = vsel %vm796, %v10992, %v10994
        %v10996 = vrot.slane %v10362, 4
        %v10997 = vrot.slane %v10363, 4
        %v10998 = vsel %vm796, %v10996, %v10997
        %v10999 = vrot.slane %v10364, 4
        %v11000 = vsel %vm796, %v10997, %v10999
        %v11001 = vrot.slane %v10365, 4
        %v11002 = vrot.slane %v10366, 4
        %v11003 = vsel %vm796, %v11001, %v11002
        %v11004 = vrot.slane %v10367, 4
        %v11005 = vsel %vm796, %v11002, %v11004
        %v11006 = vrot.slane %v10368, 4
        %v11007 = vrot.slane %v10369, 4
        %v11008 = vsel %vm796, %v11006, %v11007
        %v11009 = vrot.slane %v10370, 4
        %v11010 = vsel %vm796, %v11007, %v11009
        %v11011 = vrot.slane %v10371, 4
        %v11012 = vrot.slane %v10372, 4
        %v11013 = vsel %vm796, %v11011, %v11012
        %v11014 = vrot.slane %v10373, 4
        %v11015 = vsel %vm796, %v11012, %v11014
        %v11016 = vrot.slane %v10374, 4
        %v11017 = vrot.slane %v10375, 4
        %v11018 = vsel %vm796, %v11016, %v11017
        %v11019 = vrot.slane %v10376, 4
        %v11020 = vsel %vm796, %v11017, %v11019
        %v11021 = vrot.slane %v10377, 4
        %v11022 = vrot.slane %v10378, 4
        %v11023 = vsel %vm796, %v11021, %v11022
        %v11024 = vrot.slane %v10379, 4
        %v11025 = vsel %vm796, %v11022, %v11024
        %v11026 = vrot.slane %v10380, 4
        %v11027 = vrot.slane %v10381, 4
        %v11028 = vsel %vm796, %v11026, %v11027
        %v11029 = vrot.slane %v10382, 4
        %v11030 = vsel %vm796, %v11027, %v11029
        %v11031 = vrot.slane %v10383, 4
        %v11032 = vrot.slane %v10384, 4
        %v11033 = vsel %vm796, %v11031, %v11032
        %v11034 = vrot.slane %v10385, 4
        %v11035 = vsel %vm796, %v11032, %v11034
        %v11036 = vrot.slane %v10386, 4
        %v11037 = vrot.slane %v10387, 4
        %v11038 = vsel %vm796, %v11036, %v11037
        %v11039 = vrot.slane %v10388, 4
        %v11040 = vsel %vm796, %v11037, %v11039
        %v11041 = vrot.slane %v10389, 4
        %v11042 = vrot.slane %v10390, 4
        %v11043 = vsel %vm796, %v11041, %v11042
        %v11044 = vrot.slane %v10391, 4
        %v11045 = vsel %vm796, %v11042, %v11044
        %v11046 = vrot.slane %v10392, 4
        %v11047 = vrot.slane %v10393, 4
        %v11048 = vsel %vm796, %v11046, %v11047
        %v11049 = vrot.slane %v10394, 4
        %v11050 = vsel %vm796, %v11047, %v11049
        %11051 = vrot.lane.b32.xlu0 %v10973, 12
        %v11052 = vpop.permute.xlu0 %11051
        %11053 = vrot.lane.b32.xlu0 %v10975, 12
        %v11054 = vpop.permute.xlu0 %11053
        %11055 = vrot.lane.b32.xlu0 %v10978, 12
        %v11056 = vpop.permute.xlu0 %11055
        %11057 = vrot.lane.b32.xlu0 %v10980, 12
        %v11058 = vpop.permute.xlu0 %11057
        %11059 = vrot.lane.b32.xlu0 %v10983, 12
        %v11060 = vpop.permute.xlu0 %11059
        %11061 = vrot.lane.b32.xlu0 %v10985, 12
        %v11062 = vpop.permute.xlu0 %11061
        %11063 = vrot.lane.b32.xlu0 %v10988, 12
        %v11064 = vpop.permute.xlu0 %11063
        %11065 = vrot.lane.b32.xlu0 %v10990, 12
        %v11066 = vpop.permute.xlu0 %11065
        %11067 = vrot.lane.b32.xlu0 %v10993, 12
        %v11068 = vpop.permute.xlu0 %11067
        %11069 = vrot.lane.b32.xlu0 %v10995, 12
        %v11070 = vpop.permute.xlu0 %11069
        %11071 = vrot.lane.b32.xlu0 %v10998, 12
        %v11072 = vpop.permute.xlu0 %11071
        %11073 = vrot.lane.b32.xlu0 %v11000, 12
        %v11074 = vpop.permute.xlu0 %11073
        %11075 = vrot.lane.b32.xlu0 %v11003, 12
        %v11076 = vpop.permute.xlu0 %11075
        %11077 = vrot.lane.b32.xlu0 %v11005, 12
        %v11078 = vpop.permute.xlu0 %11077
        %11079 = vrot.lane.b32.xlu0 %v11008, 12
        %v11080 = vpop.permute.xlu0 %11079
        %11081 = vrot.lane.b32.xlu0 %v11010, 12
        %v11082 = vpop.permute.xlu0 %11081
        %11083 = vrot.lane.b32.xlu0 %v11013, 12
        %v11084 = vpop.permute.xlu0 %11083
        %11085 = vrot.lane.b32.xlu0 %v11015, 12
        %v11086 = vpop.permute.xlu0 %11085
        %11087 = vrot.lane.b32.xlu0 %v11018, 12
        %v11088 = vpop.permute.xlu0 %11087
        %11089 = vrot.lane.b32.xlu0 %v11020, 12
        %v11090 = vpop.permute.xlu0 %11089
        %11091 = vrot.lane.b32.xlu0 %v11023, 12
        %v11092 = vpop.permute.xlu0 %11091
        %11093 = vrot.lane.b32.xlu0 %v11025, 12
        %v11094 = vpop.permute.xlu0 %11093
        %11095 = vrot.lane.b32.xlu0 %v11028, 12
        %v11096 = vpop.permute.xlu0 %11095
        %11097 = vrot.lane.b32.xlu0 %v11030, 12
        %v11098 = vpop.permute.xlu0 %11097
        %11099 = vrot.lane.b32.xlu0 %v11033, 12
        %v11100 = vpop.permute.xlu0 %11099
        %11101 = vrot.lane.b32.xlu0 %v11035, 12
        %v11102 = vpop.permute.xlu0 %11101
        %11103 = vrot.lane.b32.xlu0 %v11038, 12
        %v11104 = vpop.permute.xlu0 %11103
        %11105 = vrot.lane.b32.xlu0 %v11040, 12
        %v11106 = vpop.permute.xlu0 %11105
        %11107 = vrot.lane.b32.xlu0 %v11043, 12
        %v11108 = vpop.permute.xlu0 %11107
        %11109 = vrot.lane.b32.xlu0 %v11045, 12
        %v11110 = vpop.permute.xlu0 %11109
        %11111 = vrot.lane.b32.xlu0 %v11048, 12
        %v11112 = vpop.permute.xlu0 %11111
        %11113 = vrot.lane.b32.xlu0 %v11050, 12
        %v11114 = vpop.permute.xlu0 %11113
        %v11147 = vrot.slane %v10347, 5
        %v11148 = vrot.slane %v10348, 5
        %v11149 = vsel %vm973, %v11147, %v11148
        %v11150 = vrot.slane %v10349, 5
        %v11151 = vsel %vm973, %v11148, %v11150
        %v11152 = vrot.slane %v10350, 5
        %v11153 = vrot.slane %v10351, 5
        %v11154 = vsel %vm973, %v11152, %v11153
        %v11155 = vrot.slane %v10352, 5
        %v11156 = vsel %vm973, %v11153, %v11155
        %v11157 = vrot.slane %v10353, 5
        %v11158 = vrot.slane %v10354, 5
        %v11159 = vsel %vm973, %v11157, %v11158
        %v11160 = vrot.slane %v10355, 5
        %v11161 = vsel %vm973, %v11158, %v11160
        %v11162 = vrot.slane %v10356, 5
        %v11163 = vrot.slane %v10357, 5
        %v11164 = vsel %vm973, %v11162, %v11163
        %v11165 = vrot.slane %v10358, 5
        %v11166 = vsel %vm973, %v11163, %v11165
        %v11167 = vrot.slane %v10359, 5
        %v11168 = vrot.slane %v10360, 5
        %v11169 = vsel %vm973, %v11167, %v11168
        %v11170 = vrot.slane %v10361, 5
        %v11171 = vsel %vm973, %v11168, %v11170
        %v11172 = vrot.slane %v10362, 5
        %v11173 = vrot.slane %v10363, 5
        %v11174 = vsel %vm973, %v11172, %v11173
        %v11175 = vrot.slane %v10364, 5
        %v11176 = vsel %vm973, %v11173, %v11175
        %v11177 = vrot.slane %v10365, 5
        %v11178 = vrot.slane %v10366, 5
        %v11179 = vsel %vm973, %v11177, %v11178
        %v11180 = vrot.slane %v10367, 5
        %v11181 = vsel %vm973, %v11178, %v11180
        %v11182 = vrot.slane %v10368, 5
        %v11183 = vrot.slane %v10369, 5
        %v11184 = vsel %vm973, %v11182, %v11183
        %v11185 = vrot.slane %v10370, 5
        %v11186 = vsel %vm973, %v11183, %v11185
        %v11187 = vrot.slane %v10371, 5
        %v11188 = vrot.slane %v10372, 5
        %v11189 = vsel %vm973, %v11187, %v11188
        %v11190 = vrot.slane %v10373, 5
        %v11191 = vsel %vm973, %v11188, %v11190
        %v11192 = vrot.slane %v10374, 5
        %v11193 = vrot.slane %v10375, 5
        %v11194 = vsel %vm973, %v11192, %v11193
        %v11195 = vrot.slane %v10376, 5
        %v11196 = vsel %vm973, %v11193, %v11195
        %v11197 = vrot.slane %v10377, 5
        %v11198 = vrot.slane %v10378, 5
        %v11199 = vsel %vm973, %v11197, %v11198
        %v11200 = vrot.slane %v10379, 5
        %v11201 = vsel %vm973, %v11198, %v11200
        %v11202 = vrot.slane %v10380, 5
        %v11203 = vrot.slane %v10381, 5
        %v11204 = vsel %vm973, %v11202, %v11203
        %v11205 = vrot.slane %v10382, 5
        %v11206 = vsel %vm973, %v11203, %v11205
        %v11207 = vrot.slane %v10383, 5
        %v11208 = vrot.slane %v10384, 5
        %v11209 = vsel %vm973, %v11207, %v11208
        %v11210 = vrot.slane %v10385, 5
        %v11211 = vsel %vm973, %v11208, %v11210
        %v11212 = vrot.slane %v10386, 5
        %v11213 = vrot.slane %v10387, 5
        %v11214 = vsel %vm973, %v11212, %v11213
        %v11215 = vrot.slane %v10388, 5
        %v11216 = vsel %vm973, %v11213, %v11215
        %v11217 = vrot.slane %v10389, 5
        %v11218 = vrot.slane %v10390, 5
        %v11219 = vsel %vm973, %v11217, %v11218
        %v11220 = vrot.slane %v10391, 5
        %v11221 = vsel %vm973, %v11218, %v11220
        %v11222 = vrot.slane %v10392, 5
        %v11223 = vrot.slane %v10393, 5
        %v11224 = vsel %vm973, %v11222, %v11223
        %v11225 = vrot.slane %v10394, 5
        %v11226 = vsel %vm973, %v11223, %v11225
        %11227 = vrot.lane.b32.xlu0 %v11149, 15
        %v11228 = vpop.permute.xlu0 %11227
        %11229 = vrot.lane.b32.xlu0 %v11151, 15
        %v11230 = vpop.permute.xlu0 %11229
        %11231 = vrot.lane.b32.xlu0 %v11154, 15
        %v11232 = vpop.permute.xlu0 %11231
        %11233 = vrot.lane.b32.xlu0 %v11156, 15
        %v11234 = vpop.permute.xlu0 %11233
        %11235 = vrot.lane.b32.xlu0 %v11159, 15
        %v11236 = vpop.permute.xlu0 %11235
        %11237 = vrot.lane.b32.xlu0 %v11161, 15
        %v11238 = vpop.permute.xlu0 %11237
        %11239 = vrot.lane.b32.xlu0 %v11164, 15
        %v11240 = vpop.permute.xlu0 %11239
        %11241 = vrot.lane.b32.xlu0 %v11166, 15
        %v11242 = vpop.permute.xlu0 %11241
        %11243 = vrot.lane.b32.xlu0 %v11169, 15
        %v11244 = vpop.permute.xlu0 %11243
        %11245 = vrot.lane.b32.xlu0 %v11171, 15
        %v11246 = vpop.permute.xlu0 %11245
        %11247 = vrot.lane.b32.xlu0 %v11174, 15
        %v11248 = vpop.permute.xlu0 %11247
        %11249 = vrot.lane.b32.xlu0 %v11176, 15
        %v11250 = vpop.permute.xlu0 %11249
        %11251 = vrot.lane.b32.xlu0 %v11179, 15
        %v11252 = vpop.permute.xlu0 %11251
        %11253 = vrot.lane.b32.xlu0 %v11181, 15
        %v11254 = vpop.permute.xlu0 %11253
        %11255 = vrot.lane.b32.xlu0 %v11184, 15
        %v11256 = vpop.permute.xlu0 %11255
        %11257 = vrot.lane.b32.xlu0 %v11186, 15
        %v11258 = vpop.permute.xlu0 %11257
        %11259 = vrot.lane.b32.xlu0 %v11189, 15
        %v11260 = vpop.permute.xlu0 %11259
        %11261 = vrot.lane.b32.xlu0 %v11191, 15
        %v11262 = vpop.permute.xlu0 %11261
        %11263 = vrot.lane.b32.xlu0 %v11194, 15
        %v11264 = vpop.permute.xlu0 %11263
        %11265 = vrot.lane.b32.xlu0 %v11196, 15
        %v11266 = vpop.permute.xlu0 %11265
        %11267 = vrot.lane.b32.xlu0 %v11199, 15
        %v11268 = vpop.permute.xlu0 %11267
        %11269 = vrot.lane.b32.xlu0 %v11201, 15
        %v11270 = vpop.permute.xlu0 %11269
        %11271 = vrot.lane.b32.xlu0 %v11204, 15
        %v11272 = vpop.permute.xlu0 %11271
        %11273 = vrot.lane.b32.xlu0 %v11206, 15
        %v11274 = vpop.permute.xlu0 %11273
        %11275 = vrot.lane.b32.xlu0 %v11209, 15
        %v11276 = vpop.permute.xlu0 %11275
        %11277 = vrot.lane.b32.xlu0 %v11211, 15
        %v11278 = vpop.permute.xlu0 %11277
        %11279 = vrot.lane.b32.xlu0 %v11214, 15
        %v11280 = vpop.permute.xlu0 %11279
        %11281 = vrot.lane.b32.xlu0 %v11216, 15
        %v11282 = vpop.permute.xlu0 %11281
        %11283 = vrot.lane.b32.xlu0 %v11219, 15
        %v11284 = vpop.permute.xlu0 %11283
        %11285 = vrot.lane.b32.xlu0 %v11221, 15
        %v11286 = vpop.permute.xlu0 %11285
        %11287 = vrot.lane.b32.xlu0 %v11224, 15
        %v11288 = vpop.permute.xlu0 %11287
        %11289 = vrot.lane.b32.xlu0 %v11226, 15
        %v11290 = vpop.permute.xlu0 %11289
        %v11323 = vrot.slane %v10347, 6
        %v11324 = vrot.slane %v10348, 6
        %v11325 = vsel %vm1150, %v11323, %v11324
        %v11326 = vrot.slane %v10349, 6
        %v11327 = vsel %vm1150, %v11324, %v11326
        %v11328 = vrot.slane %v10350, 6
        %v11329 = vrot.slane %v10351, 6
        %v11330 = vsel %vm1150, %v11328, %v11329
        %v11331 = vrot.slane %v10352, 6
        %v11332 = vsel %vm1150, %v11329, %v11331
        %v11333 = vrot.slane %v10353, 6
        %v11334 = vrot.slane %v10354, 6
        %v11335 = vsel %vm1150, %v11333, %v11334
        %v11336 = vrot.slane %v10355, 6
        %v11337 = vsel %vm1150, %v11334, %v11336
        %v11338 = vrot.slane %v10356, 6
        %v11339 = vrot.slane %v10357, 6
        %v11340 = vsel %vm1150, %v11338, %v11339
        %v11341 = vrot.slane %v10358, 6
        %v11342 = vsel %vm1150, %v11339, %v11341
        %v11343 = vrot.slane %v10359, 6
        %v11344 = vrot.slane %v10360, 6
        %v11345 = vsel %vm1150, %v11343, %v11344
        %v11346 = vrot.slane %v10361, 6
        %v11347 = vsel %vm1150, %v11344, %v11346
        %v11348 = vrot.slane %v10362, 6
        %v11349 = vrot.slane %v10363, 6
        %v11350 = vsel %vm1150, %v11348, %v11349
        %v11351 = vrot.slane %v10364, 6
        %v11352 = vsel %vm1150, %v11349, %v11351
        %v11353 = vrot.slane %v10365, 6
        %v11354 = vrot.slane %v10366, 6
        %v11355 = vsel %vm1150, %v11353, %v11354
        %v11356 = vrot.slane %v10367, 6
        %v11357 = vsel %vm1150, %v11354, %v11356
        %v11358 = vrot.slane %v10368, 6
        %v11359 = vrot.slane %v10369, 6
        %v11360 = vsel %vm1150, %v11358, %v11359
        %v11361 = vrot.slane %v10370, 6
        %v11362 = vsel %vm1150, %v11359, %v11361
        %v11363 = vrot.slane %v10371, 6
        %v11364 = vrot.slane %v10372, 6
        %v11365 = vsel %vm1150, %v11363, %v11364
        %v11366 = vrot.slane %v10373, 6
        %v11367 = vsel %vm1150, %v11364, %v11366
        %v11368 = vrot.slane %v10374, 6
        %v11369 = vrot.slane %v10375, 6
        %v11370 = vsel %vm1150, %v11368, %v11369
        %v11371 = vrot.slane %v10376, 6
        %v11372 = vsel %vm1150, %v11369, %v11371
        %v11373 = vrot.slane %v10377, 6
        %v11374 = vrot.slane %v10378, 6
        %v11375 = vsel %vm1150, %v11373, %v11374
        %v11376 = vrot.slane %v10379, 6
        %v11377 = vsel %vm1150, %v11374, %v11376
        %v11378 = vrot.slane %v10380, 6
        %v11379 = vrot.slane %v10381, 6
        %v11380 = vsel %vm1150, %v11378, %v11379
        %v11381 = vrot.slane %v10382, 6
        %v11382 = vsel %vm1150, %v11379, %v11381
        %v11383 = vrot.slane %v10383, 6
        %v11384 = vrot.slane %v10384, 6
        %v11385 = vsel %vm1150, %v11383, %v11384
        %v11386 = vrot.slane %v10385, 6
        %v11387 = vsel %vm1150, %v11384, %v11386
        %v11388 = vrot.slane %v10386, 6
        %v11389 = vrot.slane %v10387, 6
        %v11390 = vsel %vm1150, %v11388, %v11389
        %v11391 = vrot.slane %v10388, 6
        %v11392 = vsel %vm1150, %v11389, %v11391
        %v11393 = vrot.slane %v10389, 6
        %v11394 = vrot.slane %v10390, 6
        %v11395 = vsel %vm1150, %v11393, %v11394
        %v11396 = vrot.slane %v10391, 6
        %v11397 = vsel %vm1150, %v11394, %v11396
        %v11398 = vrot.slane %v10392, 6
        %v11399 = vrot.slane %v10393, 6
        %v11400 = vsel %vm1150, %v11398, %v11399
        %v11401 = vrot.slane %v10394, 6
        %v11402 = vsel %vm1150, %v11399, %v11401
        %11403 = vrot.lane.b32.xlu0 %v11325, 18
        %v11404 = vpop.permute.xlu0 %11403
        %11405 = vrot.lane.b32.xlu0 %v11327, 18
        %v11406 = vpop.permute.xlu0 %11405
        %11407 = vrot.lane.b32.xlu0 %v11330, 18
        %v11408 = vpop.permute.xlu0 %11407
        %11409 = vrot.lane.b32.xlu0 %v11332, 18
        %v11410 = vpop.permute.xlu0 %11409
        %11411 = vrot.lane.b32.xlu0 %v11335, 18
        %v11412 = vpop.permute.xlu0 %11411
        %11413 = vrot.lane.b32.xlu0 %v11337, 18
        %v11414 = vpop.permute.xlu0 %11413
        %11415 = vrot.lane.b32.xlu0 %v11340, 18
        %v11416 = vpop.permute.xlu0 %11415
        %11417 = vrot.lane.b32.xlu0 %v11342, 18
        %v11418 = vpop.permute.xlu0 %11417
        %11419 = vrot.lane.b32.xlu0 %v11345, 18
        %v11420 = vpop.permute.xlu0 %11419
        %11421 = vrot.lane.b32.xlu0 %v11347, 18
        %v11422 = vpop.permute.xlu0 %11421
        %11423 = vrot.lane.b32.xlu0 %v11350, 18
        %v11424 = vpop.permute.xlu0 %11423
        %11425 = vrot.lane.b32.xlu0 %v11352, 18
        %v11426 = vpop.permute.xlu0 %11425
        %11427 = vrot.lane.b32.xlu0 %v11355, 18
        %v11428 = vpop.permute.xlu0 %11427
        %11429 = vrot.lane.b32.xlu0 %v11357, 18
        %v11430 = vpop.permute.xlu0 %11429
        %11431 = vrot.lane.b32.xlu0 %v11360, 18
        %v11432 = vpop.permute.xlu0 %11431
        %11433 = vrot.lane.b32.xlu0 %v11362, 18
        %v11434 = vpop.permute.xlu0 %11433
        %11435 = vrot.lane.b32.xlu0 %v11365, 18
        %v11436 = vpop.permute.xlu0 %11435
        %11437 = vrot.lane.b32.xlu0 %v11367, 18
        %v11438 = vpop.permute.xlu0 %11437
        %11439 = vrot.lane.b32.xlu0 %v11370, 18
        %v11440 = vpop.permute.xlu0 %11439
        %11441 = vrot.lane.b32.xlu0 %v11372, 18
        %v11442 = vpop.permute.xlu0 %11441
        %11443 = vrot.lane.b32.xlu0 %v11375, 18
        %v11444 = vpop.permute.xlu0 %11443
        %11445 = vrot.lane.b32.xlu0 %v11377, 18
        %v11446 = vpop.permute.xlu0 %11445
        %11447 = vrot.lane.b32.xlu0 %v11380, 18
        %v11448 = vpop.permute.xlu0 %11447
        %11449 = vrot.lane.b32.xlu0 %v11382, 18
        %v11450 = vpop.permute.xlu0 %11449
        %11451 = vrot.lane.b32.xlu0 %v11385, 18
        %v11452 = vpop.permute.xlu0 %11451
        %11453 = vrot.lane.b32.xlu0 %v11387, 18
        %v11454 = vpop.permute.xlu0 %11453
        %11455 = vrot.lane.b32.xlu0 %v11390, 18
        %v11456 = vpop.permute.xlu0 %11455
        %11457 = vrot.lane.b32.xlu0 %v11392, 18
        %v11458 = vpop.permute.xlu0 %11457
        %11459 = vrot.lane.b32.xlu0 %v11395, 18
        %v11460 = vpop.permute.xlu0 %11459
        %11461 = vrot.lane.b32.xlu0 %v11397, 18
        %v11462 = vpop.permute.xlu0 %11461
        %11463 = vrot.lane.b32.xlu0 %v11400, 18
        %v11464 = vpop.permute.xlu0 %11463
        %11465 = vrot.lane.b32.xlu0 %v11402, 18
        %v11466 = vpop.permute.xlu0 %11465
        %v11499 = vsel %vm1327, %v10347, %v10524
        %v11500 = vsel %vm1327, %v10348, %v10526
        %v11501 = vsel %vm1327, %v10350, %v10528
        %v11502 = vsel %vm1327, %v10351, %v10530
        %v11503 = vsel %vm1327, %v10353, %v10532
        %v11504 = vsel %vm1327, %v10354, %v10534
        %v11505 = vsel %vm1327, %v10356, %v10536
        %v11506 = vsel %vm1327, %v10357, %v10538
        %v11507 = vsel %vm1327, %v10359, %v10540
        %v11508 = vsel %vm1327, %v10360, %v10542
        %v11509 = vsel %vm1327, %v10362, %v10544
        %v11510 = vsel %vm1327, %v10363, %v10546
        %v11511 = vsel %vm1327, %v10365, %v10548
        %v11512 = vsel %vm1327, %v10366, %v10550
        %v11513 = vsel %vm1327, %v10368, %v10552
        %v11514 = vsel %vm1327, %v10369, %v10554
        %v11515 = vsel %vm1327, %v10371, %v10556
        %v11516 = vsel %vm1327, %v10372, %v10558
        %v11517 = vsel %vm1327, %v10374, %v10560
        %v11518 = vsel %vm1327, %v10375, %v10562
        %v11519 = vsel %vm1327, %v10377, %v10564
        %v11520 = vsel %vm1327, %v10378, %v10566
        %v11521 = vsel %vm1327, %v10380, %v10568
        %v11522 = vsel %vm1327, %v10381, %v10570
        %v11523 = vsel %vm1327, %v10383, %v10572
        %v11524 = vsel %vm1327, %v10384, %v10574
        %v11525 = vsel %vm1327, %v10386, %v10576
        %v11526 = vsel %vm1327, %v10387, %v10578
        %v11527 = vsel %vm1327, %v10389, %v10580
        %v11528 = vsel %vm1327, %v10390, %v10582
        %v11529 = vsel %vm1327, %v10392, %v10584
        %v11530 = vsel %vm1327, %v10393, %v10586
        %v11531 = vsel %vm1360, %v11499, %v10700
        %v11532 = vsel %vm1360, %v11500, %v10702
        %v11533 = vsel %vm1360, %v11501, %v10704
        %v11534 = vsel %vm1360, %v11502, %v10706
        %v11535 = vsel %vm1360, %v11503, %v10708
        %v11536 = vsel %vm1360, %v11504, %v10710
        %v11537 = vsel %vm1360, %v11505, %v10712
        %v11538 = vsel %vm1360, %v11506, %v10714
        %v11539 = vsel %vm1360, %v11507, %v10716
        %v11540 = vsel %vm1360, %v11508, %v10718
        %v11541 = vsel %vm1360, %v11509, %v10720
        %v11542 = vsel %vm1360, %v11510, %v10722
        %v11543 = vsel %vm1360, %v11511, %v10724
        %v11544 = vsel %vm1360, %v11512, %v10726
        %v11545 = vsel %vm1360, %v11513, %v10728
        %v11546 = vsel %vm1360, %v11514, %v10730
        %v11547 = vsel %vm1360, %v11515, %v10732
        %v11548 = vsel %vm1360, %v11516, %v10734
        %v11549 = vsel %vm1360, %v11517, %v10736
        %v11550 = vsel %vm1360, %v11518, %v10738
        %v11551 = vsel %vm1360, %v11519, %v10740
        %v11552 = vsel %vm1360, %v11520, %v10742
        %v11553 = vsel %vm1360, %v11521, %v10744
        %v11554 = vsel %vm1360, %v11522, %v10746
        %v11555 = vsel %vm1360, %v11523, %v10748
        %v11556 = vsel %vm1360, %v11524, %v10750
        %v11557 = vsel %vm1360, %v11525, %v10752
        %v11558 = vsel %vm1360, %v11526, %v10754
        %v11559 = vsel %vm1360, %v11527, %v10756
        %v11560 = vsel %vm1360, %v11528, %v10758
        %v11561 = vsel %vm1360, %v11529, %v10760
        %v11562 = vsel %vm1360, %v11530, %v10762
        %v11563 = vsel %vm1393, %v11531, %v10876
        %v11564 = vsel %vm1393, %v11532, %v10878
        %v11565 = vsel %vm1393, %v11533, %v10880
        %v11566 = vsel %vm1393, %v11534, %v10882
        %v11567 = vsel %vm1393, %v11535, %v10884
        %v11568 = vsel %vm1393, %v11536, %v10886
        %v11569 = vsel %vm1393, %v11537, %v10888
        %v11570 = vsel %vm1393, %v11538, %v10890
        %v11571 = vsel %vm1393, %v11539, %v10892
        %v11572 = vsel %vm1393, %v11540, %v10894
        %v11573 = vsel %vm1393, %v11541, %v10896
        %v11574 = vsel %vm1393, %v11542, %v10898
        %v11575 = vsel %vm1393, %v11543, %v10900
        %v11576 = vsel %vm1393, %v11544, %v10902
        %v11577 = vsel %vm1393, %v11545, %v10904
        %v11578 = vsel %vm1393, %v11546, %v10906
        %v11579 = vsel %vm1393, %v11547, %v10908
        %v11580 = vsel %vm1393, %v11548, %v10910
        %v11581 = vsel %vm1393, %v11549, %v10912
        %v11582 = vsel %vm1393, %v11550, %v10914
        %v11583 = vsel %vm1393, %v11551, %v10916
        %v11584 = vsel %vm1393, %v11552, %v10918
        %v11585 = vsel %vm1393, %v11553, %v10920
        %v11586 = vsel %vm1393, %v11554, %v10922
        %v11587 = vsel %vm1393, %v11555, %v10924
        %v11588 = vsel %vm1393, %v11556, %v10926
        %v11589 = vsel %vm1393, %v11557, %v10928
        %v11590 = vsel %vm1393, %v11558, %v10930
        %v11591 = vsel %vm1393, %v11559, %v10932
        %v11592 = vsel %vm1393, %v11560, %v10934
        %v11593 = vsel %vm1393, %v11561, %v10936
        %v11594 = vsel %vm1393, %v11562, %v10938
        %v11595 = vsel %vm1426, %v11563, %v11052
        %v11596 = vsel %vm1426, %v11564, %v11054
        %v11597 = vsel %vm1426, %v11565, %v11056
        %v11598 = vsel %vm1426, %v11566, %v11058
        %v11599 = vsel %vm1426, %v11567, %v11060
        %v11600 = vsel %vm1426, %v11568, %v11062
        %v11601 = vsel %vm1426, %v11569, %v11064
        %v11602 = vsel %vm1426, %v11570, %v11066
        %v11603 = vsel %vm1426, %v11571, %v11068
        %v11604 = vsel %vm1426, %v11572, %v11070
        %v11605 = vsel %vm1426, %v11573, %v11072
        %v11606 = vsel %vm1426, %v11574, %v11074
        %v11607 = vsel %vm1426, %v11575, %v11076
        %v11608 = vsel %vm1426, %v11576, %v11078
        %v11609 = vsel %vm1426, %v11577, %v11080
        %v11610 = vsel %vm1426, %v11578, %v11082
        %v11611 = vsel %vm1426, %v11579, %v11084
        %v11612 = vsel %vm1426, %v11580, %v11086
        %v11613 = vsel %vm1426, %v11581, %v11088
        %v11614 = vsel %vm1426, %v11582, %v11090
        %v11615 = vsel %vm1426, %v11583, %v11092
        %v11616 = vsel %vm1426, %v11584, %v11094
        %v11617 = vsel %vm1426, %v11585, %v11096
        %v11618 = vsel %vm1426, %v11586, %v11098
        %v11619 = vsel %vm1426, %v11587, %v11100
        %v11620 = vsel %vm1426, %v11588, %v11102
        %v11621 = vsel %vm1426, %v11589, %v11104
        %v11622 = vsel %vm1426, %v11590, %v11106
        %v11623 = vsel %vm1426, %v11591, %v11108
        %v11624 = vsel %vm1426, %v11592, %v11110
        %v11625 = vsel %vm1426, %v11593, %v11112
        %v11626 = vsel %vm1426, %v11594, %v11114
        %v11627 = vsel %vm1459, %v11595, %v11228
        %v11628 = vsel %vm1459, %v11596, %v11230
        %v11629 = vsel %vm1459, %v11597, %v11232
        %v11630 = vsel %vm1459, %v11598, %v11234
        %v11631 = vsel %vm1459, %v11599, %v11236
        %v11632 = vsel %vm1459, %v11600, %v11238
        %v11633 = vsel %vm1459, %v11601, %v11240
        %v11634 = vsel %vm1459, %v11602, %v11242
        %v11635 = vsel %vm1459, %v11603, %v11244
        %v11636 = vsel %vm1459, %v11604, %v11246
        %v11637 = vsel %vm1459, %v11605, %v11248
        %v11638 = vsel %vm1459, %v11606, %v11250
        %v11639 = vsel %vm1459, %v11607, %v11252
        %v11640 = vsel %vm1459, %v11608, %v11254
        %v11641 = vsel %vm1459, %v11609, %v11256
        %v11642 = vsel %vm1459, %v11610, %v11258
        %v11643 = vsel %vm1459, %v11611, %v11260
        %v11644 = vsel %vm1459, %v11612, %v11262
        %v11645 = vsel %vm1459, %v11613, %v11264
        %v11646 = vsel %vm1459, %v11614, %v11266
        %v11647 = vsel %vm1459, %v11615, %v11268
        %v11648 = vsel %vm1459, %v11616, %v11270
        %v11649 = vsel %vm1459, %v11617, %v11272
        %v11650 = vsel %vm1459, %v11618, %v11274
        %v11651 = vsel %vm1459, %v11619, %v11276
        %v11652 = vsel %vm1459, %v11620, %v11278
        %v11653 = vsel %vm1459, %v11621, %v11280
        %v11654 = vsel %vm1459, %v11622, %v11282
        %v11655 = vsel %vm1459, %v11623, %v11284
        %v11656 = vsel %vm1459, %v11624, %v11286
        %v11657 = vsel %vm1459, %v11625, %v11288
        %v11658 = vsel %vm1459, %v11626, %v11290
        %v11659 = vsel %vm1492, %v11627, %v11404
        %v11660 = vsel %vm1492, %v11628, %v11406
        %v11661 = vsel %vm1492, %v11629, %v11408
        %v11662 = vsel %vm1492, %v11630, %v11410
        %v11663 = vsel %vm1492, %v11631, %v11412
        %v11664 = vsel %vm1492, %v11632, %v11414
        %v11665 = vsel %vm1492, %v11633, %v11416
        %v11666 = vsel %vm1492, %v11634, %v11418
        %v11667 = vsel %vm1492, %v11635, %v11420
        %v11668 = vsel %vm1492, %v11636, %v11422
        %v11669 = vsel %vm1492, %v11637, %v11424
        %v11670 = vsel %vm1492, %v11638, %v11426
        %v11671 = vsel %vm1492, %v11639, %v11428
        %v11672 = vsel %vm1492, %v11640, %v11430
        %v11673 = vsel %vm1492, %v11641, %v11432
        %v11674 = vsel %vm1492, %v11642, %v11434
        %v11675 = vsel %vm1492, %v11643, %v11436
        %v11676 = vsel %vm1492, %v11644, %v11438
        %v11677 = vsel %vm1492, %v11645, %v11440
        %v11678 = vsel %vm1492, %v11646, %v11442
        %v11679 = vsel %vm1492, %v11647, %v11444
        %v11680 = vsel %vm1492, %v11648, %v11446
        %v11681 = vsel %vm1492, %v11649, %v11448
        %v11682 = vsel %vm1492, %v11650, %v11450
        %v11683 = vsel %vm1492, %v11651, %v11452
        %v11684 = vsel %vm1492, %v11652, %v11454
        %v11685 = vsel %vm1492, %v11653, %v11456
        %v11686 = vsel %vm1492, %v11654, %v11458
        %v11687 = vsel %vm1492, %v11655, %v11460
        %v11688 = vsel %vm1492, %v11656, %v11462
        %v11689 = vsel %vm1492, %v11657, %v11464
        %v11690 = vsel %vm1492, %v11658, %v11466
        %s11691 = scalar_lea.vmem %s1, 144
        %v11692 = vld [vmem:[%s11691] sm:$0xff]
        %v11693 = vld [vmem:[%s11691 + $0x8] sm:$0xff]
        %v11694 = vld [vmem:[%s11691 + $0x10] sm:$0x1f]
        %v11696 = vsel %vm2877, %v11659, 0
        %v11699 = vsel %vm2877, %v11660, 0
        %v11702 = vsel %vm2877, %v11661, 0
        %v11705 = vsel %vm2877, %v11662, 0
        %v11708 = vsel %vm2877, %v11663, 0
        %v11711 = vsel %vm2877, %v11664, 0
        %v11714 = vsel %vm2877, %v11665, 0
        %v11717 = vsel %vm2877, %v11666, 0
        %v11720 = vsel %vm2877, %v11667, 0
        %v11723 = vsel %vm2877, %v11668, 0
        %v11726 = vsel %vm2877, %v11669, 0
        %v11729 = vsel %vm2877, %v11670, 0
        %v11732 = vsel %vm2877, %v11671, 0
        %v11735 = vsel %vm2877, %v11672, 0
        %v11738 = vsel %vm2877, %v11673, 0
        %v11741 = vsel %vm2877, %v11674, 0
        %v11744 = vsel %vm2877, %v11675, 0
        %v11747 = vsel %vm2877, %v11676, 0
        %v11750 = vsel %vm2877, %v11677, 0
        %v11753 = vsel %vm2877, %v11678, 0
        %v11756 = vsel %vm2877, %v11679, 0
        %v11759 = vsel %vm2877, %v11680, 0
        %v11762 = vsel %vm2877, %v11681, 0
        %v11765 = vsel %vm2877, %v11682, 0
        %v11768 = vsel %vm2877, %v11683, 0
        %v11771 = vsel %vm2877, %v11684, 0
        %v11774 = vsel %vm2877, %v11685, 0
        %v11777 = vsel %vm2877, %v11686, 0
        %v11780 = vsel %vm2877, %v11687, 0
        %v11783 = vsel %vm2877, %v11688, 0
        %v11786 = vsel %vm2877, %v11689, 0
        %v11789 = vsel %vm2877, %v11690, 0
        %v11792 = vsel %vm619, %v11694, 0
        %11794 = vmatprep.subr.mxu0 0.0
        %11795 = vmatpush1.msra.mxu0 0.0
        %11796 = vmatprep.subr.mxu0 0.0
        %11797 = vmatpush1.msra.mxu0 0.0
        %11798 = vmatprep.subr.mxu0 0.0
        %11799 = vmatpush1.msra.mxu0 0.0
        %11800 = vmatprep.subr.mxu0 0.0
        %11801 = vmatpush1.msra.mxu0 0.0
        %11802 = vmatprep.subr.mxu0 0.0
        %11803 = vmatpush1.msra.mxu0 0.0
        %11804 = vmatprep.subr.mxu0 0.0
        %11805 = vmatpush1.msra.mxu0 0.0
        %11806 = vmatprep.subr.mxu0 0.0
        %11807 = vmatpush1.msra.mxu0 0.0
        %11808 = vmatprep.subr.mxu0 0.0
        %11809 = vmatpush1.msra.mxu0 0.0
        %11810 = vmatprep.subr.mxu0 0.0
        %11811 = vmatpush1.msra.mxu0 0.0
        %11812 = vmatprep.subr.mxu0 0.0
        %11813 = vmatpush1.msra.mxu0 0.0
        %11814 = vmatprep.subr.mxu0 0.0
        %11815 = vmatpush1.msra.mxu0 0.0
        %11816 = vmatprep.subr.mxu0 0.0
        %11817 = vmatpush1.msra.mxu0 0.0
        %11818 = vmatprep.subr.mxu0 0.0
        %11819 = vmatpush1.msra.mxu0 0.0
        %11820 = vmatprep.subr.mxu0 0.0
        %11821 = vmatpush1.msra.mxu0 %v11792
        %11822 = vmatprep.subr.mxu0 0.0
        %11823 = vmatpush1.msra.mxu0 %v11693
        %11824 = vmatprep.subr.mxu0 0.0
        %11825 = vmatpush1.msra.mxu0 %v11692
        %11826 = vmatprep.subr.mxu0 0.0
        %11827 = vmatpush2.msra.mxu0 0.0
        %11828 = vmatprep.subr.mxu0 0.0
        %11829 = vmatpush2.msra.mxu0 0.0
        %11830 = vmatprep.subr.mxu0 0.0
        %11831 = vmatpush2.msra.mxu0 0.0
        %11832 = vmatprep.subr.mxu0 0.0
        %11833 = vmatpush2.msra.mxu0 0.0
        %11834 = vmatprep.subr.mxu0 0.0
        %11835 = vmatpush2.msra.mxu0 0.0
        %11836 = vmatprep.subr.mxu0 0.0
        %11837 = vmatpush2.msra.mxu0 0.0
        %11838 = vmatprep.subr.mxu0 0.0
        %11839 = vmatpush2.msra.mxu0 0.0
        %11840 = vmatprep.subr.mxu0 0.0
        %11841 = vmatpush2.msra.mxu0 0.0
        %11842 = vmatprep.subr.mxu0 0.0
        %11843 = vmatpush2.msra.mxu0 0.0
        %11844 = vmatprep.subr.mxu0 0.0
        %11845 = vmatpush2.msra.mxu0 0.0
        %11846 = vmatprep.subr.mxu0 0.0
        %11847 = vmatpush2.msra.mxu0 0.0
        %11848 = vmatprep.subr.mxu0 0.0
        %11849 = vmatpush2.msra.mxu0 0.0
        %11850 = vmatprep.subr.mxu0 0.0
        %11851 = vmatpush2.msra.mxu0 0.0
        %11852 = vmatprep.subr.mxu0 0.0
        %11853 = vmatpush2.msra.mxu0 0.0
        %11854 = vmatprep.subr.mxu0 0.0
        %11855 = vmatpush2.msra.mxu0 0.0
        %11856 = vmatprep.subr.mxu0 0.0
        %11857 = vmatpush2.msra.mxu0 0.0
        %11858 = vmatprep.mubr.f32.mxu0 0.0
        %11859 = vmatmul.mubr.f32.gmra.mxu0 %v11696
        %v11860 = vpop.f32.mrf.mxu0
        %v11861 = vadd.f32 0.0, %v11860
        %v11862 = vpop.f32.mrf.mxu0
        %11863 = vmatprep.mubr.f32.mxu0 0.0
        %11864 = vmatmul.mubr.f32.gmra.mxu0 %v11699
        %v11865 = vpop.f32.mrf.mxu0
        %v11866 = vadd.f32 0.0, %v11865
        %v11867 = vpop.f32.mrf.mxu0
        %11868 = vmatprep.mubr.f32.mxu0 0.0
        %11869 = vmatmul.mubr.f32.gmra.mxu0 %v11702
        %v11870 = vpop.f32.mrf.mxu0
        %v11871 = vadd.f32 0.0, %v11870
        %v11872 = vpop.f32.mrf.mxu0
        %11873 = vmatprep.mubr.f32.mxu0 0.0
        %11874 = vmatmul.mubr.f32.gmra.mxu0 %v11705
        %v11875 = vpop.f32.mrf.mxu0
        %v11876 = vadd.f32 0.0, %v11875
        %v11877 = vpop.f32.mrf.mxu0
        %11878 = vmatprep.mubr.f32.mxu0 0.0
        %11879 = vmatmul.mubr.f32.gmra.mxu0 %v11708
        %v11880 = vpop.f32.mrf.mxu0
        %v11881 = vadd.f32 0.0, %v11880
        %v11882 = vpop.f32.mrf.mxu0
        %11883 = vmatprep.mubr.f32.mxu0 0.0
        %11884 = vmatmul.mubr.f32.gmra.mxu0 %v11711
        %v11885 = vpop.f32.mrf.mxu0
        %v11886 = vadd.f32 0.0, %v11885
        %v11887 = vpop.f32.mrf.mxu0
        %11888 = vmatprep.mubr.f32.mxu0 0.0
        %11889 = vmatmul.mubr.f32.gmra.mxu0 %v11714
        %v11890 = vpop.f32.mrf.mxu0
        %v11891 = vadd.f32 0.0, %v11890
        %v11892 = vpop.f32.mrf.mxu0
        %11893 = vmatprep.mubr.f32.mxu0 0.0
        %11894 = vmatmul.mubr.f32.gmra.mxu0 %v11717
        %v11895 = vpop.f32.mrf.mxu0
        %v11896 = vadd.f32 0.0, %v11895
        %v11897 = vpop.f32.mrf.mxu0
        %11898 = vmatprep.mubr.f32.mxu0 0.0
        %11899 = vmatmul.mubr.f32.gmra.mxu0 %v11720
        %v11900 = vpop.f32.mrf.mxu0
        %v11901 = vadd.f32 0.0, %v11900
        %v11902 = vpop.f32.mrf.mxu0
        %11903 = vmatprep.mubr.f32.mxu0 0.0
        %11904 = vmatmul.mubr.f32.gmra.mxu0 %v11723
        %v11905 = vpop.f32.mrf.mxu0
        %v11906 = vadd.f32 0.0, %v11905
        %v11907 = vpop.f32.mrf.mxu0
        %11908 = vmatprep.mubr.f32.mxu0 0.0
        %11909 = vmatmul.mubr.f32.gmra.mxu0 %v11726
        %v11910 = vpop.f32.mrf.mxu0
        %v11911 = vadd.f32 0.0, %v11910
        %v11912 = vpop.f32.mrf.mxu0
        %11913 = vmatprep.mubr.f32.mxu0 0.0
        %11914 = vmatmul.mubr.f32.gmra.mxu0 %v11729
        %v11915 = vpop.f32.mrf.mxu0
        %v11916 = vadd.f32 0.0, %v11915
        %v11917 = vpop.f32.mrf.mxu0
        %11918 = vmatprep.mubr.f32.mxu0 0.0
        %11919 = vmatmul.mubr.f32.gmra.mxu0 %v11732
        %v11920 = vpop.f32.mrf.mxu0
        %v11921 = vadd.f32 0.0, %v11920
        %v11922 = vpop.f32.mrf.mxu0
        %11923 = vmatprep.mubr.f32.mxu0 0.0
        %11924 = vmatmul.mubr.f32.gmra.mxu0 %v11735
        %v11925 = vpop.f32.mrf.mxu0
        %v11926 = vadd.f32 0.0, %v11925
        %v11927 = vpop.f32.mrf.mxu0
        %11928 = vmatprep.mubr.f32.mxu0 0.0
        %11929 = vmatmul.mubr.f32.gmra.mxu0 %v11738
        %v11930 = vpop.f32.mrf.mxu0
        %v11931 = vadd.f32 0.0, %v11930
        %v11932 = vpop.f32.mrf.mxu0
        %11933 = vmatprep.mubr.f32.mxu0 0.0
        %11934 = vmatmul.mubr.f32.gmra.mxu0 %v11741
        %v11935 = vpop.f32.mrf.mxu0
        %v11936 = vadd.f32 0.0, %v11935
        %v11937 = vpop.f32.mrf.mxu0
        %11938 = vmatprep.mubr.f32.mxu0 0.0
        %11939 = vmatmul.mubr.f32.gmra.mxu0 %v11744
        %v11940 = vpop.f32.mrf.mxu0
        %v11941 = vadd.f32 0.0, %v11940
        %v11942 = vpop.f32.mrf.mxu0
        %11943 = vmatprep.mubr.f32.mxu0 0.0
        %11944 = vmatmul.mubr.f32.gmra.mxu0 %v11747
        %v11945 = vpop.f32.mrf.mxu0
        %v11946 = vadd.f32 0.0, %v11945
        %v11947 = vpop.f32.mrf.mxu0
        %11948 = vmatprep.mubr.f32.mxu0 0.0
        %11949 = vmatmul.mubr.f32.gmra.mxu0 %v11750
        %v11950 = vpop.f32.mrf.mxu0
        %v11951 = vadd.f32 0.0, %v11950
        %v11952 = vpop.f32.mrf.mxu0
        %11953 = vmatprep.mubr.f32.mxu0 0.0
        %11954 = vmatmul.mubr.f32.gmra.mxu0 %v11753
        %v11955 = vpop.f32.mrf.mxu0
        %v11956 = vadd.f32 0.0, %v11955
        %v11957 = vpop.f32.mrf.mxu0
        %11958 = vmatprep.mubr.f32.mxu0 0.0
        %11959 = vmatmul.mubr.f32.gmra.mxu0 %v11756
        %v11960 = vpop.f32.mrf.mxu0
        %v11961 = vadd.f32 0.0, %v11960
        %v11962 = vpop.f32.mrf.mxu0
        %11963 = vmatprep.mubr.f32.mxu0 0.0
        %11964 = vmatmul.mubr.f32.gmra.mxu0 %v11759
        %v11965 = vpop.f32.mrf.mxu0
        %v11966 = vadd.f32 0.0, %v11965
        %v11967 = vpop.f32.mrf.mxu0
        %11968 = vmatprep.mubr.f32.mxu0 0.0
        %11969 = vmatmul.mubr.f32.gmra.mxu0 %v11762
        %v11970 = vpop.f32.mrf.mxu0
        %v11971 = vadd.f32 0.0, %v11970
        %v11972 = vpop.f32.mrf.mxu0
        %11973 = vmatprep.mubr.f32.mxu0 0.0
        %11974 = vmatmul.mubr.f32.gmra.mxu0 %v11765
        %v11975 = vpop.f32.mrf.mxu0
        %v11976 = vadd.f32 0.0, %v11975
        %v11977 = vpop.f32.mrf.mxu0
        %11978 = vmatprep.mubr.f32.mxu0 0.0
        %11979 = vmatmul.mubr.f32.gmra.mxu0 %v11768
        %v11980 = vpop.f32.mrf.mxu0
        %v11981 = vadd.f32 0.0, %v11980
        %v11982 = vpop.f32.mrf.mxu0
        %11983 = vmatprep.mubr.f32.mxu0 0.0
        %11984 = vmatmul.mubr.f32.gmra.mxu0 %v11771
        %v11985 = vpop.f32.mrf.mxu0
        %v11986 = vadd.f32 0.0, %v11985
        %v11987 = vpop.f32.mrf.mxu0
        %11988 = vmatprep.mubr.f32.mxu0 0.0
        %11989 = vmatmul.mubr.f32.gmra.mxu0 %v11774
        %v11990 = vpop.f32.mrf.mxu0
        %v11991 = vadd.f32 0.0, %v11990
        %v11992 = vpop.f32.mrf.mxu0
        %11993 = vmatprep.mubr.f32.mxu0 0.0
        %11994 = vmatmul.mubr.f32.gmra.mxu0 %v11777
        %v11995 = vpop.f32.mrf.mxu0
        %v11996 = vadd.f32 0.0, %v11995
        %v11997 = vpop.f32.mrf.mxu0
        %11998 = vmatprep.mubr.f32.mxu0 0.0
        %11999 = vmatmul.mubr.f32.gmra.mxu0 %v11780
        %v12000 = vpop.f32.mrf.mxu0
        %v12001 = vadd.f32 0.0, %v12000
        %v12002 = vpop.f32.mrf.mxu0
        %12003 = vmatprep.mubr.f32.mxu0 0.0
        %12004 = vmatmul.mubr.f32.gmra.mxu0 %v11783
        %v12005 = vpop.f32.mrf.mxu0
        %v12006 = vadd.f32 0.0, %v12005
        %v12007 = vpop.f32.mrf.mxu0
        %12008 = vmatprep.mubr.f32.mxu0 0.0
        %12009 = vmatmul.mubr.f32.gmra.mxu0 %v11786
        %v12010 = vpop.f32.mrf.mxu0
        %v12011 = vadd.f32 0.0, %v12010
        %v12012 = vpop.f32.mrf.mxu0
        %12013 = vmatprep.mubr.f32.mxu0 0.0
        %12014 = vmatmul.mubr.f32.gmra.mxu0 %v11789
        %v12015 = vpop.f32.mrf.mxu0
        %v12016 = vadd.f32 0.0, %v12015
        %v12017 = vpop.f32.mrf.mxu0
        %12018 = vdwg.mxu0
        %v12019 = vadd.f32 %v10314, %v11861
        %v12020 = vadd.f32 %v10315, %v11866
        %v12021 = vadd.f32 %v10316, %v11871
        %v12022 = vadd.f32 %v10317, %v11876
        %v12023 = vadd.f32 %v10318, %v11881
        %v12024 = vadd.f32 %v10319, %v11886
        %v12025 = vadd.f32 %v10320, %v11891
        %v12026 = vadd.f32 %v10321, %v11896
        %v12027 = vadd.f32 %v10322, %v11901
        %v12028 = vadd.f32 %v10323, %v11906
        %v12029 = vadd.f32 %v10324, %v11911
        %v12030 = vadd.f32 %v10325, %v11916
        %v12031 = vadd.f32 %v10326, %v11921
        %v12032 = vadd.f32 %v10327, %v11926
        %v12033 = vadd.f32 %v10328, %v11931
        %v12034 = vadd.f32 %v10329, %v11936
        %v12035 = vadd.f32 %v10330, %v11941
        %v12036 = vadd.f32 %v10331, %v11946
        %v12037 = vadd.f32 %v10332, %v11951
        %v12038 = vadd.f32 %v10333, %v11956
        %v12039 = vadd.f32 %v10334, %v11961
        %v12040 = vadd.f32 %v10335, %v11966
        %v12041 = vadd.f32 %v10336, %v11971
        %v12042 = vadd.f32 %v10337, %v11976
        %v12043 = vadd.f32 %v10338, %v11981
        %v12044 = vadd.f32 %v10339, %v11986
        %v12045 = vadd.f32 %v10340, %v11991
        %v12046 = vadd.f32 %v10341, %v11996
        %v12047 = vadd.f32 %v10342, %v12001
        %v12048 = vadd.f32 %v10343, %v12006
        %v12049 = vadd.f32 %v10344, %v12011
        %v12050 = vadd.f32 %v10345, %v12016
        %v12051 = vld [vmem:[%s2] sm:$0x1]
        %v12053 = vlaneseq
        %v12054 = vshrl.u32 %v12053, 7
        %v12055 = vsub.s32 0, %v12054
        %v12056 = vrot.slane %v12051, %v12055
        %v12058 = vadd.f32 %v12019, %v12056
        %v12059 = vadd.f32 %v12020, %v12056
        %v12060 = vadd.f32 %v12021, %v12056
        %v12061 = vadd.f32 %v12022, %v12056
        %v12062 = vadd.f32 %v12023, %v12056
        %v12063 = vadd.f32 %v12024, %v12056
        %v12064 = vadd.f32 %v12025, %v12056
        %v12065 = vadd.f32 %v12026, %v12056
        %v12066 = vadd.f32 %v12027, %v12056
        %v12067 = vadd.f32 %v12028, %v12056
        %v12068 = vadd.f32 %v12029, %v12056
        %v12069 = vadd.f32 %v12030, %v12056
        %v12070 = vadd.f32 %v12031, %v12056
        %v12071 = vadd.f32 %v12032, %v12056
        %v12072 = vadd.f32 %v12033, %v12056
        %v12073 = vadd.f32 %v12034, %v12056
        %v12074 = vadd.f32 %v12035, %v12056
        %v12075 = vadd.f32 %v12036, %v12056
        %v12076 = vadd.f32 %v12037, %v12056
        %v12077 = vadd.f32 %v12038, %v12056
        %v12078 = vadd.f32 %v12039, %v12056
        %v12079 = vadd.f32 %v12040, %v12056
        %v12080 = vadd.f32 %v12041, %v12056
        %v12081 = vadd.f32 %v12042, %v12056
        %v12082 = vadd.f32 %v12043, %v12056
        %v12083 = vadd.f32 %v12044, %v12056
        %v12084 = vadd.f32 %v12045, %v12056
        %v12085 = vadd.f32 %v12046, %v12056
        %v12086 = vadd.f32 %v12047, %v12056
        %v12087 = vadd.f32 %v12048, %v12056
        %v12088 = vadd.f32 %v12049, %v12056
        %v12089 = vadd.f32 %v12050, %v12056
        %v12090 = vmax.f32 %v12058, 0.0
        %v12091 = vmax.f32 %v12059, 0.0
        %v12092 = vmax.f32 %v12060, 0.0
        %v12093 = vmax.f32 %v12061, 0.0
        %v12094 = vmax.f32 %v12062, 0.0
        %v12095 = vmax.f32 %v12063, 0.0
        %v12096 = vmax.f32 %v12064, 0.0
        %v12097 = vmax.f32 %v12065, 0.0
        %v12098 = vmax.f32 %v12066, 0.0
        %v12099 = vmax.f32 %v12067, 0.0
        %v12100 = vmax.f32 %v12068, 0.0
        %v12101 = vmax.f32 %v12069, 0.0
        %v12102 = vmax.f32 %v12070, 0.0
        %v12103 = vmax.f32 %v12071, 0.0
        %v12104 = vmax.f32 %v12072, 0.0
        %v12105 = vmax.f32 %v12073, 0.0
        %v12106 = vmax.f32 %v12074, 0.0
        %v12107 = vmax.f32 %v12075, 0.0
        %v12108 = vmax.f32 %v12076, 0.0
        %v12109 = vmax.f32 %v12077, 0.0
        %v12110 = vmax.f32 %v12078, 0.0
        %v12111 = vmax.f32 %v12079, 0.0
        %v12112 = vmax.f32 %v12080, 0.0
        %v12113 = vmax.f32 %v12081, 0.0
        %v12114 = vmax.f32 %v12082, 0.0
        %v12115 = vmax.f32 %v12083, 0.0
        %v12116 = vmax.f32 %v12084, 0.0
        %v12117 = vmax.f32 %v12085, 0.0
        %v12118 = vmax.f32 %v12086, 0.0
        %v12119 = vmax.f32 %v12087, 0.0
        %v12120 = vmax.f32 %v12088, 0.0
        %v12121 = vmax.f32 %v12089, 0.0
        %vm12122 = vcmask 523264
        %12123 = vst.msk [vmem:[%s163] sm:$0xff] %vm12122, %v12090
        %12124 = vst.msk [vmem:[%s163 + $0x8] sm:$0xff] %vm12122, %v12091
        %12125 = vst.msk [vmem:[%s163 + $0x10] sm:$0xff] %vm12122, %v12092
        %12126 = vst.msk [vmem:[%s163 + $0x18] sm:$0xff] %vm12122, %v12093
        %12127 = vst.msk [vmem:[%s163 + $0x20] sm:$0xff] %vm12122, %v12094
        %12128 = vst.msk [vmem:[%s163 + $0x28] sm:$0xff] %vm12122, %v12095
        %12129 = vst.msk [vmem:[%s163 + $0x30] sm:$0xff] %vm12122, %v12096
        %12130 = vst.msk [vmem:[%s163 + $0x38] sm:$0xff] %vm12122, %v12097
        %12131 = vst.msk [vmem:[%s163 + $0x40] sm:$0xff] %vm12122, %v12098
        %12132 = vst.msk [vmem:[%s163 + $0x48] sm:$0xff] %vm12122, %v12099
        %12133 = vst.msk [vmem:[%s163 + $0x50] sm:$0xff] %vm12122, %v12100
        %12134 = vst.msk [vmem:[%s163 + $0x58] sm:$0xff] %vm12122, %v12101
        %12135 = vst.msk [vmem:[%s163 + $0x60] sm:$0xff] %vm12122, %v12102
        %12136 = vst.msk [vmem:[%s163 + $0x68] sm:$0xff] %vm12122, %v12103
        %12137 = vst.msk [vmem:[%s163 + $0x70] sm:$0xff] %vm12122, %v12104
        %12138 = vst.msk [vmem:[%s163 + $0x78] sm:$0xff] %vm12122, %v12105
        %12139 = vst.msk [vmem:[%s163 + $0x80] sm:$0xff] %vm12122, %v12106
        %12140 = vst.msk [vmem:[%s163 + $0x88] sm:$0xff] %vm12122, %v12107
        %12141 = vst.msk [vmem:[%s163 + $0x90] sm:$0xff] %vm12122, %v12108
        %12142 = vst.msk [vmem:[%s163 + $0x98] sm:$0xff] %vm12122, %v12109
        %12143 = vst.msk [vmem:[%s163 + $0xa0] sm:$0xff] %vm12122, %v12110
        %12144 = vst.msk [vmem:[%s163 + $0xa8] sm:$0xff] %vm12122, %v12111
        %12145 = vst.msk [vmem:[%s163 + $0xb0] sm:$0xff] %vm12122, %v12112
        %12146 = vst.msk [vmem:[%s163 + $0xb8] sm:$0xff] %vm12122, %v12113
        %12147 = vst.msk [vmem:[%s163 + $0xc0] sm:$0xff] %vm12122, %v12114
        %12148 = vst.msk [vmem:[%s163 + $0xc8] sm:$0xff] %vm12122, %v12115
        %12149 = vst.msk [vmem:[%s163 + $0xd0] sm:$0xff] %vm12122, %v12116
        %12150 = vst.msk [vmem:[%s163 + $0xd8] sm:$0xff] %vm12122, %v12117
        %12151 = vst.msk [vmem:[%s163 + $0xe0] sm:$0xff] %vm12122, %v12118
        %12152 = vst.msk [vmem:[%s163 + $0xe8] sm:$0xff] %vm12122, %v12119
        %12153 = vst.msk [vmem:[%s163 + $0xf0] sm:$0xff] %vm12122, %v12120
        %12154 = vst.msk [vmem:[%s163 + $0xf8] sm:$0xff] %vm12122, %v12121
        %s12155 = sand.u32 %s93, 1
        %s12156 = scalar_lea.sflag [#allocation3], %s12155
        %s12157 = sand.u32 %s93, 1
        %s12158 = smul.addr %s12157, 256
        %s12159 = scalar_lea.vmem [#allocation2], %s12158
        // Predicated region
        $region33: #{mul_forward.1} parent=31 // pred_check
          %p12160 = pneg %p103
        $region34: #{mul_forward.1} parent=31 // pred_check_branch
          %12162 = sbr.rel (%p12160) target = $region36
        $region35: #{mul_forward.1} parent=31 // pred_region
          %s12164 = ssub.s32 4096, 4096
          %12165 = vsyncadd %s12156, %s12164
          %s12166 = smul.addr %s17, 32
          %s12167 = smul.addr %s12166, 128
          %s12168 = scalar_lea.hbm %s3, %s12167
          %s12169 = sshll.u32 %s12159, 4
          %s12170 = int_to_ptr.vmem [resolvable:$true] %s12169
          %12175 = dma.vmem_to_hbm [thread:$0]  %s12170, 4096, %s12168, %s12156, 128, 128, 8
        $region36: #{mul_forward.1} parent=31 // pred_fallthru
          _
      $region32: #{mul_forward.1} parent=5 // pred_fallthru
        _
      %p12176 = scmp.le.s32.totalorder 2, %s12
      // Predicated region
      $region37: #{mul_forward.1} parent=5 // pred_check
        %p12177 = pneg %p12176
      $region38: #{mul_forward.1} parent=5 // pred_check_branch
        %12179 = sbr.rel (%p12177) target = $region40
      $region39: #{mul_forward.1} parent=5 // pred_region
        %s12180 = ssub.s32 %s12, 2
        // Predicated region
        $region41: #{mul_forward.1} parent=39 // pred_check
          %p12181 = pneg %p109
        $region42: #{mul_forward.1} parent=39 // pred_check_branch
          %12183 = sbr.rel (%p12181) target = $region44
        $region43: #{mul_forward.1} parent=39 // pred_region
          %s12184 = sand.u32 %s94, 1
          %s12185 = scalar_lea.sflag [#allocation3], %s12184
          %s12186 = sand.u32 %s94, 1
          %s12187 = smul.addr %s12186, 256
          %s12188 = scalar_lea.vmem [#allocation2], %s12187
          %12189 = dma.done %s12185, 4096
        $region44: #{mul_forward.1} parent=39 // pred_fallthru
          _
      $region40: #{mul_forward.1} parent=5 // pred_fallthru
        _
    $region6: #{mul_forward.1} parent=1 // loop_footer
      %s16 = sadd.s32 1, %s12
    $region7: #{mul_forward.1} parent=1 // loop_footer_branch
      %11 = sbr.rel target = $region3
    $region8: #{mul_forward.1} parent=1 // loop_exit
      _
    %12190 = vsyncpa [#allocation3], 1
    %s12191 = scalar_lea.sflag [#allocation3], 1
    %12192 = vsyncpa %s12191, 1

</llo_original>
